<compile_context>
chip_gen: v7x
topology: tpu7x:2x2x1
jax: 0.10.0
libtpu: 0.0.40
codegen_flags: <defaults>
</compile_context>

<pallas_src>
import math

import jax
import jax.numpy as jnp
import numpy as np
from jax.experimental import pallas as pl
from jax.experimental.pallas import tpu as pltpu

EPS = 1e-5                     # PyTorch BatchNorm2d default eps
TM_MAX = 1024                  # row-tile size for the M grid axis
LANE = 128                     # lane width: matmul-N padding granularity
SPEED_OF_LIGHT = 299792458.0 * 1000.0  # mm/s (as in the torch code)


def _round_up(x, m):
    return ((x + m - 1) // m) * m


def _pad_rows(m):
    """Choose (padded M, row tile).  16-granular (bf16 packs (16,128) tiles)."""
    if m <= TM_MAX:
        mp = _round_up(m, 16)
        return mp, mp
    return _round_up(m, TM_MAX), TM_MAX


def _pad_k(kd):
    """K padding: 128-lane multiple only for large K, 16 otherwise (avoid 4.7x blow-up of K=27)."""
    return _round_up(kd, 128) if kd >= 512 else _round_up(kd, 16)


def _vmem_limit_bytes():
    try:
        cap = int(pltpu.get_tpu_info().vmem_capacity_bytes)
        if cap >= 64 * 1024 * 1024:
            return min(64 * 1024 * 1024, (cap * 5) // 8)   # 64 MiB on v5e/v6e, 40 MiB on v7x
    except Exception:
        pass
    return 32 * 1024 * 1024


VMEM_LIMIT = _vmem_limit_bytes()
Y_SCRATCH_MAX = VMEM_LIMIT // 3     # budget for the resident pre-BN activation scratch


# ----------------------------------------------------------------------------- #
# Pallas kernels
# ----------------------------------------------------------------------------- #
def _make_fused_conv_bn_kernel(tm, cout, m_real, emit_oaff, mask_rows):
    """Single-call Conv(matmul)+BN(train)+ReLU.

    grid = (2, ntiles), both 'arbitrary'.  Pass 0: y = patches @ W into VMEM scratch +
    per-channel sum/sumsq.  Pass 1: z = relu(y*scale+shift) -> bf16 HBM (real Cout only),
    optionally also emitting (scale,shift) of z for a downstream standalone BatchNorm.
    Conv bias is omitted everywhere BN follows (exactly cancelled by mean subtraction)."""
    inv_n = 1.0 / float(m_real)

    def kernel(*refs):
        p_ref, w_ref, z_ref = refs[0], refs[1], refs[2]
        idx = 3
        oaff_ref = None
        if emit_oaff:
            oaff_ref = refs[idx]
            idx += 1
        y_buf, stat, aff = refs[idx], refs[idx + 1], refs[idx + 2]

        pp = pl.program_id(0)
        i = pl.program_id(1)

        @pl.when(pp == 0)
        def _pass_matmul():
            @pl.when(i == 0)
            def _():
                stat[...] = jnp.zeros_like(stat)

            y = jnp.dot(p_ref[...], w_ref[...], preferred_element_type=jnp.float32)
            y_buf[i] = y
            # padded patch rows are zero -> contribute nothing to the sums
            stat[0:1, :] += jnp.sum(y, axis=0, keepdims=True)
            stat[1:2, :] += jnp.sum(y * y, axis=0, keepdims=True)

        @pl.when(pp == 1)
        def _pass_affine():
            @pl.when(i == 0)
            def _():
                mean = stat[0:1, :] * inv_n
                var = jnp.maximum(stat[1:2, :] * inv_n - mean * mean, 0.0)
                sc = jax.lax.rsqrt(var + EPS)
                aff[0:1, :] = sc
                aff[1:2, :] = -mean * sc
                if emit_oaff:
                    stat[...] = jnp.zeros_like(stat)   # reuse for the output's stats

            y = y_buf[i]
            z = jnp.maximum(y * aff[0:1, :] + aff[1:2, :], 0.0)
            z_ref[...] = z[:, :cout].astype(z_ref.dtype)

            if emit_oaff:
                if mask_rows:
                    rid = i * tm + jax.lax.broadcasted_iota(jnp.int32, (tm, 1), 0)
                    zs = jnp.where(rid < m_real, z, 0.0)
                else:
                    zs = z
                stat[0:1, :] += jnp.sum(zs, axis=0, keepdims=True)
                stat[1:2, :] += jnp.sum(zs * zs, axis=0, keepdims=True)

                @pl.when(i == pl.num_programs(1) - 1)
                def _():
                    mean = stat[0:1, :] * inv_n
                    var = jnp.maximum(stat[1:2, :] * inv_n - mean * mean, 0.0)
                    sc = jax.lax.rsqrt(var + EPS)
                    oaff_ref[0:1, :] = sc
                    oaff_ref[1:2, :] = -mean * sc

    return kernel


def _make_convt_kernel(tm, cout, m_real, mask_rows, n_total):
    """ConvTranspose phase matmul + bias + ReLU, bf16 real-Cout output, fused output
    BN-affine ((scale,shift) of z) for the next decoder layer."""
    inv_n = 1.0 / float(n_total)

    def kernel(p_ref, w_ref, b_ref, z_ref, oaff_ref, stat):
        g = pl.program_id(0)
        i = pl.program_id(1)

        @pl.when((g == 0) & (i == 0))
        def _():
            stat[...] = jnp.zeros_like(stat)

        y = jnp.dot(p_ref[...], w_ref[...], preferred_element_type=jnp.float32)
        z = jnp.maximum(y + b_ref[...], 0.0)
        z_ref[...] = z[:, :cout].astype(z_ref.dtype)

        if mask_rows:
            rid = i * tm + jax.lax.broadcasted_iota(jnp.int32, (tm, 1), 0)
            zs = jnp.where(rid < m_real, z, 0.0)
        else:
            zs = z
        stat[0:1, :] += jnp.sum(zs, axis=0, keepdims=True)
        stat[1:2, :] += jnp.sum(zs * zs, axis=0, keepdims=True)

        @pl.when((g == pl.num_programs(0) - 1) & (i == pl.num_programs(1) - 1))
        def _():
            mean = stat[0:1, :] * inv_n
            var = jnp.maximum(stat[1:2, :] * inv_n - mean * mean, 0.0)
            sc = jax.lax.rsqrt(var + EPS)
            oaff_ref[0:1, :] = sc
            oaff_ref[1:2, :] = -mean * sc

    return kernel


def _final_combine_kernel(p_ref, w_ref, s_ref, wcb_ref, c_ref, o_ref):
    """Last ConvTranspose phase (Cout=1) fused with the 33->1 combine conv.
    consts row 0 = convT bias, row 1 = Wcb[0,0] (weight on the convT channel), row 2 = bcb."""
    u = jnp.dot(p_ref[...], w_ref[...], preferred_element_type=jnp.float32)
    u = jnp.maximum(u + c_ref[0:1, :], 0.0)
    v = jnp.dot(s_ref[...], wcb_ref[...], preferred_element_type=jnp.float32)
    o_ref[...] = u[:, 0:1] * c_ref[1:2, 0:1] + v[:, 0:1] + c_ref[2:3, 0:1]


# ----- fallback (two-call) kernels, used only when the y scratch would not fit VMEM ----- #
def _mm_stats_kernel(p_ref, w_ref, y_ref, st_ref):
    y = jnp.dot(p_ref[...], w_ref[...], preferred_element_type=jnp.float32)
    y_ref[...] = y.astype(y_ref.dtype)
    st_ref[0:1, :] = jnp.sum(y, axis=0, keepdims=True)
    st_ref[1:2, :] = jnp.sum(y * y, axis=0, keepdims=True)


def _make_affine_relu_kernel(tm, cout, m_real, mask_rows, emit_stats):
    def kernel(*refs):
        y_ref, a_ref, z_ref = refs[0], refs[1], refs[2]
        z = jnp.maximum(
            y_ref[...].astype(jnp.float32) * a_ref[0:1, :] + a_ref[1:2, :], 0.0)
        z_ref[...] = z[:, :cout].astype(z_ref.dtype)
        if emit_stats:
            st_ref = refs[3]
            if mask_rows:
                rid = (pl.program_id(0) * tm
                       + jax.lax.broadcasted_iota(jnp.int32, (tm, 1), 0))
                zs = jnp.where(rid < m_real, z, 0.0)
            else:
                zs = z
            st_ref[0:1, :] = jnp.sum(zs, axis=0, keepdims=True)
            st_ref[1:2, :] = jnp.sum(zs * zs, axis=0, keepdims=True)
    return kernel


# ----------------------------------------------------------------------------- #
# pallas_call wrappers
# ----------------------------------------------------------------------------- #
def _call_fused_conv_bn(p, w, *, tm, cout, coutp, m_real, emit, mask_rows):
    mp, kdp = p.shape
    ntiles = mp // tm
    out_shape = [jax.ShapeDtypeStruct((mp, cout), jnp.bfloat16)]
    out_specs = [pl.BlockSpec((tm, cout), lambda pp, i: (i * pp, 0))]
    if emit:
        out_shape.append(jax.ShapeDtypeStruct((2, coutp), jnp.float32))
        out_specs.append(pl.BlockSpec((2, coutp), lambda pp, i: (0, 0)))

    outs = pl.pallas_call(
        _make_fused_conv_bn_kernel(tm, cout, m_real, emit, mask_rows),
        out_shape=tuple(out_shape),
        grid=(2, ntiles),
        in_specs=[
            pl.BlockSpec((tm, kdp), lambda pp, i: (i * (1 - pp), 0)),   # no re-read in pass 1
            pl.BlockSpec((kdp, coutp), lambda pp, i: (0, 0)),           # resident weights
        ],
        out_specs=tuple(out_specs),
        scratch_shapes=[pltpu.VMEM((ntiles, tm, coutp), jnp.float32),   # resident y
                        pltpu.VMEM((2, coutp), jnp.float32),            # sum / sumsq
                        pltpu.VMEM((2, coutp), jnp.float32)],           # scale / shift
        compiler_params=pltpu.CompilerParams(
            dimension_semantics=("arbitrary", "arbitrary"),
            vmem_limit_bytes=VMEM_LIMIT),
    )(p, w)
    return (outs[0], outs[1]) if emit else (outs[0], None)


def _bn_affine_from_stats(stats, n):
    """stats (..., 2, C) partial (sum, sumsq) -> (2, C) = [scale; shift] (biased var, torch train)."""
    tot = stats.reshape(-1, 2, stats.shape[-1]).sum(axis=0)
    mean = tot[0] / n
    var = jnp.maximum(tot[1] / n - mean * mean, 0.0)
    sc = jax.lax.rsqrt(var + EPS)
    return jnp.stack([sc, -mean * sc], axis=0)


def _call_twopass_conv_bn(p, w, *, tm, cout, coutp, m_real, emit, mask_rows):
    """Fallback when the full pre-BN activation does not fit VMEM: bf16 y round trip."""
    mp, kdp = p.shape
    ntiles = mp // tm
    y, stats = pl.pallas_call(
        _mm_stats_kernel,
        out_shape=(jax.ShapeDtypeStruct((mp, coutp), jnp.bfloat16),
                   jax.ShapeDtypeStruct((ntiles, 2, coutp), jnp.float32)),
        grid=(ntiles,),
        in_specs=[pl.BlockSpec((tm, kdp), lambda i: (i, 0)),
                  pl.BlockSpec((kdp, coutp), lambda i: (0, 0))],
        out_specs=(pl.BlockSpec((tm, coutp), lambda i: (i, 0)),
                   pl.BlockSpec((None, 2, coutp), lambda i: (i, 0, 0))),
        compiler_params=pltpu.CompilerParams(
            dimension_semantics=("parallel",), vmem_limit_bytes=VMEM_LIMIT),
    )(p, w)
    aff = _bn_affine_from_stats(stats, m_real)

    out_shape = [jax.ShapeDtypeStruct((mp, cout), jnp.bfloat16)]
    out_specs = [pl.BlockSpec((tm, cout), lambda i: (i, 0))]
    if emit:
        out_shape.append(jax.ShapeDtypeStruct((ntiles, 2, coutp), jnp.float32))
        out_specs.append(pl.BlockSpec((None, 2, coutp), lambda i: (i, 0, 0)))
    outs = pl.pallas_call(
        _make_affine_relu_kernel(tm, cout, m_real, mask_rows, emit),
        out_shape=tuple(out_shape),
        grid=(ntiles,),
        in_specs=[pl.BlockSpec((tm, coutp), lambda i: (i, 0)),
                  pl.BlockSpec((2, coutp), lambda i: (0, 0))],
        out_specs=tuple(out_specs),
        compiler_params=pltpu.CompilerParams(
            dimension_semantics=("parallel",), vmem_limit_bytes=VMEM_LIMIT),
    )(y, aff)
    if emit:
        return outs[0], _bn_affine_from_stats(outs[1], m_real)
    return outs[0], None


# ----------------------------------------------------------------------------- #
# Plain-JAX glue: im2col and layer wrappers
# ----------------------------------------------------------------------------- #
def im2col(x_nhwc, kh, kw, stride, pad):
    B, H, W, C = x_nhwc.shape
    xp = jnp.pad(x_nhwc, ((0, 0), (pad, pad), (pad, pad), (0, 0)))
    Ho = (H + 2 * pad - kh) // stride + 1
    Wo = (W + 2 * pad - kw) // stride + 1
    cols = []
    for i in range(kh):
        for j in range(kw):
            cols.append(xp[:, i:i + stride * Ho:stride, j:j + stride * Wo:stride, :])
    patches = jnp.concatenate(cols, axis=-1)         # tap-major / channel-minor
    return patches.reshape(B * Ho * Wo, kh * kw * C), (B, Ho, Wo)


def conv2d_bn_relu(x, W, *, stride, pad, emit_out_affine=False, force_two_pass=False):
    """Conv2d (bias cancelled by BN) + BatchNorm2d(train) + ReLU.  x: NHWC, returns bf16 NHWC."""
    Cout, Cin, kh, kw = W.shape
    patches, (B, Ho, Wo) = im2col(x.astype(jnp.bfloat16), kh, kw, stride, pad)
    M, Kd = patches.shape
    w2d = jnp.transpose(W, (2, 3, 1, 0)).reshape(kh * kw * Cin, Cout)

    KdP = _pad_k(Kd)
    CoutP = _round_up(Cout, LANE)
    Mp, TM = _pad_rows(M)
    ntiles = Mp // TM
    p = jnp.pad(patches, ((0, Mp - M), (0, KdP - Kd)))
    w = jnp.pad(w2d, ((0, KdP - Kd), (0, CoutP - Cout))).astype(jnp.bfloat16)
    mask_rows = Mp != M

    y_bytes = ntiles * TM * CoutP * 4
    if force_two_pass or y_bytes > Y_SCRATCH_MAX:
        z, oaff = _call_twopass_conv_bn(p, w, tm=TM, cout=Cout, coutp=CoutP,
                                        m_real=M, emit=emit_out_affine,
                                        mask_rows=mask_rows)
    else:
        z, oaff = _call_fused_conv_bn(p, w, tm=TM, cout=Cout, coutp=CoutP,
                                      m_real=M, emit=emit_out_affine,
                                      mask_rows=mask_rows)
    out = z[:M, :].reshape(B, Ho, Wo, Cout)
    return out, oaff


def _convt_phase_inputs(x, bn_aff, Wt):
    """Fold the standalone BN into the patch gather and build the exact 4-phase
    sub-pixel decomposition of ConvTranspose2d(k=4, s=2, p=1)."""
    Cin, Cout = Wt.shape[0], Wt.shape[1]
    B, H, W_, _ = x.shape
    scale = bn_aff[0, :Cin].reshape(1, 1, 1, Cin)
    shift = bn_aff[1, :Cin].reshape(1, 1, 1, Cin)
    xbn = (x.astype(jnp.float32) * scale + shift).astype(jnp.bfloat16)
    xp = jnp.pad(xbn, ((0, 0), (1, 1), (1, 1), (0, 0)))     # zero pad AFTER BN (torch semantics)
    Wf = jnp.transpose(Wt[:, :, ::-1, ::-1], (2, 3, 0, 1))   # flipped taps (4,4,Cin,Cout)
    pats, wmats = [], []
    for ry in (0, 1):
        for rx in (0, 1):
            sub = xp[:, ry:ry + H + 1, rx:rx + W_ + 1, :]
            p2d, _ = im2col(sub, 2, 2, 1, 0)                       # no zero taps -> 4x fewer FLOPs
            pats.append(p2d)
            wmats.append(Wf[ry::2, rx::2].reshape(4 * Cin, Cout))
    return pats, wmats, (B, H, W_)


def convT_relu(x, bn_aff, Wt, b):
    """BatchNorm2d (affine from upstream kernel) -> ConvTranspose2d(k=4,s=2,p=1) -> ReLU.
    Returns (bf16 NHWC output, (2, CoutP) BN affine of the output)."""
    Cin, Cout = Wt.shape[0], Wt.shape[1]
    pats, wmats, (B, H, W_) = _convt_phase_inputs(x, bn_aff, Wt)

    M, Kd = pats[0].shape
    KdP = _pad_k(Kd)
    CoutP = _round_up(Cout, LANE)
    Mp, TM = _pad_rows(M)
    ntiles = Mp // TM
    P = jnp.pad(jnp.stack(pats, 0), ((0, 0), (0, Mp - M), (0, KdP - Kd)))
    Wm = jnp.pad(jnp.stack(wmats, 0),
                 ((0, 0), (0, KdP - Kd), (0, CoutP - Cout))).astype(jnp.bfloat16)
    bias = jnp.pad(b, (0, CoutP - Cout)).reshape(1, CoutP).astype(jnp.float32)
    mask_rows = Mp != M

    z, oaff = pl.pallas_call(
        _make_convt_kernel(TM, Cout, M, mask_rows, 4 * M),
        out_shape=(jax.ShapeDtypeStruct((4, Mp, Cout), jnp.bfloat16),
                   jax.ShapeDtypeStruct((2, CoutP), jnp.float32)),
        grid=(4, ntiles),
        in_specs=[pl.BlockSpec((None, TM, KdP), lambda g, i: (g, i, 0)),
                  pl.BlockSpec((None, KdP, CoutP), lambda g, i: (g, 0, 0)),
                  pl.BlockSpec((1, CoutP), lambda g, i: (0, 0))],
        out_specs=(pl.BlockSpec((None, TM, Cout), lambda g, i: (g, i, 0)),
                   pl.BlockSpec((2, CoutP), lambda g, i: (0, 0))),
        scratch_shapes=[pltpu.VMEM((2, CoutP), jnp.float32)],
        compiler_params=pltpu.CompilerParams(
            dimension_semantics=("arbitrary", "arbitrary"),
            vmem_limit_bytes=VMEM_LIMIT),
    )(P, Wm, bias)

    zz = z[:, :M, :].reshape(2, 2, B, H, W_, Cout)
    out = jnp.transpose(zz, (2, 3, 0, 4, 1, 5)).reshape(B, 2 * H, 2 * W_, Cout)
    return out, oaff


def convT_combine_final(x, bn_aff, Wt, b, x_skip, Wcb, bcb):
    """BN -> ConvTranspose2d(32->1) -> ReLU fused with the final 1x1 combine conv over
    cat([upsampled, skip]).  The skip tensor is read phase-strided; output last dim = 1."""
    Cin, Cout = Wt.shape[0], Wt.shape[1]
    Csk = x_skip.shape[-1]
    pats, wmats, (B, H, W_) = _convt_phase_inputs(x, bn_aff, Wt)
    skips = []
    for ry in (0, 1):
        for rx in (0, 1):
            skips.append(x_skip[:, ry::2, rx::2, :].reshape(B * H * W_, Csk))

    M, Kd = pats[0].shape
    KdP = _pad_k(Kd)
    CoutP = LANE                       # single output column padded to 128 for the MXU only
    Mp, TM = _pad_rows(M)
    ntiles = Mp // TM
    P = jnp.pad(jnp.stack(pats, 0), ((0, 0), (0, Mp - M), (0, KdP - Kd)))
    Wm = jnp.pad(jnp.stack(wmats, 0),
                 ((0, 0), (0, KdP - Kd), (0, CoutP - Cout))).astype(jnp.bfloat16)
    S = jnp.pad(jnp.stack(skips, 0).astype(jnp.bfloat16), ((0, 0), (0, Mp - M), (0, 0)))
    wcb_rest = jnp.pad(Wcb[0, 1:, 0, 0].reshape(Csk, 1),
                       ((0, 0), (0, LANE - 1))).astype(jnp.bfloat16)
    consts = jnp.stack([
        jnp.broadcast_to(b[0].astype(jnp.float32), (LANE,)),
        jnp.broadcast_to(Wcb[0, 0, 0, 0].astype(jnp.float32), (LANE,)),
        jnp.broadcast_to(bcb[0].astype(jnp.float32), (LANE,)),
    ], axis=0)

    out4 = pl.pallas_call(
        _final_combine_kernel,
        out_shape=jax.ShapeDtypeStruct((4, Mp, 1), jnp.float32),
        grid=(4, ntiles),
        in_specs=[pl.BlockSpec((None, TM, KdP), lambda g, i: (g, i, 0)),
                  pl.BlockSpec((None, KdP, CoutP), lambda g, i: (g, 0, 0)),
                  pl.BlockSpec((None, TM, Csk), lambda g, i: (g, i, 0)),
                  pl.BlockSpec((Csk, LANE), lambda g, i: (0, 0)),
                  pl.BlockSpec((3, LANE), lambda g, i: (0, 0))],
        out_specs=pl.BlockSpec((None, TM, 1), lambda g, i: (g, i, 0)),
        compiler_params=pltpu.CompilerParams(
            dimension_semantics=("parallel", "parallel"),
            vmem_limit_bytes=VMEM_LIMIT),
    )(P, Wm, S, wcb_rest, consts)

    zz = out4[:, :M, 0].reshape(2, 2, B, H, W_)
    return jnp.transpose(zz, (2, 3, 0, 4, 1)).reshape(B, 2 * H, 2 * W_)


# ----------------------------------------------------------------------------- #
# Brightness-value preprocessing (approximated externals; deterministic, plain JAX)
# ----------------------------------------------------------------------------- #
def get_ham_k3(N):
    K = 3
    mod = np.zeros((N, K), dtype=np.float32)
    dem = np.zeros((N, K), dtype=np.float32)
    mod_duty, dem_duty = 1.0 / 6.0, 1.0 / 2.0
    for k in range(K):
        mod[: int(round(mod_duty * N)), k] = 1.0 / mod_duty
    shifts = [0, N // 3, (2 * N) // 3]
    for k in range(K):
        dem[: int(round(dem_duty * N)), k] = 1.0
        dem[:, k] = np.roll(dem[:, k], shifts[k])
    return jnp.asarray(mod), jnp.asarray(dem)


def scale_mod(ModFs, tau, pAveSource, dt):
    avg = jnp.sum(ModFs * dt, axis=0, keepdims=True) / tau
    return ModFs * (pAveSource / avg)


def get_correlation_functions(ModFs, DemodFs, dt):
    F_mod = jnp.fft.rfft(ModFs, axis=0)
    F_dem = jnp.fft.rfft(DemodFs, axis=0)
    return jnp.fft.irfft(jnp.conj(F_mod) * F_dem, n=ModFs.shape[0], axis=0) * dt


def compute_brightness_vals(DemodFs, CorrFs, depths, pAmbient, beta, T, tau, dt, gamma):
    N = CorrFs.shape[0]
    dMax = SPEED_OF_LIGHT * tau / 2.0
    idx = (jnp.round(depths / dMax * N).astype(jnp.int32)) % N      # (B,H,W)
    kappas = jnp.mean(DemodFs, axis=0)                               # (K,)
    ambient = pAmbient * kappas * tau
    return gamma * beta * (T / tau) * (CorrFs[idx, :] + ambient[None, None, None, :])


# ----------------------------------------------------------------------------- #
# Parameters (deterministic init; shapes from CNN.__init__/network('sequential'))
# ----------------------------------------------------------------------------- #
def init_params(key):
    def conv_w(k, cout, cin, kh, kw):
        s = 1.0 / math.sqrt(cin * kh * kw)
        return jax.random.uniform(k, (cout, cin, kh, kw), jnp.float32, -s, s)

    def convT_w(k, cin, cout, kh, kw):
        s = 1.0 / math.sqrt(cout * kh * kw)
        return jax.random.uniform(k, (cin, cout, kh, kw), jnp.float32, -s, s)

    def bias(k, c, fan_in):
        s = 1.0 / math.sqrt(fan_in)
        return jax.random.uniform(k, (c,), jnp.float32, -s, s)

    keys = jax.random.split(key, 18)
    p = {}
    # conv biases of the conv+BN layers exist in torch but are exactly cancelled by BN -> unused
    p["Wd1"], p["bd1"] = conv_w(keys[0], 32, 3, 3, 3), bias(keys[1], 32, 3 * 9)
    p["Wd2"], p["bd2"] = conv_w(keys[2], 64, 32, 3, 3), bias(keys[3], 64, 32 * 9)
    p["Wd3"], p["bd3"] = conv_w(keys[4], 128, 64, 3, 3), bias(keys[5], 128, 64 * 9)
    p["Ws1"], p["bs1"] = conv_w(keys[6], 128, 128, 3, 3), bias(keys[7], 128, 128 * 9)
    p["Wu1"], p["bu1"] = convT_w(keys[8], 128, 64, 4, 4), bias(keys[9], 64, 64 * 16)
    p["Wu2"], p["bu2"] = convT_w(keys[10], 64, 32, 4, 4), bias(keys[11], 32, 32 * 16)
    p["Wu3"], p["bu3"] = convT_w(keys[12], 32, 1, 4, 4), bias(keys[13], 1, 1 * 16)
    p["Wsk"], p["bsk"] = conv_w(keys[14], 32, 3, 1, 1), bias(keys[15], 32, 3)
    p["Wcb"], p["bcb"] = conv_w(keys[16], 1, 33, 1, 1), bias(keys[17], 1, 33)
    return p


# ----------------------------------------------------------------------------- #
# Full forward pass (architecture = 'sequential')
# ----------------------------------------------------------------------------- #
def cnn_forward(gt_depths, params):
    # physics constants from CNN.__init__
    N = 10000
    dMax = 10000.0
    fMax = SPEED_OF_LIGHT / (2.0 * dMax)
    tauMin = 1.0 / fMax
    dt = tauMin / float(N)
    T = 0.1
    pAveSource = 10.0 ** 9
    pAveAmbient = 10.0 ** 6
    meanBeta = 1e-4
    tau = 1.0 / fMax
    gamma = 1.0 / (meanBeta * T * (pAveAmbient + pAveSource))

    ModFs, DemodFs = get_ham_k3(N)
    ModFs_scaled = scale_mod(ModFs, tauMin, pAveSource, dt)
    CorrFs = get_correlation_functions(ModFs_scaled, DemodFs, dt)
    # NOTE: NormCorrFs is computed in the torch forward but never used -> skipped.

    BVals = compute_brightness_vals(DemodFs, CorrFs, gt_depths,
                                    pAveAmbient, meanBeta, T, tau, dt, gamma)  # NHWC
    BVals = (BVals - jnp.mean(BVals)) / jnp.std(BVals, ddof=1)   # global norm: plain JAX

    # ----- CNN.network('sequential') -----
    x, _ = conv2d_bn_relu(BVals, params["Wd1"], stride=2, pad=1)
    x, _ = conv2d_bn_relu(x, params["Wd2"], stride=2, pad=1)
    x, _ = conv2d_bn_relu(x, params["Wd3"], stride=2, pad=1)
    x, aff1 = conv2d_bn_relu(x, params["Ws1"], stride=1, pad=1, emit_out_affine=True)

    x, aff2 = convT_relu(x, aff1, params["Wu1"], params["bu1"])
    x, aff3 = convT_relu(x, aff2, params["Wu2"], params["bu2"])

    x_skip, _ = conv2d_bn_relu(BVals, params["Wsk"], stride=1, pad=0)

    # last ConvTranspose (32->1) + ReLU + cat + 1x1 combine, fused in one kernel
    out = convT_combine_final(x, aff3, params["Wu3"], params["bu3"],
                              x_skip, params["Wcb"], params["bcb"])
    return out                                                   # torch.squeeze(out, 1)


# ----------------------------------------------------------------------------- #
if __name__ == "__main__":
    key = jax.random.PRNGKey(0)
    pkey, dkey = jax.random.split(key)
    params = init_params(pkey)

    # small deterministic depth map: B=2, H=W=16, depths in [0, dMax)
    gt_depths = jax.random.uniform(dkey, (2, 16, 16), jnp.float32, 0.0, 9999.0)

    fwd = jax.jit(cnn_forward)
    out = jax.block_until_ready(fwd(gt_depths, params))
    assert out.shape == (2, 16, 16) and out.dtype == jnp.float32
    assert bool(jnp.all(jnp.isfinite(out)))

    # consistency check: fused single-call conv+BN+ReLU vs the two-call fallback path
    xtest = jax.random.normal(jax.random.PRNGKey(1), (2, 16, 16, 3), jnp.float32)
    fused, _ = jax.jit(
        lambda a, w: conv2d_bn_relu(a, w, stride=2, pad=1))(xtest, params["Wd1"])
    twop, _ = jax.jit(
        lambda a, w: conv2d_bn_relu(a, w, stride=2, pad=1, force_two_pass=True)
    )(xtest, params["Wd1"])
    assert bool(jnp.allclose(fused.astype(jnp.float32), twop.astype(jnp.float32),
                             atol=0.1, rtol=0.1))

    print("KERNEL_OK")
</pallas_src>

<mosaic_0001>
module attributes {stable_mosaic.version = 11 : i64} {
  func.func @kernel(%arg0: i32, %arg1: i32, %arg2: memref<512x16xbf16, #tpu.memory_space<vmem>>, %arg3: memref<16x128xbf16, #tpu.memory_space<vmem>>, %arg4: memref<512x32xbf16, #tpu.memory_space<vmem>>, %arg5: memref<1x512x128xf32, #tpu.memory_space<vmem>>, %arg6: memref<2x128xf32, #tpu.memory_space<vmem>>, %arg7: memref<2x128xf32, #tpu.memory_space<vmem>>) attributes {dimension_semantics = [#tpu.dimension_semantics<arbitrary>, #tpu.dimension_semantics<arbitrary>], iteration_bounds = array<i64: 2, 1>, scalar_prefetch = 0 : i64, scratch_operands = 3 : i64, tpu.core_type = #tpu.core_type<tc>, window_params = [{transform_indices = @transform_0, window_bounds = array<i64: 512, 16>}, {pipeline_mode = #tpu.pipeline_mode<synchronous>, transform_indices = @transform_1, window_bounds = array<i64: 16, 128>}, {transform_indices = @transform_2, window_bounds = array<i64: 512, 32>}]} {
    %c0_i32 = arith.constant 0 : i32
    %0 = arith.cmpi eq, %arg0, %c0_i32 : i32
    %1 = arith.extui %0 : i1 to i32
    %c0_i32_0 = arith.constant 0 : i32
    %2 = arith.cmpi ne, %1, %c0_i32_0 : i32
    scf.if %2 {
      %c0_i32_2 = arith.constant 0 : i32
      %6 = arith.cmpi eq, %arg1, %c0_i32_2 : i32
      %7 = arith.extui %6 : i1 to i32
      %c0_i32_3 = arith.constant 0 : i32
      %8 = arith.cmpi ne, %7, %c0_i32_3 : i32
      scf.if %8 {
        %cst_18 = arith.constant 0.000000e+00 : f32
        %27 = vector.broadcast %cst_18 : f32 to vector<2x128xf32>
        %c0_19 = arith.constant 0 : index
        %c0_20 = arith.constant 0 : index
        %28 = vector.load %arg6[%c0_19, %c0_20] : memref<2x128xf32, #tpu.memory_space<vmem>>, vector<2x128xf32>
        tpu.vector_store %arg6[%c0_19, %c0_20], %27 {strides = array<i32>} : memref<2x128xf32, #tpu.memory_space<vmem>>, vector<2x128xf32>,
      } else {
      }
      %c0 = arith.constant 0 : index
      %c0_4 = arith.constant 0 : index
      %9 = vector.load %arg2[%c0, %c0_4] : memref<512x16xbf16, #tpu.memory_space<vmem>>, vector<512x16xbf16>
      %c0_5 = arith.constant 0 : index
      %c0_6 = arith.constant 0 : index
      %10 = vector.load %arg3[%c0_5, %c0_6] : memref<16x128xbf16, #tpu.memory_space<vmem>>, vector<16x128xbf16>
      %cst = arith.constant dense<0.000000e+00> : vector<512x128xf32>
      %11 = tpu.matmul %9, %10, %cst {dimension_numbers = #tpu.dot_dimension_numbers<[1], [0], [0], [1], [0, 0, 1, 1], [], []>} : vector<512x16xbf16>, vector<16x128xbf16>, vector<512x128xf32> -> vector<512x128xf32>
      %12 = arith.index_cast %arg1 : i32 to index
      %c0_7 = arith.constant 0 : index
      %c0_8 = arith.constant 0 : index
      %13 = vector.load %arg5[%12, %c0_7, %c0_8] : memref<1x512x128xf32, #tpu.memory_space<vmem>>, vector<1x512x128xf32>
      %14 = vector.shape_cast %13 : vector<1x512x128xf32> to vector<512x128xf32>
      %15 = vector.shape_cast %11 : vector<512x128xf32> to vector<1x512x128xf32>
      tpu.vector_store %arg5[%12, %c0_7, %c0_8], %15 {strides = array<i32>} : memref<1x512x128xf32, #tpu.memory_space<vmem>>, vector<1x512x128xf32>,
      %c0_9 = arith.constant 0 : index
      %c0_10 = arith.constant 0 : index
      %16 = vector.load %arg6[%c0_9, %c0_10] : memref<2x128xf32, #tpu.memory_space<vmem>>, vector<1x128xf32>
      %cst_11 = arith.constant dense<0.000000e+00> : vector<128xf32>
      %17 = vector.multi_reduction <add>, %11, %cst_11 [0] : vector<512x128xf32> to vector<128xf32>
      %18 = vector.shape_cast %17 : vector<128xf32> to vector<1x128xf32>
      %19 = arith.addf %16, %18 : vector<1x128xf32>
      %c0_12 = arith.constant 0 : index
      %c0_13 = arith.constant 0 : index
      %20 = vector.load %arg6[%c0_12, %c0_13] : memref<2x128xf32, #tpu.memory_space<vmem>>, vector<1x128xf32>
      tpu.vector_store %arg6[%c0_12, %c0_13], %19 {strides = array<i32>} : memref<2x128xf32, #tpu.memory_space<vmem>>, vector<1x128xf32>,
      %c1 = arith.constant 1 : index
      %c0_14 = arith.constant 0 : index
      %21 = vector.load %arg6[%c1, %c0_14] : memref<2x128xf32, #tpu.memory_space<vmem>>, vector<1x128xf32>
      %22 = arith.mulf %11, %11 : vector<512x128xf32>
      %cst_15 = arith.constant dense<0.000000e+00> : vector<128xf32>
      %23 = vector.multi_reduction <add>, %22, %cst_15 [0] : vector<512x128xf32> to vector<128xf32>
      %24 = vector.shape_cast %23 : vector<128xf32> to vector<1x128xf32>
      %25 = arith.addf %21, %24 : vector<1x128xf32>
      %c1_16 = arith.constant 1 : index
      %c0_17 = arith.constant 0 : index
      %26 = vector.load %arg6[%c1_16, %c0_17] : memref<2x128xf32, #tpu.memory_space<vmem>>, vector<1x128xf32>
      tpu.vector_store %arg6[%c1_16, %c0_17], %25 {strides = array<i32>} : memref<2x128xf32, #tpu.memory_space<vmem>>, vector<1x128xf32>,
    } else {
    }
    %c1_i32 = arith.constant 1 : i32
    %3 = arith.cmpi eq, %arg0, %c1_i32 : i32
    %4 = arith.extui %3 : i1 to i32
    %c0_i32_1 = arith.constant 0 : i32
    %5 = arith.cmpi ne, %4, %c0_i32_1 : i32
    scf.if %5 {
      %c0_i32_2 = arith.constant 0 : i32
      %6 = arith.cmpi eq, %arg1, %c0_i32_2 : i32
      %7 = arith.extui %6 : i1 to i32
      %c0_i32_3 = arith.constant 0 : i32
      %8 = arith.cmpi ne, %7, %c0_i32_3 : i32
      scf.if %8 {
        %c0_10 = arith.constant 0 : index
        %c0_11 = arith.constant 0 : index
        %23 = vector.load %arg6[%c0_10, %c0_11] : memref<2x128xf32, #tpu.memory_space<vmem>>, vector<1x128xf32>
        %cst_12 = arith.constant 0.001953125 : f32
        %24 = vector.broadcast %cst_12 : f32 to vector<1x128xf32>
        %25 = arith.mulf %23, %24 : vector<1x128xf32>
        %c1_13 = arith.constant 1 : index
        %c0_14 = arith.constant 0 : index
        %26 = vector.load %arg6[%c1_13, %c0_14] : memref<2x128xf32, #tpu.memory_space<vmem>>, vector<1x128xf32>
        %cst_15 = arith.constant 0.001953125 : f32
        %27 = vector.broadcast %cst_15 : f32 to vector<1x128xf32>
        %28 = arith.mulf %26, %27 : vector<1x128xf32>
        %29 = arith.mulf %25, %25 : vector<1x128xf32>
        %30 = arith.subf %28, %29 : vector<1x128xf32>
        %cst_16 = arith.constant 0.000000e+00 : f32
        %31 = vector.broadcast %cst_16 : f32 to vector<1x128xf32>
        %32 = arith.maximumf %30, %31 : vector<1x128xf32>
        %cst_17 = arith.constant 9.99999974E-6 : f32
        %33 = vector.broadcast %cst_17 : f32 to vector<1x128xf32>
        %34 = arith.addf %32, %33 : vector<1x128xf32>
        %35 = math.rsqrt %34 : vector<1x128xf32>
        %c0_18 = arith.constant 0 : index
        %c0_19 = arith.constant 0 : index
        %36 = vector.load %arg7[%c0_18, %c0_19] : memref<2x128xf32, #tpu.memory_space<vmem>>, vector<1x128xf32>
        tpu.vector_store %arg7[%c0_18, %c0_19], %35 {strides = array<i32>} : memref<2x128xf32, #tpu.memory_space<vmem>>, vector<1x128xf32>,
        %cst_20 = arith.constant 0.000000e+00 : f32
        %37 = vector.broadcast %cst_20 : f32 to vector<1x128xf32>
        %38 = arith.subf %37, %25 : vector<1x128xf32>
        %39 = arith.mulf %38, %35 : vector<1x128xf32>
        %c1_21 = arith.constant 1 : index
        %c0_22 = arith.constant 0 : index
        %40 = vector.load %arg7[%c1_21, %c0_22] : memref<2x128xf32, #tpu.memory_space<vmem>>, vector<1x128xf32>
        tpu.vector_store %arg7[%c1_21, %c0_22], %39 {strides = array<i32>} : memref<2x128xf32, #tpu.memory_space<vmem>>, vector<1x128xf32>,
      } else {
      }
      %9 = arith.index_cast %arg1 : i32 to index
      %c0 = arith.constant 0 : index
      %c0_4 = arith.constant 0 : index
      %10 = vector.load %arg5[%9, %c0, %c0_4] : memref<1x512x128xf32, #tpu.memory_space<vmem>>, vector<1x512x128xf32>
      %11 = vector.shape_cast %10 : vector<1x512x128xf32> to vector<512x128xf32>
      %c0_5 = arith.constant 0 : index
      %c0_6 = arith.constant 0 : index
      %12 = vector.load %arg7[%c0_5, %c0_6] : memref<2x128xf32, #tpu.memory_space<vmem>>, vector<1x128xf32>
      %13 = vector.broadcast %12 : vector<1x128xf32> to vector<512x128xf32>
      %14 = arith.mulf %11, %13 : vector<512x128xf32>
      %c1 = arith.constant 1 : index
      %c0_7 = arith.constant 0 : index
      %15 = vector.load %arg7[%c1, %c0_7] : memref<2x128xf32, #tpu.memory_space<vmem>>, vector<1x128xf32>
      %16 = vector.broadcast %15 : vector<1x128xf32> to vector<512x128xf32>
      %17 = arith.addf %14, %16 : vector<512x128xf32>
      %cst = arith.constant 0.000000e+00 : f32
      %18 = vector.broadcast %cst : f32 to vector<512x128xf32>
      %19 = arith.maximumf %17, %18 : vector<512x128xf32>
      %20 = vector.extract_strided_slice %19 {offsets = [0, 0], sizes = [512, 32], strides = [1, 1]} : vector<512x128xf32> to vector<512x32xf32>
      %21 = arith.truncf %20 : vector<512x32xf32> to vector<512x32xbf16>
      %c0_8 = arith.constant 0 : index
      %c0_9 = arith.constant 0 : index
      %22 = vector.load %arg4[%c0_8, %c0_9] : memref<512x32xbf16, #tpu.memory_space<vmem>>, vector<512x32xbf16>
      tpu.vector_store %arg4[%c0_8, %c0_9], %21 {strides = array<i32>} : memref<512x32xbf16, #tpu.memory_space<vmem>>, vector<512x32xbf16>,
    } else {
    }
    return
  }
  func.func @transform_0(%arg0: i32, %arg1: i32) -> (i32, i32) {
    %c1_i32 = arith.constant 1 : i32
    %0 = arith.subi %c1_i32, %arg0 : i32
    %1 = arith.muli %arg1, %0 : i32
    %c0_i32 = arith.constant 0 : i32
    %c0_i32_0 = arith.constant 0 : i32
    return %1, %c0_i32 : i32, i32
  }
  func.func @transform_1(%arg0: i32, %arg1: i32) -> (i32, i32) {
    %c0_i32 = arith.constant 0 : i32
    %c0_i32_0 = arith.constant 0 : i32
    %c0_i32_1 = arith.constant 0 : i32
    return %c0_i32, %c0_i32_0 : i32, i32
  }
  func.func @transform_2(%arg0: i32, %arg1: i32) -> (i32, i32) {
    %0 = arith.muli %arg1, %arg0 : i32
    %c0_i32 = arith.constant 0 : i32
    %c0_i32_0 = arith.constant 0 : i32
    return %0, %c0_i32 : i32, i32
  }
}

module attributes {stable_mosaic.version = 11 : i64} {
  func.func @kernel(%arg0: i32, %arg1: i32, %arg2: memref<128x32xbf16, #tpu.memory_space<vmem>>, %arg3: memref<32x128xbf16, #tpu.memory_space<vmem>>, %arg4: memref<128x32xbf16, #tpu.memory_space<vmem>>, %arg5: memref<1x128x128xf32, #tpu.memory_space<vmem>>, %arg6: memref<2x128xf32, #tpu.memory_space<vmem>>, %arg7: memref<2x128xf32, #tpu.memory_space<vmem>>) attributes {dimension_semantics = [#tpu.dimension_semantics<arbitrary>, #tpu.dimension_semantics<arbitrary>], iteration_bounds = array<i64: 2, 1>, scalar_prefetch = 0 : i64, scratch_operands = 3 : i64, tpu.core_type = #tpu.core_type<tc>, window_params = [{transform_indices = @transform_0, window_bounds = array<i64: 128, 32>}, {pipeline_mode = #tpu.pipeline_mode<synchronous>, transform_indices = @transform_1, window_bounds = array<i64: 32, 128>}, {transform_indices = @transform_2, window_bounds = array<i64: 128, 32>}]} {
    %c0_i32 = arith.constant 0 : i32
    %0 = arith.cmpi eq, %arg0, %c0_i32 : i32
    %1 = arith.extui %0 : i1 to i32
    %c0_i32_0 = arith.constant 0 : i32
    %2 = arith.cmpi ne, %1, %c0_i32_0 : i32
    scf.if %2 {
      %c0_i32_2 = arith.constant 0 : i32
      %6 = arith.cmpi eq, %arg1, %c0_i32_2 : i32
      %7 = arith.extui %6 : i1 to i32
      %c0_i32_3 = arith.constant 0 : i32
      %8 = arith.cmpi ne, %7, %c0_i32_3 : i32
      scf.if %8 {
        %cst_18 = arith.constant 0.000000e+00 : f32
        %27 = vector.broadcast %cst_18 : f32 to vector<2x128xf32>
        %c0_19 = arith.constant 0 : index
        %c0_20 = arith.constant 0 : index
        %28 = vector.load %arg6[%c0_19, %c0_20] : memref<2x128xf32, #tpu.memory_space<vmem>>, vector<2x128xf32>
        tpu.vector_store %arg6[%c0_19, %c0_20], %27 {strides = array<i32>} : memref<2x128xf32, #tpu.memory_space<vmem>>, vector<2x128xf32>,
      } else {
      }
      %c0 = arith.constant 0 : index
      %c0_4 = arith.constant 0 : index
      %9 = vector.load %arg2[%c0, %c0_4] : memref<128x32xbf16, #tpu.memory_space<vmem>>, vector<128x32xbf16>
      %c0_5 = arith.constant 0 : index
      %c0_6 = arith.constant 0 : index
      %10 = vector.load %arg3[%c0_5, %c0_6] : memref<32x128xbf16, #tpu.memory_space<vmem>>, vector<32x128xbf16>
      %cst = arith.constant dense<0.000000e+00> : vector<128x128xf32>
      %11 = tpu.matmul %9, %10, %cst {dimension_numbers = #tpu.dot_dimension_numbers<[1], [0], [0], [1], [0, 0, 1, 1], [], []>} : vector<128x32xbf16>, vector<32x128xbf16>, vector<128x128xf32> -> vector<128x128xf32>
      %12 = arith.index_cast %arg1 : i32 to index
      %c0_7 = arith.constant 0 : index
      %c0_8 = arith.constant 0 : index
      %13 = vector.load %arg5[%12, %c0_7, %c0_8] : memref<1x128x128xf32, #tpu.memory_space<vmem>>, vector<1x128x128xf32>
      %14 = vector.shape_cast %13 : vector<1x128x128xf32> to vector<128x128xf32>
      %15 = vector.shape_cast %11 : vector<128x128xf32> to vector<1x128x128xf32>
      tpu.vector_store %arg5[%12, %c0_7, %c0_8], %15 {strides = array<i32>} : memref<1x128x128xf32, #tpu.memory_space<vmem>>, vector<1x128x128xf32>,
      %c0_9 = arith.constant 0 : index
      %c0_10 = arith.constant 0 : index
      %16 = vector.load %arg6[%c0_9, %c0_10] : memref<2x128xf32, #tpu.memory_space<vmem>>, vector<1x128xf32>
      %cst_11 = arith.constant dense<0.000000e+00> : vector<128xf32>
      %17 = vector.multi_reduction <add>, %11, %cst_11 [0] : vector<128x128xf32> to vector<128xf32>
      %18 = vector.shape_cast %17 : vector<128xf32> to vector<1x128xf32>
      %19 = arith.addf %16, %18 : vector<1x128xf32>
      %c0_12 = arith.constant 0 : index
      %c0_13 = arith.constant 0 : index
      %20 = vector.load %arg6[%c0_12, %c0_13] : memref<2x128xf32, #tpu.memory_space<vmem>>, vector<1x128xf32>
      tpu.vector_store %arg6[%c0_12, %c0_13], %19 {strides = array<i32>} : memref<2x128xf32, #tpu.memory_space<vmem>>, vector<1x128xf32>,
      %c1 = arith.constant 1 : index
      %c0_14 = arith.constant 0 : index
      %21 = vector.load %arg6[%c1, %c0_14] : memref<2x128xf32, #tpu.memory_space<vmem>>, vector<1x128xf32>
      %22 = arith.mulf %11, %11 : vector<128x128xf32>
      %cst_15 = arith.constant dense<0.000000e+00> : vector<128xf32>
      %23 = vector.multi_reduction <add>, %22, %cst_15 [0] : vector<128x128xf32> to vector<128xf32>
      %24 = vector.shape_cast %23 : vector<128xf32> to vector<1x128xf32>
      %25 = arith.addf %21, %24 : vector<1x128xf32>
      %c1_16 = arith.constant 1 : index
      %c0_17 = arith.constant 0 : index
      %26 = vector.load %arg6[%c1_16, %c0_17] : memref<2x128xf32, #tpu.memory_space<vmem>>, vector<1x128xf32>
      tpu.vector_store %arg6[%c1_16, %c0_17], %25 {strides = array<i32>} : memref<2x128xf32, #tpu.memory_space<vmem>>, vector<1x128xf32>,
    } else {
    }
    %c1_i32 = arith.constant 1 : i32
    %3 = arith.cmpi eq, %arg0, %c1_i32 : i32
    %4 = arith.extui %3 : i1 to i32
    %c0_i32_1 = arith.constant 0 : i32
    %5 = arith.cmpi ne, %4, %c0_i32_1 : i32
    scf.if %5 {
      %c0_i32_2 = arith.constant 0 : i32
      %6 = arith.cmpi eq, %arg1, %c0_i32_2 : i32
      %7 = arith.extui %6 : i1 to i32
      %c0_i32_3 = arith.constant 0 : i32
      %8 = arith.cmpi ne, %7, %c0_i32_3 : i32
      scf.if %8 {
        %c0_10 = arith.constant 0 : index
        %c0_11 = arith.constant 0 : index
        %23 = vector.load %arg6[%c0_10, %c0_11] : memref<2x128xf32, #tpu.memory_space<vmem>>, vector<1x128xf32>
        %cst_12 = arith.constant 7.812500e-03 : f32
        %24 = vector.broadcast %cst_12 : f32 to vector<1x128xf32>
        %25 = arith.mulf %23, %24 : vector<1x128xf32>
        %c1_13 = arith.constant 1 : index
        %c0_14 = arith.constant 0 : index
        %26 = vector.load %arg6[%c1_13, %c0_14] : memref<2x128xf32, #tpu.memory_space<vmem>>, vector<1x128xf32>
        %cst_15 = arith.constant 7.812500e-03 : f32
        %27 = vector.broadcast %cst_15 : f32 to vector<1x128xf32>
        %28 = arith.mulf %26, %27 : vector<1x128xf32>
        %29 = arith.mulf %25, %25 : vector<1x128xf32>
        %30 = arith.subf %28, %29 : vector<1x128xf32>
        %cst_16 = arith.constant 0.000000e+00 : f32
        %31 = vector.broadcast %cst_16 : f32 to vector<1x128xf32>
        %32 = arith.maximumf %30, %31 : vector<1x128xf32>
        %cst_17 = arith.constant 9.99999974E-6 : f32
        %33 = vector.broadcast %cst_17 : f32 to vector<1x128xf32>
        %34 = arith.addf %32, %33 : vector<1x128xf32>
        %35 = math.rsqrt %34 : vector<1x128xf32>
        %c0_18 = arith.constant 0 : index
        %c0_19 = arith.constant 0 : index
        %36 = vector.load %arg7[%c0_18, %c0_19] : memref<2x128xf32, #tpu.memory_space<vmem>>, vector<1x128xf32>
        tpu.vector_store %arg7[%c0_18, %c0_19], %35 {strides = array<i32>} : memref<2x128xf32, #tpu.memory_space<vmem>>, vector<1x128xf32>,
        %cst_20 = arith.constant 0.000000e+00 : f32
        %37 = vector.broadcast %cst_20 : f32 to vector<1x128xf32>
        %38 = arith.subf %37, %25 : vector<1x128xf32>
        %39 = arith.mulf %38, %35 : vector<1x128xf32>
        %c1_21 = arith.constant 1 : index
        %c0_22 = arith.constant 0 : index
        %40 = vector.load %arg7[%c1_21, %c0_22] : memref<2x128xf32, #tpu.memory_space<vmem>>, vector<1x128xf32>
        tpu.vector_store %arg7[%c1_21, %c0_22], %39 {strides = array<i32>} : memref<2x128xf32, #tpu.memory_space<vmem>>, vector<1x128xf32>,
      } else {
      }
      %9 = arith.index_cast %arg1 : i32 to index
      %c0 = arith.constant 0 : index
      %c0_4 = arith.constant 0 : index
      %10 = vector.load %arg5[%9, %c0, %c0_4] : memref<1x128x128xf32, #tpu.memory_space<vmem>>, vector<1x128x128xf32>
      %11 = vector.shape_cast %10 : vector<1x128x128xf32> to vector<128x128xf32>
      %c0_5 = arith.constant 0 : index
      %c0_6 = arith.constant 0 : index
      %12 = vector.load %arg7[%c0_5, %c0_6] : memref<2x128xf32, #tpu.memory_space<vmem>>, vector<1x128xf32>
      %13 = vector.broadcast %12 : vector<1x128xf32> to vector<128x128xf32>
      %14 = arith.mulf %11, %13 : vector<128x128xf32>
      %c1 = arith.constant 1 : index
      %c0_7 = arith.constant 0 : index
      %15 = vector.load %arg7[%c1, %c0_7] : memref<2x128xf32, #tpu.memory_space<vmem>>, vector<1x128xf32>
      %16 = vector.broadcast %15 : vector<1x128xf32> to vector<128x128xf32>
      %17 = arith.addf %14, %16 : vector<128x128xf32>
      %cst = arith.constant 0.000000e+00 : f32
      %18 = vector.broadcast %cst : f32 to vector<128x128xf32>
      %19 = arith.maximumf %17, %18 : vector<128x128xf32>
      %20 = vector.extract_strided_slice %19 {offsets = [0, 0], sizes = [128, 32], strides = [1, 1]} : vector<128x128xf32> to vector<128x32xf32>
      %21 = arith.truncf %20 : vector<128x32xf32> to vector<128x32xbf16>
      %c0_8 = arith.constant 0 : index
      %c0_9 = arith.constant 0 : index
      %22 = vector.load %arg4[%c0_8, %c0_9] : memref<128x32xbf16, #tpu.memory_space<vmem>>, vector<128x32xbf16>
      tpu.vector_store %arg4[%c0_8, %c0_9], %21 {strides = array<i32>} : memref<128x32xbf16, #tpu.memory_space<vmem>>, vector<128x32xbf16>,
    } else {
    }
    return
  }
  func.func @transform_0(%arg0: i32, %arg1: i32) -> (i32, i32) {
    %c1_i32 = arith.constant 1 : i32
    %0 = arith.subi %c1_i32, %arg0 : i32
    %1 = arith.muli %arg1, %0 : i32
    %c0_i32 = arith.constant 0 : i32
    %c0_i32_0 = arith.constant 0 : i32
    return %1, %c0_i32 : i32, i32
  }
  func.func @transform_1(%arg0: i32, %arg1: i32) -> (i32, i32) {
    %c0_i32 = arith.constant 0 : i32
    %c0_i32_0 = arith.constant 0 : i32
    %c0_i32_1 = arith.constant 0 : i32
    return %c0_i32, %c0_i32_0 : i32, i32
  }
  func.func @transform_2(%arg0: i32, %arg1: i32) -> (i32, i32) {
    %0 = arith.muli %arg1, %arg0 : i32
    %c0_i32 = arith.constant 0 : i32
    %c0_i32_0 = arith.constant 0 : i32
    return %0, %c0_i32 : i32, i32
  }
}

module attributes {stable_mosaic.version = 11 : i64} {
  func.func @kernel(%arg0: i32, %arg1: i32, %arg2: memref<32x288xbf16, #tpu.memory_space<vmem>>, %arg3: memref<288x128xbf16, #tpu.memory_space<vmem>>, %arg4: memref<32x64xbf16, #tpu.memory_space<vmem>>, %arg5: memref<1x32x128xf32, #tpu.memory_space<vmem>>, %arg6: memref<2x128xf32, #tpu.memory_space<vmem>>, %arg7: memref<2x128xf32, #tpu.memory_space<vmem>>) attributes {dimension_semantics = [#tpu.dimension_semantics<arbitrary>, #tpu.dimension_semantics<arbitrary>], iteration_bounds = array<i64: 2, 1>, scalar_prefetch = 0 : i64, scratch_operands = 3 : i64, tpu.core_type = #tpu.core_type<tc>, window_params = [{transform_indices = @transform_0, window_bounds = array<i64: 32, 288>}, {pipeline_mode = #tpu.pipeline_mode<synchronous>, transform_indices = @transform_1, window_bounds = array<i64: 288, 128>}, {transform_indices = @transform_2, window_bounds = array<i64: 32, 64>}]} {
    %c0_i32 = arith.constant 0 : i32
    %0 = arith.cmpi eq, %arg0, %c0_i32 : i32
    %1 = arith.extui %0 : i1 to i32
    %c0_i32_0 = arith.constant 0 : i32
    %2 = arith.cmpi ne, %1, %c0_i32_0 : i32
    scf.if %2 {
      %c0_i32_2 = arith.constant 0 : i32
      %6 = arith.cmpi eq, %arg1, %c0_i32_2 : i32
      %7 = arith.extui %6 : i1 to i32
      %c0_i32_3 = arith.constant 0 : i32
      %8 = arith.cmpi ne, %7, %c0_i32_3 : i32
      scf.if %8 {
        %cst_18 = arith.constant 0.000000e+00 : f32
        %27 = vector.broadcast %cst_18 : f32 to vector<2x128xf32>
        %c0_19 = arith.constant 0 : index
        %c0_20 = arith.constant 0 : index
        %28 = vector.load %arg6[%c0_19, %c0_20] : memref<2x128xf32, #tpu.memory_space<vmem>>, vector<2x128xf32>
        tpu.vector_store %arg6[%c0_19, %c0_20], %27 {strides = array<i32>} : memref<2x128xf32, #tpu.memory_space<vmem>>, vector<2x128xf32>,
      } else {
      }
      %c0 = arith.constant 0 : index
      %c0_4 = arith.constant 0 : index
      %9 = vector.load %arg2[%c0, %c0_4] : memref<32x288xbf16, #tpu.memory_space<vmem>>, vector<32x288xbf16>
      %c0_5 = arith.constant 0 : index
      %c0_6 = arith.constant 0 : index
      %10 = vector.load %arg3[%c0_5, %c0_6] : memref<288x128xbf16, #tpu.memory_space<vmem>>, vector<288x128xbf16>
      %cst = arith.constant dense<0.000000e+00> : vector<32x128xf32>
      %11 = tpu.matmul %9, %10, %cst {dimension_numbers = #tpu.dot_dimension_numbers<[1], [0], [0], [1], [0, 0, 1, 1], [], []>} : vector<32x288xbf16>, vector<288x128xbf16>, vector<32x128xf32> -> vector<32x128xf32>
      %12 = arith.index_cast %arg1 : i32 to index
      %c0_7 = arith.constant 0 : index
      %c0_8 = arith.constant 0 : index
      %13 = vector.load %arg5[%12, %c0_7, %c0_8] : memref<1x32x128xf32, #tpu.memory_space<vmem>>, vector<1x32x128xf32>
      %14 = vector.shape_cast %13 : vector<1x32x128xf32> to vector<32x128xf32>
      %15 = vector.shape_cast %11 : vector<32x128xf32> to vector<1x32x128xf32>
      tpu.vector_store %arg5[%12, %c0_7, %c0_8], %15 {strides = array<i32>} : memref<1x32x128xf32, #tpu.memory_space<vmem>>, vector<1x32x128xf32>,
      %c0_9 = arith.constant 0 : index
      %c0_10 = arith.constant 0 : index
      %16 = vector.load %arg6[%c0_9, %c0_10] : memref<2x128xf32, #tpu.memory_space<vmem>>, vector<1x128xf32>
      %cst_11 = arith.constant dense<0.000000e+00> : vector<128xf32>
      %17 = vector.multi_reduction <add>, %11, %cst_11 [0] : vector<32x128xf32> to vector<128xf32>
      %18 = vector.shape_cast %17 : vector<128xf32> to vector<1x128xf32>
      %19 = arith.addf %16, %18 : vector<1x128xf32>
      %c0_12 = arith.constant 0 : index
      %c0_13 = arith.constant 0 : index
      %20 = vector.load %arg6[%c0_12, %c0_13] : memref<2x128xf32, #tpu.memory_space<vmem>>, vector<1x128xf32>
      tpu.vector_store %arg6[%c0_12, %c0_13], %19 {strides = array<i32>} : memref<2x128xf32, #tpu.memory_space<vmem>>, vector<1x128xf32>,
      %c1 = arith.constant 1 : index
      %c0_14 = arith.constant 0 : index
      %21 = vector.load %arg6[%c1, %c0_14] : memref<2x128xf32, #tpu.memory_space<vmem>>, vector<1x128xf32>
      %22 = arith.mulf %11, %11 : vector<32x128xf32>
      %cst_15 = arith.constant dense<0.000000e+00> : vector<128xf32>
      %23 = vector.multi_reduction <add>, %22, %cst_15 [0] : vector<32x128xf32> to vector<128xf32>
      %24 = vector.shape_cast %23 : vector<128xf32> to vector<1x128xf32>
      %25 = arith.addf %21, %24 : vector<1x128xf32>
      %c1_16 = arith.constant 1 : index
      %c0_17 = arith.constant 0 : index
      %26 = vector.load %arg6[%c1_16, %c0_17] : memref<2x128xf32, #tpu.memory_space<vmem>>, vector<1x128xf32>
      tpu.vector_store %arg6[%c1_16, %c0_17], %25 {strides = array<i32>} : memref<2x128xf32, #tpu.memory_space<vmem>>, vector<1x128xf32>,
    } else {
    }
    %c1_i32 = arith.constant 1 : i32
    %3 = arith.cmpi eq, %arg0, %c1_i32 : i32
    %4 = arith.extui %3 : i1 to i32
    %c0_i32_1 = arith.constant 0 : i32
    %5 = arith.cmpi ne, %4, %c0_i32_1 : i32
    scf.if %5 {
      %c0_i32_2 = arith.constant 0 : i32
      %6 = arith.cmpi eq, %arg1, %c0_i32_2 : i32
      %7 = arith.extui %6 : i1 to i32
      %c0_i32_3 = arith.constant 0 : i32
      %8 = arith.cmpi ne, %7, %c0_i32_3 : i32
      scf.if %8 {
        %c0_10 = arith.constant 0 : index
        %c0_11 = arith.constant 0 : index
        %23 = vector.load %arg6[%c0_10, %c0_11] : memref<2x128xf32, #tpu.memory_space<vmem>>, vector<1x128xf32>
        %cst_12 = arith.constant 3.125000e-02 : f32
        %24 = vector.broadcast %cst_12 : f32 to vector<1x128xf32>
        %25 = arith.mulf %23, %24 : vector<1x128xf32>
        %c1_13 = arith.constant 1 : index
        %c0_14 = arith.constant 0 : index
        %26 = vector.load %arg6[%c1_13, %c0_14] : memref<2x128xf32, #tpu.memory_space<vmem>>, vector<1x128xf32>
        %cst_15 = arith.constant 3.125000e-02 : f32
        %27 = vector.broadcast %cst_15 : f32 to vector<1x128xf32>
        %28 = arith.mulf %26, %27 : vector<1x128xf32>
        %29 = arith.mulf %25, %25 : vector<1x128xf32>
        %30 = arith.subf %28, %29 : vector<1x128xf32>
        %cst_16 = arith.constant 0.000000e+00 : f32
        %31 = vector.broadcast %cst_16 : f32 to vector<1x128xf32>
        %32 = arith.maximumf %30, %31 : vector<1x128xf32>
        %cst_17 = arith.constant 9.99999974E-6 : f32
        %33 = vector.broadcast %cst_17 : f32 to vector<1x128xf32>
        %34 = arith.addf %32, %33 : vector<1x128xf32>
        %35 = math.rsqrt %34 : vector<1x128xf32>
        %c0_18 = arith.constant 0 : index
        %c0_19 = arith.constant 0 : index
        %36 = vector.load %arg7[%c0_18, %c0_19] : memref<2x128xf32, #tpu.memory_space<vmem>>, vector<1x128xf32>
        tpu.vector_store %arg7[%c0_18, %c0_19], %35 {strides = array<i32>} : memref<2x128xf32, #tpu.memory_space<vmem>>, vector<1x128xf32>,
        %cst_20 = arith.constant 0.000000e+00 : f32
        %37 = vector.broadcast %cst_20 : f32 to vector<1x128xf32>
        %38 = arith.subf %37, %25 : vector<1x128xf32>
        %39 = arith.mulf %38, %35 : vector<1x128xf32>
        %c1_21 = arith.constant 1 : index
        %c0_22 = arith.constant 0 : index
        %40 = vector.load %arg7[%c1_21, %c0_22] : memref<2x128xf32, #tpu.memory_space<vmem>>, vector<1x128xf32>
        tpu.vector_store %arg7[%c1_21, %c0_22], %39 {strides = array<i32>} : memref<2x128xf32, #tpu.memory_space<vmem>>, vector<1x128xf32>,
      } else {
      }
      %9 = arith.index_cast %arg1 : i32 to index
      %c0 = arith.constant 0 : index
      %c0_4 = arith.constant 0 : index
      %10 = vector.load %arg5[%9, %c0, %c0_4] : memref<1x32x128xf32, #tpu.memory_space<vmem>>, vector<1x32x128xf32>
      %11 = vector.shape_cast %10 : vector<1x32x128xf32> to vector<32x128xf32>
      %c0_5 = arith.constant 0 : index
      %c0_6 = arith.constant 0 : index
      %12 = vector.load %arg7[%c0_5, %c0_6] : memref<2x128xf32, #tpu.memory_space<vmem>>, vector<1x128xf32>
      %13 = vector.broadcast %12 : vector<1x128xf32> to vector<32x128xf32>
      %14 = arith.mulf %11, %13 : vector<32x128xf32>
      %c1 = arith.constant 1 : index
      %c0_7 = arith.constant 0 : index
      %15 = vector.load %arg7[%c1, %c0_7] : memref<2x128xf32, #tpu.memory_space<vmem>>, vector<1x128xf32>
      %16 = vector.broadcast %15 : vector<1x128xf32> to vector<32x128xf32>
      %17 = arith.addf %14, %16 : vector<32x128xf32>
      %cst = arith.constant 0.000000e+00 : f32
      %18 = vector.broadcast %cst : f32 to vector<32x128xf32>
      %19 = arith.maximumf %17, %18 : vector<32x128xf32>
      %20 = vector.extract_strided_slice %19 {offsets = [0, 0], sizes = [32, 64], strides = [1, 1]} : vector<32x128xf32> to vector<32x64xf32>
      %21 = arith.truncf %20 : vector<32x64xf32> to vector<32x64xbf16>
      %c0_8 = arith.constant 0 : index
      %c0_9 = arith.constant 0 : index
      %22 = vector.load %arg4[%c0_8, %c0_9] : memref<32x64xbf16, #tpu.memory_space<vmem>>, vector<32x64xbf16>
      tpu.vector_store %arg4[%c0_8, %c0_9], %21 {strides = array<i32>} : memref<32x64xbf16, #tpu.memory_space<vmem>>, vector<32x64xbf16>,
    } else {
    }
    return
  }
  func.func @transform_0(%arg0: i32, %arg1: i32) -> (i32, i32) {
    %c1_i32 = arith.constant 1 : i32
    %0 = arith.subi %c1_i32, %arg0 : i32
    %1 = arith.muli %arg1, %0 : i32
    %c0_i32 = arith.constant 0 : i32
    %c0_i32_0 = arith.constant 0 : i32
    return %1, %c0_i32 : i32, i32
  }
  func.func @transform_1(%arg0: i32, %arg1: i32) -> (i32, i32) {
    %c0_i32 = arith.constant 0 : i32
    %c0_i32_0 = arith.constant 0 : i32
    %c0_i32_1 = arith.constant 0 : i32
    return %c0_i32, %c0_i32_0 : i32, i32
  }
  func.func @transform_2(%arg0: i32, %arg1: i32) -> (i32, i32) {
    %0 = arith.muli %arg1, %arg0 : i32
    %c0_i32 = arith.constant 0 : i32
    %c0_i32_0 = arith.constant 0 : i32
    return %0, %c0_i32 : i32, i32
  }
}

module attributes {stable_mosaic.version = 11 : i64} {
  func.func @kernel(%arg0: i32, %arg1: i32, %arg2: memref<16x640xbf16, #tpu.memory_space<vmem>>, %arg3: memref<640x128xbf16, #tpu.memory_space<vmem>>, %arg4: memref<16x128xbf16, #tpu.memory_space<vmem>>, %arg5: memref<1x16x128xf32, #tpu.memory_space<vmem>>, %arg6: memref<2x128xf32, #tpu.memory_space<vmem>>, %arg7: memref<2x128xf32, #tpu.memory_space<vmem>>) attributes {dimension_semantics = [#tpu.dimension_semantics<arbitrary>, #tpu.dimension_semantics<arbitrary>], iteration_bounds = array<i64: 2, 1>, scalar_prefetch = 0 : i64, scratch_operands = 3 : i64, tpu.core_type = #tpu.core_type<tc>, window_params = [{transform_indices = @transform_0, window_bounds = array<i64: 16, 640>}, {pipeline_mode = #tpu.pipeline_mode<synchronous>, transform_indices = @transform_1, window_bounds = array<i64: 640, 128>}, {transform_indices = @transform_2, window_bounds = array<i64: 16, 128>}]} {
    %c0_i32 = arith.constant 0 : i32
    %0 = arith.cmpi eq, %arg0, %c0_i32 : i32
    %1 = arith.extui %0 : i1 to i32
    %c0_i32_0 = arith.constant 0 : i32
    %2 = arith.cmpi ne, %1, %c0_i32_0 : i32
    scf.if %2 {
      %c0_i32_2 = arith.constant 0 : i32
      %6 = arith.cmpi eq, %arg1, %c0_i32_2 : i32
      %7 = arith.extui %6 : i1 to i32
      %c0_i32_3 = arith.constant 0 : i32
      %8 = arith.cmpi ne, %7, %c0_i32_3 : i32
      scf.if %8 {
        %cst_18 = arith.constant 0.000000e+00 : f32
        %27 = vector.broadcast %cst_18 : f32 to vector<2x128xf32>
        %c0_19 = arith.constant 0 : index
        %c0_20 = arith.constant 0 : index
        %28 = vector.load %arg6[%c0_19, %c0_20] : memref<2x128xf32, #tpu.memory_space<vmem>>, vector<2x128xf32>
        tpu.vector_store %arg6[%c0_19, %c0_20], %27 {strides = array<i32>} : memref<2x128xf32, #tpu.memory_space<vmem>>, vector<2x128xf32>,
      } else {
      }
      %c0 = arith.constant 0 : index
      %c0_4 = arith.constant 0 : index
      %9 = vector.load %arg2[%c0, %c0_4] : memref<16x640xbf16, #tpu.memory_space<vmem>>, vector<16x640xbf16>
      %c0_5 = arith.constant 0 : index
      %c0_6 = arith.constant 0 : index
      %10 = vector.load %arg3[%c0_5, %c0_6] : memref<640x128xbf16, #tpu.memory_space<vmem>>, vector<640x128xbf16>
      %cst = arith.constant dense<0.000000e+00> : vector<16x128xf32>
      %11 = tpu.matmul %9, %10, %cst {dimension_numbers = #tpu.dot_dimension_numbers<[1], [0], [0], [1], [0, 0, 1, 1], [], []>} : vector<16x640xbf16>, vector<640x128xbf16>, vector<16x128xf32> -> vector<16x128xf32>
      %12 = arith.index_cast %arg1 : i32 to index
      %c0_7 = arith.constant 0 : index
      %c0_8 = arith.constant 0 : index
      %13 = vector.load %arg5[%12, %c0_7, %c0_8] : memref<1x16x128xf32, #tpu.memory_space<vmem>>, vector<1x16x128xf32>
      %14 = vector.shape_cast %13 : vector<1x16x128xf32> to vector<16x128xf32>
      %15 = vector.shape_cast %11 : vector<16x128xf32> to vector<1x16x128xf32>
      tpu.vector_store %arg5[%12, %c0_7, %c0_8], %15 {strides = array<i32>} : memref<1x16x128xf32, #tpu.memory_space<vmem>>, vector<1x16x128xf32>,
      %c0_9 = arith.constant 0 : index
      %c0_10 = arith.constant 0 : index
      %16 = vector.load %arg6[%c0_9, %c0_10] : memref<2x128xf32, #tpu.memory_space<vmem>>, vector<1x128xf32>
      %cst_11 = arith.constant dense<0.000000e+00> : vector<128xf32>
      %17 = vector.multi_reduction <add>, %11, %cst_11 [0] : vector<16x128xf32> to vector<128xf32>
      %18 = vector.shape_cast %17 : vector<128xf32> to vector<1x128xf32>
      %19 = arith.addf %16, %18 : vector<1x128xf32>
      %c0_12 = arith.constant 0 : index
      %c0_13 = arith.constant 0 : index
      %20 = vector.load %arg6[%c0_12, %c0_13] : memref<2x128xf32, #tpu.memory_space<vmem>>, vector<1x128xf32>
      tpu.vector_store %arg6[%c0_12, %c0_13], %19 {strides = array<i32>} : memref<2x128xf32, #tpu.memory_space<vmem>>, vector<1x128xf32>,
      %c1 = arith.constant 1 : index
      %c0_14 = arith.constant 0 : index
      %21 = vector.load %arg6[%c1, %c0_14] : memref<2x128xf32, #tpu.memory_space<vmem>>, vector<1x128xf32>
      %22 = arith.mulf %11, %11 : vector<16x128xf32>
      %cst_15 = arith.constant dense<0.000000e+00> : vector<128xf32>
      %23 = vector.multi_reduction <add>, %22, %cst_15 [0] : vector<16x128xf32> to vector<128xf32>
      %24 = vector.shape_cast %23 : vector<128xf32> to vector<1x128xf32>
      %25 = arith.addf %21, %24 : vector<1x128xf32>
      %c1_16 = arith.constant 1 : index
      %c0_17 = arith.constant 0 : index
      %26 = vector.load %arg6[%c1_16, %c0_17] : memref<2x128xf32, #tpu.memory_space<vmem>>, vector<1x128xf32>
      tpu.vector_store %arg6[%c1_16, %c0_17], %25 {strides = array<i32>} : memref<2x128xf32, #tpu.memory_space<vmem>>, vector<1x128xf32>,
    } else {
    }
    %c1_i32 = arith.constant 1 : i32
    %3 = arith.cmpi eq, %arg0, %c1_i32 : i32
    %4 = arith.extui %3 : i1 to i32
    %c0_i32_1 = arith.constant 0 : i32
    %5 = arith.cmpi ne, %4, %c0_i32_1 : i32
    scf.if %5 {
      %c0_i32_2 = arith.constant 0 : i32
      %6 = arith.cmpi eq, %arg1, %c0_i32_2 : i32
      %7 = arith.extui %6 : i1 to i32
      %c0_i32_3 = arith.constant 0 : i32
      %8 = arith.cmpi ne, %7, %c0_i32_3 : i32
      scf.if %8 {
        %c0_10 = arith.constant 0 : index
        %c0_11 = arith.constant 0 : index
        %22 = vector.load %arg6[%c0_10, %c0_11] : memref<2x128xf32, #tpu.memory_space<vmem>>, vector<1x128xf32>
        %cst_12 = arith.constant 1.250000e-01 : f32
        %23 = vector.broadcast %cst_12 : f32 to vector<1x128xf32>
        %24 = arith.mulf %22, %23 : vector<1x128xf32>
        %c1_13 = arith.constant 1 : index
        %c0_14 = arith.constant 0 : index
        %25 = vector.load %arg6[%c1_13, %c0_14] : memref<2x128xf32, #tpu.memory_space<vmem>>, vector<1x128xf32>
        %cst_15 = arith.constant 1.250000e-01 : f32
        %26 = vector.broadcast %cst_15 : f32 to vector<1x128xf32>
        %27 = arith.mulf %25, %26 : vector<1x128xf32>
        %28 = arith.mulf %24, %24 : vector<1x128xf32>
        %29 = arith.subf %27, %28 : vector<1x128xf32>
        %cst_16 = arith.constant 0.000000e+00 : f32
        %30 = vector.broadcast %cst_16 : f32 to vector<1x128xf32>
        %31 = arith.maximumf %29, %30 : vector<1x128xf32>
        %cst_17 = arith.constant 9.99999974E-6 : f32
        %32 = vector.broadcast %cst_17 : f32 to vector<1x128xf32>
        %33 = arith.addf %31, %32 : vector<1x128xf32>
        %34 = math.rsqrt %33 : vector<1x128xf32>
        %c0_18 = arith.constant 0 : index
        %c0_19 = arith.constant 0 : index
        %35 = vector.load %arg7[%c0_18, %c0_19] : memref<2x128xf32, #tpu.memory_space<vmem>>, vector<1x128xf32>
        tpu.vector_store %arg7[%c0_18, %c0_19], %34 {strides = array<i32>} : memref<2x128xf32, #tpu.memory_space<vmem>>, vector<1x128xf32>,
        %cst_20 = arith.constant 0.000000e+00 : f32
        %36 = vector.broadcast %cst_20 : f32 to vector<1x128xf32>
        %37 = arith.subf %36, %24 : vector<1x128xf32>
        %38 = arith.mulf %37, %34 : vector<1x128xf32>
        %c1_21 = arith.constant 1 : index
        %c0_22 = arith.constant 0 : index
        %39 = vector.load %arg7[%c1_21, %c0_22] : memref<2x128xf32, #tpu.memory_space<vmem>>, vector<1x128xf32>
        tpu.vector_store %arg7[%c1_21, %c0_22], %38 {strides = array<i32>} : memref<2x128xf32, #tpu.memory_space<vmem>>, vector<1x128xf32>,
      } else {
      }
      %9 = arith.index_cast %arg1 : i32 to index
      %c0 = arith.constant 0 : index
      %c0_4 = arith.constant 0 : index
      %10 = vector.load %arg5[%9, %c0, %c0_4] : memref<1x16x128xf32, #tpu.memory_space<vmem>>, vector<1x16x128xf32>
      %11 = vector.shape_cast %10 : vector<1x16x128xf32> to vector<16x128xf32>
      %c0_5 = arith.constant 0 : index
      %c0_6 = arith.constant 0 : index
      %12 = vector.load %arg7[%c0_5, %c0_6] : memref<2x128xf32, #tpu.memory_space<vmem>>, vector<1x128xf32>
      %13 = vector.broadcast %12 : vector<1x128xf32> to vector<16x128xf32>
      %14 = arith.mulf %11, %13 : vector<16x128xf32>
      %c1 = arith.constant 1 : index
      %c0_7 = arith.constant 0 : index
      %15 = vector.load %arg7[%c1, %c0_7] : memref<2x128xf32, #tpu.memory_space<vmem>>, vector<1x128xf32>
      %16 = vector.broadcast %15 : vector<1x128xf32> to vector<16x128xf32>
      %17 = arith.addf %14, %16 : vector<16x128xf32>
      %cst = arith.constant 0.000000e+00 : f32
      %18 = vector.broadcast %cst : f32 to vector<16x128xf32>
      %19 = arith.maximumf %17, %18 : vector<16x128xf32>
      %20 = arith.truncf %19 : vector<16x128xf32> to vector<16x128xbf16>
      %c0_8 = arith.constant 0 : index
      %c0_9 = arith.constant 0 : index
      %21 = vector.load %arg4[%c0_8, %c0_9] : memref<16x128xbf16, #tpu.memory_space<vmem>>, vector<16x128xbf16>
      tpu.vector_store %arg4[%c0_8, %c0_9], %20 {strides = array<i32>} : memref<16x128xbf16, #tpu.memory_space<vmem>>, vector<16x128xbf16>,
    } else {
    }
    return
  }
  func.func @transform_0(%arg0: i32, %arg1: i32) -> (i32, i32) {
    %c1_i32 = arith.constant 1 : i32
    %0 = arith.subi %c1_i32, %arg0 : i32
    %1 = arith.muli %arg1, %0 : i32
    %c0_i32 = arith.constant 0 : i32
    %c0_i32_0 = arith.constant 0 : i32
    return %1, %c0_i32 : i32, i32
  }
  func.func @transform_1(%arg0: i32, %arg1: i32) -> (i32, i32) {
    %c0_i32 = arith.constant 0 : i32
    %c0_i32_0 = arith.constant 0 : i32
    %c0_i32_1 = arith.constant 0 : i32
    return %c0_i32, %c0_i32_0 : i32, i32
  }
  func.func @transform_2(%arg0: i32, %arg1: i32) -> (i32, i32) {
    %0 = arith.muli %arg1, %arg0 : i32
    %c0_i32 = arith.constant 0 : i32
    %c0_i32_0 = arith.constant 0 : i32
    return %0, %c0_i32 : i32, i32
  }
}

module attributes {stable_mosaic.version = 11 : i64} {
  func.func @kernel(%arg0: i32, %arg1: i32, %arg2: memref<16x1152xbf16, #tpu.memory_space<vmem>>, %arg3: memref<1152x128xbf16, #tpu.memory_space<vmem>>, %arg4: memref<16x128xbf16, #tpu.memory_space<vmem>>, %arg5: memref<2x128xf32, #tpu.memory_space<vmem>>, %arg6: memref<1x16x128xf32, #tpu.memory_space<vmem>>, %arg7: memref<2x128xf32, #tpu.memory_space<vmem>>, %arg8: memref<2x128xf32, #tpu.memory_space<vmem>>) attributes {dimension_semantics = [#tpu.dimension_semantics<arbitrary>, #tpu.dimension_semantics<arbitrary>], iteration_bounds = array<i64: 2, 1>, scalar_prefetch = 0 : i64, scratch_operands = 3 : i64, tpu.core_type = #tpu.core_type<tc>, window_params = [{transform_indices = @transform_0, window_bounds = array<i64: 16, 1152>}, {pipeline_mode = #tpu.pipeline_mode<synchronous>, transform_indices = @transform_1, window_bounds = array<i64: 1152, 128>}, {transform_indices = @transform_2, window_bounds = array<i64: 16, 128>}, {pipeline_mode = #tpu.pipeline_mode<synchronous>, transform_indices = @transform_3, window_bounds = array<i64: 2, 128>}]} {
    %c0_i32 = arith.constant 0 : i32
    %0 = arith.cmpi eq, %arg0, %c0_i32 : i32
    %1 = arith.extui %0 : i1 to i32
    %c0_i32_0 = arith.constant 0 : i32
    %2 = arith.cmpi ne, %1, %c0_i32_0 : i32
    scf.if %2 {
      %c0_i32_2 = arith.constant 0 : i32
      %6 = arith.cmpi eq, %arg1, %c0_i32_2 : i32
      %7 = arith.extui %6 : i1 to i32
      %c0_i32_3 = arith.constant 0 : i32
      %8 = arith.cmpi ne, %7, %c0_i32_3 : i32
      scf.if %8 {
        %cst_18 = arith.constant 0.000000e+00 : f32
        %27 = vector.broadcast %cst_18 : f32 to vector<2x128xf32>
        %c0_19 = arith.constant 0 : index
        %c0_20 = arith.constant 0 : index
        %28 = vector.load %arg7[%c0_19, %c0_20] : memref<2x128xf32, #tpu.memory_space<vmem>>, vector<2x128xf32>
        tpu.vector_store %arg7[%c0_19, %c0_20], %27 {strides = array<i32>} : memref<2x128xf32, #tpu.memory_space<vmem>>, vector<2x128xf32>,
      } else {
      }
      %c0 = arith.constant 0 : index
      %c0_4 = arith.constant 0 : index
      %9 = vector.load %arg2[%c0, %c0_4] : memref<16x1152xbf16, #tpu.memory_space<vmem>>, vector<16x1152xbf16>
      %c0_5 = arith.constant 0 : index
      %c0_6 = arith.constant 0 : index
      %10 = vector.load %arg3[%c0_5, %c0_6] : memref<1152x128xbf16, #tpu.memory_space<vmem>>, vector<1152x128xbf16>
      %cst = arith.constant dense<0.000000e+00> : vector<16x128xf32>
      %11 = tpu.matmul %9, %10, %cst {dimension_numbers = #tpu.dot_dimension_numbers<[1], [0], [0], [1], [0, 0, 1, 1], [], []>} : vector<16x1152xbf16>, vector<1152x128xbf16>, vector<16x128xf32> -> vector<16x128xf32>
      %12 = arith.index_cast %arg1 : i32 to index
      %c0_7 = arith.constant 0 : index
      %c0_8 = arith.constant 0 : index
      %13 = vector.load %arg6[%12, %c0_7, %c0_8] : memref<1x16x128xf32, #tpu.memory_space<vmem>>, vector<1x16x128xf32>
      %14 = vector.shape_cast %13 : vector<1x16x128xf32> to vector<16x128xf32>
      %15 = vector.shape_cast %11 : vector<16x128xf32> to vector<1x16x128xf32>
      tpu.vector_store %arg6[%12, %c0_7, %c0_8], %15 {strides = array<i32>} : memref<1x16x128xf32, #tpu.memory_space<vmem>>, vector<1x16x128xf32>,
      %c0_9 = arith.constant 0 : index
      %c0_10 = arith.constant 0 : index
      %16 = vector.load %arg7[%c0_9, %c0_10] : memref<2x128xf32, #tpu.memory_space<vmem>>, vector<1x128xf32>
      %cst_11 = arith.constant dense<0.000000e+00> : vector<128xf32>
      %17 = vector.multi_reduction <add>, %11, %cst_11 [0] : vector<16x128xf32> to vector<128xf32>
      %18 = vector.shape_cast %17 : vector<128xf32> to vector<1x128xf32>
      %19 = arith.addf %16, %18 : vector<1x128xf32>
      %c0_12 = arith.constant 0 : index
      %c0_13 = arith.constant 0 : index
      %20 = vector.load %arg7[%c0_12, %c0_13] : memref<2x128xf32, #tpu.memory_space<vmem>>, vector<1x128xf32>
      tpu.vector_store %arg7[%c0_12, %c0_13], %19 {strides = array<i32>} : memref<2x128xf32, #tpu.memory_space<vmem>>, vector<1x128xf32>,
      %c1 = arith.constant 1 : index
      %c0_14 = arith.constant 0 : index
      %21 = vector.load %arg7[%c1, %c0_14] : memref<2x128xf32, #tpu.memory_space<vmem>>, vector<1x128xf32>
      %22 = arith.mulf %11, %11 : vector<16x128xf32>
      %cst_15 = arith.constant dense<0.000000e+00> : vector<128xf32>
      %23 = vector.multi_reduction <add>, %22, %cst_15 [0] : vector<16x128xf32> to vector<128xf32>
      %24 = vector.shape_cast %23 : vector<128xf32> to vector<1x128xf32>
      %25 = arith.addf %21, %24 : vector<1x128xf32>
      %c1_16 = arith.constant 1 : index
      %c0_17 = arith.constant 0 : index
      %26 = vector.load %arg7[%c1_16, %c0_17] : memref<2x128xf32, #tpu.memory_space<vmem>>, vector<1x128xf32>
      tpu.vector_store %arg7[%c1_16, %c0_17], %25 {strides = array<i32>} : memref<2x128xf32, #tpu.memory_space<vmem>>, vector<1x128xf32>,
    } else {
    }
    %c1_i32 = arith.constant 1 : i32
    %3 = arith.cmpi eq, %arg0, %c1_i32 : i32
    %4 = arith.extui %3 : i1 to i32
    %c0_i32_1 = arith.constant 0 : i32
    %5 = arith.cmpi ne, %4, %c0_i32_1 : i32
    scf.if %5 {
      %c0_i32_2 = arith.constant 0 : i32
      %6 = arith.cmpi eq, %arg1, %c0_i32_2 : i32
      %7 = arith.extui %6 : i1 to i32
      %c0_i32_3 = arith.constant 0 : i32
      %8 = arith.cmpi ne, %7, %c0_i32_3 : i32
      scf.if %8 {
        %c0_23 = arith.constant 0 : index
        %c0_24 = arith.constant 0 : index
        %46 = vector.load %arg7[%c0_23, %c0_24] : memref<2x128xf32, #tpu.memory_space<vmem>>, vector<1x128xf32>
        %cst_25 = arith.constant 1.250000e-01 : f32
        %47 = vector.broadcast %cst_25 : f32 to vector<1x128xf32>
        %48 = arith.mulf %46, %47 : vector<1x128xf32>
        %c1_26 = arith.constant 1 : index
        %c0_27 = arith.constant 0 : index
        %49 = vector.load %arg7[%c1_26, %c0_27] : memref<2x128xf32, #tpu.memory_space<vmem>>, vector<1x128xf32>
        %cst_28 = arith.constant 1.250000e-01 : f32
        %50 = vector.broadcast %cst_28 : f32 to vector<1x128xf32>
        %51 = arith.mulf %49, %50 : vector<1x128xf32>
        %52 = arith.mulf %48, %48 : vector<1x128xf32>
        %53 = arith.subf %51, %52 : vector<1x128xf32>
        %cst_29 = arith.constant 0.000000e+00 : f32
        %54 = vector.broadcast %cst_29 : f32 to vector<1x128xf32>
        %55 = arith.maximumf %53, %54 : vector<1x128xf32>
        %cst_30 = arith.constant 9.99999974E-6 : f32
        %56 = vector.broadcast %cst_30 : f32 to vector<1x128xf32>
        %57 = arith.addf %55, %56 : vector<1x128xf32>
        %58 = math.rsqrt %57 : vector<1x128xf32>
        %c0_31 = arith.constant 0 : index
        %c0_32 = arith.constant 0 : index
        %59 = vector.load %arg8[%c0_31, %c0_32] : memref<2x128xf32, #tpu.memory_space<vmem>>, vector<1x128xf32>
        tpu.vector_store %arg8[%c0_31, %c0_32], %58 {strides = array<i32>} : memref<2x128xf32, #tpu.memory_space<vmem>>, vector<1x128xf32>,
        %cst_33 = arith.constant 0.000000e+00 : f32
        %60 = vector.broadcast %cst_33 : f32 to vector<1x128xf32>
        %61 = arith.subf %60, %48 : vector<1x128xf32>
        %62 = arith.mulf %61, %58 : vector<1x128xf32>
        %c1_34 = arith.constant 1 : index
        %c0_35 = arith.constant 0 : index
        %63 = vector.load %arg8[%c1_34, %c0_35] : memref<2x128xf32, #tpu.memory_space<vmem>>, vector<1x128xf32>
        tpu.vector_store %arg8[%c1_34, %c0_35], %62 {strides = array<i32>} : memref<2x128xf32, #tpu.memory_space<vmem>>, vector<1x128xf32>,
        %cst_36 = arith.constant 0.000000e+00 : f32
        %64 = vector.broadcast %cst_36 : f32 to vector<2x128xf32>
        %c0_37 = arith.constant 0 : index
        %c0_38 = arith.constant 0 : index
        %65 = vector.load %arg7[%c0_37, %c0_38] : memref<2x128xf32, #tpu.memory_space<vmem>>, vector<2x128xf32>
        tpu.vector_store %arg7[%c0_37, %c0_38], %64 {strides = array<i32>} : memref<2x128xf32, #tpu.memory_space<vmem>>, vector<2x128xf32>,
      } else {
      }
      %9 = arith.index_cast %arg1 : i32 to index
      %c0 = arith.constant 0 : index
      %c0_4 = arith.constant 0 : index
      %10 = vector.load %arg6[%9, %c0, %c0_4] : memref<1x16x128xf32, #tpu.memory_space<vmem>>, vector<1x16x128xf32>
      %11 = vector.shape_cast %10 : vector<1x16x128xf32> to vector<16x128xf32>
      %c0_5 = arith.constant 0 : index
      %c0_6 = arith.constant 0 : index
      %12 = vector.load %arg8[%c0_5, %c0_6] : memref<2x128xf32, #tpu.memory_space<vmem>>, vector<1x128xf32>
      %13 = vector.broadcast %12 : vector<1x128xf32> to vector<16x128xf32>
      %14 = arith.mulf %11, %13 : vector<16x128xf32>
      %c1 = arith.constant 1 : index
      %c0_7 = arith.constant 0 : index
      %15 = vector.load %arg8[%c1, %c0_7] : memref<2x128xf32, #tpu.memory_space<vmem>>, vector<1x128xf32>
      %16 = vector.broadcast %15 : vector<1x128xf32> to vector<16x128xf32>
      %17 = arith.addf %14, %16 : vector<16x128xf32>
      %cst = arith.constant 0.000000e+00 : f32
      %18 = vector.broadcast %cst : f32 to vector<16x128xf32>
      %19 = arith.maximumf %17, %18 : vector<16x128xf32>
      %20 = arith.truncf %19 : vector<16x128xf32> to vector<16x128xbf16>
      %c0_8 = arith.constant 0 : index
      %c0_9 = arith.constant 0 : index
      %21 = vector.load %arg4[%c0_8, %c0_9] : memref<16x128xbf16, #tpu.memory_space<vmem>>, vector<16x128xbf16>
      tpu.vector_store %arg4[%c0_8, %c0_9], %20 {strides = array<i32>} : memref<16x128xbf16, #tpu.memory_space<vmem>>, vector<16x128xbf16>,
      %c16_i32 = arith.constant 16 : i32
      %22 = arith.muli %arg1, %c16_i32 : i32
      %23 = tpu.iota {dimensions = array<i32: 0>} : vector<16x1xi32>
      %24 = vector.broadcast %22 : i32 to vector<16x1xi32>
      %25 = arith.addi %24, %23 : vector<16x1xi32>
      %c8_i32 = arith.constant 8 : i32
      %26 = vector.broadcast %c8_i32 : i32 to vector<16x1xi32>
      %27 = arith.cmpi slt, %25, %26 : vector<16x1xi32>
      %cst_10 = arith.constant 0.000000e+00 : f32
      %28 = vector.shape_cast %27 : vector<16x1xi1> to vector<16x1xi1>
      %29 = vector.broadcast %28 : vector<16x1xi1> to vector<16x128xi1>
      %30 = vector.broadcast %cst_10 : f32 to vector<16x128xf32>
      %31 = arith.select %29, %19, %30 : vector<16x128xi1>, vector<16x128xf32>
      %c0_11 = arith.constant 0 : index
      %c0_12 = arith.constant 0 : index
      %32 = vector.load %arg7[%c0_11, %c0_12] : memref<2x128xf32, #tpu.memory_space<vmem>>, vector<1x128xf32>
      %cst_13 = arith.constant dense<0.000000e+00> : vector<128xf32>
      %33 = vector.multi_reduction <add>, %31, %cst_13 [0] : vector<16x128xf32> to vector<128xf32>
      %34 = vector.shape_cast %33 : vector<128xf32> to vector<1x128xf32>
      %35 = arith.addf %32, %34 : vector<1x128xf32>
      %c0_14 = arith.constant 0 : index
      %c0_15 = arith.constant 0 : index
      %36 = vector.load %arg7[%c0_14, %c0_15] : memref<2x128xf32, #tpu.memory_space<vmem>>, vector<1x128xf32>
      tpu.vector_store %arg7[%c0_14, %c0_15], %35 {strides = array<i32>} : memref<2x128xf32, #tpu.memory_space<vmem>>, vector<1x128xf32>,
      %c1_16 = arith.constant 1 : index
      %c0_17 = arith.constant 0 : index
      %37 = vector.load %arg7[%c1_16, %c0_17] : memref<2x128xf32, #tpu.memory_space<vmem>>, vector<1x128xf32>
      %38 = arith.mulf %31, %31 : vector<16x128xf32>
      %cst_18 = arith.constant dense<0.000000e+00> : vector<128xf32>
      %39 = vector.multi_reduction <add>, %38, %cst_18 [0] : vector<16x128xf32> to vector<128xf32>
      %40 = vector.shape_cast %39 : vector<128xf32> to vector<1x128xf32>
      %41 = arith.addf %37, %40 : vector<1x128xf32>
      %c1_19 = arith.constant 1 : index
      %c0_20 = arith.constant 0 : index
      %42 = vector.load %arg7[%c1_19, %c0_20] : memref<2x128xf32, #tpu.memory_space<vmem>>, vector<1x128xf32>
      tpu.vector_store %arg7[%c1_19, %c0_20], %41 {strides = array<i32>} : memref<2x128xf32, #tpu.memory_space<vmem>>, vector<1x128xf32>,
      %c0_i32_21 = arith.constant 0 : i32
      %43 = arith.cmpi eq, %arg1, %c0_i32_21 : i32
      %44 = arith.extui %43 : i1 to i32
      %c0_i32_22 = arith.constant 0 : i32
      %45 = arith.cmpi ne, %44, %c0_i32_22 : i32
      scf.if %45 {
        %c0_23 = arith.constant 0 : index
        %c0_24 = arith.constant 0 : index
        %46 = vector.load %arg7[%c0_23, %c0_24] : memref<2x128xf32, #tpu.memory_space<vmem>>, vector<1x128xf32>
        %cst_25 = arith.constant 1.250000e-01 : f32
        %47 = vector.broadcast %cst_25 : f32 to vector<1x128xf32>
        %48 = arith.mulf %46, %47 : vector<1x128xf32>
        %c1_26 = arith.constant 1 : index
        %c0_27 = arith.constant 0 : index
        %49 = vector.load %arg7[%c1_26, %c0_27] : memref<2x128xf32, #tpu.memory_space<vmem>>, vector<1x128xf32>
        %cst_28 = arith.constant 1.250000e-01 : f32
        %50 = vector.broadcast %cst_28 : f32 to vector<1x128xf32>
        %51 = arith.mulf %49, %50 : vector<1x128xf32>
        %52 = arith.mulf %48, %48 : vector<1x128xf32>
        %53 = arith.subf %51, %52 : vector<1x128xf32>
        %cst_29 = arith.constant 0.000000e+00 : f32
        %54 = vector.broadcast %cst_29 : f32 to vector<1x128xf32>
        %55 = arith.maximumf %53, %54 : vector<1x128xf32>
        %cst_30 = arith.constant 9.99999974E-6 : f32
        %56 = vector.broadcast %cst_30 : f32 to vector<1x128xf32>
        %57 = arith.addf %55, %56 : vector<1x128xf32>
        %58 = math.rsqrt %57 : vector<1x128xf32>
        %c0_31 = arith.constant 0 : index
        %c0_32 = arith.constant 0 : index
        %59 = vector.load %arg5[%c0_31, %c0_32] : memref<2x128xf32, #tpu.memory_space<vmem>>, vector<1x128xf32>
        tpu.vector_store %arg5[%c0_31, %c0_32], %58 {strides = array<i32>} : memref<2x128xf32, #tpu.memory_space<vmem>>, vector<1x128xf32>,
        %cst_33 = arith.constant 0.000000e+00 : f32
        %60 = vector.broadcast %cst_33 : f32 to vector<1x128xf32>
        %61 = arith.subf %60, %48 : vector<1x128xf32>
        %62 = arith.mulf %61, %58 : vector<1x128xf32>
        %c1_34 = arith.constant 1 : index
        %c0_35 = arith.constant 0 : index
        %63 = vector.load %arg5[%c1_34, %c0_35] : memref<2x128xf32, #tpu.memory_space<vmem>>, vector<1x128xf32>
        tpu.vector_store %arg5[%c1_34, %c0_35], %62 {strides = array<i32>} : memref<2x128xf32, #tpu.memory_space<vmem>>, vector<1x128xf32>,
      } else {
      }
    } else {
    }
    return
  }
  func.func @transform_0(%arg0: i32, %arg1: i32) -> (i32, i32) {
    %c1_i32 = arith.constant 1 : i32
    %0 = arith.subi %c1_i32, %arg0 : i32
    %1 = arith.muli %arg1, %0 : i32
    %c0_i32 = arith.constant 0 : i32
    %c0_i32_0 = arith.constant 0 : i32
    return %1, %c0_i32 : i32, i32
  }
  func.func @transform_1(%arg0: i32, %arg1: i32) -> (i32, i32) {
    %c0_i32 = arith.constant 0 : i32
    %c0_i32_0 = arith.constant 0 : i32
    %c0_i32_1 = arith.constant 0 : i32
    return %c0_i32, %c0_i32_0 : i32, i32
  }
  func.func @transform_2(%arg0: i32, %arg1: i32) -> (i32, i32) {
    %0 = arith.muli %arg1, %arg0 : i32
    %c0_i32 = arith.constant 0 : i32
    %c0_i32_0 = arith.constant 0 : i32
    return %0, %c0_i32 : i32, i32
  }
  func.func @transform_3(%arg0: i32, %arg1: i32) -> (i32, i32) {
    %c0_i32 = arith.constant 0 : i32
    %c0_i32_0 = arith.constant 0 : i32
    %c0_i32_1 = arith.constant 0 : i32
    return %c0_i32, %c0_i32_0 : i32, i32
  }
}

module attributes {stable_mosaic.version = 11 : i64} {
  func.func @kernel(%arg0: i32, %arg1: i32, %arg2: memref<1x16x512xbf16, #tpu.memory_space<vmem>>, %arg3: memref<1x512x128xbf16, #tpu.memory_space<vmem>>, %arg4: memref<1x128xf32, #tpu.memory_space<vmem>>, %arg5: memref<1x16x64xbf16, #tpu.memory_space<vmem>>, %arg6: memref<2x128xf32, #tpu.memory_space<vmem>>, %arg7: memref<2x128xf32, #tpu.memory_space<vmem>>) attributes {dimension_semantics = [#tpu.dimension_semantics<arbitrary>, #tpu.dimension_semantics<arbitrary>], iteration_bounds = array<i64: 4, 1>, scalar_prefetch = 0 : i64, scratch_operands = 1 : i64, tpu.core_type = #tpu.core_type<tc>, window_params = [{transform_indices = @transform_0, window_bounds = array<i64: 1, 16, 512>}, {transform_indices = @transform_1, window_bounds = array<i64: 1, 512, 128>}, {pipeline_mode = #tpu.pipeline_mode<synchronous>, transform_indices = @transform_2, window_bounds = array<i64: 1, 128>}, {transform_indices = @transform_3, window_bounds = array<i64: 1, 16, 64>}, {pipeline_mode = #tpu.pipeline_mode<synchronous>, transform_indices = @transform_4, window_bounds = array<i64: 2, 128>}]} {
    %c0_i32 = arith.constant 0 : i32
    %0 = arith.cmpi eq, %arg0, %c0_i32 : i32
    %c0_i32_0 = arith.constant 0 : i32
    %1 = arith.cmpi eq, %arg1, %c0_i32_0 : i32
    %2 = arith.andi %0, %1 : i1
    %3 = arith.extui %2 : i1 to i32
    %c0_i32_1 = arith.constant 0 : i32
    %4 = arith.cmpi ne, %3, %c0_i32_1 : i32
    scf.if %4 {
      %cst_25 = arith.constant 0.000000e+00 : f32
      %46 = vector.broadcast %cst_25 : f32 to vector<2x128xf32>
      %c0_26 = arith.constant 0 : index
      %c0_27 = arith.constant 0 : index
      %47 = vector.load %arg7[%c0_26, %c0_27] : memref<2x128xf32, #tpu.memory_space<vmem>>, vector<2x128xf32>
      tpu.vector_store %arg7[%c0_26, %c0_27], %46 {strides = array<i32>} : memref<2x128xf32, #tpu.memory_space<vmem>>, vector<2x128xf32>,
    } else {
    }
    %c0 = arith.constant 0 : index
    %c0_2 = arith.constant 0 : index
    %c0_3 = arith.constant 0 : index
    %5 = vector.load %arg2[%c0, %c0_2, %c0_3] : memref<1x16x512xbf16, #tpu.memory_space<vmem>>, vector<1x16x512xbf16>
    %6 = vector.shape_cast %5 : vector<1x16x512xbf16> to vector<16x512xbf16>
    %c0_4 = arith.constant 0 : index
    %c0_5 = arith.constant 0 : index
    %c0_6 = arith.constant 0 : index
    %7 = vector.load %arg3[%c0_4, %c0_5, %c0_6] : memref<1x512x128xbf16, #tpu.memory_space<vmem>>, vector<1x512x128xbf16>
    %8 = vector.shape_cast %7 : vector<1x512x128xbf16> to vector<512x128xbf16>
    %cst = arith.constant dense<0.000000e+00> : vector<16x128xf32>
    %9 = tpu.matmul %6, %8, %cst {dimension_numbers = #tpu.dot_dimension_numbers<[1], [0], [0], [1], [0, 0, 1, 1], [], []>} : vector<16x512xbf16>, vector<512x128xbf16>, vector<16x128xf32> -> vector<16x128xf32>
    %c0_7 = arith.constant 0 : index
    %c0_8 = arith.constant 0 : index
    %10 = vector.load %arg4[%c0_7, %c0_8] : memref<1x128xf32, #tpu.memory_space<vmem>>, vector<1x128xf32>
    %11 = vector.broadcast %10 : vector<1x128xf32> to vector<16x128xf32>
    %12 = arith.addf %9, %11 : vector<16x128xf32>
    %cst_9 = arith.constant 0.000000e+00 : f32
    %13 = vector.broadcast %cst_9 : f32 to vector<16x128xf32>
    %14 = arith.maximumf %12, %13 : vector<16x128xf32>
    %15 = vector.extract_strided_slice %14 {offsets = [0, 0], sizes = [16, 64], strides = [1, 1]} : vector<16x128xf32> to vector<16x64xf32>
    %16 = arith.truncf %15 : vector<16x64xf32> to vector<16x64xbf16>
    %c0_10 = arith.constant 0 : index
    %c0_11 = arith.constant 0 : index
    %c0_12 = arith.constant 0 : index
    %17 = vector.load %arg5[%c0_10, %c0_11, %c0_12] : memref<1x16x64xbf16, #tpu.memory_space<vmem>>, vector<1x16x64xbf16>
    %18 = vector.shape_cast %17 : vector<1x16x64xbf16> to vector<16x64xbf16>
    %19 = vector.shape_cast %16 : vector<16x64xbf16> to vector<1x16x64xbf16>
    tpu.vector_store %arg5[%c0_10, %c0_11, %c0_12], %19 {strides = array<i32>} : memref<1x16x64xbf16, #tpu.memory_space<vmem>>, vector<1x16x64xbf16>,
    %c16_i32 = arith.constant 16 : i32
    %20 = arith.muli %arg1, %c16_i32 : i32
    %21 = tpu.iota {dimensions = array<i32: 0>} : vector<16x1xi32>
    %22 = vector.broadcast %20 : i32 to vector<16x1xi32>
    %23 = arith.addi %22, %21 : vector<16x1xi32>
    %c8_i32 = arith.constant 8 : i32
    %24 = vector.broadcast %c8_i32 : i32 to vector<16x1xi32>
    %25 = arith.cmpi slt, %23, %24 : vector<16x1xi32>
    %cst_13 = arith.constant 0.000000e+00 : f32
    %26 = vector.shape_cast %25 : vector<16x1xi1> to vector<16x1xi1>
    %27 = vector.broadcast %26 : vector<16x1xi1> to vector<16x128xi1>
    %28 = vector.broadcast %cst_13 : f32 to vector<16x128xf32>
    %29 = arith.select %27, %14, %28 : vector<16x128xi1>, vector<16x128xf32>
    %c0_14 = arith.constant 0 : index
    %c0_15 = arith.constant 0 : index
    %30 = vector.load %arg7[%c0_14, %c0_15] : memref<2x128xf32, #tpu.memory_space<vmem>>, vector<1x128xf32>
    %cst_16 = arith.constant dense<0.000000e+00> : vector<128xf32>
    %31 = vector.multi_reduction <add>, %29, %cst_16 [0] : vector<16x128xf32> to vector<128xf32>
    %32 = vector.shape_cast %31 : vector<128xf32> to vector<1x128xf32>
    %33 = arith.addf %30, %32 : vector<1x128xf32>
    %c0_17 = arith.constant 0 : index
    %c0_18 = arith.constant 0 : index
    %34 = vector.load %arg7[%c0_17, %c0_18] : memref<2x128xf32, #tpu.memory_space<vmem>>, vector<1x128xf32>
    tpu.vector_store %arg7[%c0_17, %c0_18], %33 {strides = array<i32>} : memref<2x128xf32, #tpu.memory_space<vmem>>, vector<1x128xf32>,
    %c1 = arith.constant 1 : index
    %c0_19 = arith.constant 0 : index
    %35 = vector.load %arg7[%c1, %c0_19] : memref<2x128xf32, #tpu.memory_space<vmem>>, vector<1x128xf32>
    %36 = arith.mulf %29, %29 : vector<16x128xf32>
    %cst_20 = arith.constant dense<0.000000e+00> : vector<128xf32>
    %37 = vector.multi_reduction <add>, %36, %cst_20 [0] : vector<16x128xf32> to vector<128xf32>
    %38 = vector.shape_cast %37 : vector<128xf32> to vector<1x128xf32>
    %39 = arith.addf %35, %38 : vector<1x128xf32>
    %c1_21 = arith.constant 1 : index
    %c0_22 = arith.constant 0 : index
    %40 = vector.load %arg7[%c1_21, %c0_22] : memref<2x128xf32, #tpu.memory_space<vmem>>, vector<1x128xf32>
    tpu.vector_store %arg7[%c1_21, %c0_22], %39 {strides = array<i32>} : memref<2x128xf32, #tpu.memory_space<vmem>>, vector<1x128xf32>,
    %c3_i32 = arith.constant 3 : i32
    %41 = arith.cmpi eq, %arg0, %c3_i32 : i32
    %c0_i32_23 = arith.constant 0 : i32
    %42 = arith.cmpi eq, %arg1, %c0_i32_23 : i32
    %43 = arith.andi %41, %42 : i1
    %44 = arith.extui %43 : i1 to i32
    %c0_i32_24 = arith.constant 0 : i32
    %45 = arith.cmpi ne, %44, %c0_i32_24 : i32
    scf.if %45 {
      %c0_25 = arith.constant 0 : index
      %c0_26 = arith.constant 0 : index
      %46 = vector.load %arg7[%c0_25, %c0_26] : memref<2x128xf32, #tpu.memory_space<vmem>>, vector<1x128xf32>
      %cst_27 = arith.constant 3.125000e-02 : f32
      %47 = vector.broadcast %cst_27 : f32 to vector<1x128xf32>
      %48 = arith.mulf %46, %47 : vector<1x128xf32>
      %c1_28 = arith.constant 1 : index
      %c0_29 = arith.constant 0 : index
      %49 = vector.load %arg7[%c1_28, %c0_29] : memref<2x128xf32, #tpu.memory_space<vmem>>, vector<1x128xf32>
      %cst_30 = arith.constant 3.125000e-02 : f32
      %50 = vector.broadcast %cst_30 : f32 to vector<1x128xf32>
      %51 = arith.mulf %49, %50 : vector<1x128xf32>
      %52 = arith.mulf %48, %48 : vector<1x128xf32>
      %53 = arith.subf %51, %52 : vector<1x128xf32>
      %cst_31 = arith.constant 0.000000e+00 : f32
      %54 = vector.broadcast %cst_31 : f32 to vector<1x128xf32>
      %55 = arith.maximumf %53, %54 : vector<1x128xf32>
      %cst_32 = arith.constant 9.99999974E-6 : f32
      %56 = vector.broadcast %cst_32 : f32 to vector<1x128xf32>
      %57 = arith.addf %55, %56 : vector<1x128xf32>
      %58 = math.rsqrt %57 : vector<1x128xf32>
      %c0_33 = arith.constant 0 : index
      %c0_34 = arith.constant 0 : index
      %59 = vector.load %arg6[%c0_33, %c0_34] : memref<2x128xf32, #tpu.memory_space<vmem>>, vector<1x128xf32>
      tpu.vector_store %arg6[%c0_33, %c0_34], %58 {strides = array<i32>} : memref<2x128xf32, #tpu.memory_space<vmem>>, vector<1x128xf32>,
      %cst_35 = arith.constant 0.000000e+00 : f32
      %60 = vector.broadcast %cst_35 : f32 to vector<1x128xf32>
      %61 = arith.subf %60, %48 : vector<1x128xf32>
      %62 = arith.mulf %61, %58 : vector<1x128xf32>
      %c1_36 = arith.constant 1 : index
      %c0_37 = arith.constant 0 : index
      %63 = vector.load %arg6[%c1_36, %c0_37] : memref<2x128xf32, #tpu.memory_space<vmem>>, vector<1x128xf32>
      tpu.vector_store %arg6[%c1_36, %c0_37], %62 {strides = array<i32>} : memref<2x128xf32, #tpu.memory_space<vmem>>, vector<1x128xf32>,
    } else {
    }
    return
  }
  func.func @transform_0(%arg0: i32, %arg1: i32) -> (i32, i32, i32) {
    %c0_i32 = arith.constant 0 : i32
    %c0_i32_0 = arith.constant 0 : i32
    return %arg0, %arg1, %c0_i32 : i32, i32, i32
  }
  func.func @transform_1(%arg0: i32, %arg1: i32) -> (i32, i32, i32) {
    %c0_i32 = arith.constant 0 : i32
    %c0_i32_0 = arith.constant 0 : i32
    %c0_i32_1 = arith.constant 0 : i32
    return %arg0, %c0_i32, %c0_i32_0 : i32, i32, i32
  }
  func.func @transform_2(%arg0: i32, %arg1: i32) -> (i32, i32) {
    %c0_i32 = arith.constant 0 : i32
    %c0_i32_0 = arith.constant 0 : i32
    %c0_i32_1 = arith.constant 0 : i32
    return %c0_i32, %c0_i32_0 : i32, i32
  }
  func.func @transform_3(%arg0: i32, %arg1: i32) -> (i32, i32, i32) {
    %c0_i32 = arith.constant 0 : i32
    %c0_i32_0 = arith.constant 0 : i32
    return %arg0, %arg1, %c0_i32 : i32, i32, i32
  }
  func.func @transform_4(%arg0: i32, %arg1: i32) -> (i32, i32) {
    %c0_i32 = arith.constant 0 : i32
    %c0_i32_0 = arith.constant 0 : i32
    %c0_i32_1 = arith.constant 0 : i32
    return %c0_i32, %c0_i32_0 : i32, i32
  }
}

module attributes {stable_mosaic.version = 11 : i64} {
  func.func @kernel(%arg0: i32, %arg1: i32, %arg2: memref<1x32x256xbf16, #tpu.memory_space<vmem>>, %arg3: memref<1x256x128xbf16, #tpu.memory_space<vmem>>, %arg4: memref<1x128xf32, #tpu.memory_space<vmem>>, %arg5: memref<1x32x32xbf16, #tpu.memory_space<vmem>>, %arg6: memref<2x128xf32, #tpu.memory_space<vmem>>, %arg7: memref<2x128xf32, #tpu.memory_space<vmem>>) attributes {dimension_semantics = [#tpu.dimension_semantics<arbitrary>, #tpu.dimension_semantics<arbitrary>], iteration_bounds = array<i64: 4, 1>, scalar_prefetch = 0 : i64, scratch_operands = 1 : i64, tpu.core_type = #tpu.core_type<tc>, window_params = [{transform_indices = @transform_0, window_bounds = array<i64: 1, 32, 256>}, {transform_indices = @transform_1, window_bounds = array<i64: 1, 256, 128>}, {pipeline_mode = #tpu.pipeline_mode<synchronous>, transform_indices = @transform_2, window_bounds = array<i64: 1, 128>}, {transform_indices = @transform_3, window_bounds = array<i64: 1, 32, 32>}, {pipeline_mode = #tpu.pipeline_mode<synchronous>, transform_indices = @transform_4, window_bounds = array<i64: 2, 128>}]} {
    %c0_i32 = arith.constant 0 : i32
    %0 = arith.cmpi eq, %arg0, %c0_i32 : i32
    %c0_i32_0 = arith.constant 0 : i32
    %1 = arith.cmpi eq, %arg1, %c0_i32_0 : i32
    %2 = arith.andi %0, %1 : i1
    %3 = arith.extui %2 : i1 to i32
    %c0_i32_1 = arith.constant 0 : i32
    %4 = arith.cmpi ne, %3, %c0_i32_1 : i32
    scf.if %4 {
      %cst_24 = arith.constant 0.000000e+00 : f32
      %36 = vector.broadcast %cst_24 : f32 to vector<2x128xf32>
      %c0_25 = arith.constant 0 : index
      %c0_26 = arith.constant 0 : index
      %37 = vector.load %arg7[%c0_25, %c0_26] : memref<2x128xf32, #tpu.memory_space<vmem>>, vector<2x128xf32>
      tpu.vector_store %arg7[%c0_25, %c0_26], %36 {strides = array<i32>} : memref<2x128xf32, #tpu.memory_space<vmem>>, vector<2x128xf32>,
    } else {
    }
    %c0 = arith.constant 0 : index
    %c0_2 = arith.constant 0 : index
    %c0_3 = arith.constant 0 : index
    %5 = vector.load %arg2[%c0, %c0_2, %c0_3] : memref<1x32x256xbf16, #tpu.memory_space<vmem>>, vector<1x32x256xbf16>
    %6 = vector.shape_cast %5 : vector<1x32x256xbf16> to vector<32x256xbf16>
    %c0_4 = arith.constant 0 : index
    %c0_5 = arith.constant 0 : index
    %c0_6 = arith.constant 0 : index
    %7 = vector.load %arg3[%c0_4, %c0_5, %c0_6] : memref<1x256x128xbf16, #tpu.memory_space<vmem>>, vector<1x256x128xbf16>
    %8 = vector.shape_cast %7 : vector<1x256x128xbf16> to vector<256x128xbf16>
    %cst = arith.constant dense<0.000000e+00> : vector<32x128xf32>
    %9 = tpu.matmul %6, %8, %cst {dimension_numbers = #tpu.dot_dimension_numbers<[1], [0], [0], [1], [0, 0, 1, 1], [], []>} : vector<32x256xbf16>, vector<256x128xbf16>, vector<32x128xf32> -> vector<32x128xf32>
    %c0_7 = arith.constant 0 : index
    %c0_8 = arith.constant 0 : index
    %10 = vector.load %arg4[%c0_7, %c0_8] : memref<1x128xf32, #tpu.memory_space<vmem>>, vector<1x128xf32>
    %11 = vector.broadcast %10 : vector<1x128xf32> to vector<32x128xf32>
    %12 = arith.addf %9, %11 : vector<32x128xf32>
    %cst_9 = arith.constant 0.000000e+00 : f32
    %13 = vector.broadcast %cst_9 : f32 to vector<32x128xf32>
    %14 = arith.maximumf %12, %13 : vector<32x128xf32>
    %15 = vector.extract_strided_slice %14 {offsets = [0, 0], sizes = [32, 32], strides = [1, 1]} : vector<32x128xf32> to vector<32x32xf32>
    %16 = arith.truncf %15 : vector<32x32xf32> to vector<32x32xbf16>
    %c0_10 = arith.constant 0 : index
    %c0_11 = arith.constant 0 : index
    %c0_12 = arith.constant 0 : index
    %17 = vector.load %arg5[%c0_10, %c0_11, %c0_12] : memref<1x32x32xbf16, #tpu.memory_space<vmem>>, vector<1x32x32xbf16>
    %18 = vector.shape_cast %17 : vector<1x32x32xbf16> to vector<32x32xbf16>
    %19 = vector.shape_cast %16 : vector<32x32xbf16> to vector<1x32x32xbf16>
    tpu.vector_store %arg5[%c0_10, %c0_11, %c0_12], %19 {strides = array<i32>} : memref<1x32x32xbf16, #tpu.memory_space<vmem>>, vector<1x32x32xbf16>,
    %c0_13 = arith.constant 0 : index
    %c0_14 = arith.constant 0 : index
    %20 = vector.load %arg7[%c0_13, %c0_14] : memref<2x128xf32, #tpu.memory_space<vmem>>, vector<1x128xf32>
    %cst_15 = arith.constant dense<0.000000e+00> : vector<128xf32>
    %21 = vector.multi_reduction <add>, %14, %cst_15 [0] : vector<32x128xf32> to vector<128xf32>
    %22 = vector.shape_cast %21 : vector<128xf32> to vector<1x128xf32>
    %23 = arith.addf %20, %22 : vector<1x128xf32>
    %c0_16 = arith.constant 0 : index
    %c0_17 = arith.constant 0 : index
    %24 = vector.load %arg7[%c0_16, %c0_17] : memref<2x128xf32, #tpu.memory_space<vmem>>, vector<1x128xf32>
    tpu.vector_store %arg7[%c0_16, %c0_17], %23 {strides = array<i32>} : memref<2x128xf32, #tpu.memory_space<vmem>>, vector<1x128xf32>,
    %c1 = arith.constant 1 : index
    %c0_18 = arith.constant 0 : index
    %25 = vector.load %arg7[%c1, %c0_18] : memref<2x128xf32, #tpu.memory_space<vmem>>, vector<1x128xf32>
    %26 = arith.mulf %14, %14 : vector<32x128xf32>
    %cst_19 = arith.constant dense<0.000000e+00> : vector<128xf32>
    %27 = vector.multi_reduction <add>, %26, %cst_19 [0] : vector<32x128xf32> to vector<128xf32>
    %28 = vector.shape_cast %27 : vector<128xf32> to vector<1x128xf32>
    %29 = arith.addf %25, %28 : vector<1x128xf32>
    %c1_20 = arith.constant 1 : index
    %c0_21 = arith.constant 0 : index
    %30 = vector.load %arg7[%c1_20, %c0_21] : memref<2x128xf32, #tpu.memory_space<vmem>>, vector<1x128xf32>
    tpu.vector_store %arg7[%c1_20, %c0_21], %29 {strides = array<i32>} : memref<2x128xf32, #tpu.memory_space<vmem>>, vector<1x128xf32>,
    %c3_i32 = arith.constant 3 : i32
    %31 = arith.cmpi eq, %arg0, %c3_i32 : i32
    %c0_i32_22 = arith.constant 0 : i32
    %32 = arith.cmpi eq, %arg1, %c0_i32_22 : i32
    %33 = arith.andi %31, %32 : i1
    %34 = arith.extui %33 : i1 to i32
    %c0_i32_23 = arith.constant 0 : i32
    %35 = arith.cmpi ne, %34, %c0_i32_23 : i32
    scf.if %35 {
      %c0_24 = arith.constant 0 : index
      %c0_25 = arith.constant 0 : index
      %36 = vector.load %arg7[%c0_24, %c0_25] : memref<2x128xf32, #tpu.memory_space<vmem>>, vector<1x128xf32>
      %cst_26 = arith.constant 7.812500e-03 : f32
      %37 = vector.broadcast %cst_26 : f32 to vector<1x128xf32>
      %38 = arith.mulf %36, %37 : vector<1x128xf32>
      %c1_27 = arith.constant 1 : index
      %c0_28 = arith.constant 0 : index
      %39 = vector.load %arg7[%c1_27, %c0_28] : memref<2x128xf32, #tpu.memory_space<vmem>>, vector<1x128xf32>
      %cst_29 = arith.constant 7.812500e-03 : f32
      %40 = vector.broadcast %cst_29 : f32 to vector<1x128xf32>
      %41 = arith.mulf %39, %40 : vector<1x128xf32>
      %42 = arith.mulf %38, %38 : vector<1x128xf32>
      %43 = arith.subf %41, %42 : vector<1x128xf32>
      %cst_30 = arith.constant 0.000000e+00 : f32
      %44 = vector.broadcast %cst_30 : f32 to vector<1x128xf32>
      %45 = arith.maximumf %43, %44 : vector<1x128xf32>
      %cst_31 = arith.constant 9.99999974E-6 : f32
      %46 = vector.broadcast %cst_31 : f32 to vector<1x128xf32>
      %47 = arith.addf %45, %46 : vector<1x128xf32>
      %48 = math.rsqrt %47 : vector<1x128xf32>
      %c0_32 = arith.constant 0 : index
      %c0_33 = arith.constant 0 : index
      %49 = vector.load %arg6[%c0_32, %c0_33] : memref<2x128xf32, #tpu.memory_space<vmem>>, vector<1x128xf32>
      tpu.vector_store %arg6[%c0_32, %c0_33], %48 {strides = array<i32>} : memref<2x128xf32, #tpu.memory_space<vmem>>, vector<1x128xf32>,
      %cst_34 = arith.constant 0.000000e+00 : f32
      %50 = vector.broadcast %cst_34 : f32 to vector<1x128xf32>
      %51 = arith.subf %50, %38 : vector<1x128xf32>
      %52 = arith.mulf %51, %48 : vector<1x128xf32>
      %c1_35 = arith.constant 1 : index
      %c0_36 = arith.constant 0 : index
      %53 = vector.load %arg6[%c1_35, %c0_36] : memref<2x128xf32, #tpu.memory_space<vmem>>, vector<1x128xf32>
      tpu.vector_store %arg6[%c1_35, %c0_36], %52 {strides = array<i32>} : memref<2x128xf32, #tpu.memory_space<vmem>>, vector<1x128xf32>,
    } else {
    }
    return
  }
  func.func @transform_0(%arg0: i32, %arg1: i32) -> (i32, i32, i32) {
    %c0_i32 = arith.constant 0 : i32
    %c0_i32_0 = arith.constant 0 : i32
    return %arg0, %arg1, %c0_i32 : i32, i32, i32
  }
  func.func @transform_1(%arg0: i32, %arg1: i32) -> (i32, i32, i32) {
    %c0_i32 = arith.constant 0 : i32
    %c0_i32_0 = arith.constant 0 : i32
    %c0_i32_1 = arith.constant 0 : i32
    return %arg0, %c0_i32, %c0_i32_0 : i32, i32, i32
  }
  func.func @transform_2(%arg0: i32, %arg1: i32) -> (i32, i32) {
    %c0_i32 = arith.constant 0 : i32
    %c0_i32_0 = arith.constant 0 : i32
    %c0_i32_1 = arith.constant 0 : i32
    return %c0_i32, %c0_i32_0 : i32, i32
  }
  func.func @transform_3(%arg0: i32, %arg1: i32) -> (i32, i32, i32) {
    %c0_i32 = arith.constant 0 : i32
    %c0_i32_0 = arith.constant 0 : i32
    return %arg0, %arg1, %c0_i32 : i32, i32, i32
  }
  func.func @transform_4(%arg0: i32, %arg1: i32) -> (i32, i32) {
    %c0_i32 = arith.constant 0 : i32
    %c0_i32_0 = arith.constant 0 : i32
    %c0_i32_1 = arith.constant 0 : i32
    return %c0_i32, %c0_i32_0 : i32, i32
  }
}

module attributes {stable_mosaic.version = 11 : i64} {
  func.func @_final_combine_kernel(%arg0: i32, %arg1: i32, %arg2: memref<1x128x128xbf16, #tpu.memory_space<vmem>>, %arg3: memref<1x128x128xbf16, #tpu.memory_space<vmem>>, %arg4: memref<1x128x32xbf16, #tpu.memory_space<vmem>>, %arg5: memref<32x128xbf16, #tpu.memory_space<vmem>>, %arg6: memref<3x128xf32, #tpu.memory_space<vmem>>, %arg7: memref<1x128x1xf32, #tpu.memory_space<vmem>>) attributes {dimension_semantics = [#tpu.dimension_semantics<parallel>, #tpu.dimension_semantics<parallel>], iteration_bounds = array<i64: 4, 1>, scalar_prefetch = 0 : i64, scratch_operands = 0 : i64, tpu.core_type = #tpu.core_type<tc>, window_params = [{transform_indices = @transform_0, window_bounds = array<i64: 1, 128, 128>}, {transform_indices = @transform_1, window_bounds = array<i64: 1, 128, 128>}, {transform_indices = @transform_2, window_bounds = array<i64: 1, 128, 32>}, {pipeline_mode = #tpu.pipeline_mode<synchronous>, transform_indices = @transform_3, window_bounds = array<i64: 32, 128>}, {pipeline_mode = #tpu.pipeline_mode<synchronous>, transform_indices = @transform_4, window_bounds = array<i64: 3, 128>}, {transform_indices = @transform_5, window_bounds = array<i64: 1, 128, 1>}]} {
    %c0 = arith.constant 0 : index
    %c0_0 = arith.constant 0 : index
    %c0_1 = arith.constant 0 : index
    %0 = vector.load %arg2[%c0, %c0_0, %c0_1] : memref<1x128x128xbf16, #tpu.memory_space<vmem>>, vector<1x128x128xbf16>
    %1 = vector.shape_cast %0 : vector<1x128x128xbf16> to vector<128x128xbf16>
    %c0_2 = arith.constant 0 : index
    %c0_3 = arith.constant 0 : index
    %c0_4 = arith.constant 0 : index
    %2 = vector.load %arg3[%c0_2, %c0_3, %c0_4] : memref<1x128x128xbf16, #tpu.memory_space<vmem>>, vector<1x128x128xbf16>
    %3 = vector.shape_cast %2 : vector<1x128x128xbf16> to vector<128x128xbf16>
    %cst = arith.constant dense<0.000000e+00> : vector<128x128xf32>
    %4 = tpu.matmul %1, %3, %cst {dimension_numbers = #tpu.dot_dimension_numbers<[1], [0], [0], [1], [0, 0, 1, 1], [], []>} : vector<128x128xbf16>, vector<128x128xbf16>, vector<128x128xf32> -> vector<128x128xf32>
    %c0_5 = arith.constant 0 : index
    %c0_6 = arith.constant 0 : index
    %5 = vector.load %arg6[%c0_5, %c0_6] : memref<3x128xf32, #tpu.memory_space<vmem>>, vector<1x128xf32>
    %6 = vector.broadcast %5 : vector<1x128xf32> to vector<128x128xf32>
    %7 = arith.addf %4, %6 : vector<128x128xf32>
    %cst_7 = arith.constant 0.000000e+00 : f32
    %8 = vector.broadcast %cst_7 : f32 to vector<128x128xf32>
    %9 = arith.maximumf %7, %8 : vector<128x128xf32>
    %c0_8 = arith.constant 0 : index
    %c0_9 = arith.constant 0 : index
    %c0_10 = arith.constant 0 : index
    %10 = vector.load %arg4[%c0_8, %c0_9, %c0_10] : memref<1x128x32xbf16, #tpu.memory_space<vmem>>, vector<1x128x32xbf16>
    %11 = vector.shape_cast %10 : vector<1x128x32xbf16> to vector<128x32xbf16>
    %c0_11 = arith.constant 0 : index
    %c0_12 = arith.constant 0 : index
    %12 = vector.load %arg5[%c0_11, %c0_12] : memref<32x128xbf16, #tpu.memory_space<vmem>>, vector<32x128xbf16>
    %cst_13 = arith.constant dense<0.000000e+00> : vector<128x128xf32>
    %13 = tpu.matmul %11, %12, %cst_13 {dimension_numbers = #tpu.dot_dimension_numbers<[1], [0], [0], [1], [0, 0, 1, 1], [], []>} : vector<128x32xbf16>, vector<32x128xbf16>, vector<128x128xf32> -> vector<128x128xf32>
    %14 = vector.extract_strided_slice %9 {offsets = [0, 0], sizes = [128, 1], strides = [1, 1]} : vector<128x128xf32> to vector<128x1xf32>
    %c1 = arith.constant 1 : index
    %c0_14 = arith.constant 0 : index
    %15 = vector.load %arg6[%c1, %c0_14] : memref<3x128xf32, #tpu.memory_space<vmem>>, vector<1x1xf32>
    %16 = vector.broadcast %15 : vector<1x1xf32> to vector<128x1xf32>
    %17 = arith.mulf %14, %16 : vector<128x1xf32>
    %18 = vector.extract_strided_slice %13 {offsets = [0, 0], sizes = [128, 1], strides = [1, 1]} : vector<128x128xf32> to vector<128x1xf32>
    %19 = arith.addf %17, %18 : vector<128x1xf32>
    %c2 = arith.constant 2 : index
    %c0_15 = arith.constant 0 : index
    %20 = vector.load %arg6[%c2, %c0_15] : memref<3x128xf32, #tpu.memory_space<vmem>>, vector<1x1xf32>
    %21 = vector.broadcast %20 : vector<1x1xf32> to vector<128x1xf32>
    %22 = arith.addf %19, %21 : vector<128x1xf32>
    %c0_16 = arith.constant 0 : index
    %c0_17 = arith.constant 0 : index
    %c0_18 = arith.constant 0 : index
    %23 = vector.load %arg7[%c0_16, %c0_17, %c0_18] : memref<1x128x1xf32, #tpu.memory_space<vmem>>, vector<1x128x1xf32>
    %24 = vector.shape_cast %23 : vector<1x128x1xf32> to vector<128x1xf32>
    %25 = vector.shape_cast %22 : vector<128x1xf32> to vector<1x128x1xf32>
    tpu.vector_store %arg7[%c0_16, %c0_17, %c0_18], %25 {strides = array<i32>} : memref<1x128x1xf32, #tpu.memory_space<vmem>>, vector<1x128x1xf32>,
    return
  }
  func.func @transform_0(%arg0: i32, %arg1: i32) -> (i32, i32, i32) {
    %c0_i32 = arith.constant 0 : i32
    %c0_i32_0 = arith.constant 0 : i32
    return %arg0, %arg1, %c0_i32 : i32, i32, i32
  }
  func.func @transform_1(%arg0: i32, %arg1: i32) -> (i32, i32, i32) {
    %c0_i32 = arith.constant 0 : i32
    %c0_i32_0 = arith.constant 0 : i32
    %c0_i32_1 = arith.constant 0 : i32
    return %arg0, %c0_i32, %c0_i32_0 : i32, i32, i32
  }
  func.func @transform_2(%arg0: i32, %arg1: i32) -> (i32, i32, i32) {
    %c0_i32 = arith.constant 0 : i32
    %c0_i32_0 = arith.constant 0 : i32
    return %arg0, %arg1, %c0_i32 : i32, i32, i32
  }
  func.func @transform_3(%arg0: i32, %arg1: i32) -> (i32, i32) {
    %c0_i32 = arith.constant 0 : i32
    %c0_i32_0 = arith.constant 0 : i32
    %c0_i32_1 = arith.constant 0 : i32
    return %c0_i32, %c0_i32_0 : i32, i32
  }
  func.func @transform_4(%arg0: i32, %arg1: i32) -> (i32, i32) {
    %c0_i32 = arith.constant 0 : i32
    %c0_i32_0 = arith.constant 0 : i32
    %c0_i32_1 = arith.constant 0 : i32
    return %c0_i32, %c0_i32_0 : i32, i32
  }
  func.func @transform_5(%arg0: i32, %arg1: i32) -> (i32, i32, i32) {
    %c0_i32 = arith.constant 0 : i32
    %c0_i32_0 = arith.constant 0 : i32
    return %arg0, %arg1, %c0_i32 : i32, i32, i32
  }
}

</mosaic_0001>

<llo_original>
// kernel: reverse.3
$region0: #{reverse.3}
  %s0 = inlined_call_operand.vmem [shape: f32[3,5120], index: 0, kind: input, shape index: {}]
  %s1 = inlined_call_operand.vmem [shape: f32[3,5120], index: 1, kind: output, shape index: {}]
  %v2 = vlaneseq
  %v3 = vsub.s32 127, %v2
  %4 = vset.pattern.permute.xlu0 %v3
  $region1: #{reverse.3} parent=0
    #allocation0 [shape = 'u8[4096]{0}', space=vmem, size = 0x1000, scoped, tag = 'operand span for operand 0']
    #allocation1 [shape = 'u8[4096]{0}', space=vmem, size = 0x1000, scoped, tag = 'packed  for operand 0']
    #allocation2 [shape = 'u8[4096]{0}', space=vmem, size = 0x1000, scoped, tag = 'operand span for operand 1']
    #allocation3 [shape = 'u8[4096]{0}', space=vmem, size = 0x1000, scoped, tag = 'packed  for operand 1']
    loop: start=0, step=1, limit=42
    $region2: #{reverse.3} parent=1 // loop_pre_header
      _
    $region3: #{reverse.3} parent=1 // loop_header
      %s6 = sphi 0, %s10
      %p7 = scmp.ge.s32.totalorder %s6, 42
      %s13 = sphi 0, %s25
      %s14 = sphi 0, %s21
      %s15 = sphi 0, %s13
      %s16 = sphi 0, %s14
      %s17 = sphi 0, %s15
      %s18 = sphi 0, %s16
    $region4: #{reverse.3} parent=1 // loop_header_branch
      %9 = sbr.rel (%p7) target = $region8
    $region5: #{reverse.3} parent=1 // loop_body
      %s11 = ssub.s32 %s6, 1
      %s12 = ssub.s32 %s6, 2
      %s19 = sadd.s32 1, %s14
      %p20 = scmp.ge.s32.totalorder %s19, 40
      %s21 = scalar_select %p20, 0, %s19
      %s22 = sadd.s32 1, %s13
      %s23 = scalar_select %p20, %s22, %s13
      %p24 = scmp.ge.s32.totalorder %s23, 1
      %s25 = scalar_select %p24, 0, %s23
      %p26 = scmp.le.s32.totalorder 1, %s6
      %p27 = scmp.lt.s32.totalorder %s6, 41
      %p28 = pnand %p26, %p27
      %p29 = pneg %p28
      // Predicated region
      $region9: #{reverse.3} parent=5 // pred_check
        _
      $region10: #{reverse.3} parent=5 // pred_check_branch
        %31 = sbr.rel (%p28) target = $region12
      $region11: #{reverse.3} parent=5 // pred_region
        %s32 = ssub.s32 %s6, 1
      $region12: #{reverse.3} parent=5 // pred_fallthru
        _
      %p33 = scmp.lt.s32.totalorder %s6, 40
      // Predicated region
      $region13: #{reverse.3} parent=5 // pred_check
        %p34 = pneg %p33
      $region14: #{reverse.3} parent=5 // pred_check_branch
        %36 = sbr.rel (%p34) target = $region16
      $region15: #{reverse.3} parent=5 // pred_region
        %s37 = sand.u32 %s6, 1
        %s38 = sand.u32 %s6, 1
        %s39 = smul.addr %s38, 4
        %s40 = scalar_lea.vmem [#allocation1], %s39
        %s41 = ssub.s32 39, %s14
        %s42 = smul.addr %s13, 40
        %s43 = sadd.s32 %s41, %s42
        %s44 = smul.addr %s43, 4
        %s45 = scalar_lea.vmem %s0, %s44
        // Predicated region
        $region17: #{reverse.3} parent=15 // pred_check
          _
        $region18: #{reverse.3} parent=15 // pred_check_branch
          %47 = sbr.rel (0) target = $region20
        $region19: #{reverse.3} parent=15 // pred_region
          // Predicated region
          $region21: #{reverse.3} parent=19 // pred_check
            _
          $region22: #{reverse.3} parent=19 // pred_check_branch
            %49 = sbr.rel target = $region24
          $region23: #{reverse.3} parent=19 // pred_region
            // Predicated region
            $region36: #{reverse.3} parent=23 // pred_check
              _
            $region37: #{reverse.3} parent=23 // pred_check_branch
              %64 = sbr.rel (0) target = $region39
            $region38: #{reverse.3} parent=23 // pred_region
              loop: start=0, step=1, limit=1
              $region40: #{reverse.3} parent=38 // loop_pre_header
                _
              $region41: #{reverse.3} parent=38 // loop_header
                %s67 = sphi 0, %s71
                %p68 = scmp.ge.s32.totalorder %s67, 1
                %s72 = sphi %s45, %s45
                %s73 = sphi %s40, %s40
              $region42: #{reverse.3} parent=38 // loop_header_branch
                %70 = sbr.rel (%p68) target = $region46
              $region43: #{reverse.3} parent=38 // loop_body
                %v74 = vld [vmem:[%s72] sm:$0xf]
                %75 = vst [vmem:[%s73] sm:$0xf] %v74
              $region44: #{reverse.3} parent=38 // loop_footer
                %s71 = sadd.s32 1, %s67
              $region45: #{reverse.3} parent=38 // loop_footer_branch
                %66 = sbr.rel target = $region41
              $region46: #{reverse.3} parent=38 // loop_exit
                _
            $region39: #{reverse.3} parent=23 // pred_fallthru
              _
          $region24: #{reverse.3} parent=19 // pred_fallthru
            _
          // Predicated region
          $region25: #{reverse.3} parent=19 // pred_check
            _
          $region26: #{reverse.3} parent=19 // pred_check_branch
            %51 = sbr.rel (0) target = $region28
          $region27: #{reverse.3} parent=19 // pred_region
            loop: start=0, step=1, limit=1
            $region29: #{reverse.3} parent=27 // loop_pre_header
              _
            $region30: #{reverse.3} parent=27 // loop_header
              %s54 = sphi 0, %s58
              %p55 = scmp.ge.s32.totalorder %s54, 1
              %s59 = sphi %s45, %s45
              %s60 = sphi %s40, %s40
            $region31: #{reverse.3} parent=27 // loop_header_branch
              %57 = sbr.rel (%p55) target = $region35
            $region32: #{reverse.3} parent=27 // loop_body
              %v61 = vld [vmem:[%s59] sm:$0xf]
              %62 = vst [vmem:[%s60] sm:$0xf] %v61
            $region33: #{reverse.3} parent=27 // loop_footer
              %s58 = sadd.s32 1, %s54
            $region34: #{reverse.3} parent=27 // loop_footer_branch
              %53 = sbr.rel target = $region30
            $region35: #{reverse.3} parent=27 // loop_exit
              _
          $region28: #{reverse.3} parent=19 // pred_fallthru
            _
        $region20: #{reverse.3} parent=15 // pred_fallthru
          _
        %76 = vnop
      $region16: #{reverse.3} parent=5 // pred_fallthru
        _
      %p77 = scmp.le.s32.totalorder 1, %s6
      %p78 = scmp.lt.s32.totalorder %s6, 41
      %p79 = pnand %p77, %p78
      %p80 = pneg %p79
      // Predicated region
      $region47: #{reverse.3} parent=5 // pred_check
        _
      $region48: #{reverse.3} parent=5 // pred_check_branch
        %82 = sbr.rel (%p79) target = $region50
      $region49: #{reverse.3} parent=5 // pred_region
        %s83 = ssub.s32 %s6, 1
        %s84 = sand.u32 %s11, 1
        %s85 = sand.u32 %s11, 1
        %s86 = smul.addr %s85, 4
        %s87 = scalar_lea.vmem [#allocation1], %s86
        %s88 = sand.u32 %s11, 1
        %s89 = sand.u32 %s11, 1
        %s90 = smul.addr %s89, 4
        %s91 = scalar_lea.vmem [#allocation1], %s90
        %s92 = sand.u32 %s11, 1
        %s93 = sand.u32 %s11, 1
        %s94 = smul.addr %s93, 4
        %s95 = scalar_lea.vmem [#allocation3], %s94
        %s97 = sshllo.u32 0, 4
        %v98 = vld [vmem:[%s91] sm:%s97]
        %99 = vst [vmem:[#allocation0] sm:%s97] %v98
        %s100 = ssub.s32 39, %s16
        %v101 = vld [vmem:[#allocation0] sm:$0xff]
        %102 = vperm.xlu0 %4, %v101
        %v103 = vpop.permute.xlu0 %102
        %104 = vst [vmem:[#allocation2] sm:$0xff] %v103
        %s106 = sshllo.u32 0, 4
        %v108 = vld [vmem:[#allocation2] sm:%s106]
        %s109 = sshllo.u32 0, 4
        %110 = vst [vmem:[%s95] sm:%s109] %v108
        %s111 = sand.u32 %s11, 1
        %s112 = sand.u32 %s11, 1
        %s113 = smul.addr %s112, 4
        %s114 = scalar_lea.vmem [#allocation3], %s113
        %s115 = smul.addr %s15, 40
        %s116 = sadd.s32 %s16, %s115
        %s117 = smul.addr %s116, 4
        %s118 = scalar_lea.vmem %s1, %s117
        // Predicated region
        $region51: #{reverse.3} parent=49 // pred_check
          _
        $region52: #{reverse.3} parent=49 // pred_check_branch
          %120 = sbr.rel (0) target = $region54
        $region53: #{reverse.3} parent=49 // pred_region
          // Predicated region
          $region55: #{reverse.3} parent=53 // pred_check
            _
          $region56: #{reverse.3} parent=53 // pred_check_branch
            %122 = sbr.rel target = $region58
          $region57: #{reverse.3} parent=53 // pred_region
            // Predicated region
            $region70: #{reverse.3} parent=57 // pred_check
              _
            $region71: #{reverse.3} parent=57 // pred_check_branch
              %137 = sbr.rel (0) target = $region73
            $region72: #{reverse.3} parent=57 // pred_region
              loop: start=0, step=1, limit=1
              $region74: #{reverse.3} parent=72 // loop_pre_header
                _
              $region75: #{reverse.3} parent=72 // loop_header
                %s140 = sphi 0, %s144
                %p141 = scmp.ge.s32.totalorder %s140, 1
                %s145 = sphi %s114, %s114
                %s146 = sphi %s118, %s118
              $region76: #{reverse.3} parent=72 // loop_header_branch
                %143 = sbr.rel (%p141) target = $region80
              $region77: #{reverse.3} parent=72 // loop_body
                %v147 = vld [vmem:[%s145] sm:$0xf]
                %148 = vst [vmem:[%s146] sm:$0xf] %v147
              $region78: #{reverse.3} parent=72 // loop_footer
                %s144 = sadd.s32 1, %s140
              $region79: #{reverse.3} parent=72 // loop_footer_branch
                %139 = sbr.rel target = $region75
              $region80: #{reverse.3} parent=72 // loop_exit
                _
            $region73: #{reverse.3} parent=57 // pred_fallthru
              _
          $region58: #{reverse.3} parent=53 // pred_fallthru
            _
          // Predicated region
          $region59: #{reverse.3} parent=53 // pred_check
            _
          $region60: #{reverse.3} parent=53 // pred_check_branch
            %124 = sbr.rel (0) target = $region62
          $region61: #{reverse.3} parent=53 // pred_region
            loop: start=0, step=1, limit=1
            $region63: #{reverse.3} parent=61 // loop_pre_header
              _
            $region64: #{reverse.3} parent=61 // loop_header
              %s127 = sphi 0, %s131
              %p128 = scmp.ge.s32.totalorder %s127, 1
              %s132 = sphi %s114, %s114
              %s133 = sphi %s118, %s118
            $region65: #{reverse.3} parent=61 // loop_header_branch
              %130 = sbr.rel (%p128) target = $region69
            $region66: #{reverse.3} parent=61 // loop_body
              %v134 = vld [vmem:[%s132] sm:$0xf]
              %135 = vst [vmem:[%s133] sm:$0xf] %v134
            $region67: #{reverse.3} parent=61 // loop_footer
              %s131 = sadd.s32 1, %s127
            $region68: #{reverse.3} parent=61 // loop_footer_branch
              %126 = sbr.rel target = $region64
            $region69: #{reverse.3} parent=61 // loop_exit
              _
          $region62: #{reverse.3} parent=53 // pred_fallthru
            _
        $region54: #{reverse.3} parent=49 // pred_fallthru
          _
        %149 = vnop
      $region50: #{reverse.3} parent=5 // pred_fallthru
        _
      %p150 = scmp.le.s32.totalorder 2, %s6
      // Predicated region
      $region81: #{reverse.3} parent=5 // pred_check
        %p151 = pneg %p150
      $region82: #{reverse.3} parent=5 // pred_check_branch
        %153 = sbr.rel (%p151) target = $region84
      $region83: #{reverse.3} parent=5 // pred_region
        %s154 = ssub.s32 %s6, 2
        %s155 = sand.u32 %s12, 1
        %s156 = sand.u32 %s12, 1
        %s157 = smul.addr %s156, 4
        %s158 = scalar_lea.vmem [#allocation3], %s157
      $region84: #{reverse.3} parent=5 // pred_fallthru
        _
    $region6: #{reverse.3} parent=1 // loop_footer
      %s10 = sadd.s32 1, %s6
    $region7: #{reverse.3} parent=1 // loop_footer_branch
      %5 = sbr.rel target = $region3
    $region8: #{reverse.3} parent=1 // loop_exit
      _

// kernel: cnn_forward.14
$region0: #{cnn_forward.14}
  #allocation0 [shape = 'u32[]', space=smem, size = 0x4, offset = 0x4, fixed_abs, tag = 'smem constant byte address 0x4 - core index']
  #allocation1 [shape = 'u32[144,128]{1,0:T(1,128)}', space=vmem, size = 0x12000, scoped, tag = 'internal scratch']
  #allocation2 [shape = 'f32[1,512,128]{2,1,0:T(8,128)}', space=vmem, size = 0x40000, scoped, tag = 'scratch operand']
  #allocation3 [shape = 'f32[2,128]{1,0:T(2,128)}', space=vmem, size = 0x400, scoped, tag = 'scratch operand']
  #allocation4 [shape = 'f32[2,128]{1,0:T(2,128)}', space=vmem, size = 0x400, scoped, tag = 'scratch operand']
  %s0 = inlined_call_operand.vmem [shape: bf16[512,16], index: 0, kind: input, shape index: {}]
  %s1 = inlined_call_operand.vmem [shape: bf16[16,128], index: 1, kind: input, shape index: {}]
  %s2 = inlined_call_operand.vmem [shape: bf16[512,32], index: 2, kind: output, shape index: {}]
  %s3 = sld [smem:[#allocation0]]
  $region57: #{cnn_forward.14} parent=0
    _
  %s5 = ssub.s32 1, %s3
  %s6 = scalar_select 0, %s5, %s3
  loop: start=0, step=1, limit=4
  $region2: #{cnn_forward.14} parent=0 // loop_pre_header
    _
  $region3: #{cnn_forward.14} parent=0 // loop_header
    %s8 = sphi 0, %s12
    %p9 = scmp.ge.s32.totalorder %s8, 4
    %s15 = sphi 0, %s27
    %s16 = sphi 0, %s23
    %s17 = sphi 0, %s15
    %s18 = sphi 0, %s16
    %s19 = sphi 0, %s17
    %s20 = sphi 0, %s18
    %s34 = sphi 0, %s36
    %s37 = sphi 0, %s34
    %s38 = sphi 0, %s37
    %s54 = sphi 0, %s38
    %s58 = sphi 0, %s58
    %s60 = sphi 0, %s58
    %s61 = sphi 0, %s60
    %s75 = sphi 0, %s61
    %s83 = sphi 0, %s85
    %s86 = sphi 0, %s83
    %s87 = sphi 0, %s86
    %s103 = sphi 0, %s87
  $region4: #{cnn_forward.14} parent=0 // loop_header_branch
    %11 = sbr.rel (%p9) target = $region8
  $region5: #{cnn_forward.14} parent=0 // loop_body
    %s13 = ssub.s32 %s8, 1
    %s14 = ssub.s32 %s8, 2
    %s21 = sadd.s32 1, %s16
    %p22 = scmp.ge.s32.totalorder %s21, 1
    %s23 = scalar_select %p22, 0, %s21
    %s24 = sadd.s32 1, %s15
    %s25 = scalar_select %p22, %s24, %s15
    %p26 = scmp.ge.s32.totalorder %s25, 2
    %s27 = scalar_select %p26, 0, %s25
    %s28 = ssub.s32 1, %s15
    %s29 = smul.u32 %s16, %s28
    %s30 = ssub.s32 1, %s27
    %s31 = smul.u32 %s23, %s30
    %s32 = ssub.s32 %s29, %s31
    %p33 = scmp.eq.s32.totalorder %s32, 0
    %s35 = sadd.s32 %s34, 1
    %s36 = scalar_select %p33, %s34, %s35
    %p39 = pneg %p33
    %p40 = scmp.eq.s32.totalorder %s8, 1
    %p41 = por %p39, %p40
    %p42 = scmp.ne.s32.totalorder %s34, %s37
    %p43 = scmp.eq.s32.totalorder %s8, 0
    %p44 = por %p42, %p43
    %p45 = scmp.ne.s32.totalorder %s34, %s37
    %p46 = scmp.eq.s32.totalorder %s13, 1
    %p47 = por %p45, %p46
    %p48 = scmp.ne.s32.totalorder %s37, %s38
    %p49 = scmp.eq.s32.totalorder %s13, 0
    %p50 = por %p48, %p49
    %p51 = scmp.ne.s32.totalorder %s37, %s38
    %p52 = scmp.eq.s32.totalorder %s14, 1
    %p53 = por %p51, %p52
    %p55 = scmp.ne.s32.totalorder %s38, %s54
    %p56 = scmp.eq.s32.totalorder %s14, 0
    %p57 = por %p55, %p56
    %s59 = sadd.s32 %s58, 1
    %p62 = scmp.eq.s32.totalorder %s8, 1
    %p63 = scmp.ne.s32.totalorder %s58, %s60
    %p64 = scmp.eq.s32.totalorder %s8, 0
    %p65 = por %p63, %p64
    %p66 = scmp.ne.s32.totalorder %s58, %s60
    %p67 = scmp.eq.s32.totalorder %s13, 1
    %p68 = por %p66, %p67
    %p69 = scmp.ne.s32.totalorder %s60, %s61
    %p70 = scmp.eq.s32.totalorder %s13, 0
    %p71 = por %p69, %p70
    %p72 = scmp.ne.s32.totalorder %s60, %s61
    %p73 = scmp.eq.s32.totalorder %s14, 1
    %p74 = por %p72, %p73
    %p76 = scmp.ne.s32.totalorder %s61, %s75
    %p77 = scmp.eq.s32.totalorder %s14, 0
    %p78 = por %p76, %p77
    %s79 = smul.u32 %s16, %s15
    %s80 = smul.u32 %s23, %s27
    %s81 = ssub.s32 %s79, %s80
    %p82 = scmp.eq.s32.totalorder %s81, 0
    %s84 = sadd.s32 %s83, 1
    %s85 = scalar_select %p82, %s83, %s84
    %p88 = pneg %p82
    %p89 = scmp.eq.s32.totalorder %s8, 1
    %p90 = por %p88, %p89
    %p91 = scmp.ne.s32.totalorder %s83, %s86
    %p92 = scmp.eq.s32.totalorder %s8, 0
    %p93 = por %p91, %p92
    %p94 = scmp.ne.s32.totalorder %s83, %s86
    %p95 = scmp.eq.s32.totalorder %s13, 1
    %p96 = por %p94, %p95
    %p97 = scmp.ne.s32.totalorder %s86, %s87
    %p98 = scmp.eq.s32.totalorder %s13, 0
    %p99 = por %p97, %p98
    %p100 = scmp.ne.s32.totalorder %s86, %s87
    %p101 = scmp.eq.s32.totalorder %s14, 1
    %p102 = por %p100, %p101
    %p104 = scmp.ne.s32.totalorder %s87, %s103
    %p105 = scmp.eq.s32.totalorder %s14, 0
    %p106 = por %p104, %p105
    %p107 = scmp.le.s32.totalorder 1, %s8
    %p108 = scmp.lt.s32.totalorder %s8, 3
    %p109 = pnand %p107, %p108
    %p110 = pneg %p109
    // Predicated region
    $region9: #{cnn_forward.14} parent=5 // pred_check
      _
    $region10: #{cnn_forward.14} parent=5 // pred_check_branch
      %112 = sbr.rel (%p109) target = $region12
    $region11: #{cnn_forward.14} parent=5 // pred_region
      %s113 = ssub.s32 %s8, 1
      // Predicated region
      $region13: #{cnn_forward.14} parent=11 // pred_check
        %p114 = pneg %p71
      $region14: #{cnn_forward.14} parent=11 // pred_check_branch
        %116 = sbr.rel (%p114) target = $region16
      $region15: #{cnn_forward.14} parent=11 // pred_region
        _
      $region16: #{cnn_forward.14} parent=11 // pred_fallthru
        _
    $region12: #{cnn_forward.14} parent=5 // pred_fallthru
      _
    %p117 = scmp.lt.s32.totalorder %s8, 2
    // Predicated region
    $region17: #{cnn_forward.14} parent=5 // pred_check
      %p118 = pneg %p117
    $region18: #{cnn_forward.14} parent=5 // pred_check_branch
      %120 = sbr.rel (%p118) target = $region20
    $region19: #{cnn_forward.14} parent=5 // pred_region
      // Predicated region
      $region21: #{cnn_forward.14} parent=19 // pred_check
        %p121 = pneg %p44
      $region22: #{cnn_forward.14} parent=19 // pred_check_branch
        %123 = sbr.rel (%p121) target = $region24
      $region23: #{cnn_forward.14} parent=19 // pred_region
        %s124 = ssub.s32 1, %s15
        %s125 = smul.u32 %s16, %s124
        %s126 = smul.u32 64, %s125
        %p127 = scmp.lt.s32.totalorder %s126, 63
        %s128 = scalar_select %p127, %s126, 63
        %s129 = smul.addr %s128, 4
        %s130 = scalar_lea.vmem %s0, %s129
        %s131 = ssub.s32 1, %s15
        %s132 = smul.u32 %s16, %s131
        %s133 = smul.u32 64, %s132
      $region24: #{cnn_forward.14} parent=19 // pred_fallthru
        _
    $region20: #{cnn_forward.14} parent=5 // pred_fallthru
      _
    %p134 = scmp.le.s32.totalorder 1, %s8
    %p135 = scmp.lt.s32.totalorder %s8, 3
    %p136 = pnand %p134, %p135
    %p137 = pneg %p136
    // Predicated region
    $region25: #{cnn_forward.14} parent=5 // pred_check
      _
    $region26: #{cnn_forward.14} parent=5 // pred_check_branch
      %139 = sbr.rel (%p136) target = $region28
    $region27: #{cnn_forward.14} parent=5 // pred_region
      %s140 = ssub.s32 %s8, 1
      %s141 = ssub.s32 1, %s17
      %s142 = smul.u32 %s18, %s141
      %s143 = smul.u32 64, %s142
      %p144 = scmp.lt.s32.totalorder %s143, 63
      %s145 = scalar_select %p144, %s143, 63
      %s146 = smul.addr %s145, 4
      %s147 = scalar_lea.vmem %s0, %s146
      %p148 = pneg %p50
      %p149 = pneg %p47
      %p150 = pneg %p71
      %p151 = pneg %p68
      %p152 = pneg %p99
      %p153 = pneg %p96
      %s154 = smul.u32 %s18, %s17
      %s155 = smul.u32 64, %s154
      %p156 = scmp.lt.s32.totalorder %s155, 63
      %s157 = scalar_select %p156, %s155, 63
      %s158 = smul.addr %s157, 4
      %s159 = scalar_lea.vmem %s2, %s158
      %s160 = ssub.s32 1, %s17
      %s161 = smul.u32 %s18, %s160
      %s162 = smul.u32 64, %s161
      %p163 = scmp.lt.s32.totalorder %s162, 63
      %s164 = scalar_select %p163, %s162, 63
      %s165 = smul.addr %s164, 4
      %s166 = scalar_lea.vmem %s0, %s165
      %s167 = ssub.s32 1, %s17
      %s168 = smul.u32 %s18, %s167
      %s169 = smul.u32 64, %s168
      %s170 = smul.u32 %s18, %s17
      %s171 = smul.u32 64, %s170
      %p172 = scmp.lt.s32.totalorder %s171, 63
      %s173 = scalar_select %p172, %s171, 63
      %s174 = smul.addr %s173, 4
      %s175 = scalar_lea.vmem %s2, %s174
      %s176 = smul.u32 %s18, %s17
      %s177 = smul.u32 64, %s176
      %p179 = scmp.eq.s32.totalorder %s17, 0
      // Predicated region
      $region29: #{cnn_forward.14} parent=27 // pred_check
        %p180 = pneg %p179
      $region30: #{cnn_forward.14} parent=27 // pred_check_branch
        %182 = sbr.rel (%p180) target = $region32
      $region31: #{cnn_forward.14} parent=27 // pred_region
        %p183 = scmp.eq.s32.totalorder %s18, 0
        // Predicated region
        $region33: #{cnn_forward.14} parent=31 // pred_check
          %p184 = pneg %p183
        $region34: #{cnn_forward.14} parent=31 // pred_check_branch
          %186 = sbr.rel (%p184) target = $region36
        $region35: #{cnn_forward.14} parent=31 // pred_region
          %187 = vst [vmem:[#allocation3] sm:$0x3] 0.0
        $region36: #{cnn_forward.14} parent=31 // pred_fallthru
          _
        %v188 = vld [vmem:[%s166] sm:$0xf]
        %v189 = vld [vmem:[%s166 + $0x4] sm:$0xf]
        %v190 = vld [vmem:[%s166 + $0x8] sm:$0xf]
        %v191 = vld [vmem:[%s166 + $0xc] sm:$0xf]
        %v192 = vld [vmem:[%s166 + $0x10] sm:$0xf]
        %v193 = vld [vmem:[%s166 + $0x14] sm:$0xf]
        %v194 = vld [vmem:[%s166 + $0x18] sm:$0xf]
        %v195 = vld [vmem:[%s166 + $0x1c] sm:$0xf]
        %v196 = vld [vmem:[%s166 + $0x20] sm:$0xf]
        %v197 = vld [vmem:[%s166 + $0x24] sm:$0xf]
        %v198 = vld [vmem:[%s166 + $0x28] sm:$0xf]
        %v199 = vld [vmem:[%s166 + $0x2c] sm:$0xf]
        %v200 = vld [vmem:[%s166 + $0x30] sm:$0xf]
        %v201 = vld [vmem:[%s166 + $0x34] sm:$0xf]
        %v202 = vld [vmem:[%s166 + $0x38] sm:$0xf]
        %v203 = vld [vmem:[%s166 + $0x3c] sm:$0xf]
        %v204 = vld [vmem:[%s166 + $0x40] sm:$0xf]
        %v205 = vld [vmem:[%s166 + $0x44] sm:$0xf]
        %v206 = vld [vmem:[%s166 + $0x48] sm:$0xf]
        %v207 = vld [vmem:[%s166 + $0x4c] sm:$0xf]
        %v208 = vld [vmem:[%s166 + $0x50] sm:$0xf]
        %v209 = vld [vmem:[%s166 + $0x54] sm:$0xf]
        %v210 = vld [vmem:[%s166 + $0x58] sm:$0xf]
        %v211 = vld [vmem:[%s166 + $0x5c] sm:$0xf]
        %v212 = vld [vmem:[%s166 + $0x60] sm:$0xf]
        %v213 = vld [vmem:[%s166 + $0x64] sm:$0xf]
        %v214 = vld [vmem:[%s166 + $0x68] sm:$0xf]
        %v215 = vld [vmem:[%s166 + $0x6c] sm:$0xf]
        %v216 = vld [vmem:[%s166 + $0x70] sm:$0xf]
        %v217 = vld [vmem:[%s166 + $0x74] sm:$0xf]
        %v218 = vld [vmem:[%s166 + $0x78] sm:$0xf]
        %v219 = vld [vmem:[%s166 + $0x7c] sm:$0xf]
        %v220 = vld [vmem:[%s166 + $0x80] sm:$0xf]
        %v221 = vld [vmem:[%s166 + $0x84] sm:$0xf]
        %v222 = vld [vmem:[%s166 + $0x88] sm:$0xf]
        %v223 = vld [vmem:[%s166 + $0x8c] sm:$0xf]
        %v224 = vld [vmem:[%s166 + $0x90] sm:$0xf]
        %v225 = vld [vmem:[%s166 + $0x94] sm:$0xf]
        %v226 = vld [vmem:[%s166 + $0x98] sm:$0xf]
        %v227 = vld [vmem:[%s166 + $0x9c] sm:$0xf]
        %v228 = vld [vmem:[%s166 + $0xa0] sm:$0xf]
        %v229 = vld [vmem:[%s166 + $0xa4] sm:$0xf]
        %v230 = vld [vmem:[%s166 + $0xa8] sm:$0xf]
        %v231 = vld [vmem:[%s166 + $0xac] sm:$0xf]
        %v232 = vld [vmem:[%s166 + $0xb0] sm:$0xf]
        %v233 = vld [vmem:[%s166 + $0xb4] sm:$0xf]
        %v234 = vld [vmem:[%s166 + $0xb8] sm:$0xf]
        %v235 = vld [vmem:[%s166 + $0xbc] sm:$0xf]
        %v236 = vld [vmem:[%s166 + $0xc0] sm:$0xf]
        %v237 = vld [vmem:[%s166 + $0xc4] sm:$0xf]
        %v238 = vld [vmem:[%s166 + $0xc8] sm:$0xf]
        %v239 = vld [vmem:[%s166 + $0xcc] sm:$0xf]
        %v240 = vld [vmem:[%s166 + $0xd0] sm:$0xf]
        %v241 = vld [vmem:[%s166 + $0xd4] sm:$0xf]
        %v242 = vld [vmem:[%s166 + $0xd8] sm:$0xf]
        %v243 = vld [vmem:[%s166 + $0xdc] sm:$0xf]
        %v244 = vld [vmem:[%s166 + $0xe0] sm:$0xf]
        %v245 = vld [vmem:[%s166 + $0xe4] sm:$0xf]
        %v246 = vld [vmem:[%s166 + $0xe8] sm:$0xf]
        %v247 = vld [vmem:[%s166 + $0xec] sm:$0xf]
        %v248 = vld [vmem:[%s166 + $0xf0] sm:$0xf]
        %v249 = vld [vmem:[%s166 + $0xf4] sm:$0xf]
        %v250 = vld [vmem:[%s166 + $0xf8] sm:$0xf]
        %v251 = vld [vmem:[%s166 + $0xfc] sm:$0xf]
        %v252 = vld [vmem:[%s1] sm:$0xf]
        %v253 = vld [vmem:[%s1 + $0x4] sm:$0xf]
        %v318 = vunpack.c.l.b16 %v188
        %v319 = vunpack.c.l.b16 %v189
        %v320 = vunpack.c.l.b16 %v190
        %v321 = vunpack.c.l.b16 %v191
        %v322 = vunpack.c.l.b16 %v192
        %v323 = vunpack.c.l.b16 %v193
        %v324 = vunpack.c.l.b16 %v194
        %v325 = vunpack.c.l.b16 %v195
        %v326 = vunpack.c.l.b16 %v196
        %v327 = vunpack.c.l.b16 %v197
        %v328 = vunpack.c.l.b16 %v198
        %v329 = vunpack.c.l.b16 %v199
        %v330 = vunpack.c.l.b16 %v200
        %v331 = vunpack.c.l.b16 %v201
        %v332 = vunpack.c.l.b16 %v202
        %v333 = vunpack.c.l.b16 %v203
        %v334 = vunpack.c.l.b16 %v204
        %v335 = vunpack.c.l.b16 %v205
        %v336 = vunpack.c.l.b16 %v206
        %v337 = vunpack.c.l.b16 %v207
        %v338 = vunpack.c.l.b16 %v208
        %v339 = vunpack.c.l.b16 %v209
        %v340 = vunpack.c.l.b16 %v210
        %v341 = vunpack.c.l.b16 %v211
        %v342 = vunpack.c.l.b16 %v212
        %v343 = vunpack.c.l.b16 %v213
        %v344 = vunpack.c.l.b16 %v214
        %v345 = vunpack.c.l.b16 %v215
        %v346 = vunpack.c.l.b16 %v216
        %v347 = vunpack.c.l.b16 %v217
        %v348 = vunpack.c.l.b16 %v218
        %v349 = vunpack.c.l.b16 %v219
        %v350 = vunpack.c.l.b16 %v220
        %v351 = vunpack.c.l.b16 %v221
        %v352 = vunpack.c.l.b16 %v222
        %v353 = vunpack.c.l.b16 %v223
        %v354 = vunpack.c.l.b16 %v224
        %v355 = vunpack.c.l.b16 %v225
        %v356 = vunpack.c.l.b16 %v226
        %v357 = vunpack.c.l.b16 %v227
        %v358 = vunpack.c.l.b16 %v228
        %v359 = vunpack.c.l.b16 %v229
        %v360 = vunpack.c.l.b16 %v230
        %v361 = vunpack.c.l.b16 %v231
        %v362 = vunpack.c.l.b16 %v232
        %v363 = vunpack.c.l.b16 %v233
        %v364 = vunpack.c.l.b16 %v234
        %v365 = vunpack.c.l.b16 %v235
        %v366 = vunpack.c.l.b16 %v236
        %v367 = vunpack.c.l.b16 %v237
        %v368 = vunpack.c.l.b16 %v238
        %v369 = vunpack.c.l.b16 %v239
        %v370 = vunpack.c.l.b16 %v240
        %v371 = vunpack.c.l.b16 %v241
        %v372 = vunpack.c.l.b16 %v242
        %v373 = vunpack.c.l.b16 %v243
        %v374 = vunpack.c.l.b16 %v244
        %v375 = vunpack.c.l.b16 %v245
        %v376 = vunpack.c.l.b16 %v246
        %v377 = vunpack.c.l.b16 %v247
        %v378 = vunpack.c.l.b16 %v248
        %v379 = vunpack.c.l.b16 %v249
        %v380 = vunpack.c.l.b16 %v250
        %v381 = vunpack.c.l.b16 %v251
        %v382 = vpack.c.b16 %v319, %v318
        %v383 = vpack.c.b16 %v321, %v320
        %v384 = vpack.c.b16 %v323, %v322
        %v385 = vpack.c.b16 %v325, %v324
        %v386 = vpack.c.b16 %v327, %v326
        %v387 = vpack.c.b16 %v329, %v328
        %v388 = vpack.c.b16 %v331, %v330
        %v389 = vpack.c.b16 %v333, %v332
        %v390 = vpack.c.b16 %v335, %v334
        %v391 = vpack.c.b16 %v337, %v336
        %v392 = vpack.c.b16 %v339, %v338
        %v393 = vpack.c.b16 %v341, %v340
        %v394 = vpack.c.b16 %v343, %v342
        %v395 = vpack.c.b16 %v345, %v344
        %v396 = vpack.c.b16 %v347, %v346
        %v397 = vpack.c.b16 %v349, %v348
        %v398 = vpack.c.b16 %v351, %v350
        %v399 = vpack.c.b16 %v353, %v352
        %v400 = vpack.c.b16 %v355, %v354
        %v401 = vpack.c.b16 %v357, %v356
        %v402 = vpack.c.b16 %v359, %v358
        %v403 = vpack.c.b16 %v361, %v360
        %v404 = vpack.c.b16 %v363, %v362
        %v405 = vpack.c.b16 %v365, %v364
        %v406 = vpack.c.b16 %v367, %v366
        %v407 = vpack.c.b16 %v369, %v368
        %v408 = vpack.c.b16 %v371, %v370
        %v409 = vpack.c.b16 %v373, %v372
        %v410 = vpack.c.b16 %v375, %v374
        %v411 = vpack.c.b16 %v377, %v376
        %v412 = vpack.c.b16 %v379, %v378
        %v413 = vpack.c.b16 %v381, %v380
        %v416 = vunpack.c.l.b16 %v252
        %v417 = vunpack.c.l.b16 %v253
        %v418 = vpack.c.b16 %v417, %v416
        %vm420 = vcmask 130048
        %v422 = vsel %vm420, %v382, 0
        %v425 = vsel %vm420, %v383, 0
        %v428 = vsel %vm420, %v384, 0
        %v431 = vsel %vm420, %v385, 0
        %v434 = vsel %vm420, %v386, 0
        %v437 = vsel %vm420, %v387, 0
        %v440 = vsel %vm420, %v388, 0
        %v443 = vsel %vm420, %v389, 0
        %v446 = vsel %vm420, %v390, 0
        %v449 = vsel %vm420, %v391, 0
        %v452 = vsel %vm420, %v392, 0
        %v455 = vsel %vm420, %v393, 0
        %v458 = vsel %vm420, %v394, 0
        %v461 = vsel %vm420, %v395, 0
        %v464 = vsel %vm420, %v396, 0
        %v467 = vsel %vm420, %v397, 0
        %v470 = vsel %vm420, %v398, 0
        %v473 = vsel %vm420, %v399, 0
        %v476 = vsel %vm420, %v400, 0
        %v479 = vsel %vm420, %v401, 0
        %v482 = vsel %vm420, %v402, 0
        %v485 = vsel %vm420, %v403, 0
        %v488 = vsel %vm420, %v404, 0
        %v491 = vsel %vm420, %v405, 0
        %v494 = vsel %vm420, %v406, 0
        %v497 = vsel %vm420, %v407, 0
        %v500 = vsel %vm420, %v408, 0
        %v503 = vsel %vm420, %v409, 0
        %v506 = vsel %vm420, %v410, 0
        %v509 = vsel %vm420, %v411, 0
        %v512 = vsel %vm420, %v412, 0
        %v515 = vsel %vm420, %v413, 0
        %517 = vmatprep.subr.bf16.mxu0 0
        %518 = vmatpush1.bf16.msra.mxu0 %v418
        %519 = vmatprep.subr.bf16.mxu0 0
        %520 = vmatpush1.bf16.msra.mxu0 0
        %521 = vmatprep.subr.bf16.mxu0 0
        %522 = vmatpush1.bf16.msra.mxu0 0
        %523 = vmatprep.subr.bf16.mxu0 0
        %524 = vmatpush1.bf16.msra.mxu0 0
        %525 = vmatprep.subr.bf16.mxu0 0
        %526 = vmatpush1.bf16.msra.mxu0 0
        %527 = vmatprep.subr.bf16.mxu0 0
        %528 = vmatpush1.bf16.msra.mxu0 0
        %529 = vmatprep.subr.bf16.mxu0 0
        %530 = vmatpush1.bf16.msra.mxu0 0
        %531 = vmatprep.subr.bf16.mxu0 0
        %532 = vmatpush1.bf16.msra.mxu0 0
        %533 = vmatprep.subr.bf16.mxu0 0
        %534 = vmatpush1.bf16.msra.mxu0 0
        %535 = vmatprep.subr.bf16.mxu0 0
        %536 = vmatpush1.bf16.msra.mxu0 0
        %537 = vmatprep.subr.bf16.mxu0 0
        %538 = vmatpush1.bf16.msra.mxu0 0
        %539 = vmatprep.subr.bf16.mxu0 0
        %540 = vmatpush1.bf16.msra.mxu0 0
        %541 = vmatprep.subr.bf16.mxu0 0
        %542 = vmatpush1.bf16.msra.mxu0 0
        %543 = vmatprep.subr.bf16.mxu0 0
        %544 = vmatpush1.bf16.msra.mxu0 0
        %545 = vmatprep.subr.bf16.mxu0 0
        %546 = vmatpush1.bf16.msra.mxu0 0
        %547 = vmatprep.subr.bf16.mxu0 0
        %548 = vmatpush1.bf16.msra.mxu0 0
        %549 = vmatprep.mubr.bf16.mxu0 0
        %550 = vmatmul.mubr.bf16.gmra.mrb[0].mxu0 %v422
        %v551 = vpop.f32.mrb[0].mxu0
        %v552 = vadd.f32 0.0, %v551
        %v553 = vpop.f32.mrb[0].mxu0
        %v554 = vpop.f32.mrb[0].mxu0
        %v555 = vadd.f32 0.0, %v554
        %v556 = vpop.f32.mrb[0].mxu0
        %557 = vmatprep.mubr.bf16.mxu0 0
        %558 = vmatmul.mubr.bf16.gmra.mrb[0].mxu0 %v425
        %v559 = vpop.f32.mrb[0].mxu0
        %v560 = vadd.f32 0.0, %v559
        %v561 = vpop.f32.mrb[0].mxu0
        %v562 = vpop.f32.mrb[0].mxu0
        %v563 = vadd.f32 0.0, %v562
        %v564 = vpop.f32.mrb[0].mxu0
        %565 = vmatprep.mubr.bf16.mxu0 0
        %566 = vmatmul.mubr.bf16.gmra.mrb[0].mxu0 %v428
        %v567 = vpop.f32.mrb[0].mxu0
        %v568 = vadd.f32 0.0, %v567
        %v569 = vpop.f32.mrb[0].mxu0
        %v570 = vpop.f32.mrb[0].mxu0
        %v571 = vadd.f32 0.0, %v570
        %v572 = vpop.f32.mrb[0].mxu0
        %573 = vmatprep.mubr.bf16.mxu0 0
        %574 = vmatmul.mubr.bf16.gmra.mrb[0].mxu0 %v431
        %v575 = vpop.f32.mrb[0].mxu0
        %v576 = vadd.f32 0.0, %v575
        %v577 = vpop.f32.mrb[0].mxu0
        %v578 = vpop.f32.mrb[0].mxu0
        %v579 = vadd.f32 0.0, %v578
        %v580 = vpop.f32.mrb[0].mxu0
        %581 = vmatprep.mubr.bf16.mxu0 0
        %582 = vmatmul.mubr.bf16.gmra.mrb[0].mxu0 %v434
        %v583 = vpop.f32.mrb[0].mxu0
        %v584 = vadd.f32 0.0, %v583
        %v585 = vpop.f32.mrb[0].mxu0
        %v586 = vpop.f32.mrb[0].mxu0
        %v587 = vadd.f32 0.0, %v586
        %v588 = vpop.f32.mrb[0].mxu0
        %589 = vmatprep.mubr.bf16.mxu0 0
        %590 = vmatmul.mubr.bf16.gmra.mrb[0].mxu0 %v437
        %v591 = vpop.f32.mrb[0].mxu0
        %v592 = vadd.f32 0.0, %v591
        %v593 = vpop.f32.mrb[0].mxu0
        %v594 = vpop.f32.mrb[0].mxu0
        %v595 = vadd.f32 0.0, %v594
        %v596 = vpop.f32.mrb[0].mxu0
        %597 = vmatprep.mubr.bf16.mxu0 0
        %598 = vmatmul.mubr.bf16.gmra.mrb[0].mxu0 %v440
        %v599 = vpop.f32.mrb[0].mxu0
        %v600 = vadd.f32 0.0, %v599
        %v601 = vpop.f32.mrb[0].mxu0
        %v602 = vpop.f32.mrb[0].mxu0
        %v603 = vadd.f32 0.0, %v602
        %v604 = vpop.f32.mrb[0].mxu0
        %605 = vmatprep.mubr.bf16.mxu0 0
        %606 = vmatmul.mubr.bf16.gmra.mrb[0].mxu0 %v443
        %v607 = vpop.f32.mrb[0].mxu0
        %v608 = vadd.f32 0.0, %v607
        %v609 = vpop.f32.mrb[0].mxu0
        %v610 = vpop.f32.mrb[0].mxu0
        %v611 = vadd.f32 0.0, %v610
        %v612 = vpop.f32.mrb[0].mxu0
        %613 = vmatprep.mubr.bf16.mxu0 0
        %614 = vmatmul.mubr.bf16.gmra.mrb[0].mxu0 %v446
        %v615 = vpop.f32.mrb[0].mxu0
        %v616 = vadd.f32 0.0, %v615
        %v617 = vpop.f32.mrb[0].mxu0
        %v618 = vpop.f32.mrb[0].mxu0
        %v619 = vadd.f32 0.0, %v618
        %v620 = vpop.f32.mrb[0].mxu0
        %621 = vmatprep.mubr.bf16.mxu0 0
        %622 = vmatmul.mubr.bf16.gmra.mrb[0].mxu0 %v449
        %v623 = vpop.f32.mrb[0].mxu0
        %v624 = vadd.f32 0.0, %v623
        %v625 = vpop.f32.mrb[0].mxu0
        %v626 = vpop.f32.mrb[0].mxu0
        %v627 = vadd.f32 0.0, %v626
        %v628 = vpop.f32.mrb[0].mxu0
        %629 = vmatprep.mubr.bf16.mxu0 0
        %630 = vmatmul.mubr.bf16.gmra.mrb[0].mxu0 %v452
        %v631 = vpop.f32.mrb[0].mxu0
        %v632 = vadd.f32 0.0, %v631
        %v633 = vpop.f32.mrb[0].mxu0
        %v634 = vpop.f32.mrb[0].mxu0
        %v635 = vadd.f32 0.0, %v634
        %v636 = vpop.f32.mrb[0].mxu0
        %637 = vmatprep.mubr.bf16.mxu0 0
        %638 = vmatmul.mubr.bf16.gmra.mrb[0].mxu0 %v455
        %v639 = vpop.f32.mrb[0].mxu0
        %v640 = vadd.f32 0.0, %v639
        %v641 = vpop.f32.mrb[0].mxu0
        %v642 = vpop.f32.mrb[0].mxu0
        %v643 = vadd.f32 0.0, %v642
        %v644 = vpop.f32.mrb[0].mxu0
        %645 = vmatprep.mubr.bf16.mxu0 0
        %646 = vmatmul.mubr.bf16.gmra.mrb[0].mxu0 %v458
        %v647 = vpop.f32.mrb[0].mxu0
        %v648 = vadd.f32 0.0, %v647
        %v649 = vpop.f32.mrb[0].mxu0
        %v650 = vpop.f32.mrb[0].mxu0
        %v651 = vadd.f32 0.0, %v650
        %v652 = vpop.f32.mrb[0].mxu0
        %653 = vmatprep.mubr.bf16.mxu0 0
        %654 = vmatmul.mubr.bf16.gmra.mrb[0].mxu0 %v461
        %v655 = vpop.f32.mrb[0].mxu0
        %v656 = vadd.f32 0.0, %v655
        %v657 = vpop.f32.mrb[0].mxu0
        %v658 = vpop.f32.mrb[0].mxu0
        %v659 = vadd.f32 0.0, %v658
        %v660 = vpop.f32.mrb[0].mxu0
        %661 = vmatprep.mubr.bf16.mxu0 0
        %662 = vmatmul.mubr.bf16.gmra.mrb[0].mxu0 %v464
        %v663 = vpop.f32.mrb[0].mxu0
        %v664 = vadd.f32 0.0, %v663
        %v665 = vpop.f32.mrb[0].mxu0
        %v666 = vpop.f32.mrb[0].mxu0
        %v667 = vadd.f32 0.0, %v666
        %v668 = vpop.f32.mrb[0].mxu0
        %669 = vmatprep.mubr.bf16.mxu0 0
        %670 = vmatmul.mubr.bf16.gmra.mrb[0].mxu0 %v467
        %v671 = vpop.f32.mrb[0].mxu0
        %v672 = vadd.f32 0.0, %v671
        %v673 = vpop.f32.mrb[0].mxu0
        %v674 = vpop.f32.mrb[0].mxu0
        %v675 = vadd.f32 0.0, %v674
        %v676 = vpop.f32.mrb[0].mxu0
        %677 = vmatprep.mubr.bf16.mxu0 0
        %678 = vmatmul.mubr.bf16.gmra.mrb[0].mxu0 %v470
        %v679 = vpop.f32.mrb[0].mxu0
        %v680 = vadd.f32 0.0, %v679
        %v681 = vpop.f32.mrb[0].mxu0
        %v682 = vpop.f32.mrb[0].mxu0
        %v683 = vadd.f32 0.0, %v682
        %v684 = vpop.f32.mrb[0].mxu0
        %685 = vmatprep.mubr.bf16.mxu0 0
        %686 = vmatmul.mubr.bf16.gmra.mrb[0].mxu0 %v473
        %v687 = vpop.f32.mrb[0].mxu0
        %v688 = vadd.f32 0.0, %v687
        %v689 = vpop.f32.mrb[0].mxu0
        %v690 = vpop.f32.mrb[0].mxu0
        %v691 = vadd.f32 0.0, %v690
        %v692 = vpop.f32.mrb[0].mxu0
        %693 = vmatprep.mubr.bf16.mxu0 0
        %694 = vmatmul.mubr.bf16.gmra.mrb[0].mxu0 %v476
        %v695 = vpop.f32.mrb[0].mxu0
        %v696 = vadd.f32 0.0, %v695
        %v697 = vpop.f32.mrb[0].mxu0
        %v698 = vpop.f32.mrb[0].mxu0
        %v699 = vadd.f32 0.0, %v698
        %v700 = vpop.f32.mrb[0].mxu0
        %701 = vmatprep.mubr.bf16.mxu0 0
        %702 = vmatmul.mubr.bf16.gmra.mrb[0].mxu0 %v479
        %v703 = vpop.f32.mrb[0].mxu0
        %v704 = vadd.f32 0.0, %v703
        %v705 = vpop.f32.mrb[0].mxu0
        %v706 = vpop.f32.mrb[0].mxu0
        %v707 = vadd.f32 0.0, %v706
        %v708 = vpop.f32.mrb[0].mxu0
        %709 = vmatprep.mubr.bf16.mxu0 0
        %710 = vmatmul.mubr.bf16.gmra.mrb[0].mxu0 %v482
        %v711 = vpop.f32.mrb[0].mxu0
        %v712 = vadd.f32 0.0, %v711
        %v713 = vpop.f32.mrb[0].mxu0
        %v714 = vpop.f32.mrb[0].mxu0
        %v715 = vadd.f32 0.0, %v714
        %v716 = vpop.f32.mrb[0].mxu0
        %717 = vmatprep.mubr.bf16.mxu0 0
        %718 = vmatmul.mubr.bf16.gmra.mrb[0].mxu0 %v485
        %v719 = vpop.f32.mrb[0].mxu0
        %v720 = vadd.f32 0.0, %v719
        %v721 = vpop.f32.mrb[0].mxu0
        %v722 = vpop.f32.mrb[0].mxu0
        %v723 = vadd.f32 0.0, %v722
        %v724 = vpop.f32.mrb[0].mxu0
        %725 = vmatprep.mubr.bf16.mxu0 0
        %726 = vmatmul.mubr.bf16.gmra.mrb[0].mxu0 %v488
        %v727 = vpop.f32.mrb[0].mxu0
        %v728 = vadd.f32 0.0, %v727
        %v729 = vpop.f32.mrb[0].mxu0
        %v730 = vpop.f32.mrb[0].mxu0
        %v731 = vadd.f32 0.0, %v730
        %v732 = vpop.f32.mrb[0].mxu0
        %733 = vmatprep.mubr.bf16.mxu0 0
        %734 = vmatmul.mubr.bf16.gmra.mrb[0].mxu0 %v491
        %v735 = vpop.f32.mrb[0].mxu0
        %v736 = vadd.f32 0.0, %v735
        %v737 = vpop.f32.mrb[0].mxu0
        %v738 = vpop.f32.mrb[0].mxu0
        %v739 = vadd.f32 0.0, %v738
        %v740 = vpop.f32.mrb[0].mxu0
        %741 = vmatprep.mubr.bf16.mxu0 0
        %742 = vmatmul.mubr.bf16.gmra.mrb[0].mxu0 %v494
        %v743 = vpop.f32.mrb[0].mxu0
        %v744 = vadd.f32 0.0, %v743
        %v745 = vpop.f32.mrb[0].mxu0
        %v746 = vpop.f32.mrb[0].mxu0
        %v747 = vadd.f32 0.0, %v746
        %v748 = vpop.f32.mrb[0].mxu0
        %749 = vmatprep.mubr.bf16.mxu0 0
        %750 = vmatmul.mubr.bf16.gmra.mrb[0].mxu0 %v497
        %v751 = vpop.f32.mrb[0].mxu0
        %v752 = vadd.f32 0.0, %v751
        %v753 = vpop.f32.mrb[0].mxu0
        %v754 = vpop.f32.mrb[0].mxu0
        %v755 = vadd.f32 0.0, %v754
        %v756 = vpop.f32.mrb[0].mxu0
        %757 = vmatprep.mubr.bf16.mxu0 0
        %758 = vmatmul.mubr.bf16.gmra.mrb[0].mxu0 %v500
        %v759 = vpop.f32.mrb[0].mxu0
        %v760 = vadd.f32 0.0, %v759
        %v761 = vpop.f32.mrb[0].mxu0
        %v762 = vpop.f32.mrb[0].mxu0
        %v763 = vadd.f32 0.0, %v762
        %v764 = vpop.f32.mrb[0].mxu0
        %765 = vmatprep.mubr.bf16.mxu0 0
        %766 = vmatmul.mubr.bf16.gmra.mrb[0].mxu0 %v503
        %v767 = vpop.f32.mrb[0].mxu0
        %v768 = vadd.f32 0.0, %v767
        %v769 = vpop.f32.mrb[0].mxu0
        %v770 = vpop.f32.mrb[0].mxu0
        %v771 = vadd.f32 0.0, %v770
        %v772 = vpop.f32.mrb[0].mxu0
        %773 = vmatprep.mubr.bf16.mxu0 0
        %774 = vmatmul.mubr.bf16.gmra.mrb[0].mxu0 %v506
        %v775 = vpop.f32.mrb[0].mxu0
        %v776 = vadd.f32 0.0, %v775
        %v777 = vpop.f32.mrb[0].mxu0
        %v778 = vpop.f32.mrb[0].mxu0
        %v779 = vadd.f32 0.0, %v778
        %v780 = vpop.f32.mrb[0].mxu0
        %781 = vmatprep.mubr.bf16.mxu0 0
        %782 = vmatmul.mubr.bf16.gmra.mrb[0].mxu0 %v509
        %v783 = vpop.f32.mrb[0].mxu0
        %v784 = vadd.f32 0.0, %v783
        %v785 = vpop.f32.mrb[0].mxu0
        %v786 = vpop.f32.mrb[0].mxu0
        %v787 = vadd.f32 0.0, %v786
        %v788 = vpop.f32.mrb[0].mxu0
        %789 = vmatprep.mubr.bf16.mxu0 0
        %790 = vmatmul.mubr.bf16.gmra.mrb[0].mxu0 %v512
        %v791 = vpop.f32.mrb[0].mxu0
        %v792 = vadd.f32 0.0, %v791
        %v793 = vpop.f32.mrb[0].mxu0
        %v794 = vpop.f32.mrb[0].mxu0
        %v795 = vadd.f32 0.0, %v794
        %v796 = vpop.f32.mrb[0].mxu0
        %797 = vmatprep.mubr.bf16.mxu0 0
        %798 = vmatmul.mubr.bf16.gmra.mrb[0].mxu0 %v515
        %v799 = vpop.f32.mrb[0].mxu0
        %v800 = vadd.f32 0.0, %v799
        %v801 = vpop.f32.mrb[0].mxu0
        %v802 = vpop.f32.mrb[0].mxu0
        %v803 = vadd.f32 0.0, %v802
        %v804 = vpop.f32.mrb[0].mxu0
        %805 = vdwg.mxu0
        %s806 = smul.u32 %s18, 512
        %s807 = scalar_lea.vmem [#allocation2], %s806
        %808 = vst [vmem:[%s807] sm:$0xff] %v552
        %809 = vst [vmem:[%s807 + $0x8] sm:$0xff] %v555
        %810 = vst [vmem:[%s807 + $0x10] sm:$0xff] %v560
        %811 = vst [vmem:[%s807 + $0x18] sm:$0xff] %v563
        %812 = vst [vmem:[%s807 + $0x20] sm:$0xff] %v568
        %813 = vst [vmem:[%s807 + $0x28] sm:$0xff] %v571
        %814 = vst [vmem:[%s807 + $0x30] sm:$0xff] %v576
        %815 = vst [vmem:[%s807 + $0x38] sm:$0xff] %v579
        %816 = vst [vmem:[%s807 + $0x40] sm:$0xff] %v584
        %817 = vst [vmem:[%s807 + $0x48] sm:$0xff] %v587
        %818 = vst [vmem:[%s807 + $0x50] sm:$0xff] %v592
        %819 = vst [vmem:[%s807 + $0x58] sm:$0xff] %v595
        %820 = vst [vmem:[%s807 + $0x60] sm:$0xff] %v600
        %821 = vst [vmem:[%s807 + $0x68] sm:$0xff] %v603
        %822 = vst [vmem:[%s807 + $0x70] sm:$0xff] %v608
        %823 = vst [vmem:[%s807 + $0x78] sm:$0xff] %v611
        %824 = vst [vmem:[%s807 + $0x80] sm:$0xff] %v616
        %825 = vst [vmem:[%s807 + $0x88] sm:$0xff] %v619
        %826 = vst [vmem:[%s807 + $0x90] sm:$0xff] %v624
        %827 = vst [vmem:[%s807 + $0x98] sm:$0xff] %v627
        %828 = vst [vmem:[%s807 + $0xa0] sm:$0xff] %v632
        %829 = vst [vmem:[%s807 + $0xa8] sm:$0xff] %v635
        %830 = vst [vmem:[%s807 + $0xb0] sm:$0xff] %v640
        %831 = vst [vmem:[%s807 + $0xb8] sm:$0xff] %v643
        %832 = vst [vmem:[%s807 + $0xc0] sm:$0xff] %v648
        %833 = vst [vmem:[%s807 + $0xc8] sm:$0xff] %v651
        %834 = vst [vmem:[%s807 + $0xd0] sm:$0xff] %v656
        %835 = vst [vmem:[%s807 + $0xd8] sm:$0xff] %v659
        %836 = vst [vmem:[%s807 + $0xe0] sm:$0xff] %v664
        %837 = vst [vmem:[%s807 + $0xe8] sm:$0xff] %v667
        %838 = vst [vmem:[%s807 + $0xf0] sm:$0xff] %v672
        %839 = vst [vmem:[%s807 + $0xf8] sm:$0xff] %v675
        %840 = vst [vmem:[%s807 + $0x100] sm:$0xff] %v680
        %841 = vst [vmem:[%s807 + $0x108] sm:$0xff] %v683
        %842 = vst [vmem:[%s807 + $0x110] sm:$0xff] %v688
        %843 = vst [vmem:[%s807 + $0x118] sm:$0xff] %v691
        %844 = vst [vmem:[%s807 + $0x120] sm:$0xff] %v696
        %845 = vst [vmem:[%s807 + $0x128] sm:$0xff] %v699
        %846 = vst [vmem:[%s807 + $0x130] sm:$0xff] %v704
        %847 = vst [vmem:[%s807 + $0x138] sm:$0xff] %v707
        %848 = vst [vmem:[%s807 + $0x140] sm:$0xff] %v712
        %849 = vst [vmem:[%s807 + $0x148] sm:$0xff] %v715
        %850 = vst [vmem:[%s807 + $0x150] sm:$0xff] %v720
        %851 = vst [vmem:[%s807 + $0x158] sm:$0xff] %v723
        %852 = vst [vmem:[%s807 + $0x160] sm:$0xff] %v728
        %853 = vst [vmem:[%s807 + $0x168] sm:$0xff] %v731
        %854 = vst [vmem:[%s807 + $0x170] sm:$0xff] %v736
        %855 = vst [vmem:[%s807 + $0x178] sm:$0xff] %v739
        %856 = vst [vmem:[%s807 + $0x180] sm:$0xff] %v744
        %857 = vst [vmem:[%s807 + $0x188] sm:$0xff] %v747
        %858 = vst [vmem:[%s807 + $0x190] sm:$0xff] %v752
        %859 = vst [vmem:[%s807 + $0x198] sm:$0xff] %v755
        %860 = vst [vmem:[%s807 + $0x1a0] sm:$0xff] %v760
        %861 = vst [vmem:[%s807 + $0x1a8] sm:$0xff] %v763
        %862 = vst [vmem:[%s807 + $0x1b0] sm:$0xff] %v768
        %863 = vst [vmem:[%s807 + $0x1b8] sm:$0xff] %v771
        %864 = vst [vmem:[%s807 + $0x1c0] sm:$0xff] %v776
        %865 = vst [vmem:[%s807 + $0x1c8] sm:$0xff] %v779
        %866 = vst [vmem:[%s807 + $0x1d0] sm:$0xff] %v784
        %867 = vst [vmem:[%s807 + $0x1d8] sm:$0xff] %v787
        %868 = vst [vmem:[%s807 + $0x1e0] sm:$0xff] %v792
        %869 = vst [vmem:[%s807 + $0x1e8] sm:$0xff] %v795
        %870 = vst [vmem:[%s807 + $0x1f0] sm:$0xff] %v800
        %871 = vst [vmem:[%s807 + $0x1f8] sm:$0xff] %v803
        %v872 = vld [vmem:[#allocation3] sm:$0x1]
        %v873 = vadd.f32 %v552, %v555
        %v874 = vadd.f32 %v873, %v560
        %v875 = vadd.f32 %v874, %v563
        %v876 = vadd.f32 %v875, %v568
        %v877 = vadd.f32 %v876, %v571
        %v878 = vadd.f32 %v877, %v576
        %v879 = vadd.f32 %v878, %v579
        %v880 = vadd.f32 %v879, %v584
        %v881 = vadd.f32 %v880, %v587
        %v882 = vadd.f32 %v881, %v592
        %v883 = vadd.f32 %v882, %v595
        %v884 = vadd.f32 %v883, %v600
        %v885 = vadd.f32 %v884, %v603
        %v886 = vadd.f32 %v885, %v608
        %v887 = vadd.f32 %v886, %v611
        %v888 = vadd.f32 %v887, %v616
        %v889 = vadd.f32 %v888, %v619
        %v890 = vadd.f32 %v889, %v624
        %v891 = vadd.f32 %v890, %v627
        %v892 = vadd.f32 %v891, %v632
        %v893 = vadd.f32 %v892, %v635
        %v894 = vadd.f32 %v893, %v640
        %v895 = vadd.f32 %v894, %v643
        %v896 = vadd.f32 %v895, %v648
        %v897 = vadd.f32 %v896, %v651
        %v898 = vadd.f32 %v897, %v656
        %v899 = vadd.f32 %v898, %v659
        %v900 = vadd.f32 %v899, %v664
        %v901 = vadd.f32 %v900, %v667
        %v902 = vadd.f32 %v901, %v672
        %v903 = vadd.f32 %v902, %v675
        %v904 = vadd.f32 %v903, %v680
        %v905 = vadd.f32 %v904, %v683
        %v906 = vadd.f32 %v905, %v688
        %v907 = vadd.f32 %v906, %v691
        %v908 = vadd.f32 %v907, %v696
        %v909 = vadd.f32 %v908, %v699
        %v910 = vadd.f32 %v909, %v704
        %v911 = vadd.f32 %v910, %v707
        %v912 = vadd.f32 %v911, %v712
        %v913 = vadd.f32 %v912, %v715
        %v914 = vadd.f32 %v913, %v720
        %v915 = vadd.f32 %v914, %v723
        %v916 = vadd.f32 %v915, %v728
        %v917 = vadd.f32 %v916, %v731
        %v918 = vadd.f32 %v917, %v736
        %v919 = vadd.f32 %v918, %v739
        %v920 = vadd.f32 %v919, %v744
        %v921 = vadd.f32 %v920, %v747
        %v922 = vadd.f32 %v921, %v752
        %v923 = vadd.f32 %v922, %v755
        %v924 = vadd.f32 %v923, %v760
        %v925 = vadd.f32 %v924, %v763
        %v926 = vadd.f32 %v925, %v768
        %v927 = vadd.f32 %v926, %v771
        %v928 = vadd.f32 %v927, %v776
        %v929 = vadd.f32 %v928, %v779
        %v930 = vadd.f32 %v929, %v784
        %v931 = vadd.f32 %v930, %v787
        %v932 = vadd.f32 %v931, %v792
        %v933 = vadd.f32 %v932, %v795
        %v934 = vadd.f32 %v933, %v800
        %v935 = vadd.f32 %v934, %v803
        %v936 = vrot.slane %v935, 4
        %v937 = vadd.f32 %v935, %v936
        %v938 = vrot.slane %v937, 2
        %v939 = vadd.f32 %v937, %v938
        %v940 = vrot.slane %v939, 1
        %v941 = vadd.f32 %v939, %v940
        %v942 = vadd.f32 %v872, %v941
        %943 = vst [vmem:[#allocation3] sm:$0x1] %v942
        %v944 = vld [vmem:[#allocation3 + $0x1] sm:$0x1]
        %v945 = vmul.f32 %v552, %v552
        %v946 = vmul.f32 %v555, %v555
        %v947 = vmul.f32 %v560, %v560
        %v948 = vmul.f32 %v563, %v563
        %v949 = vmul.f32 %v568, %v568
        %v950 = vmul.f32 %v571, %v571
        %v951 = vmul.f32 %v576, %v576
        %v952 = vmul.f32 %v579, %v579
        %v953 = vmul.f32 %v584, %v584
        %v954 = vmul.f32 %v587, %v587
        %v955 = vmul.f32 %v592, %v592
        %v956 = vmul.f32 %v595, %v595
        %v957 = vmul.f32 %v600, %v600
        %v958 = vmul.f32 %v603, %v603
        %v959 = vmul.f32 %v608, %v608
        %v960 = vmul.f32 %v611, %v611
        %v961 = vmul.f32 %v616, %v616
        %v962 = vmul.f32 %v619, %v619
        %v963 = vmul.f32 %v624, %v624
        %v964 = vmul.f32 %v627, %v627
        %v965 = vmul.f32 %v632, %v632
        %v966 = vmul.f32 %v635, %v635
        %v967 = vmul.f32 %v640, %v640
        %v968 = vmul.f32 %v643, %v643
        %v969 = vmul.f32 %v648, %v648
        %v970 = vmul.f32 %v651, %v651
        %v971 = vmul.f32 %v656, %v656
        %v972 = vmul.f32 %v659, %v659
        %v973 = vmul.f32 %v664, %v664
        %v974 = vmul.f32 %v667, %v667
        %v975 = vmul.f32 %v672, %v672
        %v976 = vmul.f32 %v675, %v675
        %v977 = vmul.f32 %v680, %v680
        %v978 = vmul.f32 %v683, %v683
        %v979 = vmul.f32 %v688, %v688
        %v980 = vmul.f32 %v691, %v691
        %v981 = vmul.f32 %v696, %v696
        %v982 = vmul.f32 %v699, %v699
        %v983 = vmul.f32 %v704, %v704
        %v984 = vmul.f32 %v707, %v707
        %v985 = vmul.f32 %v712, %v712
        %v986 = vmul.f32 %v715, %v715
        %v987 = vmul.f32 %v720, %v720
        %v988 = vmul.f32 %v723, %v723
        %v989 = vmul.f32 %v728, %v728
        %v990 = vmul.f32 %v731, %v731
        %v991 = vmul.f32 %v736, %v736
        %v992 = vmul.f32 %v739, %v739
        %v993 = vmul.f32 %v744, %v744
        %v994 = vmul.f32 %v747, %v747
        %v995 = vmul.f32 %v752, %v752
        %v996 = vmul.f32 %v755, %v755
        %v997 = vmul.f32 %v760, %v760
        %v998 = vmul.f32 %v763, %v763
        %v999 = vmul.f32 %v768, %v768
        %v1000 = vmul.f32 %v771, %v771
        %v1001 = vmul.f32 %v776, %v776
        %v1002 = vmul.f32 %v779, %v779
        %v1003 = vmul.f32 %v784, %v784
        %v1004 = vmul.f32 %v787, %v787
        %v1005 = vmul.f32 %v792, %v792
        %v1006 = vmul.f32 %v795, %v795
        %v1007 = vmul.f32 %v800, %v800
        %v1008 = vmul.f32 %v803, %v803
        %v1009 = vadd.f32 %v945, %v946
        %v1010 = vadd.f32 %v1009, %v947
        %v1011 = vadd.f32 %v1010, %v948
        %v1012 = vadd.f32 %v1011, %v949
        %v1013 = vadd.f32 %v1012, %v950
        %v1014 = vadd.f32 %v1013, %v951
        %v1015 = vadd.f32 %v1014, %v952
        %v1016 = vadd.f32 %v1015, %v953
        %v1017 = vadd.f32 %v1016, %v954
        %v1018 = vadd.f32 %v1017, %v955
        %v1019 = vadd.f32 %v1018, %v956
        %v1020 = vadd.f32 %v1019, %v957
        %v1021 = vadd.f32 %v1020, %v958
        %v1022 = vadd.f32 %v1021, %v959
        %v1023 = vadd.f32 %v1022, %v960
        %v1024 = vadd.f32 %v1023, %v961
        %v1025 = vadd.f32 %v1024, %v962
        %v1026 = vadd.f32 %v1025, %v963
        %v1027 = vadd.f32 %v1026, %v964
        %v1028 = vadd.f32 %v1027, %v965
        %v1029 = vadd.f32 %v1028, %v966
        %v1030 = vadd.f32 %v1029, %v967
        %v1031 = vadd.f32 %v1030, %v968
        %v1032 = vadd.f32 %v1031, %v969
        %v1033 = vadd.f32 %v1032, %v970
        %v1034 = vadd.f32 %v1033, %v971
        %v1035 = vadd.f32 %v1034, %v972
        %v1036 = vadd.f32 %v1035, %v973
        %v1037 = vadd.f32 %v1036, %v974
        %v1038 = vadd.f32 %v1037, %v975
        %v1039 = vadd.f32 %v1038, %v976
        %v1040 = vadd.f32 %v1039, %v977
        %v1041 = vadd.f32 %v1040, %v978
        %v1042 = vadd.f32 %v1041, %v979
        %v1043 = vadd.f32 %v1042, %v980
        %v1044 = vadd.f32 %v1043, %v981
        %v1045 = vadd.f32 %v1044, %v982
        %v1046 = vadd.f32 %v1045, %v983
        %v1047 = vadd.f32 %v1046, %v984
        %v1048 = vadd.f32 %v1047, %v985
        %v1049 = vadd.f32 %v1048, %v986
        %v1050 = vadd.f32 %v1049, %v987
        %v1051 = vadd.f32 %v1050, %v988
        %v1052 = vadd.f32 %v1051, %v989
        %v1053 = vadd.f32 %v1052, %v990
        %v1054 = vadd.f32 %v1053, %v991
        %v1055 = vadd.f32 %v1054, %v992
        %v1056 = vadd.f32 %v1055, %v993
        %v1057 = vadd.f32 %v1056, %v994
        %v1058 = vadd.f32 %v1057, %v995
        %v1059 = vadd.f32 %v1058, %v996
        %v1060 = vadd.f32 %v1059, %v997
        %v1061 = vadd.f32 %v1060, %v998
        %v1062 = vadd.f32 %v1061, %v999
        %v1063 = vadd.f32 %v1062, %v1000
        %v1064 = vadd.f32 %v1063, %v1001
        %v1065 = vadd.f32 %v1064, %v1002
        %v1066 = vadd.f32 %v1065, %v1003
        %v1067 = vadd.f32 %v1066, %v1004
        %v1068 = vadd.f32 %v1067, %v1005
        %v1069 = vadd.f32 %v1068, %v1006
        %v1070 = vadd.f32 %v1069, %v1007
        %v1071 = vadd.f32 %v1070, %v1008
        %v1072 = vrot.slane %v1071, 4
        %v1073 = vadd.f32 %v1071, %v1072
        %v1074 = vrot.slane %v1073, 2
        %v1075 = vadd.f32 %v1073, %v1074
        %v1076 = vrot.slane %v1075, 1
        %v1077 = vadd.f32 %v1075, %v1076
        %v1078 = vadd.f32 %v944, %v1077
        %1079 = vst [vmem:[#allocation3 + $0x1] sm:$0x1] %v1078
      $region32: #{cnn_forward.14} parent=27 // pred_fallthru
        _
      %p1080 = scmp.eq.s32.totalorder %s17, 1
      // Predicated region
      $region37: #{cnn_forward.14} parent=27 // pred_check
        %p1081 = pneg %p1080
      $region38: #{cnn_forward.14} parent=27 // pred_check_branch
        %1083 = sbr.rel (%p1081) target = $region40
      $region39: #{cnn_forward.14} parent=27 // pred_region
        %p1084 = scmp.eq.s32.totalorder %s18, 0
        // Predicated region
        $region41: #{cnn_forward.14} parent=39 // pred_check
          %p1085 = pneg %p1084
        $region42: #{cnn_forward.14} parent=39 // pred_check_branch
          %1087 = sbr.rel (%p1085) target = $region44
        $region43: #{cnn_forward.14} parent=39 // pred_region
          %v1088 = vld [vmem:[#allocation3] sm:$0x1]
          %v1089 = vmul.f32 %v1088, 0.001953125
          %v1090 = vld [vmem:[#allocation3 + $0x1] sm:$0x1]
          %v1091 = vmul.f32 %v1090, 0.001953125
          %v1092 = vmul.f32 %v1089, %v1089
          %v1093 = vsub.f32 %v1091, %v1092
          %v1094 = vmax.f32 %v1093, 0.0
          %v1095 = vadd.f32 %v1094, 1e-05
          %v1096 = vrsqrt.pop %v1095
          %1097 = vst [vmem:[#allocation4] sm:$0x1] %v1096
          %v1098 = vsub.f32 0.0, %v1089
          %v1099 = vmul.f32 %v1098, %v1096
          %1100 = vst [vmem:[#allocation4 + $0x1] sm:$0x1] %v1099
        $region44: #{cnn_forward.14} parent=39 // pred_fallthru
          _
        %s1101 = smul.u32 %s18, 512
        %s1102 = scalar_lea.vmem [#allocation2], %s1101
        %v1103 = vld [vmem:[%s1102] sm:$0xff]
        %v1104 = vld [vmem:[%s1102 + $0x8] sm:$0xff]
        %v1105 = vld [vmem:[%s1102 + $0x10] sm:$0xff]
        %v1106 = vld [vmem:[%s1102 + $0x18] sm:$0xff]
        %v1107 = vld [vmem:[%s1102 + $0x20] sm:$0xff]
        %v1108 = vld [vmem:[%s1102 + $0x28] sm:$0xff]
        %v1109 = vld [vmem:[%s1102 + $0x30] sm:$0xff]
        %v1110 = vld [vmem:[%s1102 + $0x38] sm:$0xff]
        %v1111 = vld [vmem:[%s1102 + $0x40] sm:$0xff]
        %v1112 = vld [vmem:[%s1102 + $0x48] sm:$0xff]
        %v1113 = vld [vmem:[%s1102 + $0x50] sm:$0xff]
        %v1114 = vld [vmem:[%s1102 + $0x58] sm:$0xff]
        %v1115 = vld [vmem:[%s1102 + $0x60] sm:$0xff]
        %v1116 = vld [vmem:[%s1102 + $0x68] sm:$0xff]
        %v1117 = vld [vmem:[%s1102 + $0x70] sm:$0xff]
        %v1118 = vld [vmem:[%s1102 + $0x78] sm:$0xff]
        %v1119 = vld [vmem:[%s1102 + $0x80] sm:$0xff]
        %v1120 = vld [vmem:[%s1102 + $0x88] sm:$0xff]
        %v1121 = vld [vmem:[%s1102 + $0x90] sm:$0xff]
        %v1122 = vld [vmem:[%s1102 + $0x98] sm:$0xff]
        %v1123 = vld [vmem:[%s1102 + $0xa0] sm:$0xff]
        %v1124 = vld [vmem:[%s1102 + $0xa8] sm:$0xff]
        %v1125 = vld [vmem:[%s1102 + $0xb0] sm:$0xff]
        %v1126 = vld [vmem:[%s1102 + $0xb8] sm:$0xff]
        %v1127 = vld [vmem:[%s1102 + $0xc0] sm:$0xff]
        %v1128 = vld [vmem:[%s1102 + $0xc8] sm:$0xff]
        %v1129 = vld [vmem:[%s1102 + $0xd0] sm:$0xff]
        %v1130 = vld [vmem:[%s1102 + $0xd8] sm:$0xff]
        %v1131 = vld [vmem:[%s1102 + $0xe0] sm:$0xff]
        %v1132 = vld [vmem:[%s1102 + $0xe8] sm:$0xff]
        %v1133 = vld [vmem:[%s1102 + $0xf0] sm:$0xff]
        %v1134 = vld [vmem:[%s1102 + $0xf8] sm:$0xff]
        %v1135 = vld [vmem:[%s1102 + $0x100] sm:$0xff]
        %v1136 = vld [vmem:[%s1102 + $0x108] sm:$0xff]
        %v1137 = vld [vmem:[%s1102 + $0x110] sm:$0xff]
        %v1138 = vld [vmem:[%s1102 + $0x118] sm:$0xff]
        %v1139 = vld [vmem:[%s1102 + $0x120] sm:$0xff]
        %v1140 = vld [vmem:[%s1102 + $0x128] sm:$0xff]
        %v1141 = vld [vmem:[%s1102 + $0x130] sm:$0xff]
        %v1142 = vld [vmem:[%s1102 + $0x138] sm:$0xff]
        %v1143 = vld [vmem:[%s1102 + $0x140] sm:$0xff]
        %v1144 = vld [vmem:[%s1102 + $0x148] sm:$0xff]
        %v1145 = vld [vmem:[%s1102 + $0x150] sm:$0xff]
        %v1146 = vld [vmem:[%s1102 + $0x158] sm:$0xff]
        %v1147 = vld [vmem:[%s1102 + $0x160] sm:$0xff]
        %v1148 = vld [vmem:[%s1102 + $0x168] sm:$0xff]
        %v1149 = vld [vmem:[%s1102 + $0x170] sm:$0xff]
        %v1150 = vld [vmem:[%s1102 + $0x178] sm:$0xff]
        %v1151 = vld [vmem:[%s1102 + $0x180] sm:$0xff]
        %v1152 = vld [vmem:[%s1102 + $0x188] sm:$0xff]
        %v1153 = vld [vmem:[%s1102 + $0x190] sm:$0xff]
        %v1154 = vld [vmem:[%s1102 + $0x198] sm:$0xff]
        %v1155 = vld [vmem:[%s1102 + $0x1a0] sm:$0xff]
        %v1156 = vld [vmem:[%s1102 + $0x1a8] sm:$0xff]
        %v1157 = vld [vmem:[%s1102 + $0x1b0] sm:$0xff]
        %v1158 = vld [vmem:[%s1102 + $0x1b8] sm:$0xff]
        %v1159 = vld [vmem:[%s1102 + $0x1c0] sm:$0xff]
        %v1160 = vld [vmem:[%s1102 + $0x1c8] sm:$0xff]
        %v1161 = vld [vmem:[%s1102 + $0x1d0] sm:$0xff]
        %v1162 = vld [vmem:[%s1102 + $0x1d8] sm:$0xff]
        %v1163 = vld [vmem:[%s1102 + $0x1e0] sm:$0xff]
        %v1164 = vld [vmem:[%s1102 + $0x1e8] sm:$0xff]
        %v1165 = vld [vmem:[%s1102 + $0x1f0] sm:$0xff]
        %v1166 = vld [vmem:[%s1102 + $0x1f8] sm:$0xff]
        %v1167 = vld [vmem:[#allocation4] sm:$0x1]
        %v1168 = vlaneseq
        %v1169 = vshrl.u32 %v1168, 7
        %v1170 = vsub.s32 0, %v1169
        %v1171 = vrot.slane %v1167, %v1170
        %v1172 = vmul.f32 %v1103, %v1171
        %v1173 = vmul.f32 %v1104, %v1171
        %v1174 = vmul.f32 %v1105, %v1171
        %v1175 = vmul.f32 %v1106, %v1171
        %v1176 = vmul.f32 %v1107, %v1171
        %v1177 = vmul.f32 %v1108, %v1171
        %v1178 = vmul.f32 %v1109, %v1171
        %v1179 = vmul.f32 %v1110, %v1171
        %v1180 = vmul.f32 %v1111, %v1171
        %v1181 = vmul.f32 %v1112, %v1171
        %v1182 = vmul.f32 %v1113, %v1171
        %v1183 = vmul.f32 %v1114, %v1171
        %v1184 = vmul.f32 %v1115, %v1171
        %v1185 = vmul.f32 %v1116, %v1171
        %v1186 = vmul.f32 %v1117, %v1171
        %v1187 = vmul.f32 %v1118, %v1171
        %v1188 = vmul.f32 %v1119, %v1171
        %v1189 = vmul.f32 %v1120, %v1171
        %v1190 = vmul.f32 %v1121, %v1171
        %v1191 = vmul.f32 %v1122, %v1171
        %v1192 = vmul.f32 %v1123, %v1171
        %v1193 = vmul.f32 %v1124, %v1171
        %v1194 = vmul.f32 %v1125, %v1171
        %v1195 = vmul.f32 %v1126, %v1171
        %v1196 = vmul.f32 %v1127, %v1171
        %v1197 = vmul.f32 %v1128, %v1171
        %v1198 = vmul.f32 %v1129, %v1171
        %v1199 = vmul.f32 %v1130, %v1171
        %v1200 = vmul.f32 %v1131, %v1171
        %v1201 = vmul.f32 %v1132, %v1171
        %v1202 = vmul.f32 %v1133, %v1171
        %v1203 = vmul.f32 %v1134, %v1171
        %v1204 = vmul.f32 %v1135, %v1171
        %v1205 = vmul.f32 %v1136, %v1171
        %v1206 = vmul.f32 %v1137, %v1171
        %v1207 = vmul.f32 %v1138, %v1171
        %v1208 = vmul.f32 %v1139, %v1171
        %v1209 = vmul.f32 %v1140, %v1171
        %v1210 = vmul.f32 %v1141, %v1171
        %v1211 = vmul.f32 %v1142, %v1171
        %v1212 = vmul.f32 %v1143, %v1171
        %v1213 = vmul.f32 %v1144, %v1171
        %v1214 = vmul.f32 %v1145, %v1171
        %v1215 = vmul.f32 %v1146, %v1171
        %v1216 = vmul.f32 %v1147, %v1171
        %v1217 = vmul.f32 %v1148, %v1171
        %v1218 = vmul.f32 %v1149, %v1171
        %v1219 = vmul.f32 %v1150, %v1171
        %v1220 = vmul.f32 %v1151, %v1171
        %v1221 = vmul.f32 %v1152, %v1171
        %v1222 = vmul.f32 %v1153, %v1171
        %v1223 = vmul.f32 %v1154, %v1171
        %v1224 = vmul.f32 %v1155, %v1171
        %v1225 = vmul.f32 %v1156, %v1171
        %v1226 = vmul.f32 %v1157, %v1171
        %v1227 = vmul.f32 %v1158, %v1171
        %v1228 = vmul.f32 %v1159, %v1171
        %v1229 = vmul.f32 %v1160, %v1171
        %v1230 = vmul.f32 %v1161, %v1171
        %v1231 = vmul.f32 %v1162, %v1171
        %v1232 = vmul.f32 %v1163, %v1171
        %v1233 = vmul.f32 %v1164, %v1171
        %v1234 = vmul.f32 %v1165, %v1171
        %v1235 = vmul.f32 %v1166, %v1171
        %v1236 = vld [vmem:[#allocation4 + $0x1] sm:$0x1]
        %v1237 = vlaneseq
        %v1238 = vshrl.u32 %v1237, 7
        %v1239 = vsub.s32 0, %v1238
        %v1240 = vrot.slane %v1236, %v1239
        %v1241 = vadd.f32 %v1172, %v1240
        %v1242 = vadd.f32 %v1173, %v1240
        %v1243 = vadd.f32 %v1174, %v1240
        %v1244 = vadd.f32 %v1175, %v1240
        %v1245 = vadd.f32 %v1176, %v1240
        %v1246 = vadd.f32 %v1177, %v1240
        %v1247 = vadd.f32 %v1178, %v1240
        %v1248 = vadd.f32 %v1179, %v1240
        %v1249 = vadd.f32 %v1180, %v1240
        %v1250 = vadd.f32 %v1181, %v1240
        %v1251 = vadd.f32 %v1182, %v1240
        %v1252 = vadd.f32 %v1183, %v1240
        %v1253 = vadd.f32 %v1184, %v1240
        %v1254 = vadd.f32 %v1185, %v1240
        %v1255 = vadd.f32 %v1186, %v1240
        %v1256 = vadd.f32 %v1187, %v1240
        %v1257 = vadd.f32 %v1188, %v1240
        %v1258 = vadd.f32 %v1189, %v1240
        %v1259 = vadd.f32 %v1190, %v1240
        %v1260 = vadd.f32 %v1191, %v1240
        %v1261 = vadd.f32 %v1192, %v1240
        %v1262 = vadd.f32 %v1193, %v1240
        %v1263 = vadd.f32 %v1194, %v1240
        %v1264 = vadd.f32 %v1195, %v1240
        %v1265 = vadd.f32 %v1196, %v1240
        %v1266 = vadd.f32 %v1197, %v1240
        %v1267 = vadd.f32 %v1198, %v1240
        %v1268 = vadd.f32 %v1199, %v1240
        %v1269 = vadd.f32 %v1200, %v1240
        %v1270 = vadd.f32 %v1201, %v1240
        %v1271 = vadd.f32 %v1202, %v1240
        %v1272 = vadd.f32 %v1203, %v1240
        %v1273 = vadd.f32 %v1204, %v1240
        %v1274 = vadd.f32 %v1205, %v1240
        %v1275 = vadd.f32 %v1206, %v1240
        %v1276 = vadd.f32 %v1207, %v1240
        %v1277 = vadd.f32 %v1208, %v1240
        %v1278 = vadd.f32 %v1209, %v1240
        %v1279 = vadd.f32 %v1210, %v1240
        %v1280 = vadd.f32 %v1211, %v1240
        %v1281 = vadd.f32 %v1212, %v1240
        %v1282 = vadd.f32 %v1213, %v1240
        %v1283 = vadd.f32 %v1214, %v1240
        %v1284 = vadd.f32 %v1215, %v1240
        %v1285 = vadd.f32 %v1216, %v1240
        %v1286 = vadd.f32 %v1217, %v1240
        %v1287 = vadd.f32 %v1218, %v1240
        %v1288 = vadd.f32 %v1219, %v1240
        %v1289 = vadd.f32 %v1220, %v1240
        %v1290 = vadd.f32 %v1221, %v1240
        %v1291 = vadd.f32 %v1222, %v1240
        %v1292 = vadd.f32 %v1223, %v1240
        %v1293 = vadd.f32 %v1224, %v1240
        %v1294 = vadd.f32 %v1225, %v1240
        %v1295 = vadd.f32 %v1226, %v1240
        %v1296 = vadd.f32 %v1227, %v1240
        %v1297 = vadd.f32 %v1228, %v1240
        %v1298 = vadd.f32 %v1229, %v1240
        %v1299 = vadd.f32 %v1230, %v1240
        %v1300 = vadd.f32 %v1231, %v1240
        %v1301 = vadd.f32 %v1232, %v1240
        %v1302 = vadd.f32 %v1233, %v1240
        %v1303 = vadd.f32 %v1234, %v1240
        %v1304 = vadd.f32 %v1235, %v1240
        %v1305 = vmax.f32 %v1241, 0.0
        %v1306 = vmax.f32 %v1242, 0.0
        %v1307 = vmax.f32 %v1243, 0.0
        %v1308 = vmax.f32 %v1244, 0.0
        %v1309 = vmax.f32 %v1245, 0.0
        %v1310 = vmax.f32 %v1246, 0.0
        %v1311 = vmax.f32 %v1247, 0.0
        %v1312 = vmax.f32 %v1248, 0.0
        %v1313 = vmax.f32 %v1249, 0.0
        %v1314 = vmax.f32 %v1250, 0.0
        %v1315 = vmax.f32 %v1251, 0.0
        %v1316 = vmax.f32 %v1252, 0.0
        %v1317 = vmax.f32 %v1253, 0.0
        %v1318 = vmax.f32 %v1254, 0.0
        %v1319 = vmax.f32 %v1255, 0.0
        %v1320 = vmax.f32 %v1256, 0.0
        %v1321 = vmax.f32 %v1257, 0.0
        %v1322 = vmax.f32 %v1258, 0.0
        %v1323 = vmax.f32 %v1259, 0.0
        %v1324 = vmax.f32 %v1260, 0.0
        %v1325 = vmax.f32 %v1261, 0.0
        %v1326 = vmax.f32 %v1262, 0.0
        %v1327 = vmax.f32 %v1263, 0.0
        %v1328 = vmax.f32 %v1264, 0.0
        %v1329 = vmax.f32 %v1265, 0.0
        %v1330 = vmax.f32 %v1266, 0.0
        %v1331 = vmax.f32 %v1267, 0.0
        %v1332 = vmax.f32 %v1268, 0.0
        %v1333 = vmax.f32 %v1269, 0.0
        %v1334 = vmax.f32 %v1270, 0.0
        %v1335 = vmax.f32 %v1271, 0.0
        %v1336 = vmax.f32 %v1272, 0.0
        %v1337 = vmax.f32 %v1273, 0.0
        %v1338 = vmax.f32 %v1274, 0.0
        %v1339 = vmax.f32 %v1275, 0.0
        %v1340 = vmax.f32 %v1276, 0.0
        %v1341 = vmax.f32 %v1277, 0.0
        %v1342 = vmax.f32 %v1278, 0.0
        %v1343 = vmax.f32 %v1279, 0.0
        %v1344 = vmax.f32 %v1280, 0.0
        %v1345 = vmax.f32 %v1281, 0.0
        %v1346 = vmax.f32 %v1282, 0.0
        %v1347 = vmax.f32 %v1283, 0.0
        %v1348 = vmax.f32 %v1284, 0.0
        %v1349 = vmax.f32 %v1285, 0.0
        %v1350 = vmax.f32 %v1286, 0.0
        %v1351 = vmax.f32 %v1287, 0.0
        %v1352 = vmax.f32 %v1288, 0.0
        %v1353 = vmax.f32 %v1289, 0.0
        %v1354 = vmax.f32 %v1290, 0.0
        %v1355 = vmax.f32 %v1291, 0.0
        %v1356 = vmax.f32 %v1292, 0.0
        %v1357 = vmax.f32 %v1293, 0.0
        %v1358 = vmax.f32 %v1294, 0.0
        %v1359 = vmax.f32 %v1295, 0.0
        %v1360 = vmax.f32 %v1296, 0.0
        %v1361 = vmax.f32 %v1297, 0.0
        %v1362 = vmax.f32 %v1298, 0.0
        %v1363 = vmax.f32 %v1299, 0.0
        %v1364 = vmax.f32 %v1300, 0.0
        %v1365 = vmax.f32 %v1301, 0.0
        %v1366 = vmax.f32 %v1302, 0.0
        %v1367 = vmax.f32 %v1303, 0.0
        %v1368 = vmax.f32 %v1304, 0.0
        %v1369 = vpack.c.bf16 %v1306, %v1305
        %v1370 = vpack.c.bf16 %v1308, %v1307
        %v1371 = vpack.c.bf16 %v1310, %v1309
        %v1372 = vpack.c.bf16 %v1312, %v1311
        %v1373 = vpack.c.bf16 %v1314, %v1313
        %v1374 = vpack.c.bf16 %v1316, %v1315
        %v1375 = vpack.c.bf16 %v1318, %v1317
        %v1376 = vpack.c.bf16 %v1320, %v1319
        %v1377 = vpack.c.bf16 %v1322, %v1321
        %v1378 = vpack.c.bf16 %v1324, %v1323
        %v1379 = vpack.c.bf16 %v1326, %v1325
        %v1380 = vpack.c.bf16 %v1328, %v1327
        %v1381 = vpack.c.bf16 %v1330, %v1329
        %v1382 = vpack.c.bf16 %v1332, %v1331
        %v1383 = vpack.c.bf16 %v1334, %v1333
        %v1384 = vpack.c.bf16 %v1336, %v1335
        %v1385 = vpack.c.bf16 %v1338, %v1337
        %v1386 = vpack.c.bf16 %v1340, %v1339
        %v1387 = vpack.c.bf16 %v1342, %v1341
        %v1388 = vpack.c.bf16 %v1344, %v1343
        %v1389 = vpack.c.bf16 %v1346, %v1345
        %v1390 = vpack.c.bf16 %v1348, %v1347
        %v1391 = vpack.c.bf16 %v1350, %v1349
        %v1392 = vpack.c.bf16 %v1352, %v1351
        %v1393 = vpack.c.bf16 %v1354, %v1353
        %v1394 = vpack.c.bf16 %v1356, %v1355
        %v1395 = vpack.c.bf16 %v1358, %v1357
        %v1396 = vpack.c.bf16 %v1360, %v1359
        %v1397 = vpack.c.bf16 %v1362, %v1361
        %v1398 = vpack.c.bf16 %v1364, %v1363
        %v1399 = vpack.c.bf16 %v1366, %v1365
        %v1400 = vpack.c.bf16 %v1368, %v1367
        %v1433 = vunpack.c.l.b16 %v1369
        %v1434 = vunpack.c.h.b16 %v1369
        %v1435 = vunpack.c.l.b16 %v1370
        %v1436 = vunpack.c.h.b16 %v1370
        %v1437 = vunpack.c.l.b16 %v1371
        %v1438 = vunpack.c.h.b16 %v1371
        %v1439 = vunpack.c.l.b16 %v1372
        %v1440 = vunpack.c.h.b16 %v1372
        %v1441 = vunpack.c.l.b16 %v1373
        %v1442 = vunpack.c.h.b16 %v1373
        %v1443 = vunpack.c.l.b16 %v1374
        %v1444 = vunpack.c.h.b16 %v1374
        %v1445 = vunpack.c.l.b16 %v1375
        %v1446 = vunpack.c.h.b16 %v1375
        %v1447 = vunpack.c.l.b16 %v1376
        %v1448 = vunpack.c.h.b16 %v1376
        %v1449 = vunpack.c.l.b16 %v1377
        %v1450 = vunpack.c.h.b16 %v1377
        %v1451 = vunpack.c.l.b16 %v1378
        %v1452 = vunpack.c.h.b16 %v1378
        %v1453 = vunpack.c.l.b16 %v1379
        %v1454 = vunpack.c.h.b16 %v1379
        %v1455 = vunpack.c.l.b16 %v1380
        %v1456 = vunpack.c.h.b16 %v1380
        %v1457 = vunpack.c.l.b16 %v1381
        %v1458 = vunpack.c.h.b16 %v1381
        %v1459 = vunpack.c.l.b16 %v1382
        %v1460 = vunpack.c.h.b16 %v1382
        %v1461 = vunpack.c.l.b16 %v1383
        %v1462 = vunpack.c.h.b16 %v1383
        %v1463 = vunpack.c.l.b16 %v1384
        %v1464 = vunpack.c.h.b16 %v1384
        %v1465 = vunpack.c.l.b16 %v1385
        %v1466 = vunpack.c.h.b16 %v1385
        %v1467 = vunpack.c.l.b16 %v1386
        %v1468 = vunpack.c.h.b16 %v1386
        %v1469 = vunpack.c.l.b16 %v1387
        %v1470 = vunpack.c.h.b16 %v1387
        %v1471 = vunpack.c.l.b16 %v1388
        %v1472 = vunpack.c.h.b16 %v1388
        %v1473 = vunpack.c.l.b16 %v1389
        %v1474 = vunpack.c.h.b16 %v1389
        %v1475 = vunpack.c.l.b16 %v1390
        %v1476 = vunpack.c.h.b16 %v1390
        %v1477 = vunpack.c.l.b16 %v1391
        %v1478 = vunpack.c.h.b16 %v1391
        %v1479 = vunpack.c.l.b16 %v1392
        %v1480 = vunpack.c.h.b16 %v1392
        %v1481 = vunpack.c.l.b16 %v1393
        %v1482 = vunpack.c.h.b16 %v1393
        %v1483 = vunpack.c.l.b16 %v1394
        %v1484 = vunpack.c.h.b16 %v1394
        %v1485 = vunpack.c.l.b16 %v1395
        %v1486 = vunpack.c.h.b16 %v1395
        %v1487 = vunpack.c.l.b16 %v1396
        %v1488 = vunpack.c.h.b16 %v1396
        %v1489 = vunpack.c.l.b16 %v1397
        %v1490 = vunpack.c.h.b16 %v1397
        %v1491 = vunpack.c.l.b16 %v1398
        %v1492 = vunpack.c.h.b16 %v1398
        %v1493 = vunpack.c.l.b16 %v1399
        %v1494 = vunpack.c.h.b16 %v1399
        %v1495 = vunpack.c.l.b16 %v1400
        %v1496 = vunpack.c.h.b16 %v1400
        %v1497 = vpack.c.b16 %v1433, %v1433
        %v1498 = vpack.c.b16 %v1434, %v1434
        %v1499 = vpack.c.b16 %v1435, %v1435
        %v1500 = vpack.c.b16 %v1436, %v1436
        %v1501 = vpack.c.b16 %v1437, %v1437
        %v1502 = vpack.c.b16 %v1438, %v1438
        %v1503 = vpack.c.b16 %v1439, %v1439
        %v1504 = vpack.c.b16 %v1440, %v1440
        %v1505 = vpack.c.b16 %v1441, %v1441
        %v1506 = vpack.c.b16 %v1442, %v1442
        %v1507 = vpack.c.b16 %v1443, %v1443
        %v1508 = vpack.c.b16 %v1444, %v1444
        %v1509 = vpack.c.b16 %v1445, %v1445
        %v1510 = vpack.c.b16 %v1446, %v1446
        %v1511 = vpack.c.b16 %v1447, %v1447
        %v1512 = vpack.c.b16 %v1448, %v1448
        %v1513 = vpack.c.b16 %v1449, %v1449
        %v1514 = vpack.c.b16 %v1450, %v1450
        %v1515 = vpack.c.b16 %v1451, %v1451
        %v1516 = vpack.c.b16 %v1452, %v1452
        %v1517 = vpack.c.b16 %v1453, %v1453
        %v1518 = vpack.c.b16 %v1454, %v1454
        %v1519 = vpack.c.b16 %v1455, %v1455
        %v1520 = vpack.c.b16 %v1456, %v1456
        %v1521 = vpack.c.b16 %v1457, %v1457
        %v1522 = vpack.c.b16 %v1458, %v1458
        %v1523 = vpack.c.b16 %v1459, %v1459
        %v1524 = vpack.c.b16 %v1460, %v1460
        %v1525 = vpack.c.b16 %v1461, %v1461
        %v1526 = vpack.c.b16 %v1462, %v1462
        %v1527 = vpack.c.b16 %v1463, %v1463
        %v1528 = vpack.c.b16 %v1464, %v1464
        %v1529 = vpack.c.b16 %v1465, %v1465
        %v1530 = vpack.c.b16 %v1466, %v1466
        %v1531 = vpack.c.b16 %v1467, %v1467
        %v1532 = vpack.c.b16 %v1468, %v1468
        %v1533 = vpack.c.b16 %v1469, %v1469
        %v1534 = vpack.c.b16 %v1470, %v1470
        %v1535 = vpack.c.b16 %v1471, %v1471
        %v1536 = vpack.c.b16 %v1472, %v1472
        %v1537 = vpack.c.b16 %v1473, %v1473
        %v1538 = vpack.c.b16 %v1474, %v1474
        %v1539 = vpack.c.b16 %v1475, %v1475
        %v1540 = vpack.c.b16 %v1476, %v1476
        %v1541 = vpack.c.b16 %v1477, %v1477
        %v1542 = vpack.c.b16 %v1478, %v1478
        %v1543 = vpack.c.b16 %v1479, %v1479
        %v1544 = vpack.c.b16 %v1480, %v1480
        %v1545 = vpack.c.b16 %v1481, %v1481
        %v1546 = vpack.c.b16 %v1482, %v1482
        %v1547 = vpack.c.b16 %v1483, %v1483
        %v1548 = vpack.c.b16 %v1484, %v1484
        %v1549 = vpack.c.b16 %v1485, %v1485
        %v1550 = vpack.c.b16 %v1486, %v1486
        %v1551 = vpack.c.b16 %v1487, %v1487
        %v1552 = vpack.c.b16 %v1488, %v1488
        %v1553 = vpack.c.b16 %v1489, %v1489
        %v1554 = vpack.c.b16 %v1490, %v1490
        %v1555 = vpack.c.b16 %v1491, %v1491
        %v1556 = vpack.c.b16 %v1492, %v1492
        %v1557 = vpack.c.b16 %v1493, %v1493
        %v1558 = vpack.c.b16 %v1494, %v1494
        %v1559 = vpack.c.b16 %v1495, %v1495
        %v1560 = vpack.c.b16 %v1496, %v1496
        %vm1625 = vcmask 257024
        %1626 = vst.msk [vmem:[%s175] sm:$0xf] %vm1625, %v1497
        %1627 = vst.msk [vmem:[%s175 + $0x4] sm:$0xf] %vm1625, %v1498
        %1628 = vst.msk [vmem:[%s175 + $0x8] sm:$0xf] %vm1625, %v1499
        %1629 = vst.msk [vmem:[%s175 + $0xc] sm:$0xf] %vm1625, %v1500
        %1630 = vst.msk [vmem:[%s175 + $0x10] sm:$0xf] %vm1625, %v1501
        %1631 = vst.msk [vmem:[%s175 + $0x14] sm:$0xf] %vm1625, %v1502
        %1632 = vst.msk [vmem:[%s175 + $0x18] sm:$0xf] %vm1625, %v1503
        %1633 = vst.msk [vmem:[%s175 + $0x1c] sm:$0xf] %vm1625, %v1504
        %1634 = vst.msk [vmem:[%s175 + $0x20] sm:$0xf] %vm1625, %v1505
        %1635 = vst.msk [vmem:[%s175 + $0x24] sm:$0xf] %vm1625, %v1506
        %1636 = vst.msk [vmem:[%s175 + $0x28] sm:$0xf] %vm1625, %v1507
        %1637 = vst.msk [vmem:[%s175 + $0x2c] sm:$0xf] %vm1625, %v1508
        %1638 = vst.msk [vmem:[%s175 + $0x30] sm:$0xf] %vm1625, %v1509
        %1639 = vst.msk [vmem:[%s175 + $0x34] sm:$0xf] %vm1625, %v1510
        %1640 = vst.msk [vmem:[%s175 + $0x38] sm:$0xf] %vm1625, %v1511
        %1641 = vst.msk [vmem:[%s175 + $0x3c] sm:$0xf] %vm1625, %v1512
        %1642 = vst.msk [vmem:[%s175 + $0x40] sm:$0xf] %vm1625, %v1513
        %1643 = vst.msk [vmem:[%s175 + $0x44] sm:$0xf] %vm1625, %v1514
        %1644 = vst.msk [vmem:[%s175 + $0x48] sm:$0xf] %vm1625, %v1515
        %1645 = vst.msk [vmem:[%s175 + $0x4c] sm:$0xf] %vm1625, %v1516
        %1646 = vst.msk [vmem:[%s175 + $0x50] sm:$0xf] %vm1625, %v1517
        %1647 = vst.msk [vmem:[%s175 + $0x54] sm:$0xf] %vm1625, %v1518
        %1648 = vst.msk [vmem:[%s175 + $0x58] sm:$0xf] %vm1625, %v1519
        %1649 = vst.msk [vmem:[%s175 + $0x5c] sm:$0xf] %vm1625, %v1520
        %1650 = vst.msk [vmem:[%s175 + $0x60] sm:$0xf] %vm1625, %v1521
        %1651 = vst.msk [vmem:[%s175 + $0x64] sm:$0xf] %vm1625, %v1522
        %1652 = vst.msk [vmem:[%s175 + $0x68] sm:$0xf] %vm1625, %v1523
        %1653 = vst.msk [vmem:[%s175 + $0x6c] sm:$0xf] %vm1625, %v1524
        %1654 = vst.msk [vmem:[%s175 + $0x70] sm:$0xf] %vm1625, %v1525
        %1655 = vst.msk [vmem:[%s175 + $0x74] sm:$0xf] %vm1625, %v1526
        %1656 = vst.msk [vmem:[%s175 + $0x78] sm:$0xf] %vm1625, %v1527
        %1657 = vst.msk [vmem:[%s175 + $0x7c] sm:$0xf] %vm1625, %v1528
        %1658 = vst.msk [vmem:[%s175 + $0x80] sm:$0xf] %vm1625, %v1529
        %1659 = vst.msk [vmem:[%s175 + $0x84] sm:$0xf] %vm1625, %v1530
        %1660 = vst.msk [vmem:[%s175 + $0x88] sm:$0xf] %vm1625, %v1531
        %1661 = vst.msk [vmem:[%s175 + $0x8c] sm:$0xf] %vm1625, %v1532
        %1662 = vst.msk [vmem:[%s175 + $0x90] sm:$0xf] %vm1625, %v1533
        %1663 = vst.msk [vmem:[%s175 + $0x94] sm:$0xf] %vm1625, %v1534
        %1664 = vst.msk [vmem:[%s175 + $0x98] sm:$0xf] %vm1625, %v1535
        %1665 = vst.msk [vmem:[%s175 + $0x9c] sm:$0xf] %vm1625, %v1536
        %1666 = vst.msk [vmem:[%s175 + $0xa0] sm:$0xf] %vm1625, %v1537
        %1667 = vst.msk [vmem:[%s175 + $0xa4] sm:$0xf] %vm1625, %v1538
        %1668 = vst.msk [vmem:[%s175 + $0xa8] sm:$0xf] %vm1625, %v1539
        %1669 = vst.msk [vmem:[%s175 + $0xac] sm:$0xf] %vm1625, %v1540
        %1670 = vst.msk [vmem:[%s175 + $0xb0] sm:$0xf] %vm1625, %v1541
        %1671 = vst.msk [vmem:[%s175 + $0xb4] sm:$0xf] %vm1625, %v1542
        %1672 = vst.msk [vmem:[%s175 + $0xb8] sm:$0xf] %vm1625, %v1543
        %1673 = vst.msk [vmem:[%s175 + $0xbc] sm:$0xf] %vm1625, %v1544
        %1674 = vst.msk [vmem:[%s175 + $0xc0] sm:$0xf] %vm1625, %v1545
        %1675 = vst.msk [vmem:[%s175 + $0xc4] sm:$0xf] %vm1625, %v1546
        %1676 = vst.msk [vmem:[%s175 + $0xc8] sm:$0xf] %vm1625, %v1547
        %1677 = vst.msk [vmem:[%s175 + $0xcc] sm:$0xf] %vm1625, %v1548
        %1678 = vst.msk [vmem:[%s175 + $0xd0] sm:$0xf] %vm1625, %v1549
        %1679 = vst.msk [vmem:[%s175 + $0xd4] sm:$0xf] %vm1625, %v1550
        %1680 = vst.msk [vmem:[%s175 + $0xd8] sm:$0xf] %vm1625, %v1551
        %1681 = vst.msk [vmem:[%s175 + $0xdc] sm:$0xf] %vm1625, %v1552
        %1682 = vst.msk [vmem:[%s175 + $0xe0] sm:$0xf] %vm1625, %v1553
        %1683 = vst.msk [vmem:[%s175 + $0xe4] sm:$0xf] %vm1625, %v1554
        %1684 = vst.msk [vmem:[%s175 + $0xe8] sm:$0xf] %vm1625, %v1555
        %1685 = vst.msk [vmem:[%s175 + $0xec] sm:$0xf] %vm1625, %v1556
        %1686 = vst.msk [vmem:[%s175 + $0xf0] sm:$0xf] %vm1625, %v1557
        %1687 = vst.msk [vmem:[%s175 + $0xf4] sm:$0xf] %vm1625, %v1558
        %1688 = vst.msk [vmem:[%s175 + $0xf8] sm:$0xf] %vm1625, %v1559
        %1689 = vst.msk [vmem:[%s175 + $0xfc] sm:$0xf] %vm1625, %v1560
      $region40: #{cnn_forward.14} parent=27 // pred_fallthru
        _
      %s1690 = smul.u32 %s18, %s17
      %s1691 = smul.u32 64, %s1690
      %p1692 = scmp.lt.s32.totalorder %s1691, 63
      %s1693 = scalar_select %p1692, %s1691, 63
      %s1694 = smul.addr %s1693, 4
      %s1695 = scalar_lea.vmem %s2, %s1694
      // Predicated region
      $region45: #{cnn_forward.14} parent=27 // pred_check
        %p1696 = pneg %p96
      $region46: #{cnn_forward.14} parent=27 // pred_check_branch
        %1698 = sbr.rel (%p1696) target = $region48
      $region47: #{cnn_forward.14} parent=27 // pred_region
        %s1699 = smul.u32 %s18, %s17
        %s1700 = smul.u32 64, %s1699
      $region48: #{cnn_forward.14} parent=27 // pred_fallthru
        _
    $region28: #{cnn_forward.14} parent=5 // pred_fallthru
      _
    %p1701 = scmp.le.s32.totalorder 2, %s8
    // Predicated region
    $region49: #{cnn_forward.14} parent=5 // pred_check
      %p1702 = pneg %p1701
    $region50: #{cnn_forward.14} parent=5 // pred_check_branch
      %1704 = sbr.rel (%p1702) target = $region52
    $region51: #{cnn_forward.14} parent=5 // pred_region
      %s1705 = ssub.s32 %s8, 2
      // Predicated region
      $region53: #{cnn_forward.14} parent=51 // pred_check
        %p1706 = pneg %p102
      $region54: #{cnn_forward.14} parent=51 // pred_check_branch
        %1708 = sbr.rel (%p1706) target = $region56
      $region55: #{cnn_forward.14} parent=51 // pred_region
        %s1709 = smul.u32 %s20, %s19
        %s1710 = smul.u32 64, %s1709
        %p1711 = scmp.lt.s32.totalorder %s1710, 63
        %s1712 = scalar_select %p1711, %s1710, 63
        %s1713 = smul.addr %s1712, 4
        %s1714 = scalar_lea.vmem %s2, %s1713
      $region56: #{cnn_forward.14} parent=51 // pred_fallthru
        _
    $region52: #{cnn_forward.14} parent=5 // pred_fallthru
      _
  $region6: #{cnn_forward.14} parent=0 // loop_footer
    %s12 = sadd.s32 1, %s8
  $region7: #{cnn_forward.14} parent=0 // loop_footer_branch
    %7 = sbr.rel target = $region3
  $region8: #{cnn_forward.14} parent=0 // loop_exit
    _

// kernel: cnn_forward.8
$region0: #{cnn_forward.8}
  #allocation0 [shape = 'u32[]', space=smem, size = 0x4, offset = 0x4, fixed_abs, tag = 'smem constant byte address 0x4 - core index']
  #allocation1 [shape = 'u32[144,128]{1,0:T(1,128)}', space=vmem, size = 0x12000, scoped, tag = 'internal scratch']
  #allocation2 [shape = 'f32[1,128,128]{2,1,0:T(8,128)}', space=vmem, size = 0x10000, scoped, tag = 'scratch operand']
  #allocation3 [shape = 'f32[2,128]{1,0:T(2,128)}', space=vmem, size = 0x400, scoped, tag = 'scratch operand']
  #allocation4 [shape = 'f32[2,128]{1,0:T(2,128)}', space=vmem, size = 0x400, scoped, tag = 'scratch operand']
  %s0 = inlined_call_operand.vmem [shape: bf16[128,32], index: 0, kind: input, shape index: {}]
  %s1 = inlined_call_operand.vmem [shape: bf16[32,128], index: 1, kind: input, shape index: {}]
  %s2 = inlined_call_operand.vmem [shape: bf16[128,32], index: 2, kind: output, shape index: {}]
  %s3 = sld [smem:[#allocation0]]
  $region57: #{cnn_forward.8} parent=0
    _
  %s5 = ssub.s32 1, %s3
  %s6 = scalar_select 0, %s5, %s3
  loop: start=0, step=1, limit=4
  $region2: #{cnn_forward.8} parent=0 // loop_pre_header
    _
  $region3: #{cnn_forward.8} parent=0 // loop_header
    %s8 = sphi 0, %s12
    %p9 = scmp.ge.s32.totalorder %s8, 4
    %s15 = sphi 0, %s27
    %s16 = sphi 0, %s23
    %s17 = sphi 0, %s15
    %s18 = sphi 0, %s16
    %s19 = sphi 0, %s17
    %s20 = sphi 0, %s18
    %s34 = sphi 0, %s36
    %s37 = sphi 0, %s34
    %s38 = sphi 0, %s37
    %s54 = sphi 0, %s38
    %s58 = sphi 0, %s58
    %s60 = sphi 0, %s58
    %s61 = sphi 0, %s60
    %s75 = sphi 0, %s61
    %s83 = sphi 0, %s85
    %s86 = sphi 0, %s83
    %s87 = sphi 0, %s86
    %s103 = sphi 0, %s87
  $region4: #{cnn_forward.8} parent=0 // loop_header_branch
    %11 = sbr.rel (%p9) target = $region8
  $region5: #{cnn_forward.8} parent=0 // loop_body
    %s13 = ssub.s32 %s8, 1
    %s14 = ssub.s32 %s8, 2
    %s21 = sadd.s32 1, %s16
    %p22 = scmp.ge.s32.totalorder %s21, 1
    %s23 = scalar_select %p22, 0, %s21
    %s24 = sadd.s32 1, %s15
    %s25 = scalar_select %p22, %s24, %s15
    %p26 = scmp.ge.s32.totalorder %s25, 2
    %s27 = scalar_select %p26, 0, %s25
    %s28 = ssub.s32 1, %s15
    %s29 = smul.u32 %s16, %s28
    %s30 = ssub.s32 1, %s27
    %s31 = smul.u32 %s23, %s30
    %s32 = ssub.s32 %s29, %s31
    %p33 = scmp.eq.s32.totalorder %s32, 0
    %s35 = sadd.s32 %s34, 1
    %s36 = scalar_select %p33, %s34, %s35
    %p39 = pneg %p33
    %p40 = scmp.eq.s32.totalorder %s8, 1
    %p41 = por %p39, %p40
    %p42 = scmp.ne.s32.totalorder %s34, %s37
    %p43 = scmp.eq.s32.totalorder %s8, 0
    %p44 = por %p42, %p43
    %p45 = scmp.ne.s32.totalorder %s34, %s37
    %p46 = scmp.eq.s32.totalorder %s13, 1
    %p47 = por %p45, %p46
    %p48 = scmp.ne.s32.totalorder %s37, %s38
    %p49 = scmp.eq.s32.totalorder %s13, 0
    %p50 = por %p48, %p49
    %p51 = scmp.ne.s32.totalorder %s37, %s38
    %p52 = scmp.eq.s32.totalorder %s14, 1
    %p53 = por %p51, %p52
    %p55 = scmp.ne.s32.totalorder %s38, %s54
    %p56 = scmp.eq.s32.totalorder %s14, 0
    %p57 = por %p55, %p56
    %s59 = sadd.s32 %s58, 1
    %p62 = scmp.eq.s32.totalorder %s8, 1
    %p63 = scmp.ne.s32.totalorder %s58, %s60
    %p64 = scmp.eq.s32.totalorder %s8, 0
    %p65 = por %p63, %p64
    %p66 = scmp.ne.s32.totalorder %s58, %s60
    %p67 = scmp.eq.s32.totalorder %s13, 1
    %p68 = por %p66, %p67
    %p69 = scmp.ne.s32.totalorder %s60, %s61
    %p70 = scmp.eq.s32.totalorder %s13, 0
    %p71 = por %p69, %p70
    %p72 = scmp.ne.s32.totalorder %s60, %s61
    %p73 = scmp.eq.s32.totalorder %s14, 1
    %p74 = por %p72, %p73
    %p76 = scmp.ne.s32.totalorder %s61, %s75
    %p77 = scmp.eq.s32.totalorder %s14, 0
    %p78 = por %p76, %p77
    %s79 = smul.u32 %s16, %s15
    %s80 = smul.u32 %s23, %s27
    %s81 = ssub.s32 %s79, %s80
    %p82 = scmp.eq.s32.totalorder %s81, 0
    %s84 = sadd.s32 %s83, 1
    %s85 = scalar_select %p82, %s83, %s84
    %p88 = pneg %p82
    %p89 = scmp.eq.s32.totalorder %s8, 1
    %p90 = por %p88, %p89
    %p91 = scmp.ne.s32.totalorder %s83, %s86
    %p92 = scmp.eq.s32.totalorder %s8, 0
    %p93 = por %p91, %p92
    %p94 = scmp.ne.s32.totalorder %s83, %s86
    %p95 = scmp.eq.s32.totalorder %s13, 1
    %p96 = por %p94, %p95
    %p97 = scmp.ne.s32.totalorder %s86, %s87
    %p98 = scmp.eq.s32.totalorder %s13, 0
    %p99 = por %p97, %p98
    %p100 = scmp.ne.s32.totalorder %s86, %s87
    %p101 = scmp.eq.s32.totalorder %s14, 1
    %p102 = por %p100, %p101
    %p104 = scmp.ne.s32.totalorder %s87, %s103
    %p105 = scmp.eq.s32.totalorder %s14, 0
    %p106 = por %p104, %p105
    %p107 = scmp.le.s32.totalorder 1, %s8
    %p108 = scmp.lt.s32.totalorder %s8, 3
    %p109 = pnand %p107, %p108
    %p110 = pneg %p109
    // Predicated region
    $region9: #{cnn_forward.8} parent=5 // pred_check
      _
    $region10: #{cnn_forward.8} parent=5 // pred_check_branch
      %112 = sbr.rel (%p109) target = $region12
    $region11: #{cnn_forward.8} parent=5 // pred_region
      %s113 = ssub.s32 %s8, 1
      // Predicated region
      $region13: #{cnn_forward.8} parent=11 // pred_check
        %p114 = pneg %p71
      $region14: #{cnn_forward.8} parent=11 // pred_check_branch
        %116 = sbr.rel (%p114) target = $region16
      $region15: #{cnn_forward.8} parent=11 // pred_region
        _
      $region16: #{cnn_forward.8} parent=11 // pred_fallthru
        _
    $region12: #{cnn_forward.8} parent=5 // pred_fallthru
      _
    %p117 = scmp.lt.s32.totalorder %s8, 2
    // Predicated region
    $region17: #{cnn_forward.8} parent=5 // pred_check
      %p118 = pneg %p117
    $region18: #{cnn_forward.8} parent=5 // pred_check_branch
      %120 = sbr.rel (%p118) target = $region20
    $region19: #{cnn_forward.8} parent=5 // pred_region
      // Predicated region
      $region21: #{cnn_forward.8} parent=19 // pred_check
        %p121 = pneg %p44
      $region22: #{cnn_forward.8} parent=19 // pred_check_branch
        %123 = sbr.rel (%p121) target = $region24
      $region23: #{cnn_forward.8} parent=19 // pred_region
        %s124 = ssub.s32 1, %s15
        %s125 = smul.u32 %s16, %s124
        %s126 = smul.u32 16, %s125
        %p127 = scmp.lt.s32.totalorder %s126, 15
        %s128 = scalar_select %p127, %s126, 15
        %s129 = smul.addr %s128, 4
        %s130 = scalar_lea.vmem %s0, %s129
        %s131 = ssub.s32 1, %s15
        %s132 = smul.u32 %s16, %s131
        %s133 = smul.u32 16, %s132
      $region24: #{cnn_forward.8} parent=19 // pred_fallthru
        _
    $region20: #{cnn_forward.8} parent=5 // pred_fallthru
      _
    %p134 = scmp.le.s32.totalorder 1, %s8
    %p135 = scmp.lt.s32.totalorder %s8, 3
    %p136 = pnand %p134, %p135
    %p137 = pneg %p136
    // Predicated region
    $region25: #{cnn_forward.8} parent=5 // pred_check
      _
    $region26: #{cnn_forward.8} parent=5 // pred_check_branch
      %139 = sbr.rel (%p136) target = $region28
    $region27: #{cnn_forward.8} parent=5 // pred_region
      %s140 = ssub.s32 %s8, 1
      %s141 = ssub.s32 1, %s17
      %s142 = smul.u32 %s18, %s141
      %s143 = smul.u32 16, %s142
      %p144 = scmp.lt.s32.totalorder %s143, 15
      %s145 = scalar_select %p144, %s143, 15
      %s146 = smul.addr %s145, 4
      %s147 = scalar_lea.vmem %s0, %s146
      %p148 = pneg %p50
      %p149 = pneg %p47
      %p150 = pneg %p71
      %p151 = pneg %p68
      %p152 = pneg %p99
      %p153 = pneg %p96
      %s154 = smul.u32 %s18, %s17
      %s155 = smul.u32 16, %s154
      %p156 = scmp.lt.s32.totalorder %s155, 15
      %s157 = scalar_select %p156, %s155, 15
      %s158 = smul.addr %s157, 4
      %s159 = scalar_lea.vmem %s2, %s158
      %s160 = ssub.s32 1, %s17
      %s161 = smul.u32 %s18, %s160
      %s162 = smul.u32 16, %s161
      %p163 = scmp.lt.s32.totalorder %s162, 15
      %s164 = scalar_select %p163, %s162, 15
      %s165 = smul.addr %s164, 4
      %s166 = scalar_lea.vmem %s0, %s165
      %s167 = ssub.s32 1, %s17
      %s168 = smul.u32 %s18, %s167
      %s169 = smul.u32 16, %s168
      %s170 = smul.u32 %s18, %s17
      %s171 = smul.u32 16, %s170
      %p172 = scmp.lt.s32.totalorder %s171, 15
      %s173 = scalar_select %p172, %s171, 15
      %s174 = smul.addr %s173, 4
      %s175 = scalar_lea.vmem %s2, %s174
      %s176 = smul.u32 %s18, %s17
      %s177 = smul.u32 16, %s176
      %p179 = scmp.eq.s32.totalorder %s17, 0
      // Predicated region
      $region29: #{cnn_forward.8} parent=27 // pred_check
        %p180 = pneg %p179
      $region30: #{cnn_forward.8} parent=27 // pred_check_branch
        %182 = sbr.rel (%p180) target = $region32
      $region31: #{cnn_forward.8} parent=27 // pred_region
        %p183 = scmp.eq.s32.totalorder %s18, 0
        // Predicated region
        $region33: #{cnn_forward.8} parent=31 // pred_check
          %p184 = pneg %p183
        $region34: #{cnn_forward.8} parent=31 // pred_check_branch
          %186 = sbr.rel (%p184) target = $region36
        $region35: #{cnn_forward.8} parent=31 // pred_region
          %187 = vst [vmem:[#allocation3] sm:$0x3] 0.0
        $region36: #{cnn_forward.8} parent=31 // pred_fallthru
          _
        %v188 = vld [vmem:[%s166] sm:$0xf]
        %v189 = vld [vmem:[%s166 + $0x4] sm:$0xf]
        %v190 = vld [vmem:[%s166 + $0x8] sm:$0xf]
        %v191 = vld [vmem:[%s166 + $0xc] sm:$0xf]
        %v192 = vld [vmem:[%s166 + $0x10] sm:$0xf]
        %v193 = vld [vmem:[%s166 + $0x14] sm:$0xf]
        %v194 = vld [vmem:[%s166 + $0x18] sm:$0xf]
        %v195 = vld [vmem:[%s166 + $0x1c] sm:$0xf]
        %v196 = vld [vmem:[%s166 + $0x20] sm:$0xf]
        %v197 = vld [vmem:[%s166 + $0x24] sm:$0xf]
        %v198 = vld [vmem:[%s166 + $0x28] sm:$0xf]
        %v199 = vld [vmem:[%s166 + $0x2c] sm:$0xf]
        %v200 = vld [vmem:[%s166 + $0x30] sm:$0xf]
        %v201 = vld [vmem:[%s166 + $0x34] sm:$0xf]
        %v202 = vld [vmem:[%s166 + $0x38] sm:$0xf]
        %v203 = vld [vmem:[%s166 + $0x3c] sm:$0xf]
        %v204 = vld [vmem:[%s1] sm:$0xf]
        %v205 = vld [vmem:[%s1 + $0x4] sm:$0xf]
        %v206 = vld [vmem:[%s1 + $0x8] sm:$0xf]
        %v207 = vld [vmem:[%s1 + $0xc] sm:$0xf]
        %v224 = vunpack.c.l.b16 %v188
        %v225 = vunpack.c.l.b16 %v189
        %v226 = vunpack.c.l.b16 %v190
        %v227 = vunpack.c.l.b16 %v191
        %v228 = vunpack.c.l.b16 %v192
        %v229 = vunpack.c.l.b16 %v193
        %v230 = vunpack.c.l.b16 %v194
        %v231 = vunpack.c.l.b16 %v195
        %v232 = vunpack.c.l.b16 %v196
        %v233 = vunpack.c.l.b16 %v197
        %v234 = vunpack.c.l.b16 %v198
        %v235 = vunpack.c.l.b16 %v199
        %v236 = vunpack.c.l.b16 %v200
        %v237 = vunpack.c.l.b16 %v201
        %v238 = vunpack.c.l.b16 %v202
        %v239 = vunpack.c.l.b16 %v203
        %v240 = vpack.c.b16 %v225, %v224
        %v241 = vpack.c.b16 %v227, %v226
        %v242 = vpack.c.b16 %v229, %v228
        %v243 = vpack.c.b16 %v231, %v230
        %v244 = vpack.c.b16 %v233, %v232
        %v245 = vpack.c.b16 %v235, %v234
        %v246 = vpack.c.b16 %v237, %v236
        %v247 = vpack.c.b16 %v239, %v238
        %v252 = vunpack.c.l.b16 %v204
        %v253 = vunpack.c.l.b16 %v205
        %v254 = vunpack.c.l.b16 %v206
        %v255 = vunpack.c.l.b16 %v207
        %v256 = vpack.c.b16 %v253, %v252
        %v257 = vpack.c.b16 %v255, %v254
        %vm260 = vcmask 261120
        %v262 = vsel %vm260, %v240, 0
        %v265 = vsel %vm260, %v241, 0
        %v268 = vsel %vm260, %v242, 0
        %v271 = vsel %vm260, %v243, 0
        %v274 = vsel %vm260, %v244, 0
        %v277 = vsel %vm260, %v245, 0
        %v280 = vsel %vm260, %v246, 0
        %v283 = vsel %vm260, %v247, 0
        %285 = vmatprep.subr.bf16.mxu0 0
        %286 = vmatpush1.bf16.msra.mxu0 %v256
        %287 = vmatprep.subr.bf16.mxu0 0
        %288 = vmatpush1.bf16.msra.mxu0 %v257
        %289 = vmatprep.subr.bf16.mxu0 0
        %290 = vmatpush1.bf16.msra.mxu0 0
        %291 = vmatprep.subr.bf16.mxu0 0
        %292 = vmatpush1.bf16.msra.mxu0 0
        %293 = vmatprep.subr.bf16.mxu0 0
        %294 = vmatpush1.bf16.msra.mxu0 0
        %295 = vmatprep.subr.bf16.mxu0 0
        %296 = vmatpush1.bf16.msra.mxu0 0
        %297 = vmatprep.subr.bf16.mxu0 0
        %298 = vmatpush1.bf16.msra.mxu0 0
        %299 = vmatprep.subr.bf16.mxu0 0
        %300 = vmatpush1.bf16.msra.mxu0 0
        %301 = vmatprep.subr.bf16.mxu0 0
        %302 = vmatpush1.bf16.msra.mxu0 0
        %303 = vmatprep.subr.bf16.mxu0 0
        %304 = vmatpush1.bf16.msra.mxu0 0
        %305 = vmatprep.subr.bf16.mxu0 0
        %306 = vmatpush1.bf16.msra.mxu0 0
        %307 = vmatprep.subr.bf16.mxu0 0
        %308 = vmatpush1.bf16.msra.mxu0 0
        %309 = vmatprep.subr.bf16.mxu0 0
        %310 = vmatpush1.bf16.msra.mxu0 0
        %311 = vmatprep.subr.bf16.mxu0 0
        %312 = vmatpush1.bf16.msra.mxu0 0
        %313 = vmatprep.subr.bf16.mxu0 0
        %314 = vmatpush1.bf16.msra.mxu0 0
        %315 = vmatprep.subr.bf16.mxu0 0
        %316 = vmatpush1.bf16.msra.mxu0 0
        %317 = vmatprep.mubr.bf16.mxu0 0
        %318 = vmatmul.mubr.bf16.gmra.mrb[0].mxu0 %v262
        %v319 = vpop.f32.mrb[0].mxu0
        %v320 = vadd.f32 0.0, %v319
        %v321 = vpop.f32.mrb[0].mxu0
        %v322 = vpop.f32.mrb[0].mxu0
        %v323 = vadd.f32 0.0, %v322
        %v324 = vpop.f32.mrb[0].mxu0
        %325 = vmatprep.mubr.bf16.mxu0 0
        %326 = vmatmul.mubr.bf16.gmra.mrb[0].mxu0 %v265
        %v327 = vpop.f32.mrb[0].mxu0
        %v328 = vadd.f32 0.0, %v327
        %v329 = vpop.f32.mrb[0].mxu0
        %v330 = vpop.f32.mrb[0].mxu0
        %v331 = vadd.f32 0.0, %v330
        %v332 = vpop.f32.mrb[0].mxu0
        %333 = vmatprep.mubr.bf16.mxu0 0
        %334 = vmatmul.mubr.bf16.gmra.mrb[0].mxu0 %v268
        %v335 = vpop.f32.mrb[0].mxu0
        %v336 = vadd.f32 0.0, %v335
        %v337 = vpop.f32.mrb[0].mxu0
        %v338 = vpop.f32.mrb[0].mxu0
        %v339 = vadd.f32 0.0, %v338
        %v340 = vpop.f32.mrb[0].mxu0
        %341 = vmatprep.mubr.bf16.mxu0 0
        %342 = vmatmul.mubr.bf16.gmra.mrb[0].mxu0 %v271
        %v343 = vpop.f32.mrb[0].mxu0
        %v344 = vadd.f32 0.0, %v343
        %v345 = vpop.f32.mrb[0].mxu0
        %v346 = vpop.f32.mrb[0].mxu0
        %v347 = vadd.f32 0.0, %v346
        %v348 = vpop.f32.mrb[0].mxu0
        %349 = vmatprep.mubr.bf16.mxu0 0
        %350 = vmatmul.mubr.bf16.gmra.mrb[0].mxu0 %v274
        %v351 = vpop.f32.mrb[0].mxu0
        %v352 = vadd.f32 0.0, %v351
        %v353 = vpop.f32.mrb[0].mxu0
        %v354 = vpop.f32.mrb[0].mxu0
        %v355 = vadd.f32 0.0, %v354
        %v356 = vpop.f32.mrb[0].mxu0
        %357 = vmatprep.mubr.bf16.mxu0 0
        %358 = vmatmul.mubr.bf16.gmra.mrb[0].mxu0 %v277
        %v359 = vpop.f32.mrb[0].mxu0
        %v360 = vadd.f32 0.0, %v359
        %v361 = vpop.f32.mrb[0].mxu0
        %v362 = vpop.f32.mrb[0].mxu0
        %v363 = vadd.f32 0.0, %v362
        %v364 = vpop.f32.mrb[0].mxu0
        %365 = vmatprep.mubr.bf16.mxu0 0
        %366 = vmatmul.mubr.bf16.gmra.mrb[0].mxu0 %v280
        %v367 = vpop.f32.mrb[0].mxu0
        %v368 = vadd.f32 0.0, %v367
        %v369 = vpop.f32.mrb[0].mxu0
        %v370 = vpop.f32.mrb[0].mxu0
        %v371 = vadd.f32 0.0, %v370
        %v372 = vpop.f32.mrb[0].mxu0
        %373 = vmatprep.mubr.bf16.mxu0 0
        %374 = vmatmul.mubr.bf16.gmra.mrb[0].mxu0 %v283
        %v375 = vpop.f32.mrb[0].mxu0
        %v376 = vadd.f32 0.0, %v375
        %v377 = vpop.f32.mrb[0].mxu0
        %v378 = vpop.f32.mrb[0].mxu0
        %v379 = vadd.f32 0.0, %v378
        %v380 = vpop.f32.mrb[0].mxu0
        %381 = vdwg.mxu0
        %s382 = smul.u32 %s18, 128
        %s383 = scalar_lea.vmem [#allocation2], %s382
        %384 = vst [vmem:[%s383] sm:$0xff] %v320
        %385 = vst [vmem:[%s383 + $0x8] sm:$0xff] %v323
        %386 = vst [vmem:[%s383 + $0x10] sm:$0xff] %v328
        %387 = vst [vmem:[%s383 + $0x18] sm:$0xff] %v331
        %388 = vst [vmem:[%s383 + $0x20] sm:$0xff] %v336
        %389 = vst [vmem:[%s383 + $0x28] sm:$0xff] %v339
        %390 = vst [vmem:[%s383 + $0x30] sm:$0xff] %v344
        %391 = vst [vmem:[%s383 + $0x38] sm:$0xff] %v347
        %392 = vst [vmem:[%s383 + $0x40] sm:$0xff] %v352
        %393 = vst [vmem:[%s383 + $0x48] sm:$0xff] %v355
        %394 = vst [vmem:[%s383 + $0x50] sm:$0xff] %v360
        %395 = vst [vmem:[%s383 + $0x58] sm:$0xff] %v363
        %396 = vst [vmem:[%s383 + $0x60] sm:$0xff] %v368
        %397 = vst [vmem:[%s383 + $0x68] sm:$0xff] %v371
        %398 = vst [vmem:[%s383 + $0x70] sm:$0xff] %v376
        %399 = vst [vmem:[%s383 + $0x78] sm:$0xff] %v379
        %v400 = vld [vmem:[#allocation3] sm:$0x1]
        %v401 = vadd.f32 %v320, %v323
        %v402 = vadd.f32 %v401, %v328
        %v403 = vadd.f32 %v402, %v331
        %v404 = vadd.f32 %v403, %v336
        %v405 = vadd.f32 %v404, %v339
        %v406 = vadd.f32 %v405, %v344
        %v407 = vadd.f32 %v406, %v347
        %v408 = vadd.f32 %v407, %v352
        %v409 = vadd.f32 %v408, %v355
        %v410 = vadd.f32 %v409, %v360
        %v411 = vadd.f32 %v410, %v363
        %v412 = vadd.f32 %v411, %v368
        %v413 = vadd.f32 %v412, %v371
        %v414 = vadd.f32 %v413, %v376
        %v415 = vadd.f32 %v414, %v379
        %v416 = vrot.slane %v415, 4
        %v417 = vadd.f32 %v415, %v416
        %v418 = vrot.slane %v417, 2
        %v419 = vadd.f32 %v417, %v418
        %v420 = vrot.slane %v419, 1
        %v421 = vadd.f32 %v419, %v420
        %v422 = vadd.f32 %v400, %v421
        %423 = vst [vmem:[#allocation3] sm:$0x1] %v422
        %v424 = vld [vmem:[#allocation3 + $0x1] sm:$0x1]
        %v425 = vmul.f32 %v320, %v320
        %v426 = vmul.f32 %v323, %v323
        %v427 = vmul.f32 %v328, %v328
        %v428 = vmul.f32 %v331, %v331
        %v429 = vmul.f32 %v336, %v336
        %v430 = vmul.f32 %v339, %v339
        %v431 = vmul.f32 %v344, %v344
        %v432 = vmul.f32 %v347, %v347
        %v433 = vmul.f32 %v352, %v352
        %v434 = vmul.f32 %v355, %v355
        %v435 = vmul.f32 %v360, %v360
        %v436 = vmul.f32 %v363, %v363
        %v437 = vmul.f32 %v368, %v368
        %v438 = vmul.f32 %v371, %v371
        %v439 = vmul.f32 %v376, %v376
        %v440 = vmul.f32 %v379, %v379
        %v441 = vadd.f32 %v425, %v426
        %v442 = vadd.f32 %v441, %v427
        %v443 = vadd.f32 %v442, %v428
        %v444 = vadd.f32 %v443, %v429
        %v445 = vadd.f32 %v444, %v430
        %v446 = vadd.f32 %v445, %v431
        %v447 = vadd.f32 %v446, %v432
        %v448 = vadd.f32 %v447, %v433
        %v449 = vadd.f32 %v448, %v434
        %v450 = vadd.f32 %v449, %v435
        %v451 = vadd.f32 %v450, %v436
        %v452 = vadd.f32 %v451, %v437
        %v453 = vadd.f32 %v452, %v438
        %v454 = vadd.f32 %v453, %v439
        %v455 = vadd.f32 %v454, %v440
        %v456 = vrot.slane %v455, 4
        %v457 = vadd.f32 %v455, %v456
        %v458 = vrot.slane %v457, 2
        %v459 = vadd.f32 %v457, %v458
        %v460 = vrot.slane %v459, 1
        %v461 = vadd.f32 %v459, %v460
        %v462 = vadd.f32 %v424, %v461
        %463 = vst [vmem:[#allocation3 + $0x1] sm:$0x1] %v462
      $region32: #{cnn_forward.8} parent=27 // pred_fallthru
        _
      %p464 = scmp.eq.s32.totalorder %s17, 1
      // Predicated region
      $region37: #{cnn_forward.8} parent=27 // pred_check
        %p465 = pneg %p464
      $region38: #{cnn_forward.8} parent=27 // pred_check_branch
        %467 = sbr.rel (%p465) target = $region40
      $region39: #{cnn_forward.8} parent=27 // pred_region
        %p468 = scmp.eq.s32.totalorder %s18, 0
        // Predicated region
        $region41: #{cnn_forward.8} parent=39 // pred_check
          %p469 = pneg %p468
        $region42: #{cnn_forward.8} parent=39 // pred_check_branch
          %471 = sbr.rel (%p469) target = $region44
        $region43: #{cnn_forward.8} parent=39 // pred_region
          %v472 = vld [vmem:[#allocation3] sm:$0x1]
          %v473 = vmul.f32 %v472, 0.0078125
          %v474 = vld [vmem:[#allocation3 + $0x1] sm:$0x1]
          %v475 = vmul.f32 %v474, 0.0078125
          %v476 = vmul.f32 %v473, %v473
          %v477 = vsub.f32 %v475, %v476
          %v478 = vmax.f32 %v477, 0.0
          %v479 = vadd.f32 %v478, 1e-05
          %v480 = vrsqrt.pop %v479
          %481 = vst [vmem:[#allocation4] sm:$0x1] %v480
          %v482 = vsub.f32 0.0, %v473
          %v483 = vmul.f32 %v482, %v480
          %484 = vst [vmem:[#allocation4 + $0x1] sm:$0x1] %v483
        $region44: #{cnn_forward.8} parent=39 // pred_fallthru
          _
        %s485 = smul.u32 %s18, 128
        %s486 = scalar_lea.vmem [#allocation2], %s485
        %v487 = vld [vmem:[%s486] sm:$0xff]
        %v488 = vld [vmem:[%s486 + $0x8] sm:$0xff]
        %v489 = vld [vmem:[%s486 + $0x10] sm:$0xff]
        %v490 = vld [vmem:[%s486 + $0x18] sm:$0xff]
        %v491 = vld [vmem:[%s486 + $0x20] sm:$0xff]
        %v492 = vld [vmem:[%s486 + $0x28] sm:$0xff]
        %v493 = vld [vmem:[%s486 + $0x30] sm:$0xff]
        %v494 = vld [vmem:[%s486 + $0x38] sm:$0xff]
        %v495 = vld [vmem:[%s486 + $0x40] sm:$0xff]
        %v496 = vld [vmem:[%s486 + $0x48] sm:$0xff]
        %v497 = vld [vmem:[%s486 + $0x50] sm:$0xff]
        %v498 = vld [vmem:[%s486 + $0x58] sm:$0xff]
        %v499 = vld [vmem:[%s486 + $0x60] sm:$0xff]
        %v500 = vld [vmem:[%s486 + $0x68] sm:$0xff]
        %v501 = vld [vmem:[%s486 + $0x70] sm:$0xff]
        %v502 = vld [vmem:[%s486 + $0x78] sm:$0xff]
        %v503 = vld [vmem:[#allocation4] sm:$0x1]
        %v504 = vlaneseq
        %v505 = vshrl.u32 %v504, 7
        %v506 = vsub.s32 0, %v505
        %v507 = vrot.slane %v503, %v506
        %v508 = vmul.f32 %v487, %v507
        %v509 = vmul.f32 %v488, %v507
        %v510 = vmul.f32 %v489, %v507
        %v511 = vmul.f32 %v490, %v507
        %v512 = vmul.f32 %v491, %v507
        %v513 = vmul.f32 %v492, %v507
        %v514 = vmul.f32 %v493, %v507
        %v515 = vmul.f32 %v494, %v507
        %v516 = vmul.f32 %v495, %v507
        %v517 = vmul.f32 %v496, %v507
        %v518 = vmul.f32 %v497, %v507
        %v519 = vmul.f32 %v498, %v507
        %v520 = vmul.f32 %v499, %v507
        %v521 = vmul.f32 %v500, %v507
        %v522 = vmul.f32 %v501, %v507
        %v523 = vmul.f32 %v502, %v507
        %v524 = vld [vmem:[#allocation4 + $0x1] sm:$0x1]
        %v525 = vlaneseq
        %v526 = vshrl.u32 %v525, 7
        %v527 = vsub.s32 0, %v526
        %v528 = vrot.slane %v524, %v527
        %v529 = vadd.f32 %v508, %v528
        %v530 = vadd.f32 %v509, %v528
        %v531 = vadd.f32 %v510, %v528
        %v532 = vadd.f32 %v511, %v528
        %v533 = vadd.f32 %v512, %v528
        %v534 = vadd.f32 %v513, %v528
        %v535 = vadd.f32 %v514, %v528
        %v536 = vadd.f32 %v515, %v528
        %v537 = vadd.f32 %v516, %v528
        %v538 = vadd.f32 %v517, %v528
        %v539 = vadd.f32 %v518, %v528
        %v540 = vadd.f32 %v519, %v528
        %v541 = vadd.f32 %v520, %v528
        %v542 = vadd.f32 %v521, %v528
        %v543 = vadd.f32 %v522, %v528
        %v544 = vadd.f32 %v523, %v528
        %v545 = vmax.f32 %v529, 0.0
        %v546 = vmax.f32 %v530, 0.0
        %v547 = vmax.f32 %v531, 0.0
        %v548 = vmax.f32 %v532, 0.0
        %v549 = vmax.f32 %v533, 0.0
        %v550 = vmax.f32 %v534, 0.0
        %v551 = vmax.f32 %v535, 0.0
        %v552 = vmax.f32 %v536, 0.0
        %v553 = vmax.f32 %v537, 0.0
        %v554 = vmax.f32 %v538, 0.0
        %v555 = vmax.f32 %v539, 0.0
        %v556 = vmax.f32 %v540, 0.0
        %v557 = vmax.f32 %v541, 0.0
        %v558 = vmax.f32 %v542, 0.0
        %v559 = vmax.f32 %v543, 0.0
        %v560 = vmax.f32 %v544, 0.0
        %v561 = vpack.c.bf16 %v546, %v545
        %v562 = vpack.c.bf16 %v548, %v547
        %v563 = vpack.c.bf16 %v550, %v549
        %v564 = vpack.c.bf16 %v552, %v551
        %v565 = vpack.c.bf16 %v554, %v553
        %v566 = vpack.c.bf16 %v556, %v555
        %v567 = vpack.c.bf16 %v558, %v557
        %v568 = vpack.c.bf16 %v560, %v559
        %v577 = vunpack.c.l.b16 %v561
        %v578 = vunpack.c.h.b16 %v561
        %v579 = vunpack.c.l.b16 %v562
        %v580 = vunpack.c.h.b16 %v562
        %v581 = vunpack.c.l.b16 %v563
        %v582 = vunpack.c.h.b16 %v563
        %v583 = vunpack.c.l.b16 %v564
        %v584 = vunpack.c.h.b16 %v564
        %v585 = vunpack.c.l.b16 %v565
        %v586 = vunpack.c.h.b16 %v565
        %v587 = vunpack.c.l.b16 %v566
        %v588 = vunpack.c.h.b16 %v566
        %v589 = vunpack.c.l.b16 %v567
        %v590 = vunpack.c.h.b16 %v567
        %v591 = vunpack.c.l.b16 %v568
        %v592 = vunpack.c.h.b16 %v568
        %v593 = vpack.c.b16 %v577, %v577
        %v594 = vpack.c.b16 %v578, %v578
        %v595 = vpack.c.b16 %v579, %v579
        %v596 = vpack.c.b16 %v580, %v580
        %v597 = vpack.c.b16 %v581, %v581
        %v598 = vpack.c.b16 %v582, %v582
        %v599 = vpack.c.b16 %v583, %v583
        %v600 = vpack.c.b16 %v584, %v584
        %v601 = vpack.c.b16 %v585, %v585
        %v602 = vpack.c.b16 %v586, %v586
        %v603 = vpack.c.b16 %v587, %v587
        %v604 = vpack.c.b16 %v588, %v588
        %v605 = vpack.c.b16 %v589, %v589
        %v606 = vpack.c.b16 %v590, %v590
        %v607 = vpack.c.b16 %v591, %v591
        %v608 = vpack.c.b16 %v592, %v592
        %vm625 = vcmask 257024
        %626 = vst.msk [vmem:[%s175] sm:$0xf] %vm625, %v593
        %627 = vst.msk [vmem:[%s175 + $0x4] sm:$0xf] %vm625, %v594
        %628 = vst.msk [vmem:[%s175 + $0x8] sm:$0xf] %vm625, %v595
        %629 = vst.msk [vmem:[%s175 + $0xc] sm:$0xf] %vm625, %v596
        %630 = vst.msk [vmem:[%s175 + $0x10] sm:$0xf] %vm625, %v597
        %631 = vst.msk [vmem:[%s175 + $0x14] sm:$0xf] %vm625, %v598
        %632 = vst.msk [vmem:[%s175 + $0x18] sm:$0xf] %vm625, %v599
        %633 = vst.msk [vmem:[%s175 + $0x1c] sm:$0xf] %vm625, %v600
        %634 = vst.msk [vmem:[%s175 + $0x20] sm:$0xf] %vm625, %v601
        %635 = vst.msk [vmem:[%s175 + $0x24] sm:$0xf] %vm625, %v602
        %636 = vst.msk [vmem:[%s175 + $0x28] sm:$0xf] %vm625, %v603
        %637 = vst.msk [vmem:[%s175 + $0x2c] sm:$0xf] %vm625, %v604
        %638 = vst.msk [vmem:[%s175 + $0x30] sm:$0xf] %vm625, %v605
        %639 = vst.msk [vmem:[%s175 + $0x34] sm:$0xf] %vm625, %v606
        %640 = vst.msk [vmem:[%s175 + $0x38] sm:$0xf] %vm625, %v607
        %641 = vst.msk [vmem:[%s175 + $0x3c] sm:$0xf] %vm625, %v608
      $region40: #{cnn_forward.8} parent=27 // pred_fallthru
        _
      %s642 = smul.u32 %s18, %s17
      %s643 = smul.u32 16, %s642
      %p644 = scmp.lt.s32.totalorder %s643, 15
      %s645 = scalar_select %p644, %s643, 15
      %s646 = smul.addr %s645, 4
      %s647 = scalar_lea.vmem %s2, %s646
      // Predicated region
      $region45: #{cnn_forward.8} parent=27 // pred_check
        %p648 = pneg %p96
      $region46: #{cnn_forward.8} parent=27 // pred_check_branch
        %650 = sbr.rel (%p648) target = $region48
      $region47: #{cnn_forward.8} parent=27 // pred_region
        %s651 = smul.u32 %s18, %s17
        %s652 = smul.u32 16, %s651
      $region48: #{cnn_forward.8} parent=27 // pred_fallthru
        _
    $region28: #{cnn_forward.8} parent=5 // pred_fallthru
      _
    %p653 = scmp.le.s32.totalorder 2, %s8
    // Predicated region
    $region49: #{cnn_forward.8} parent=5 // pred_check
      %p654 = pneg %p653
    $region50: #{cnn_forward.8} parent=5 // pred_check_branch
      %656 = sbr.rel (%p654) target = $region52
    $region51: #{cnn_forward.8} parent=5 // pred_region
      %s657 = ssub.s32 %s8, 2
      // Predicated region
      $region53: #{cnn_forward.8} parent=51 // pred_check
        %p658 = pneg %p102
      $region54: #{cnn_forward.8} parent=51 // pred_check_branch
        %660 = sbr.rel (%p658) target = $region56
      $region55: #{cnn_forward.8} parent=51 // pred_region
        %s661 = smul.u32 %s20, %s19
        %s662 = smul.u32 16, %s661
        %p663 = scmp.lt.s32.totalorder %s662, 15
        %s664 = scalar_select %p663, %s662, 15
        %s665 = smul.addr %s664, 4
        %s666 = scalar_lea.vmem %s2, %s665
      $region56: #{cnn_forward.8} parent=51 // pred_fallthru
        _
    $region52: #{cnn_forward.8} parent=5 // pred_fallthru
      _
  $region6: #{cnn_forward.8} parent=0 // loop_footer
    %s12 = sadd.s32 1, %s8
  $region7: #{cnn_forward.8} parent=0 // loop_footer_branch
    %7 = sbr.rel target = $region3
  $region8: #{cnn_forward.8} parent=0 // loop_exit
    _

// kernel: cnn_forward.9
$region0: #{cnn_forward.9}
  #allocation0 [shape = 'u32[]', space=smem, size = 0x4, offset = 0x4, fixed_abs, tag = 'smem constant byte address 0x4 - core index']
  #allocation1 [shape = 'u32[144,128]{1,0:T(1,128)}', space=vmem, size = 0x12000, scoped, tag = 'internal scratch']
  #allocation2 [shape = 'f32[1,32,128]{2,1,0:T(8,128)}', space=vmem, size = 0x4000, scoped, tag = 'scratch operand']
  #allocation3 [shape = 'f32[2,128]{1,0:T(2,128)}', space=vmem, size = 0x400, scoped, tag = 'scratch operand']
  #allocation4 [shape = 'f32[2,128]{1,0:T(2,128)}', space=vmem, size = 0x400, scoped, tag = 'scratch operand']
  %s0 = inlined_call_operand.vmem [shape: bf16[32,288], index: 0, kind: input, shape index: {}]
  %s1 = inlined_call_operand.vmem [shape: bf16[288,128], index: 1, kind: input, shape index: {}]
  %s2 = inlined_call_operand.vmem [shape: bf16[32,64], index: 2, kind: output, shape index: {}]
  %s3 = sld [smem:[#allocation0]]
  $region57: #{cnn_forward.9} parent=0
    _
  %s5 = ssub.s32 1, %s3
  %s6 = scalar_select 0, %s5, %s3
  loop: start=0, step=1, limit=4
  $region2: #{cnn_forward.9} parent=0 // loop_pre_header
    _
  $region3: #{cnn_forward.9} parent=0 // loop_header
    %s8 = sphi 0, %s12
    %p9 = scmp.ge.s32.totalorder %s8, 4
    %s15 = sphi 0, %s27
    %s16 = sphi 0, %s23
    %s17 = sphi 0, %s15
    %s18 = sphi 0, %s16
    %s19 = sphi 0, %s17
    %s20 = sphi 0, %s18
    %s34 = sphi 0, %s36
    %s37 = sphi 0, %s34
    %s38 = sphi 0, %s37
    %s54 = sphi 0, %s38
    %s58 = sphi 0, %s58
    %s60 = sphi 0, %s58
    %s61 = sphi 0, %s60
    %s75 = sphi 0, %s61
    %s83 = sphi 0, %s85
    %s86 = sphi 0, %s83
    %s87 = sphi 0, %s86
    %s103 = sphi 0, %s87
  $region4: #{cnn_forward.9} parent=0 // loop_header_branch
    %11 = sbr.rel (%p9) target = $region8
  $region5: #{cnn_forward.9} parent=0 // loop_body
    %s13 = ssub.s32 %s8, 1
    %s14 = ssub.s32 %s8, 2
    %s21 = sadd.s32 1, %s16
    %p22 = scmp.ge.s32.totalorder %s21, 1
    %s23 = scalar_select %p22, 0, %s21
    %s24 = sadd.s32 1, %s15
    %s25 = scalar_select %p22, %s24, %s15
    %p26 = scmp.ge.s32.totalorder %s25, 2
    %s27 = scalar_select %p26, 0, %s25
    %s28 = ssub.s32 1, %s15
    %s29 = smul.u32 %s16, %s28
    %s30 = ssub.s32 1, %s27
    %s31 = smul.u32 %s23, %s30
    %s32 = ssub.s32 %s29, %s31
    %p33 = scmp.eq.s32.totalorder %s32, 0
    %s35 = sadd.s32 %s34, 1
    %s36 = scalar_select %p33, %s34, %s35
    %p39 = pneg %p33
    %p40 = scmp.eq.s32.totalorder %s8, 1
    %p41 = por %p39, %p40
    %p42 = scmp.ne.s32.totalorder %s34, %s37
    %p43 = scmp.eq.s32.totalorder %s8, 0
    %p44 = por %p42, %p43
    %p45 = scmp.ne.s32.totalorder %s34, %s37
    %p46 = scmp.eq.s32.totalorder %s13, 1
    %p47 = por %p45, %p46
    %p48 = scmp.ne.s32.totalorder %s37, %s38
    %p49 = scmp.eq.s32.totalorder %s13, 0
    %p50 = por %p48, %p49
    %p51 = scmp.ne.s32.totalorder %s37, %s38
    %p52 = scmp.eq.s32.totalorder %s14, 1
    %p53 = por %p51, %p52
    %p55 = scmp.ne.s32.totalorder %s38, %s54
    %p56 = scmp.eq.s32.totalorder %s14, 0
    %p57 = por %p55, %p56
    %s59 = sadd.s32 %s58, 1
    %p62 = scmp.eq.s32.totalorder %s8, 1
    %p63 = scmp.ne.s32.totalorder %s58, %s60
    %p64 = scmp.eq.s32.totalorder %s8, 0
    %p65 = por %p63, %p64
    %p66 = scmp.ne.s32.totalorder %s58, %s60
    %p67 = scmp.eq.s32.totalorder %s13, 1
    %p68 = por %p66, %p67
    %p69 = scmp.ne.s32.totalorder %s60, %s61
    %p70 = scmp.eq.s32.totalorder %s13, 0
    %p71 = por %p69, %p70
    %p72 = scmp.ne.s32.totalorder %s60, %s61
    %p73 = scmp.eq.s32.totalorder %s14, 1
    %p74 = por %p72, %p73
    %p76 = scmp.ne.s32.totalorder %s61, %s75
    %p77 = scmp.eq.s32.totalorder %s14, 0
    %p78 = por %p76, %p77
    %s79 = smul.u32 %s16, %s15
    %s80 = smul.u32 %s23, %s27
    %s81 = ssub.s32 %s79, %s80
    %p82 = scmp.eq.s32.totalorder %s81, 0
    %s84 = sadd.s32 %s83, 1
    %s85 = scalar_select %p82, %s83, %s84
    %p88 = pneg %p82
    %p89 = scmp.eq.s32.totalorder %s8, 1
    %p90 = por %p88, %p89
    %p91 = scmp.ne.s32.totalorder %s83, %s86
    %p92 = scmp.eq.s32.totalorder %s8, 0
    %p93 = por %p91, %p92
    %p94 = scmp.ne.s32.totalorder %s83, %s86
    %p95 = scmp.eq.s32.totalorder %s13, 1
    %p96 = por %p94, %p95
    %p97 = scmp.ne.s32.totalorder %s86, %s87
    %p98 = scmp.eq.s32.totalorder %s13, 0
    %p99 = por %p97, %p98
    %p100 = scmp.ne.s32.totalorder %s86, %s87
    %p101 = scmp.eq.s32.totalorder %s14, 1
    %p102 = por %p100, %p101
    %p104 = scmp.ne.s32.totalorder %s87, %s103
    %p105 = scmp.eq.s32.totalorder %s14, 0
    %p106 = por %p104, %p105
    %p107 = scmp.le.s32.totalorder 1, %s8
    %p108 = scmp.lt.s32.totalorder %s8, 3
    %p109 = pnand %p107, %p108
    %p110 = pneg %p109
    // Predicated region
    $region9: #{cnn_forward.9} parent=5 // pred_check
      _
    $region10: #{cnn_forward.9} parent=5 // pred_check_branch
      %112 = sbr.rel (%p109) target = $region12
    $region11: #{cnn_forward.9} parent=5 // pred_region
      %s113 = ssub.s32 %s8, 1
      // Predicated region
      $region13: #{cnn_forward.9} parent=11 // pred_check
        %p114 = pneg %p71
      $region14: #{cnn_forward.9} parent=11 // pred_check_branch
        %116 = sbr.rel (%p114) target = $region16
      $region15: #{cnn_forward.9} parent=11 // pred_region
        _
      $region16: #{cnn_forward.9} parent=11 // pred_fallthru
        _
    $region12: #{cnn_forward.9} parent=5 // pred_fallthru
      _
    %p117 = scmp.lt.s32.totalorder %s8, 2
    // Predicated region
    $region17: #{cnn_forward.9} parent=5 // pred_check
      %p118 = pneg %p117
    $region18: #{cnn_forward.9} parent=5 // pred_check_branch
      %120 = sbr.rel (%p118) target = $region20
    $region19: #{cnn_forward.9} parent=5 // pred_region
      // Predicated region
      $region21: #{cnn_forward.9} parent=19 // pred_check
        %p121 = pneg %p44
      $region22: #{cnn_forward.9} parent=19 // pred_check_branch
        %123 = sbr.rel (%p121) target = $region24
      $region23: #{cnn_forward.9} parent=19 // pred_region
        %s124 = ssub.s32 1, %s15
        %s125 = smul.u32 %s16, %s124
        %s126 = smul.u32 4, %s125
        %p127 = scmp.lt.s32.totalorder %s126, 3
        %s128 = scalar_select %p127, %s126, 3
        %s129 = smul.addr %s128, 3
        %s130 = smul.addr %s129, 4
        %s131 = scalar_lea.vmem %s0, %s130
        %s132 = ssub.s32 1, %s15
        %s133 = smul.u32 %s16, %s132
        %s134 = smul.u32 4, %s133
      $region24: #{cnn_forward.9} parent=19 // pred_fallthru
        _
    $region20: #{cnn_forward.9} parent=5 // pred_fallthru
      _
    %p135 = scmp.le.s32.totalorder 1, %s8
    %p136 = scmp.lt.s32.totalorder %s8, 3
    %p137 = pnand %p135, %p136
    %p138 = pneg %p137
    // Predicated region
    $region25: #{cnn_forward.9} parent=5 // pred_check
      _
    $region26: #{cnn_forward.9} parent=5 // pred_check_branch
      %140 = sbr.rel (%p137) target = $region28
    $region27: #{cnn_forward.9} parent=5 // pred_region
      %s141 = ssub.s32 %s8, 1
      %s142 = ssub.s32 1, %s17
      %s143 = smul.u32 %s18, %s142
      %s144 = smul.u32 4, %s143
      %p145 = scmp.lt.s32.totalorder %s144, 3
      %s146 = scalar_select %p145, %s144, 3
      %s147 = smul.addr %s146, 3
      %s148 = smul.addr %s147, 4
      %s149 = scalar_lea.vmem %s0, %s148
      %p150 = pneg %p50
      %p151 = pneg %p47
      %p152 = pneg %p71
      %p153 = pneg %p68
      %p154 = pneg %p99
      %p155 = pneg %p96
      %s156 = smul.u32 %s18, %s17
      %s157 = smul.u32 4, %s156
      %p158 = scmp.lt.s32.totalorder %s157, 3
      %s159 = scalar_select %p158, %s157, 3
      %s160 = smul.addr %s159, 4
      %s161 = scalar_lea.vmem %s2, %s160
      %s162 = ssub.s32 1, %s17
      %s163 = smul.u32 %s18, %s162
      %s164 = smul.u32 4, %s163
      %p165 = scmp.lt.s32.totalorder %s164, 3
      %s166 = scalar_select %p165, %s164, 3
      %s167 = smul.addr %s166, 3
      %s168 = smul.addr %s167, 4
      %s169 = scalar_lea.vmem %s0, %s168
      %s170 = ssub.s32 1, %s17
      %s171 = smul.u32 %s18, %s170
      %s172 = smul.u32 4, %s171
      %s173 = smul.u32 %s18, %s17
      %s174 = smul.u32 4, %s173
      %p175 = scmp.lt.s32.totalorder %s174, 3
      %s176 = scalar_select %p175, %s174, 3
      %s177 = smul.addr %s176, 4
      %s178 = scalar_lea.vmem %s2, %s177
      %s179 = smul.u32 %s18, %s17
      %s180 = smul.u32 4, %s179
      %p182 = scmp.eq.s32.totalorder %s17, 0
      // Predicated region
      $region29: #{cnn_forward.9} parent=27 // pred_check
        %p183 = pneg %p182
      $region30: #{cnn_forward.9} parent=27 // pred_check_branch
        %185 = sbr.rel (%p183) target = $region32
      $region31: #{cnn_forward.9} parent=27 // pred_region
        %p186 = scmp.eq.s32.totalorder %s18, 0
        // Predicated region
        $region33: #{cnn_forward.9} parent=31 // pred_check
          %p187 = pneg %p186
        $region34: #{cnn_forward.9} parent=31 // pred_check_branch
          %189 = sbr.rel (%p187) target = $region36
        $region35: #{cnn_forward.9} parent=31 // pred_region
          %190 = vst [vmem:[#allocation3] sm:$0x3] 0.0
        $region36: #{cnn_forward.9} parent=31 // pred_fallthru
          _
        %v191 = vld [vmem:[%s169] sm:$0xff]
        %v192 = vld [vmem:[%s169 + $0x8] sm:$0xf]
        %v193 = vld [vmem:[%s169 + $0xc] sm:$0xff]
        %v194 = vld [vmem:[%s169 + $0x14] sm:$0xf]
        %v195 = vld [vmem:[%s169 + $0x18] sm:$0xff]
        %v196 = vld [vmem:[%s169 + $0x20] sm:$0xf]
        %v197 = vld [vmem:[%s169 + $0x24] sm:$0xff]
        %v198 = vld [vmem:[%s169 + $0x2c] sm:$0xf]
        %v199 = vld [vmem:[%s1] sm:$0xf]
        %v200 = vld [vmem:[%s1 + $0x4] sm:$0xf]
        %v201 = vld [vmem:[%s1 + $0x8] sm:$0xf]
        %v202 = vld [vmem:[%s1 + $0xc] sm:$0xf]
        %v203 = vld [vmem:[%s1 + $0x10] sm:$0xf]
        %v204 = vld [vmem:[%s1 + $0x14] sm:$0xf]
        %v205 = vld [vmem:[%s1 + $0x18] sm:$0xf]
        %v206 = vld [vmem:[%s1 + $0x1c] sm:$0xf]
        %v207 = vld [vmem:[%s1 + $0x20] sm:$0xf]
        %v208 = vld [vmem:[%s1 + $0x24] sm:$0xf]
        %v209 = vld [vmem:[%s1 + $0x28] sm:$0xf]
        %v210 = vld [vmem:[%s1 + $0x2c] sm:$0xf]
        %v211 = vld [vmem:[%s1 + $0x30] sm:$0xf]
        %v212 = vld [vmem:[%s1 + $0x34] sm:$0xf]
        %v213 = vld [vmem:[%s1 + $0x38] sm:$0xf]
        %v214 = vld [vmem:[%s1 + $0x3c] sm:$0xf]
        %v215 = vld [vmem:[%s1 + $0x40] sm:$0xf]
        %v216 = vld [vmem:[%s1 + $0x44] sm:$0xf]
        %v217 = vld [vmem:[%s1 + $0x48] sm:$0xf]
        %v218 = vld [vmem:[%s1 + $0x4c] sm:$0xf]
        %v219 = vld [vmem:[%s1 + $0x50] sm:$0xf]
        %v220 = vld [vmem:[%s1 + $0x54] sm:$0xf]
        %v221 = vld [vmem:[%s1 + $0x58] sm:$0xf]
        %v222 = vld [vmem:[%s1 + $0x5c] sm:$0xf]
        %v223 = vld [vmem:[%s1 + $0x60] sm:$0xf]
        %v224 = vld [vmem:[%s1 + $0x64] sm:$0xf]
        %v225 = vld [vmem:[%s1 + $0x68] sm:$0xf]
        %v226 = vld [vmem:[%s1 + $0x6c] sm:$0xf]
        %v227 = vld [vmem:[%s1 + $0x70] sm:$0xf]
        %v228 = vld [vmem:[%s1 + $0x74] sm:$0xf]
        %v229 = vld [vmem:[%s1 + $0x78] sm:$0xf]
        %v230 = vld [vmem:[%s1 + $0x7c] sm:$0xf]
        %v231 = vld [vmem:[%s1 + $0x80] sm:$0xf]
        %v232 = vld [vmem:[%s1 + $0x84] sm:$0xf]
        %v233 = vld [vmem:[%s1 + $0x88] sm:$0xf]
        %v234 = vld [vmem:[%s1 + $0x8c] sm:$0xf]
        %v243 = vunpack.c.l.b16 %v191
        %v244 = vunpack.c.h.b16 %v191
        %v245 = vunpack.c.l.b16 %v192
        %v246 = vunpack.c.l.b16 %v193
        %v247 = vunpack.c.h.b16 %v193
        %v248 = vunpack.c.l.b16 %v194
        %v249 = vunpack.c.l.b16 %v195
        %v250 = vunpack.c.h.b16 %v195
        %v251 = vunpack.c.l.b16 %v196
        %v252 = vunpack.c.l.b16 %v197
        %v253 = vunpack.c.h.b16 %v197
        %v254 = vunpack.c.l.b16 %v198
        %v255 = vpack.c.b16 %v246, %v243
        %v256 = vpack.c.b16 %v247, %v244
        %v257 = vpack.c.b16 %v248, %v245
        %v258 = vpack.c.b16 %v252, %v249
        %v259 = vpack.c.b16 %v253, %v250
        %v260 = vpack.c.b16 %v254, %v251
        %v301 = vunpack.c.l.b16 %v199
        %v302 = vunpack.c.l.b16 %v200
        %v303 = vunpack.c.l.b16 %v201
        %v304 = vunpack.c.l.b16 %v202
        %v305 = vunpack.c.l.b16 %v203
        %v306 = vunpack.c.l.b16 %v204
        %v307 = vunpack.c.l.b16 %v205
        %v308 = vunpack.c.l.b16 %v206
        %v309 = vunpack.c.l.b16 %v207
        %v310 = vunpack.c.l.b16 %v208
        %v311 = vunpack.c.l.b16 %v209
        %v312 = vunpack.c.l.b16 %v210
        %v313 = vunpack.c.l.b16 %v211
        %v314 = vunpack.c.l.b16 %v212
        %v315 = vunpack.c.l.b16 %v213
        %v316 = vunpack.c.l.b16 %v214
        %v317 = vunpack.c.l.b16 %v215
        %v318 = vunpack.c.l.b16 %v216
        %v319 = vunpack.c.l.b16 %v217
        %v320 = vunpack.c.l.b16 %v218
        %v321 = vunpack.c.l.b16 %v219
        %v322 = vunpack.c.l.b16 %v220
        %v323 = vunpack.c.l.b16 %v221
        %v324 = vunpack.c.l.b16 %v222
        %v325 = vunpack.c.l.b16 %v223
        %v326 = vunpack.c.l.b16 %v224
        %v327 = vunpack.c.l.b16 %v225
        %v328 = vunpack.c.l.b16 %v226
        %v329 = vunpack.c.l.b16 %v227
        %v330 = vunpack.c.l.b16 %v228
        %v331 = vunpack.c.l.b16 %v229
        %v332 = vunpack.c.l.b16 %v230
        %v333 = vunpack.c.l.b16 %v231
        %v334 = vunpack.c.l.b16 %v232
        %v335 = vunpack.c.l.b16 %v233
        %v336 = vunpack.c.l.b16 %v234
        %v337 = vpack.c.b16 %v302, %v301
        %v338 = vpack.c.b16 %v304, %v303
        %v339 = vpack.c.b16 %v306, %v305
        %v340 = vpack.c.b16 %v308, %v307
        %v341 = vpack.c.b16 %v310, %v309
        %v342 = vpack.c.b16 %v312, %v311
        %v343 = vpack.c.b16 %v314, %v313
        %v344 = vpack.c.b16 %v316, %v315
        %v345 = vpack.c.b16 %v318, %v317
        %v346 = vpack.c.b16 %v320, %v319
        %v347 = vpack.c.b16 %v322, %v321
        %v348 = vpack.c.b16 %v324, %v323
        %v349 = vpack.c.b16 %v326, %v325
        %v350 = vpack.c.b16 %v328, %v327
        %v351 = vpack.c.b16 %v330, %v329
        %v352 = vpack.c.b16 %v332, %v331
        %v353 = vpack.c.b16 %v334, %v333
        %v354 = vpack.c.b16 %v336, %v335
        %vm373 = vcmask 261120
        %v375 = vsel %vm373, %v257, 0
        %v378 = vsel %vm373, %v260, 0
        %380 = vmatprep.subr.bf16.mxu0 0
        %381 = vmatpush1.bf16.msra.mxu0 %v337
        %382 = vmatprep.subr.bf16.mxu0 0
        %383 = vmatpush1.bf16.msra.mxu0 %v338
        %384 = vmatprep.subr.bf16.mxu0 0
        %385 = vmatpush1.bf16.msra.mxu0 %v339
        %386 = vmatprep.subr.bf16.mxu0 0
        %387 = vmatpush1.bf16.msra.mxu0 %v340
        %388 = vmatprep.subr.bf16.mxu0 0
        %389 = vmatpush1.bf16.msra.mxu0 %v341
        %390 = vmatprep.subr.bf16.mxu0 0
        %391 = vmatpush1.bf16.msra.mxu0 %v342
        %392 = vmatprep.subr.bf16.mxu0 0
        %393 = vmatpush1.bf16.msra.mxu0 %v343
        %394 = vmatprep.subr.bf16.mxu0 0
        %395 = vmatpush1.bf16.msra.mxu0 %v344
        %396 = vmatprep.subr.bf16.mxu0 0
        %397 = vmatpush1.bf16.msra.mxu0 %v345
        %398 = vmatprep.subr.bf16.mxu0 0
        %399 = vmatpush1.bf16.msra.mxu0 %v346
        %400 = vmatprep.subr.bf16.mxu0 0
        %401 = vmatpush1.bf16.msra.mxu0 %v347
        %402 = vmatprep.subr.bf16.mxu0 0
        %403 = vmatpush1.bf16.msra.mxu0 %v348
        %404 = vmatprep.subr.bf16.mxu0 0
        %405 = vmatpush1.bf16.msra.mxu0 %v349
        %406 = vmatprep.subr.bf16.mxu0 0
        %407 = vmatpush1.bf16.msra.mxu0 %v350
        %408 = vmatprep.subr.bf16.mxu0 0
        %409 = vmatpush1.bf16.msra.mxu0 %v351
        %410 = vmatprep.subr.bf16.mxu0 0
        %411 = vmatpush1.bf16.msra.mxu0 %v352
        %412 = vmatprep.mubr.bf16.mxu0 %v256
        %413 = vmatmul.mubr.bf16.gmra.mrb[0].mxu0 %v255
        %v414 = vpop.f32.mrb[0].mxu0
        %v415 = vadd.f32 0.0, %v414
        %v416 = vpop.f32.mrb[0].mxu0
        %v417 = vpop.f32.mrb[0].mxu0
        %v418 = vadd.f32 0.0, %v417
        %v419 = vpop.f32.mrb[0].mxu0
        %420 = vmatprep.mubr.bf16.mxu0 %v259
        %421 = vmatmul.mubr.bf16.gmra.mrb[0].mxu0 %v258
        %v422 = vpop.f32.mrb[0].mxu0
        %v423 = vadd.f32 0.0, %v422
        %v424 = vpop.f32.mrb[0].mxu0
        %v425 = vpop.f32.mrb[0].mxu0
        %v426 = vadd.f32 0.0, %v425
        %v427 = vpop.f32.mrb[0].mxu0
        %428 = vdwg.mxu0
        %429 = vmatprep.subr.bf16.mxu0 0
        %430 = vmatpush1.bf16.msra.mxu0 %v353
        %431 = vmatprep.subr.bf16.mxu0 0
        %432 = vmatpush1.bf16.msra.mxu0 %v354
        %433 = vmatprep.subr.bf16.mxu0 0
        %434 = vmatpush1.bf16.msra.mxu0 0
        %435 = vmatprep.subr.bf16.mxu0 0
        %436 = vmatpush1.bf16.msra.mxu0 0
        %437 = vmatprep.subr.bf16.mxu0 0
        %438 = vmatpush1.bf16.msra.mxu0 0
        %439 = vmatprep.subr.bf16.mxu0 0
        %440 = vmatpush1.bf16.msra.mxu0 0
        %441 = vmatprep.subr.bf16.mxu0 0
        %442 = vmatpush1.bf16.msra.mxu0 0
        %443 = vmatprep.subr.bf16.mxu0 0
        %444 = vmatpush1.bf16.msra.mxu0 0
        %445 = vmatprep.subr.bf16.mxu0 0
        %446 = vmatpush1.bf16.msra.mxu0 0
        %447 = vmatprep.subr.bf16.mxu0 0
        %448 = vmatpush1.bf16.msra.mxu0 0
        %449 = vmatprep.subr.bf16.mxu0 0
        %450 = vmatpush1.bf16.msra.mxu0 0
        %451 = vmatprep.subr.bf16.mxu0 0
        %452 = vmatpush1.bf16.msra.mxu0 0
        %453 = vmatprep.subr.bf16.mxu0 0
        %454 = vmatpush1.bf16.msra.mxu0 0
        %455 = vmatprep.subr.bf16.mxu0 0
        %456 = vmatpush1.bf16.msra.mxu0 0
        %457 = vmatprep.subr.bf16.mxu0 0
        %458 = vmatpush1.bf16.msra.mxu0 0
        %459 = vmatprep.subr.bf16.mxu0 0
        %460 = vmatpush1.bf16.msra.mxu0 0
        %461 = vmatprep.mubr.bf16.mxu0 0
        %462 = vmatmul.mubr.bf16.gmra.mrb[0].mxu0 %v375
        %v463 = vpop.f32.mrb[0].mxu0
        %v464 = vadd.f32 %v415, %v463
        %v465 = vpop.f32.mrb[0].mxu0
        %v466 = vpop.f32.mrb[0].mxu0
        %v467 = vadd.f32 %v418, %v466
        %v468 = vpop.f32.mrb[0].mxu0
        %469 = vmatprep.mubr.bf16.mxu0 0
        %470 = vmatmul.mubr.bf16.gmra.mrb[0].mxu0 %v378
        %v471 = vpop.f32.mrb[0].mxu0
        %v472 = vadd.f32 %v423, %v471
        %v473 = vpop.f32.mrb[0].mxu0
        %v474 = vpop.f32.mrb[0].mxu0
        %v475 = vadd.f32 %v426, %v474
        %v476 = vpop.f32.mrb[0].mxu0
        %477 = vdwg.mxu0
        %s478 = smul.u32 %s18, 32
        %s479 = scalar_lea.vmem [#allocation2], %s478
        %480 = vst [vmem:[%s479] sm:$0xff] %v464
        %481 = vst [vmem:[%s479 + $0x8] sm:$0xff] %v467
        %482 = vst [vmem:[%s479 + $0x10] sm:$0xff] %v472
        %483 = vst [vmem:[%s479 + $0x18] sm:$0xff] %v475
        %v484 = vld [vmem:[#allocation3] sm:$0x1]
        %v485 = vadd.f32 %v464, %v467
        %v486 = vadd.f32 %v485, %v472
        %v487 = vadd.f32 %v486, %v475
        %v488 = vrot.slane %v487, 4
        %v489 = vadd.f32 %v487, %v488
        %v490 = vrot.slane %v489, 2
        %v491 = vadd.f32 %v489, %v490
        %v492 = vrot.slane %v491, 1
        %v493 = vadd.f32 %v491, %v492
        %v494 = vadd.f32 %v484, %v493
        %495 = vst [vmem:[#allocation3] sm:$0x1] %v494
        %v496 = vld [vmem:[#allocation3 + $0x1] sm:$0x1]
        %v497 = vmul.f32 %v464, %v464
        %v498 = vmul.f32 %v467, %v467
        %v499 = vmul.f32 %v472, %v472
        %v500 = vmul.f32 %v475, %v475
        %v501 = vadd.f32 %v497, %v498
        %v502 = vadd.f32 %v501, %v499
        %v503 = vadd.f32 %v502, %v500
        %v504 = vrot.slane %v503, 4
        %v505 = vadd.f32 %v503, %v504
        %v506 = vrot.slane %v505, 2
        %v507 = vadd.f32 %v505, %v506
        %v508 = vrot.slane %v507, 1
        %v509 = vadd.f32 %v507, %v508
        %v510 = vadd.f32 %v496, %v509
        %511 = vst [vmem:[#allocation3 + $0x1] sm:$0x1] %v510
      $region32: #{cnn_forward.9} parent=27 // pred_fallthru
        _
      %p512 = scmp.eq.s32.totalorder %s17, 1
      // Predicated region
      $region37: #{cnn_forward.9} parent=27 // pred_check
        %p513 = pneg %p512
      $region38: #{cnn_forward.9} parent=27 // pred_check_branch
        %515 = sbr.rel (%p513) target = $region40
      $region39: #{cnn_forward.9} parent=27 // pred_region
        %p516 = scmp.eq.s32.totalorder %s18, 0
        // Predicated region
        $region41: #{cnn_forward.9} parent=39 // pred_check
          %p517 = pneg %p516
        $region42: #{cnn_forward.9} parent=39 // pred_check_branch
          %519 = sbr.rel (%p517) target = $region44
        $region43: #{cnn_forward.9} parent=39 // pred_region
          %v520 = vld [vmem:[#allocation3] sm:$0x1]
          %v521 = vmul.f32 %v520, 0.03125
          %v522 = vld [vmem:[#allocation3 + $0x1] sm:$0x1]
          %v523 = vmul.f32 %v522, 0.03125
          %v524 = vmul.f32 %v521, %v521
          %v525 = vsub.f32 %v523, %v524
          %v526 = vmax.f32 %v525, 0.0
          %v527 = vadd.f32 %v526, 1e-05
          %v528 = vrsqrt.pop %v527
          %529 = vst [vmem:[#allocation4] sm:$0x1] %v528
          %v530 = vsub.f32 0.0, %v521
          %v531 = vmul.f32 %v530, %v528
          %532 = vst [vmem:[#allocation4 + $0x1] sm:$0x1] %v531
        $region44: #{cnn_forward.9} parent=39 // pred_fallthru
          _
        %s533 = smul.u32 %s18, 32
        %s534 = scalar_lea.vmem [#allocation2], %s533
        %v535 = vld [vmem:[%s534] sm:$0xff]
        %v536 = vld [vmem:[%s534 + $0x8] sm:$0xff]
        %v537 = vld [vmem:[%s534 + $0x10] sm:$0xff]
        %v538 = vld [vmem:[%s534 + $0x18] sm:$0xff]
        %v539 = vld [vmem:[#allocation4] sm:$0x1]
        %v540 = vlaneseq
        %v541 = vshrl.u32 %v540, 7
        %v542 = vsub.s32 0, %v541
        %v543 = vrot.slane %v539, %v542
        %v544 = vmul.f32 %v535, %v543
        %v545 = vmul.f32 %v536, %v543
        %v546 = vmul.f32 %v537, %v543
        %v547 = vmul.f32 %v538, %v543
        %v548 = vld [vmem:[#allocation4 + $0x1] sm:$0x1]
        %v549 = vlaneseq
        %v550 = vshrl.u32 %v549, 7
        %v551 = vsub.s32 0, %v550
        %v552 = vrot.slane %v548, %v551
        %v553 = vadd.f32 %v544, %v552
        %v554 = vadd.f32 %v545, %v552
        %v555 = vadd.f32 %v546, %v552
        %v556 = vadd.f32 %v547, %v552
        %v557 = vmax.f32 %v553, 0.0
        %v558 = vmax.f32 %v554, 0.0
        %v559 = vmax.f32 %v555, 0.0
        %v560 = vmax.f32 %v556, 0.0
        %v561 = vpack.c.bf16 %v558, %v557
        %v562 = vpack.c.bf16 %v560, %v559
        %v565 = vunpack.c.l.b16 %v561
        %v566 = vunpack.c.h.b16 %v561
        %v567 = vunpack.c.l.b16 %v562
        %v568 = vunpack.c.h.b16 %v562
        %v569 = vpack.c.b16 %v565, %v565
        %v570 = vpack.c.b16 %v566, %v566
        %v571 = vpack.c.b16 %v567, %v567
        %v572 = vpack.c.b16 %v568, %v568
        %vm577 = vcmask 519168
        %578 = vst.msk [vmem:[%s178] sm:$0xf] %vm577, %v569
        %579 = vst.msk [vmem:[%s178 + $0x4] sm:$0xf] %vm577, %v570
        %580 = vst.msk [vmem:[%s178 + $0x8] sm:$0xf] %vm577, %v571
        %581 = vst.msk [vmem:[%s178 + $0xc] sm:$0xf] %vm577, %v572
      $region40: #{cnn_forward.9} parent=27 // pred_fallthru
        _
      %s582 = smul.u32 %s18, %s17
      %s583 = smul.u32 4, %s582
      %p584 = scmp.lt.s32.totalorder %s583, 3
      %s585 = scalar_select %p584, %s583, 3
      %s586 = smul.addr %s585, 4
      %s587 = scalar_lea.vmem %s2, %s586
      // Predicated region
      $region45: #{cnn_forward.9} parent=27 // pred_check
        %p588 = pneg %p96
      $region46: #{cnn_forward.9} parent=27 // pred_check_branch
        %590 = sbr.rel (%p588) target = $region48
      $region47: #{cnn_forward.9} parent=27 // pred_region
        %s591 = smul.u32 %s18, %s17
        %s592 = smul.u32 4, %s591
      $region48: #{cnn_forward.9} parent=27 // pred_fallthru
        _
    $region28: #{cnn_forward.9} parent=5 // pred_fallthru
      _
    %p593 = scmp.le.s32.totalorder 2, %s8
    // Predicated region
    $region49: #{cnn_forward.9} parent=5 // pred_check
      %p594 = pneg %p593
    $region50: #{cnn_forward.9} parent=5 // pred_check_branch
      %596 = sbr.rel (%p594) target = $region52
    $region51: #{cnn_forward.9} parent=5 // pred_region
      %s597 = ssub.s32 %s8, 2
      // Predicated region
      $region53: #{cnn_forward.9} parent=51 // pred_check
        %p598 = pneg %p102
      $region54: #{cnn_forward.9} parent=51 // pred_check_branch
        %600 = sbr.rel (%p598) target = $region56
      $region55: #{cnn_forward.9} parent=51 // pred_region
        %s601 = smul.u32 %s20, %s19
        %s602 = smul.u32 4, %s601
        %p603 = scmp.lt.s32.totalorder %s602, 3
        %s604 = scalar_select %p603, %s602, 3
        %s605 = smul.addr %s604, 4
        %s606 = scalar_lea.vmem %s2, %s605
      $region56: #{cnn_forward.9} parent=51 // pred_fallthru
        _
    $region52: #{cnn_forward.9} parent=5 // pred_fallthru
      _
  $region6: #{cnn_forward.9} parent=0 // loop_footer
    %s12 = sadd.s32 1, %s8
  $region7: #{cnn_forward.9} parent=0 // loop_footer_branch
    %7 = sbr.rel target = $region3
  $region8: #{cnn_forward.9} parent=0 // loop_exit
    _

// kernel: cnn_forward.10
$region0: #{cnn_forward.10}
  #allocation0 [shape = 'u32[]', space=smem, size = 0x4, offset = 0x4, fixed_abs, tag = 'smem constant byte address 0x4 - core index']
  #allocation1 [shape = 'u32[144,128]{1,0:T(1,128)}', space=vmem, size = 0x12000, scoped, tag = 'internal scratch']
  #allocation2 [shape = 'f32[1,16,128]{2,1,0:T(8,128)}', space=vmem, size = 0x2000, scoped, tag = 'scratch operand']
  #allocation3 [shape = 'f32[2,128]{1,0:T(2,128)}', space=vmem, size = 0x400, scoped, tag = 'scratch operand']
  #allocation4 [shape = 'f32[2,128]{1,0:T(2,128)}', space=vmem, size = 0x400, scoped, tag = 'scratch operand']
  %s0 = inlined_call_operand.vmem [shape: bf16[16,640], index: 0, kind: input, shape index: {}]
  %s1 = inlined_call_operand.vmem [shape: bf16[640,128], index: 1, kind: input, shape index: {}]
  %s2 = inlined_call_operand.vmem [shape: bf16[16,128], index: 2, kind: output, shape index: {}]
  %s3 = sld [smem:[#allocation0]]
  $region57: #{cnn_forward.10} parent=0
    _
  %s5 = ssub.s32 1, %s3
  %s6 = scalar_select 0, %s5, %s3
  loop: start=0, step=1, limit=4
  $region2: #{cnn_forward.10} parent=0 // loop_pre_header
    _
  $region3: #{cnn_forward.10} parent=0 // loop_header
    %s8 = sphi 0, %s12
    %p9 = scmp.ge.s32.totalorder %s8, 4
    %s15 = sphi 0, %s27
    %s16 = sphi 0, %s23
    %s17 = sphi 0, %s15
    %s18 = sphi 0, %s16
    %s19 = sphi 0, %s17
    %s20 = sphi 0, %s18
    %s34 = sphi 0, %s36
    %s37 = sphi 0, %s34
    %s38 = sphi 0, %s37
    %s54 = sphi 0, %s38
    %s58 = sphi 0, %s58
    %s60 = sphi 0, %s58
    %s61 = sphi 0, %s60
    %s75 = sphi 0, %s61
    %s83 = sphi 0, %s85
    %s86 = sphi 0, %s83
    %s87 = sphi 0, %s86
    %s103 = sphi 0, %s87
  $region4: #{cnn_forward.10} parent=0 // loop_header_branch
    %11 = sbr.rel (%p9) target = $region8
  $region5: #{cnn_forward.10} parent=0 // loop_body
    %s13 = ssub.s32 %s8, 1
    %s14 = ssub.s32 %s8, 2
    %s21 = sadd.s32 1, %s16
    %p22 = scmp.ge.s32.totalorder %s21, 1
    %s23 = scalar_select %p22, 0, %s21
    %s24 = sadd.s32 1, %s15
    %s25 = scalar_select %p22, %s24, %s15
    %p26 = scmp.ge.s32.totalorder %s25, 2
    %s27 = scalar_select %p26, 0, %s25
    %s28 = ssub.s32 1, %s15
    %s29 = smul.u32 %s16, %s28
    %s30 = ssub.s32 1, %s27
    %s31 = smul.u32 %s23, %s30
    %s32 = ssub.s32 %s29, %s31
    %p33 = scmp.eq.s32.totalorder %s32, 0
    %s35 = sadd.s32 %s34, 1
    %s36 = scalar_select %p33, %s34, %s35
    %p39 = pneg %p33
    %p40 = scmp.eq.s32.totalorder %s8, 1
    %p41 = por %p39, %p40
    %p42 = scmp.ne.s32.totalorder %s34, %s37
    %p43 = scmp.eq.s32.totalorder %s8, 0
    %p44 = por %p42, %p43
    %p45 = scmp.ne.s32.totalorder %s34, %s37
    %p46 = scmp.eq.s32.totalorder %s13, 1
    %p47 = por %p45, %p46
    %p48 = scmp.ne.s32.totalorder %s37, %s38
    %p49 = scmp.eq.s32.totalorder %s13, 0
    %p50 = por %p48, %p49
    %p51 = scmp.ne.s32.totalorder %s37, %s38
    %p52 = scmp.eq.s32.totalorder %s14, 1
    %p53 = por %p51, %p52
    %p55 = scmp.ne.s32.totalorder %s38, %s54
    %p56 = scmp.eq.s32.totalorder %s14, 0
    %p57 = por %p55, %p56
    %s59 = sadd.s32 %s58, 1
    %p62 = scmp.eq.s32.totalorder %s8, 1
    %p63 = scmp.ne.s32.totalorder %s58, %s60
    %p64 = scmp.eq.s32.totalorder %s8, 0
    %p65 = por %p63, %p64
    %p66 = scmp.ne.s32.totalorder %s58, %s60
    %p67 = scmp.eq.s32.totalorder %s13, 1
    %p68 = por %p66, %p67
    %p69 = scmp.ne.s32.totalorder %s60, %s61
    %p70 = scmp.eq.s32.totalorder %s13, 0
    %p71 = por %p69, %p70
    %p72 = scmp.ne.s32.totalorder %s60, %s61
    %p73 = scmp.eq.s32.totalorder %s14, 1
    %p74 = por %p72, %p73
    %p76 = scmp.ne.s32.totalorder %s61, %s75
    %p77 = scmp.eq.s32.totalorder %s14, 0
    %p78 = por %p76, %p77
    %s79 = smul.u32 %s16, %s15
    %s80 = smul.u32 %s23, %s27
    %s81 = ssub.s32 %s79, %s80
    %p82 = scmp.eq.s32.totalorder %s81, 0
    %s84 = sadd.s32 %s83, 1
    %s85 = scalar_select %p82, %s83, %s84
    %p88 = pneg %p82
    %p89 = scmp.eq.s32.totalorder %s8, 1
    %p90 = por %p88, %p89
    %p91 = scmp.ne.s32.totalorder %s83, %s86
    %p92 = scmp.eq.s32.totalorder %s8, 0
    %p93 = por %p91, %p92
    %p94 = scmp.ne.s32.totalorder %s83, %s86
    %p95 = scmp.eq.s32.totalorder %s13, 1
    %p96 = por %p94, %p95
    %p97 = scmp.ne.s32.totalorder %s86, %s87
    %p98 = scmp.eq.s32.totalorder %s13, 0
    %p99 = por %p97, %p98
    %p100 = scmp.ne.s32.totalorder %s86, %s87
    %p101 = scmp.eq.s32.totalorder %s14, 1
    %p102 = por %p100, %p101
    %p104 = scmp.ne.s32.totalorder %s87, %s103
    %p105 = scmp.eq.s32.totalorder %s14, 0
    %p106 = por %p104, %p105
    %p107 = scmp.le.s32.totalorder 1, %s8
    %p108 = scmp.lt.s32.totalorder %s8, 3
    %p109 = pnand %p107, %p108
    %p110 = pneg %p109
    // Predicated region
    $region9: #{cnn_forward.10} parent=5 // pred_check
      _
    $region10: #{cnn_forward.10} parent=5 // pred_check_branch
      %112 = sbr.rel (%p109) target = $region12
    $region11: #{cnn_forward.10} parent=5 // pred_region
      %s113 = ssub.s32 %s8, 1
      // Predicated region
      $region13: #{cnn_forward.10} parent=11 // pred_check
        %p114 = pneg %p71
      $region14: #{cnn_forward.10} parent=11 // pred_check_branch
        %116 = sbr.rel (%p114) target = $region16
      $region15: #{cnn_forward.10} parent=11 // pred_region
        _
      $region16: #{cnn_forward.10} parent=11 // pred_fallthru
        _
    $region12: #{cnn_forward.10} parent=5 // pred_fallthru
      _
    %p117 = scmp.lt.s32.totalorder %s8, 2
    // Predicated region
    $region17: #{cnn_forward.10} parent=5 // pred_check
      %p118 = pneg %p117
    $region18: #{cnn_forward.10} parent=5 // pred_check_branch
      %120 = sbr.rel (%p118) target = $region20
    $region19: #{cnn_forward.10} parent=5 // pred_region
      // Predicated region
      $region21: #{cnn_forward.10} parent=19 // pred_check
        %p121 = pneg %p44
      $region22: #{cnn_forward.10} parent=19 // pred_check_branch
        %123 = sbr.rel (%p121) target = $region24
      $region23: #{cnn_forward.10} parent=19 // pred_region
        %s124 = ssub.s32 1, %s15
        %s125 = smul.u32 %s16, %s124
        %s126 = smul.u32 2, %s125
        %p127 = scmp.lt.s32.totalorder %s126, 1
        %s128 = scalar_select %p127, %s126, 1
        %s129 = smul.addr %s128, 5
        %s130 = smul.addr %s129, 4
        %s131 = scalar_lea.vmem %s0, %s130
        %s132 = ssub.s32 1, %s15
        %s133 = smul.u32 %s16, %s132
        %s134 = smul.u32 2, %s133
      $region24: #{cnn_forward.10} parent=19 // pred_fallthru
        _
    $region20: #{cnn_forward.10} parent=5 // pred_fallthru
      _
    %p135 = scmp.le.s32.totalorder 1, %s8
    %p136 = scmp.lt.s32.totalorder %s8, 3
    %p137 = pnand %p135, %p136
    %p138 = pneg %p137
    // Predicated region
    $region25: #{cnn_forward.10} parent=5 // pred_check
      _
    $region26: #{cnn_forward.10} parent=5 // pred_check_branch
      %140 = sbr.rel (%p137) target = $region28
    $region27: #{cnn_forward.10} parent=5 // pred_region
      %s141 = ssub.s32 %s8, 1
      %s142 = ssub.s32 1, %s17
      %s143 = smul.u32 %s18, %s142
      %s144 = smul.u32 2, %s143
      %p145 = scmp.lt.s32.totalorder %s144, 1
      %s146 = scalar_select %p145, %s144, 1
      %s147 = smul.addr %s146, 5
      %s148 = smul.addr %s147, 4
      %s149 = scalar_lea.vmem %s0, %s148
      %p150 = pneg %p50
      %p151 = pneg %p47
      %p152 = pneg %p71
      %p153 = pneg %p68
      %p154 = pneg %p99
      %p155 = pneg %p96
      %s156 = smul.u32 %s18, %s17
      %s157 = smul.u32 2, %s156
      %p158 = scmp.lt.s32.totalorder %s157, 1
      %s159 = scalar_select %p158, %s157, 1
      %s160 = smul.addr %s159, 4
      %s161 = scalar_lea.vmem %s2, %s160
      %s162 = ssub.s32 1, %s17
      %s163 = smul.u32 %s18, %s162
      %s164 = smul.u32 2, %s163
      %p165 = scmp.lt.s32.totalorder %s164, 1
      %s166 = scalar_select %p165, %s164, 1
      %s167 = smul.addr %s166, 5
      %s168 = smul.addr %s167, 4
      %s169 = scalar_lea.vmem %s0, %s168
      %s170 = ssub.s32 1, %s17
      %s171 = smul.u32 %s18, %s170
      %s172 = smul.u32 2, %s171
      %s173 = smul.u32 %s18, %s17
      %s174 = smul.u32 2, %s173
      %p175 = scmp.lt.s32.totalorder %s174, 1
      %s176 = scalar_select %p175, %s174, 1
      %s177 = smul.addr %s176, 4
      %s178 = scalar_lea.vmem %s2, %s177
      %s179 = smul.u32 %s18, %s17
      %s180 = smul.u32 2, %s179
      %p182 = scmp.eq.s32.totalorder %s17, 0
      // Predicated region
      $region29: #{cnn_forward.10} parent=27 // pred_check
        %p183 = pneg %p182
      $region30: #{cnn_forward.10} parent=27 // pred_check_branch
        %185 = sbr.rel (%p183) target = $region32
      $region31: #{cnn_forward.10} parent=27 // pred_region
        %p186 = scmp.eq.s32.totalorder %s18, 0
        // Predicated region
        $region33: #{cnn_forward.10} parent=31 // pred_check
          %p187 = pneg %p186
        $region34: #{cnn_forward.10} parent=31 // pred_check_branch
          %189 = sbr.rel (%p187) target = $region36
        $region35: #{cnn_forward.10} parent=31 // pred_region
          %190 = vst [vmem:[#allocation3] sm:$0x3] 0.0
        $region36: #{cnn_forward.10} parent=31 // pred_fallthru
          _
        %v191 = vld [vmem:[%s169] sm:$0xff]
        %v192 = vld [vmem:[%s169 + $0x8] sm:$0xff]
        %v193 = vld [vmem:[%s169 + $0x10] sm:$0xf]
        %v194 = vld [vmem:[%s169 + $0x14] sm:$0xff]
        %v195 = vld [vmem:[%s169 + $0x1c] sm:$0xff]
        %v196 = vld [vmem:[%s169 + $0x24] sm:$0xf]
        %v197 = vld [vmem:[%s1] sm:$0xf]
        %v198 = vld [vmem:[%s1 + $0x4] sm:$0xf]
        %v199 = vld [vmem:[%s1 + $0x8] sm:$0xf]
        %v200 = vld [vmem:[%s1 + $0xc] sm:$0xf]
        %v201 = vld [vmem:[%s1 + $0x10] sm:$0xf]
        %v202 = vld [vmem:[%s1 + $0x14] sm:$0xf]
        %v203 = vld [vmem:[%s1 + $0x18] sm:$0xf]
        %v204 = vld [vmem:[%s1 + $0x1c] sm:$0xf]
        %v205 = vld [vmem:[%s1 + $0x20] sm:$0xf]
        %v206 = vld [vmem:[%s1 + $0x24] sm:$0xf]
        %v207 = vld [vmem:[%s1 + $0x28] sm:$0xf]
        %v208 = vld [vmem:[%s1 + $0x2c] sm:$0xf]
        %v209 = vld [vmem:[%s1 + $0x30] sm:$0xf]
        %v210 = vld [vmem:[%s1 + $0x34] sm:$0xf]
        %v211 = vld [vmem:[%s1 + $0x38] sm:$0xf]
        %v212 = vld [vmem:[%s1 + $0x3c] sm:$0xf]
        %v213 = vld [vmem:[%s1 + $0x40] sm:$0xf]
        %v214 = vld [vmem:[%s1 + $0x44] sm:$0xf]
        %v215 = vld [vmem:[%s1 + $0x48] sm:$0xf]
        %v216 = vld [vmem:[%s1 + $0x4c] sm:$0xf]
        %v217 = vld [vmem:[%s1 + $0x50] sm:$0xf]
        %v218 = vld [vmem:[%s1 + $0x54] sm:$0xf]
        %v219 = vld [vmem:[%s1 + $0x58] sm:$0xf]
        %v220 = vld [vmem:[%s1 + $0x5c] sm:$0xf]
        %v221 = vld [vmem:[%s1 + $0x60] sm:$0xf]
        %v222 = vld [vmem:[%s1 + $0x64] sm:$0xf]
        %v223 = vld [vmem:[%s1 + $0x68] sm:$0xf]
        %v224 = vld [vmem:[%s1 + $0x6c] sm:$0xf]
        %v225 = vld [vmem:[%s1 + $0x70] sm:$0xf]
        %v226 = vld [vmem:[%s1 + $0x74] sm:$0xf]
        %v227 = vld [vmem:[%s1 + $0x78] sm:$0xf]
        %v228 = vld [vmem:[%s1 + $0x7c] sm:$0xf]
        %v229 = vld [vmem:[%s1 + $0x80] sm:$0xf]
        %v230 = vld [vmem:[%s1 + $0x84] sm:$0xf]
        %v231 = vld [vmem:[%s1 + $0x88] sm:$0xf]
        %v232 = vld [vmem:[%s1 + $0x8c] sm:$0xf]
        %v233 = vld [vmem:[%s1 + $0x90] sm:$0xf]
        %v234 = vld [vmem:[%s1 + $0x94] sm:$0xf]
        %v235 = vld [vmem:[%s1 + $0x98] sm:$0xf]
        %v236 = vld [vmem:[%s1 + $0x9c] sm:$0xf]
        %v237 = vld [vmem:[%s1 + $0xa0] sm:$0xf]
        %v238 = vld [vmem:[%s1 + $0xa4] sm:$0xf]
        %v239 = vld [vmem:[%s1 + $0xa8] sm:$0xf]
        %v240 = vld [vmem:[%s1 + $0xac] sm:$0xf]
        %v241 = vld [vmem:[%s1 + $0xb0] sm:$0xf]
        %v242 = vld [vmem:[%s1 + $0xb4] sm:$0xf]
        %v243 = vld [vmem:[%s1 + $0xb8] sm:$0xf]
        %v244 = vld [vmem:[%s1 + $0xbc] sm:$0xf]
        %v245 = vld [vmem:[%s1 + $0xc0] sm:$0xf]
        %v246 = vld [vmem:[%s1 + $0xc4] sm:$0xf]
        %v247 = vld [vmem:[%s1 + $0xc8] sm:$0xf]
        %v248 = vld [vmem:[%s1 + $0xcc] sm:$0xf]
        %v249 = vld [vmem:[%s1 + $0xd0] sm:$0xf]
        %v250 = vld [vmem:[%s1 + $0xd4] sm:$0xf]
        %v251 = vld [vmem:[%s1 + $0xd8] sm:$0xf]
        %v252 = vld [vmem:[%s1 + $0xdc] sm:$0xf]
        %v253 = vld [vmem:[%s1 + $0xe0] sm:$0xf]
        %v254 = vld [vmem:[%s1 + $0xe4] sm:$0xf]
        %v255 = vld [vmem:[%s1 + $0xe8] sm:$0xf]
        %v256 = vld [vmem:[%s1 + $0xec] sm:$0xf]
        %v257 = vld [vmem:[%s1 + $0xf0] sm:$0xf]
        %v258 = vld [vmem:[%s1 + $0xf4] sm:$0xf]
        %v259 = vld [vmem:[%s1 + $0xf8] sm:$0xf]
        %v260 = vld [vmem:[%s1 + $0xfc] sm:$0xf]
        %v261 = vld [vmem:[%s1 + $0x100] sm:$0xf]
        %v262 = vld [vmem:[%s1 + $0x104] sm:$0xf]
        %v263 = vld [vmem:[%s1 + $0x108] sm:$0xf]
        %v264 = vld [vmem:[%s1 + $0x10c] sm:$0xf]
        %v265 = vld [vmem:[%s1 + $0x110] sm:$0xf]
        %v266 = vld [vmem:[%s1 + $0x114] sm:$0xf]
        %v267 = vld [vmem:[%s1 + $0x118] sm:$0xf]
        %v268 = vld [vmem:[%s1 + $0x11c] sm:$0xf]
        %v269 = vld [vmem:[%s1 + $0x120] sm:$0xf]
        %v270 = vld [vmem:[%s1 + $0x124] sm:$0xf]
        %v271 = vld [vmem:[%s1 + $0x128] sm:$0xf]
        %v272 = vld [vmem:[%s1 + $0x12c] sm:$0xf]
        %v273 = vld [vmem:[%s1 + $0x130] sm:$0xf]
        %v274 = vld [vmem:[%s1 + $0x134] sm:$0xf]
        %v275 = vld [vmem:[%s1 + $0x138] sm:$0xf]
        %v276 = vld [vmem:[%s1 + $0x13c] sm:$0xf]
        %v283 = vunpack.c.l.b16 %v191
        %v284 = vunpack.c.h.b16 %v191
        %v285 = vunpack.c.l.b16 %v192
        %v286 = vunpack.c.h.b16 %v192
        %v287 = vunpack.c.l.b16 %v193
        %v288 = vunpack.c.l.b16 %v194
        %v289 = vunpack.c.h.b16 %v194
        %v290 = vunpack.c.l.b16 %v195
        %v291 = vunpack.c.h.b16 %v195
        %v292 = vunpack.c.l.b16 %v196
        %v293 = vpack.c.b16 %v288, %v283
        %v294 = vpack.c.b16 %v289, %v284
        %v295 = vpack.c.b16 %v290, %v285
        %v296 = vpack.c.b16 %v291, %v286
        %v297 = vpack.c.b16 %v292, %v287
        %v383 = vunpack.c.l.b16 %v197
        %v384 = vunpack.c.l.b16 %v198
        %v385 = vunpack.c.l.b16 %v199
        %v386 = vunpack.c.l.b16 %v200
        %v387 = vunpack.c.l.b16 %v201
        %v388 = vunpack.c.l.b16 %v202
        %v389 = vunpack.c.l.b16 %v203
        %v390 = vunpack.c.l.b16 %v204
        %v391 = vunpack.c.l.b16 %v205
        %v392 = vunpack.c.l.b16 %v206
        %v393 = vunpack.c.l.b16 %v207
        %v394 = vunpack.c.l.b16 %v208
        %v395 = vunpack.c.l.b16 %v209
        %v396 = vunpack.c.l.b16 %v210
        %v397 = vunpack.c.l.b16 %v211
        %v398 = vunpack.c.l.b16 %v212
        %v399 = vunpack.c.l.b16 %v213
        %v400 = vunpack.c.l.b16 %v214
        %v401 = vunpack.c.l.b16 %v215
        %v402 = vunpack.c.l.b16 %v216
        %v403 = vunpack.c.l.b16 %v217
        %v404 = vunpack.c.l.b16 %v218
        %v405 = vunpack.c.l.b16 %v219
        %v406 = vunpack.c.l.b16 %v220
        %v407 = vunpack.c.l.b16 %v221
        %v408 = vunpack.c.l.b16 %v222
        %v409 = vunpack.c.l.b16 %v223
        %v410 = vunpack.c.l.b16 %v224
        %v411 = vunpack.c.l.b16 %v225
        %v412 = vunpack.c.l.b16 %v226
        %v413 = vunpack.c.l.b16 %v227
        %v414 = vunpack.c.l.b16 %v228
        %v415 = vunpack.c.l.b16 %v229
        %v416 = vunpack.c.l.b16 %v230
        %v417 = vunpack.c.l.b16 %v231
        %v418 = vunpack.c.l.b16 %v232
        %v419 = vunpack.c.l.b16 %v233
        %v420 = vunpack.c.l.b16 %v234
        %v421 = vunpack.c.l.b16 %v235
        %v422 = vunpack.c.l.b16 %v236
        %v423 = vunpack.c.l.b16 %v237
        %v424 = vunpack.c.l.b16 %v238
        %v425 = vunpack.c.l.b16 %v239
        %v426 = vunpack.c.l.b16 %v240
        %v427 = vunpack.c.l.b16 %v241
        %v428 = vunpack.c.l.b16 %v242
        %v429 = vunpack.c.l.b16 %v243
        %v430 = vunpack.c.l.b16 %v244
        %v431 = vunpack.c.l.b16 %v245
        %v432 = vunpack.c.l.b16 %v246
        %v433 = vunpack.c.l.b16 %v247
        %v434 = vunpack.c.l.b16 %v248
        %v435 = vunpack.c.l.b16 %v249
        %v436 = vunpack.c.l.b16 %v250
        %v437 = vunpack.c.l.b16 %v251
        %v438 = vunpack.c.l.b16 %v252
        %v439 = vunpack.c.l.b16 %v253
        %v440 = vunpack.c.l.b16 %v254
        %v441 = vunpack.c.l.b16 %v255
        %v442 = vunpack.c.l.b16 %v256
        %v443 = vunpack.c.l.b16 %v257
        %v444 = vunpack.c.l.b16 %v258
        %v445 = vunpack.c.l.b16 %v259
        %v446 = vunpack.c.l.b16 %v260
        %v447 = vunpack.c.l.b16 %v261
        %v448 = vunpack.c.l.b16 %v262
        %v449 = vunpack.c.l.b16 %v263
        %v450 = vunpack.c.l.b16 %v264
        %v451 = vunpack.c.l.b16 %v265
        %v452 = vunpack.c.l.b16 %v266
        %v453 = vunpack.c.l.b16 %v267
        %v454 = vunpack.c.l.b16 %v268
        %v455 = vunpack.c.l.b16 %v269
        %v456 = vunpack.c.l.b16 %v270
        %v457 = vunpack.c.l.b16 %v271
        %v458 = vunpack.c.l.b16 %v272
        %v459 = vunpack.c.l.b16 %v273
        %v460 = vunpack.c.l.b16 %v274
        %v461 = vunpack.c.l.b16 %v275
        %v462 = vunpack.c.l.b16 %v276
        %v463 = vpack.c.b16 %v384, %v383
        %v464 = vpack.c.b16 %v386, %v385
        %v465 = vpack.c.b16 %v388, %v387
        %v466 = vpack.c.b16 %v390, %v389
        %v467 = vpack.c.b16 %v392, %v391
        %v468 = vpack.c.b16 %v394, %v393
        %v469 = vpack.c.b16 %v396, %v395
        %v470 = vpack.c.b16 %v398, %v397
        %v471 = vpack.c.b16 %v400, %v399
        %v472 = vpack.c.b16 %v402, %v401
        %v473 = vpack.c.b16 %v404, %v403
        %v474 = vpack.c.b16 %v406, %v405
        %v475 = vpack.c.b16 %v408, %v407
        %v476 = vpack.c.b16 %v410, %v409
        %v477 = vpack.c.b16 %v412, %v411
        %v478 = vpack.c.b16 %v414, %v413
        %v479 = vpack.c.b16 %v416, %v415
        %v480 = vpack.c.b16 %v418, %v417
        %v481 = vpack.c.b16 %v420, %v419
        %v482 = vpack.c.b16 %v422, %v421
        %v483 = vpack.c.b16 %v424, %v423
        %v484 = vpack.c.b16 %v426, %v425
        %v485 = vpack.c.b16 %v428, %v427
        %v486 = vpack.c.b16 %v430, %v429
        %v487 = vpack.c.b16 %v432, %v431
        %v488 = vpack.c.b16 %v434, %v433
        %v489 = vpack.c.b16 %v436, %v435
        %v490 = vpack.c.b16 %v438, %v437
        %v491 = vpack.c.b16 %v440, %v439
        %v492 = vpack.c.b16 %v442, %v441
        %v493 = vpack.c.b16 %v444, %v443
        %v494 = vpack.c.b16 %v446, %v445
        %v495 = vpack.c.b16 %v448, %v447
        %v496 = vpack.c.b16 %v450, %v449
        %v497 = vpack.c.b16 %v452, %v451
        %v498 = vpack.c.b16 %v454, %v453
        %v499 = vpack.c.b16 %v456, %v455
        %v500 = vpack.c.b16 %v458, %v457
        %v501 = vpack.c.b16 %v460, %v459
        %v502 = vpack.c.b16 %v462, %v461
        %543 = vmatprep.subr.bf16.mxu0 0
        %544 = vmatpush1.bf16.msra.mxu0 %v463
        %545 = vmatprep.subr.bf16.mxu0 0
        %546 = vmatpush1.bf16.msra.mxu0 %v464
        %547 = vmatprep.subr.bf16.mxu0 0
        %548 = vmatpush1.bf16.msra.mxu0 %v465
        %549 = vmatprep.subr.bf16.mxu0 0
        %550 = vmatpush1.bf16.msra.mxu0 %v466
        %551 = vmatprep.subr.bf16.mxu0 0
        %552 = vmatpush1.bf16.msra.mxu0 %v467
        %553 = vmatprep.subr.bf16.mxu0 0
        %554 = vmatpush1.bf16.msra.mxu0 %v468
        %555 = vmatprep.subr.bf16.mxu0 0
        %556 = vmatpush1.bf16.msra.mxu0 %v469
        %557 = vmatprep.subr.bf16.mxu0 0
        %558 = vmatpush1.bf16.msra.mxu0 %v470
        %559 = vmatprep.subr.bf16.mxu0 0
        %560 = vmatpush1.bf16.msra.mxu0 %v471
        %561 = vmatprep.subr.bf16.mxu0 0
        %562 = vmatpush1.bf16.msra.mxu0 %v472
        %563 = vmatprep.subr.bf16.mxu0 0
        %564 = vmatpush1.bf16.msra.mxu0 %v473
        %565 = vmatprep.subr.bf16.mxu0 0
        %566 = vmatpush1.bf16.msra.mxu0 %v474
        %567 = vmatprep.subr.bf16.mxu0 0
        %568 = vmatpush1.bf16.msra.mxu0 %v475
        %569 = vmatprep.subr.bf16.mxu0 0
        %570 = vmatpush1.bf16.msra.mxu0 %v476
        %571 = vmatprep.subr.bf16.mxu0 0
        %572 = vmatpush1.bf16.msra.mxu0 %v477
        %573 = vmatprep.subr.bf16.mxu0 0
        %574 = vmatpush1.bf16.msra.mxu0 %v478
        %575 = vmatprep.mubr.bf16.mxu0 %v294
        %576 = vmatmul.mubr.bf16.gmra.mrb[0].mxu0 %v293
        %v577 = vpop.f32.mrb[0].mxu0
        %v578 = vadd.f32 0.0, %v577
        %v579 = vpop.f32.mrb[0].mxu0
        %v580 = vpop.f32.mrb[0].mxu0
        %v581 = vadd.f32 0.0, %v580
        %v582 = vpop.f32.mrb[0].mxu0
        %583 = vdwg.mxu0
        %584 = vmatprep.subr.bf16.mxu0 0
        %585 = vmatpush1.bf16.msra.mxu0 %v479
        %586 = vmatprep.subr.bf16.mxu0 0
        %587 = vmatpush1.bf16.msra.mxu0 %v480
        %588 = vmatprep.subr.bf16.mxu0 0
        %589 = vmatpush1.bf16.msra.mxu0 %v481
        %590 = vmatprep.subr.bf16.mxu0 0
        %591 = vmatpush1.bf16.msra.mxu0 %v482
        %592 = vmatprep.subr.bf16.mxu0 0
        %593 = vmatpush1.bf16.msra.mxu0 %v483
        %594 = vmatprep.subr.bf16.mxu0 0
        %595 = vmatpush1.bf16.msra.mxu0 %v484
        %596 = vmatprep.subr.bf16.mxu0 0
        %597 = vmatpush1.bf16.msra.mxu0 %v485
        %598 = vmatprep.subr.bf16.mxu0 0
        %599 = vmatpush1.bf16.msra.mxu0 %v486
        %600 = vmatprep.subr.bf16.mxu0 0
        %601 = vmatpush1.bf16.msra.mxu0 %v487
        %602 = vmatprep.subr.bf16.mxu0 0
        %603 = vmatpush1.bf16.msra.mxu0 %v488
        %604 = vmatprep.subr.bf16.mxu0 0
        %605 = vmatpush1.bf16.msra.mxu0 %v489
        %606 = vmatprep.subr.bf16.mxu0 0
        %607 = vmatpush1.bf16.msra.mxu0 %v490
        %608 = vmatprep.subr.bf16.mxu0 0
        %609 = vmatpush1.bf16.msra.mxu0 %v491
        %610 = vmatprep.subr.bf16.mxu0 0
        %611 = vmatpush1.bf16.msra.mxu0 %v492
        %612 = vmatprep.subr.bf16.mxu0 0
        %613 = vmatpush1.bf16.msra.mxu0 %v493
        %614 = vmatprep.subr.bf16.mxu0 0
        %615 = vmatpush1.bf16.msra.mxu0 %v494
        %616 = vmatprep.mubr.bf16.mxu0 %v296
        %617 = vmatmul.mubr.bf16.gmra.mrb[0].mxu0 %v295
        %v618 = vpop.f32.mrb[0].mxu0
        %v619 = vadd.f32 %v578, %v618
        %v620 = vpop.f32.mrb[0].mxu0
        %v621 = vpop.f32.mrb[0].mxu0
        %v622 = vadd.f32 %v581, %v621
        %v623 = vpop.f32.mrb[0].mxu0
        %624 = vdwg.mxu0
        %625 = vmatprep.subr.bf16.mxu0 0
        %626 = vmatpush1.bf16.msra.mxu0 %v495
        %627 = vmatprep.subr.bf16.mxu0 0
        %628 = vmatpush1.bf16.msra.mxu0 %v496
        %629 = vmatprep.subr.bf16.mxu0 0
        %630 = vmatpush1.bf16.msra.mxu0 %v497
        %631 = vmatprep.subr.bf16.mxu0 0
        %632 = vmatpush1.bf16.msra.mxu0 %v498
        %633 = vmatprep.subr.bf16.mxu0 0
        %634 = vmatpush1.bf16.msra.mxu0 %v499
        %635 = vmatprep.subr.bf16.mxu0 0
        %636 = vmatpush1.bf16.msra.mxu0 %v500
        %637 = vmatprep.subr.bf16.mxu0 0
        %638 = vmatpush1.bf16.msra.mxu0 %v501
        %639 = vmatprep.subr.bf16.mxu0 0
        %640 = vmatpush1.bf16.msra.mxu0 %v502
        %641 = vmatprep.subr.bf16.mxu0 0
        %642 = vmatpush1.bf16.msra.mxu0 0
        %643 = vmatprep.subr.bf16.mxu0 0
        %644 = vmatpush1.bf16.msra.mxu0 0
        %645 = vmatprep.subr.bf16.mxu0 0
        %646 = vmatpush1.bf16.msra.mxu0 0
        %647 = vmatprep.subr.bf16.mxu0 0
        %648 = vmatpush1.bf16.msra.mxu0 0
        %649 = vmatprep.subr.bf16.mxu0 0
        %650 = vmatpush1.bf16.msra.mxu0 0
        %651 = vmatprep.subr.bf16.mxu0 0
        %652 = vmatpush1.bf16.msra.mxu0 0
        %653 = vmatprep.subr.bf16.mxu0 0
        %654 = vmatpush1.bf16.msra.mxu0 0
        %655 = vmatprep.subr.bf16.mxu0 0
        %656 = vmatpush1.bf16.msra.mxu0 0
        %657 = vmatprep.mubr.bf16.mxu0 0
        %658 = vmatmul.mubr.bf16.gmra.mrb[0].mxu0 %v297
        %v659 = vpop.f32.mrb[0].mxu0
        %v660 = vadd.f32 %v619, %v659
        %v661 = vpop.f32.mrb[0].mxu0
        %v662 = vpop.f32.mrb[0].mxu0
        %v663 = vadd.f32 %v622, %v662
        %v664 = vpop.f32.mrb[0].mxu0
        %665 = vdwg.mxu0
        %s666 = smul.u32 %s18, 16
        %s667 = scalar_lea.vmem [#allocation2], %s666
        %668 = vst [vmem:[%s667] sm:$0xff] %v660
        %669 = vst [vmem:[%s667 + $0x8] sm:$0xff] %v663
        %v670 = vld [vmem:[#allocation3] sm:$0x1]
        %v671 = vadd.f32 %v660, %v663
        %v672 = vrot.slane %v671, 4
        %v673 = vadd.f32 %v671, %v672
        %v674 = vrot.slane %v673, 2
        %v675 = vadd.f32 %v673, %v674
        %v676 = vrot.slane %v675, 1
        %v677 = vadd.f32 %v675, %v676
        %v678 = vadd.f32 %v670, %v677
        %679 = vst [vmem:[#allocation3] sm:$0x1] %v678
        %v680 = vld [vmem:[#allocation3 + $0x1] sm:$0x1]
        %v681 = vmul.f32 %v660, %v660
        %v682 = vmul.f32 %v663, %v663
        %v683 = vadd.f32 %v681, %v682
        %v684 = vrot.slane %v683, 4
        %v685 = vadd.f32 %v683, %v684
        %v686 = vrot.slane %v685, 2
        %v687 = vadd.f32 %v685, %v686
        %v688 = vrot.slane %v687, 1
        %v689 = vadd.f32 %v687, %v688
        %v690 = vadd.f32 %v680, %v689
        %691 = vst [vmem:[#allocation3 + $0x1] sm:$0x1] %v690
      $region32: #{cnn_forward.10} parent=27 // pred_fallthru
        _
      %p692 = scmp.eq.s32.totalorder %s17, 1
      // Predicated region
      $region37: #{cnn_forward.10} parent=27 // pred_check
        %p693 = pneg %p692
      $region38: #{cnn_forward.10} parent=27 // pred_check_branch
        %695 = sbr.rel (%p693) target = $region40
      $region39: #{cnn_forward.10} parent=27 // pred_region
        %p696 = scmp.eq.s32.totalorder %s18, 0
        // Predicated region
        $region41: #{cnn_forward.10} parent=39 // pred_check
          %p697 = pneg %p696
        $region42: #{cnn_forward.10} parent=39 // pred_check_branch
          %699 = sbr.rel (%p697) target = $region44
        $region43: #{cnn_forward.10} parent=39 // pred_region
          %v700 = vld [vmem:[#allocation3] sm:$0x1]
          %v701 = vmul.f32 %v700, 0.125
          %v702 = vld [vmem:[#allocation3 + $0x1] sm:$0x1]
          %v703 = vmul.f32 %v702, 0.125
          %v704 = vmul.f32 %v701, %v701
          %v705 = vsub.f32 %v703, %v704
          %v706 = vmax.f32 %v705, 0.0
          %v707 = vadd.f32 %v706, 1e-05
          %v708 = vrsqrt.pop %v707
          %709 = vst [vmem:[#allocation4] sm:$0x1] %v708
          %v710 = vsub.f32 0.0, %v701
          %v711 = vmul.f32 %v710, %v708
          %712 = vst [vmem:[#allocation4 + $0x1] sm:$0x1] %v711
        $region44: #{cnn_forward.10} parent=39 // pred_fallthru
          _
        %s713 = smul.u32 %s18, 16
        %s714 = scalar_lea.vmem [#allocation2], %s713
        %v715 = vld [vmem:[%s714] sm:$0xff]
        %v716 = vld [vmem:[%s714 + $0x8] sm:$0xff]
        %v717 = vld [vmem:[#allocation4] sm:$0x1]
        %v718 = vlaneseq
        %v719 = vshrl.u32 %v718, 7
        %v720 = vsub.s32 0, %v719
        %v721 = vrot.slane %v717, %v720
        %v722 = vmul.f32 %v715, %v721
        %v723 = vmul.f32 %v716, %v721
        %v724 = vld [vmem:[#allocation4 + $0x1] sm:$0x1]
        %v725 = vlaneseq
        %v726 = vshrl.u32 %v725, 7
        %v727 = vsub.s32 0, %v726
        %v728 = vrot.slane %v724, %v727
        %v729 = vadd.f32 %v722, %v728
        %v730 = vadd.f32 %v723, %v728
        %v731 = vmax.f32 %v729, 0.0
        %v732 = vmax.f32 %v730, 0.0
        %v733 = vpack.c.bf16 %v732, %v731
        %v735 = vunpack.c.l.b16 %v733
        %v736 = vunpack.c.h.b16 %v733
        %v737 = vpack.c.b16 %v735, %v735
        %v738 = vpack.c.b16 %v736, %v736
        %741 = vst [vmem:[%s178] sm:$0xf] %v737
        %742 = vst [vmem:[%s178 + $0x4] sm:$0xf] %v738
      $region40: #{cnn_forward.10} parent=27 // pred_fallthru
        _
      %s743 = smul.u32 %s18, %s17
      %s744 = smul.u32 2, %s743
      %p745 = scmp.lt.s32.totalorder %s744, 1
      %s746 = scalar_select %p745, %s744, 1
      %s747 = smul.addr %s746, 4
      %s748 = scalar_lea.vmem %s2, %s747
      // Predicated region
      $region45: #{cnn_forward.10} parent=27 // pred_check
        %p749 = pneg %p96
      $region46: #{cnn_forward.10} parent=27 // pred_check_branch
        %751 = sbr.rel (%p749) target = $region48
      $region47: #{cnn_forward.10} parent=27 // pred_region
        %s752 = smul.u32 %s18, %s17
        %s753 = smul.u32 2, %s752
      $region48: #{cnn_forward.10} parent=27 // pred_fallthru
        _
    $region28: #{cnn_forward.10} parent=5 // pred_fallthru
      _
    %p754 = scmp.le.s32.totalorder 2, %s8
    // Predicated region
    $region49: #{cnn_forward.10} parent=5 // pred_check
      %p755 = pneg %p754
    $region50: #{cnn_forward.10} parent=5 // pred_check_branch
      %757 = sbr.rel (%p755) target = $region52
    $region51: #{cnn_forward.10} parent=5 // pred_region
      %s758 = ssub.s32 %s8, 2
      // Predicated region
      $region53: #{cnn_forward.10} parent=51 // pred_check
        %p759 = pneg %p102
      $region54: #{cnn_forward.10} parent=51 // pred_check_branch
        %761 = sbr.rel (%p759) target = $region56
      $region55: #{cnn_forward.10} parent=51 // pred_region
        %s762 = smul.u32 %s20, %s19
        %s763 = smul.u32 2, %s762
        %p764 = scmp.lt.s32.totalorder %s763, 1
        %s765 = scalar_select %p764, %s763, 1
        %s766 = smul.addr %s765, 4
        %s767 = scalar_lea.vmem %s2, %s766
      $region56: #{cnn_forward.10} parent=51 // pred_fallthru
        _
    $region52: #{cnn_forward.10} parent=5 // pred_fallthru
      _
  $region6: #{cnn_forward.10} parent=0 // loop_footer
    %s12 = sadd.s32 1, %s8
  $region7: #{cnn_forward.10} parent=0 // loop_footer_branch
    %7 = sbr.rel target = $region3
  $region8: #{cnn_forward.10} parent=0 // loop_exit
    _

// kernel: cnn_forward.11
$region0: #{cnn_forward.11}
  #allocation0 [shape = 'u32[]', space=smem, size = 0x4, offset = 0x4, fixed_abs, tag = 'smem constant byte address 0x4 - core index']
  #allocation1 [shape = 'u32[144,128]{1,0:T(1,128)}', space=vmem, size = 0x12000, scoped, tag = 'internal scratch']
  #allocation2 [shape = 'f32[1,16,128]{2,1,0:T(8,128)}', space=vmem, size = 0x2000, scoped, tag = 'scratch operand']
  #allocation3 [shape = 'f32[2,128]{1,0:T(2,128)}', space=vmem, size = 0x400, scoped, tag = 'scratch operand']
  #allocation4 [shape = 'f32[2,128]{1,0:T(2,128)}', space=vmem, size = 0x400, scoped, tag = 'scratch operand']
  %s0 = inlined_call_operand.vmem [shape: bf16[16,1152], index: 0, kind: input, shape index: {}]
  %s1 = inlined_call_operand.vmem [shape: bf16[1152,128], index: 1, kind: input, shape index: {}]
  %s2 = inlined_call_operand.vmem [shape: bf16[16,128], index: 2, kind: output, shape index: {0}]
  %s3 = inlined_call_operand.vmem [shape: f32[2,128], index: 3, kind: output, shape index: {1}]
  %4 = xla_tuple %s2, %s3
  %s5 = sld [smem:[#allocation0]]
  $region69: #{cnn_forward.11} parent=0
    _
  %s7 = ssub.s32 1, %s5
  %s8 = scalar_select 0, %s7, %s5
  loop: start=0, step=1, limit=4
  $region2: #{cnn_forward.11} parent=0 // loop_pre_header
    _
  $region3: #{cnn_forward.11} parent=0 // loop_header
    %s10 = sphi 0, %s14
    %p11 = scmp.ge.s32.totalorder %s10, 4
    %s17 = sphi 0, %s29
    %s18 = sphi 0, %s25
    %s19 = sphi 0, %s17
    %s20 = sphi 0, %s18
    %s21 = sphi 0, %s19
    %s22 = sphi 0, %s20
    %s36 = sphi 0, %s38
    %s39 = sphi 0, %s36
    %s40 = sphi 0, %s39
    %s56 = sphi 0, %s40
    %s60 = sphi 0, %s60
    %s62 = sphi 0, %s60
    %s63 = sphi 0, %s62
    %s77 = sphi 0, %s63
    %s85 = sphi 0, %s87
    %s88 = sphi 0, %s85
    %s89 = sphi 0, %s88
    %s105 = sphi 0, %s89
    %s109 = sphi 0, %s109
    %s111 = sphi 0, %s109
    %s112 = sphi 0, %s111
    %s126 = sphi 0, %s112
  $region4: #{cnn_forward.11} parent=0 // loop_header_branch
    %13 = sbr.rel (%p11) target = $region8
  $region5: #{cnn_forward.11} parent=0 // loop_body
    %s15 = ssub.s32 %s10, 1
    %s16 = ssub.s32 %s10, 2
    %s23 = sadd.s32 1, %s18
    %p24 = scmp.ge.s32.totalorder %s23, 1
    %s25 = scalar_select %p24, 0, %s23
    %s26 = sadd.s32 1, %s17
    %s27 = scalar_select %p24, %s26, %s17
    %p28 = scmp.ge.s32.totalorder %s27, 2
    %s29 = scalar_select %p28, 0, %s27
    %s30 = ssub.s32 1, %s17
    %s31 = smul.u32 %s18, %s30
    %s32 = ssub.s32 1, %s29
    %s33 = smul.u32 %s25, %s32
    %s34 = ssub.s32 %s31, %s33
    %p35 = scmp.eq.s32.totalorder %s34, 0
    %s37 = sadd.s32 %s36, 1
    %s38 = scalar_select %p35, %s36, %s37
    %p41 = pneg %p35
    %p42 = scmp.eq.s32.totalorder %s10, 1
    %p43 = por %p41, %p42
    %p44 = scmp.ne.s32.totalorder %s36, %s39
    %p45 = scmp.eq.s32.totalorder %s10, 0
    %p46 = por %p44, %p45
    %p47 = scmp.ne.s32.totalorder %s36, %s39
    %p48 = scmp.eq.s32.totalorder %s15, 1
    %p49 = por %p47, %p48
    %p50 = scmp.ne.s32.totalorder %s39, %s40
    %p51 = scmp.eq.s32.totalorder %s15, 0
    %p52 = por %p50, %p51
    %p53 = scmp.ne.s32.totalorder %s39, %s40
    %p54 = scmp.eq.s32.totalorder %s16, 1
    %p55 = por %p53, %p54
    %p57 = scmp.ne.s32.totalorder %s40, %s56
    %p58 = scmp.eq.s32.totalorder %s16, 0
    %p59 = por %p57, %p58
    %s61 = sadd.s32 %s60, 1
    %p64 = scmp.eq.s32.totalorder %s10, 1
    %p65 = scmp.ne.s32.totalorder %s60, %s62
    %p66 = scmp.eq.s32.totalorder %s10, 0
    %p67 = por %p65, %p66
    %p68 = scmp.ne.s32.totalorder %s60, %s62
    %p69 = scmp.eq.s32.totalorder %s15, 1
    %p70 = por %p68, %p69
    %p71 = scmp.ne.s32.totalorder %s62, %s63
    %p72 = scmp.eq.s32.totalorder %s15, 0
    %p73 = por %p71, %p72
    %p74 = scmp.ne.s32.totalorder %s62, %s63
    %p75 = scmp.eq.s32.totalorder %s16, 1
    %p76 = por %p74, %p75
    %p78 = scmp.ne.s32.totalorder %s63, %s77
    %p79 = scmp.eq.s32.totalorder %s16, 0
    %p80 = por %p78, %p79
    %s81 = smul.u32 %s18, %s17
    %s82 = smul.u32 %s25, %s29
    %s83 = ssub.s32 %s81, %s82
    %p84 = scmp.eq.s32.totalorder %s83, 0
    %s86 = sadd.s32 %s85, 1
    %s87 = scalar_select %p84, %s85, %s86
    %p90 = pneg %p84
    %p91 = scmp.eq.s32.totalorder %s10, 1
    %p92 = por %p90, %p91
    %p93 = scmp.ne.s32.totalorder %s85, %s88
    %p94 = scmp.eq.s32.totalorder %s10, 0
    %p95 = por %p93, %p94
    %p96 = scmp.ne.s32.totalorder %s85, %s88
    %p97 = scmp.eq.s32.totalorder %s15, 1
    %p98 = por %p96, %p97
    %p99 = scmp.ne.s32.totalorder %s88, %s89
    %p100 = scmp.eq.s32.totalorder %s15, 0
    %p101 = por %p99, %p100
    %p102 = scmp.ne.s32.totalorder %s88, %s89
    %p103 = scmp.eq.s32.totalorder %s16, 1
    %p104 = por %p102, %p103
    %p106 = scmp.ne.s32.totalorder %s89, %s105
    %p107 = scmp.eq.s32.totalorder %s16, 0
    %p108 = por %p106, %p107
    %s110 = sadd.s32 %s109, 1
    %p113 = scmp.eq.s32.totalorder %s10, 1
    %p114 = scmp.ne.s32.totalorder %s109, %s111
    %p115 = scmp.eq.s32.totalorder %s10, 0
    %p116 = por %p114, %p115
    %p117 = scmp.ne.s32.totalorder %s109, %s111
    %p118 = scmp.eq.s32.totalorder %s15, 1
    %p119 = por %p117, %p118
    %p120 = scmp.ne.s32.totalorder %s111, %s112
    %p121 = scmp.eq.s32.totalorder %s15, 0
    %p122 = por %p120, %p121
    %p123 = scmp.ne.s32.totalorder %s111, %s112
    %p124 = scmp.eq.s32.totalorder %s16, 1
    %p125 = por %p123, %p124
    %p127 = scmp.ne.s32.totalorder %s112, %s126
    %p128 = scmp.eq.s32.totalorder %s16, 0
    %p129 = por %p127, %p128
    %p130 = scmp.le.s32.totalorder 1, %s10
    %p131 = scmp.lt.s32.totalorder %s10, 3
    %p132 = pnand %p130, %p131
    %p133 = pneg %p132
    // Predicated region
    $region9: #{cnn_forward.11} parent=5 // pred_check
      _
    $region10: #{cnn_forward.11} parent=5 // pred_check_branch
      %135 = sbr.rel (%p132) target = $region12
    $region11: #{cnn_forward.11} parent=5 // pred_region
      %s136 = ssub.s32 %s10, 1
      // Predicated region
      $region13: #{cnn_forward.11} parent=11 // pred_check
        %p137 = pneg %p73
      $region14: #{cnn_forward.11} parent=11 // pred_check_branch
        %139 = sbr.rel (%p137) target = $region16
      $region15: #{cnn_forward.11} parent=11 // pred_region
        _
      $region16: #{cnn_forward.11} parent=11 // pred_fallthru
        _
    $region12: #{cnn_forward.11} parent=5 // pred_fallthru
      _
    %p140 = scmp.lt.s32.totalorder %s10, 2
    // Predicated region
    $region17: #{cnn_forward.11} parent=5 // pred_check
      %p141 = pneg %p140
    $region18: #{cnn_forward.11} parent=5 // pred_check_branch
      %143 = sbr.rel (%p141) target = $region20
    $region19: #{cnn_forward.11} parent=5 // pred_region
      // Predicated region
      $region21: #{cnn_forward.11} parent=19 // pred_check
        %p144 = pneg %p46
      $region22: #{cnn_forward.11} parent=19 // pred_check_branch
        %146 = sbr.rel (%p144) target = $region24
      $region23: #{cnn_forward.11} parent=19 // pred_region
        %s147 = ssub.s32 1, %s17
        %s148 = smul.u32 %s18, %s147
        %s149 = smul.u32 2, %s148
        %p150 = scmp.lt.s32.totalorder %s149, 1
        %s151 = scalar_select %p150, %s149, 1
        %s152 = smul.addr %s151, 9
        %s153 = smul.addr %s152, 4
        %s154 = scalar_lea.vmem %s0, %s153
        %s155 = ssub.s32 1, %s17
        %s156 = smul.u32 %s18, %s155
        %s157 = smul.u32 2, %s156
      $region24: #{cnn_forward.11} parent=19 // pred_fallthru
        _
    $region20: #{cnn_forward.11} parent=5 // pred_fallthru
      _
    %p158 = scmp.le.s32.totalorder 1, %s10
    %p159 = scmp.lt.s32.totalorder %s10, 3
    %p160 = pnand %p158, %p159
    %p161 = pneg %p160
    // Predicated region
    $region25: #{cnn_forward.11} parent=5 // pred_check
      _
    $region26: #{cnn_forward.11} parent=5 // pred_check_branch
      %163 = sbr.rel (%p160) target = $region28
    $region27: #{cnn_forward.11} parent=5 // pred_region
      %s164 = ssub.s32 %s10, 1
      %s165 = ssub.s32 1, %s19
      %s166 = smul.u32 %s20, %s165
      %s167 = smul.u32 2, %s166
      %p168 = scmp.lt.s32.totalorder %s167, 1
      %s169 = scalar_select %p168, %s167, 1
      %s170 = smul.addr %s169, 9
      %s171 = smul.addr %s170, 4
      %s172 = scalar_lea.vmem %s0, %s171
      %p173 = pneg %p52
      %p174 = pneg %p49
      %p175 = pneg %p73
      %p176 = pneg %p70
      %p177 = pneg %p101
      %p178 = pneg %p98
      %s179 = smul.u32 %s20, %s19
      %s180 = smul.u32 2, %s179
      %p181 = scmp.lt.s32.totalorder %s180, 1
      %s182 = scalar_select %p181, %s180, 1
      %s183 = smul.addr %s182, 4
      %s184 = scalar_lea.vmem %s2, %s183
      %p185 = pneg %p122
      %p186 = pneg %p119
      %s187 = ssub.s32 1, %s19
      %s188 = smul.u32 %s20, %s187
      %s189 = smul.u32 2, %s188
      %p190 = scmp.lt.s32.totalorder %s189, 1
      %s191 = scalar_select %p190, %s189, 1
      %s192 = smul.addr %s191, 9
      %s193 = smul.addr %s192, 4
      %s194 = scalar_lea.vmem %s0, %s193
      %s195 = ssub.s32 1, %s19
      %s196 = smul.u32 %s20, %s195
      %s197 = smul.u32 2, %s196
      %s198 = smul.u32 %s20, %s19
      %s199 = smul.u32 2, %s198
      %p200 = scmp.lt.s32.totalorder %s199, 1
      %s201 = scalar_select %p200, %s199, 1
      %s202 = smul.addr %s201, 4
      %s203 = scalar_lea.vmem %s2, %s202
      %s204 = smul.u32 %s20, %s19
      %s205 = smul.u32 2, %s204
      %p207 = scmp.eq.s32.totalorder %s19, 0
      // Predicated region
      $region29: #{cnn_forward.11} parent=27 // pred_check
        %p208 = pneg %p207
      $region30: #{cnn_forward.11} parent=27 // pred_check_branch
        %210 = sbr.rel (%p208) target = $region32
      $region31: #{cnn_forward.11} parent=27 // pred_region
        %p211 = scmp.eq.s32.totalorder %s20, 0
        // Predicated region
        $region33: #{cnn_forward.11} parent=31 // pred_check
          %p212 = pneg %p211
        $region34: #{cnn_forward.11} parent=31 // pred_check_branch
          %214 = sbr.rel (%p212) target = $region36
        $region35: #{cnn_forward.11} parent=31 // pred_region
          %215 = vst [vmem:[#allocation3] sm:$0x3] 0.0
        $region36: #{cnn_forward.11} parent=31 // pred_fallthru
          _
        %v216 = vld [vmem:[%s194] sm:$0xff]
        %v217 = vld [vmem:[%s194 + $0x8] sm:$0xff]
        %v218 = vld [vmem:[%s194 + $0x10] sm:$0xff]
        %v219 = vld [vmem:[%s194 + $0x18] sm:$0xff]
        %v220 = vld [vmem:[%s194 + $0x20] sm:$0xf]
        %v221 = vld [vmem:[%s194 + $0x24] sm:$0xff]
        %v222 = vld [vmem:[%s194 + $0x2c] sm:$0xff]
        %v223 = vld [vmem:[%s194 + $0x34] sm:$0xff]
        %v224 = vld [vmem:[%s194 + $0x3c] sm:$0xff]
        %v225 = vld [vmem:[%s194 + $0x44] sm:$0xf]
        %v226 = vld [vmem:[%s1] sm:$0xf]
        %v227 = vld [vmem:[%s1 + $0x4] sm:$0xf]
        %v228 = vld [vmem:[%s1 + $0x8] sm:$0xf]
        %v229 = vld [vmem:[%s1 + $0xc] sm:$0xf]
        %v230 = vld [vmem:[%s1 + $0x10] sm:$0xf]
        %v231 = vld [vmem:[%s1 + $0x14] sm:$0xf]
        %v232 = vld [vmem:[%s1 + $0x18] sm:$0xf]
        %v233 = vld [vmem:[%s1 + $0x1c] sm:$0xf]
        %v234 = vld [vmem:[%s1 + $0x20] sm:$0xf]
        %v235 = vld [vmem:[%s1 + $0x24] sm:$0xf]
        %v236 = vld [vmem:[%s1 + $0x28] sm:$0xf]
        %v237 = vld [vmem:[%s1 + $0x2c] sm:$0xf]
        %v238 = vld [vmem:[%s1 + $0x30] sm:$0xf]
        %v239 = vld [vmem:[%s1 + $0x34] sm:$0xf]
        %v240 = vld [vmem:[%s1 + $0x38] sm:$0xf]
        %v241 = vld [vmem:[%s1 + $0x3c] sm:$0xf]
        %v242 = vld [vmem:[%s1 + $0x40] sm:$0xf]
        %v243 = vld [vmem:[%s1 + $0x44] sm:$0xf]
        %v244 = vld [vmem:[%s1 + $0x48] sm:$0xf]
        %v245 = vld [vmem:[%s1 + $0x4c] sm:$0xf]
        %v246 = vld [vmem:[%s1 + $0x50] sm:$0xf]
        %v247 = vld [vmem:[%s1 + $0x54] sm:$0xf]
        %v248 = vld [vmem:[%s1 + $0x58] sm:$0xf]
        %v249 = vld [vmem:[%s1 + $0x5c] sm:$0xf]
        %v250 = vld [vmem:[%s1 + $0x60] sm:$0xf]
        %v251 = vld [vmem:[%s1 + $0x64] sm:$0xf]
        %v252 = vld [vmem:[%s1 + $0x68] sm:$0xf]
        %v253 = vld [vmem:[%s1 + $0x6c] sm:$0xf]
        %v254 = vld [vmem:[%s1 + $0x70] sm:$0xf]
        %v255 = vld [vmem:[%s1 + $0x74] sm:$0xf]
        %v256 = vld [vmem:[%s1 + $0x78] sm:$0xf]
        %v257 = vld [vmem:[%s1 + $0x7c] sm:$0xf]
        %v258 = vld [vmem:[%s1 + $0x80] sm:$0xf]
        %v259 = vld [vmem:[%s1 + $0x84] sm:$0xf]
        %v260 = vld [vmem:[%s1 + $0x88] sm:$0xf]
        %v261 = vld [vmem:[%s1 + $0x8c] sm:$0xf]
        %v262 = vld [vmem:[%s1 + $0x90] sm:$0xf]
        %v263 = vld [vmem:[%s1 + $0x94] sm:$0xf]
        %v264 = vld [vmem:[%s1 + $0x98] sm:$0xf]
        %v265 = vld [vmem:[%s1 + $0x9c] sm:$0xf]
        %v266 = vld [vmem:[%s1 + $0xa0] sm:$0xf]
        %v267 = vld [vmem:[%s1 + $0xa4] sm:$0xf]
        %v268 = vld [vmem:[%s1 + $0xa8] sm:$0xf]
        %v269 = vld [vmem:[%s1 + $0xac] sm:$0xf]
        %v270 = vld [vmem:[%s1 + $0xb0] sm:$0xf]
        %v271 = vld [vmem:[%s1 + $0xb4] sm:$0xf]
        %v272 = vld [vmem:[%s1 + $0xb8] sm:$0xf]
        %v273 = vld [vmem:[%s1 + $0xbc] sm:$0xf]
        %v274 = vld [vmem:[%s1 + $0xc0] sm:$0xf]
        %v275 = vld [vmem:[%s1 + $0xc4] sm:$0xf]
        %v276 = vld [vmem:[%s1 + $0xc8] sm:$0xf]
        %v277 = vld [vmem:[%s1 + $0xcc] sm:$0xf]
        %v278 = vld [vmem:[%s1 + $0xd0] sm:$0xf]
        %v279 = vld [vmem:[%s1 + $0xd4] sm:$0xf]
        %v280 = vld [vmem:[%s1 + $0xd8] sm:$0xf]
        %v281 = vld [vmem:[%s1 + $0xdc] sm:$0xf]
        %v282 = vld [vmem:[%s1 + $0xe0] sm:$0xf]
        %v283 = vld [vmem:[%s1 + $0xe4] sm:$0xf]
        %v284 = vld [vmem:[%s1 + $0xe8] sm:$0xf]
        %v285 = vld [vmem:[%s1 + $0xec] sm:$0xf]
        %v286 = vld [vmem:[%s1 + $0xf0] sm:$0xf]
        %v287 = vld [vmem:[%s1 + $0xf4] sm:$0xf]
        %v288 = vld [vmem:[%s1 + $0xf8] sm:$0xf]
        %v289 = vld [vmem:[%s1 + $0xfc] sm:$0xf]
        %v290 = vld [vmem:[%s1 + $0x100] sm:$0xf]
        %v291 = vld [vmem:[%s1 + $0x104] sm:$0xf]
        %v292 = vld [vmem:[%s1 + $0x108] sm:$0xf]
        %v293 = vld [vmem:[%s1 + $0x10c] sm:$0xf]
        %v294 = vld [vmem:[%s1 + $0x110] sm:$0xf]
        %v295 = vld [vmem:[%s1 + $0x114] sm:$0xf]
        %v296 = vld [vmem:[%s1 + $0x118] sm:$0xf]
        %v297 = vld [vmem:[%s1 + $0x11c] sm:$0xf]
        %v298 = vld [vmem:[%s1 + $0x120] sm:$0xf]
        %v299 = vld [vmem:[%s1 + $0x124] sm:$0xf]
        %v300 = vld [vmem:[%s1 + $0x128] sm:$0xf]
        %v301 = vld [vmem:[%s1 + $0x12c] sm:$0xf]
        %v302 = vld [vmem:[%s1 + $0x130] sm:$0xf]
        %v303 = vld [vmem:[%s1 + $0x134] sm:$0xf]
        %v304 = vld [vmem:[%s1 + $0x138] sm:$0xf]
        %v305 = vld [vmem:[%s1 + $0x13c] sm:$0xf]
        %v306 = vld [vmem:[%s1 + $0x140] sm:$0xf]
        %v307 = vld [vmem:[%s1 + $0x144] sm:$0xf]
        %v308 = vld [vmem:[%s1 + $0x148] sm:$0xf]
        %v309 = vld [vmem:[%s1 + $0x14c] sm:$0xf]
        %v310 = vld [vmem:[%s1 + $0x150] sm:$0xf]
        %v311 = vld [vmem:[%s1 + $0x154] sm:$0xf]
        %v312 = vld [vmem:[%s1 + $0x158] sm:$0xf]
        %v313 = vld [vmem:[%s1 + $0x15c] sm:$0xf]
        %v314 = vld [vmem:[%s1 + $0x160] sm:$0xf]
        %v315 = vld [vmem:[%s1 + $0x164] sm:$0xf]
        %v316 = vld [vmem:[%s1 + $0x168] sm:$0xf]
        %v317 = vld [vmem:[%s1 + $0x16c] sm:$0xf]
        %v318 = vld [vmem:[%s1 + $0x170] sm:$0xf]
        %v319 = vld [vmem:[%s1 + $0x174] sm:$0xf]
        %v320 = vld [vmem:[%s1 + $0x178] sm:$0xf]
        %v321 = vld [vmem:[%s1 + $0x17c] sm:$0xf]
        %v322 = vld [vmem:[%s1 + $0x180] sm:$0xf]
        %v323 = vld [vmem:[%s1 + $0x184] sm:$0xf]
        %v324 = vld [vmem:[%s1 + $0x188] sm:$0xf]
        %v325 = vld [vmem:[%s1 + $0x18c] sm:$0xf]
        %v326 = vld [vmem:[%s1 + $0x190] sm:$0xf]
        %v327 = vld [vmem:[%s1 + $0x194] sm:$0xf]
        %v328 = vld [vmem:[%s1 + $0x198] sm:$0xf]
        %v329 = vld [vmem:[%s1 + $0x19c] sm:$0xf]
        %v330 = vld [vmem:[%s1 + $0x1a0] sm:$0xf]
        %v331 = vld [vmem:[%s1 + $0x1a4] sm:$0xf]
        %v332 = vld [vmem:[%s1 + $0x1a8] sm:$0xf]
        %v333 = vld [vmem:[%s1 + $0x1ac] sm:$0xf]
        %v334 = vld [vmem:[%s1 + $0x1b0] sm:$0xf]
        %v335 = vld [vmem:[%s1 + $0x1b4] sm:$0xf]
        %v336 = vld [vmem:[%s1 + $0x1b8] sm:$0xf]
        %v337 = vld [vmem:[%s1 + $0x1bc] sm:$0xf]
        %v338 = vld [vmem:[%s1 + $0x1c0] sm:$0xf]
        %v339 = vld [vmem:[%s1 + $0x1c4] sm:$0xf]
        %v340 = vld [vmem:[%s1 + $0x1c8] sm:$0xf]
        %v341 = vld [vmem:[%s1 + $0x1cc] sm:$0xf]
        %v342 = vld [vmem:[%s1 + $0x1d0] sm:$0xf]
        %v343 = vld [vmem:[%s1 + $0x1d4] sm:$0xf]
        %v344 = vld [vmem:[%s1 + $0x1d8] sm:$0xf]
        %v345 = vld [vmem:[%s1 + $0x1dc] sm:$0xf]
        %v346 = vld [vmem:[%s1 + $0x1e0] sm:$0xf]
        %v347 = vld [vmem:[%s1 + $0x1e4] sm:$0xf]
        %v348 = vld [vmem:[%s1 + $0x1e8] sm:$0xf]
        %v349 = vld [vmem:[%s1 + $0x1ec] sm:$0xf]
        %v350 = vld [vmem:[%s1 + $0x1f0] sm:$0xf]
        %v351 = vld [vmem:[%s1 + $0x1f4] sm:$0xf]
        %v352 = vld [vmem:[%s1 + $0x1f8] sm:$0xf]
        %v353 = vld [vmem:[%s1 + $0x1fc] sm:$0xf]
        %v354 = vld [vmem:[%s1 + $0x200] sm:$0xf]
        %v355 = vld [vmem:[%s1 + $0x204] sm:$0xf]
        %v356 = vld [vmem:[%s1 + $0x208] sm:$0xf]
        %v357 = vld [vmem:[%s1 + $0x20c] sm:$0xf]
        %v358 = vld [vmem:[%s1 + $0x210] sm:$0xf]
        %v359 = vld [vmem:[%s1 + $0x214] sm:$0xf]
        %v360 = vld [vmem:[%s1 + $0x218] sm:$0xf]
        %v361 = vld [vmem:[%s1 + $0x21c] sm:$0xf]
        %v362 = vld [vmem:[%s1 + $0x220] sm:$0xf]
        %v363 = vld [vmem:[%s1 + $0x224] sm:$0xf]
        %v364 = vld [vmem:[%s1 + $0x228] sm:$0xf]
        %v365 = vld [vmem:[%s1 + $0x22c] sm:$0xf]
        %v366 = vld [vmem:[%s1 + $0x230] sm:$0xf]
        %v367 = vld [vmem:[%s1 + $0x234] sm:$0xf]
        %v368 = vld [vmem:[%s1 + $0x238] sm:$0xf]
        %v369 = vld [vmem:[%s1 + $0x23c] sm:$0xf]
        %v380 = vunpack.c.l.b16 %v216
        %v381 = vunpack.c.h.b16 %v216
        %v382 = vunpack.c.l.b16 %v217
        %v383 = vunpack.c.h.b16 %v217
        %v384 = vunpack.c.l.b16 %v218
        %v385 = vunpack.c.h.b16 %v218
        %v386 = vunpack.c.l.b16 %v219
        %v387 = vunpack.c.h.b16 %v219
        %v388 = vunpack.c.l.b16 %v220
        %v389 = vunpack.c.l.b16 %v221
        %v390 = vunpack.c.h.b16 %v221
        %v391 = vunpack.c.l.b16 %v222
        %v392 = vunpack.c.h.b16 %v222
        %v393 = vunpack.c.l.b16 %v223
        %v394 = vunpack.c.h.b16 %v223
        %v395 = vunpack.c.l.b16 %v224
        %v396 = vunpack.c.h.b16 %v224
        %v397 = vunpack.c.l.b16 %v225
        %v398 = vpack.c.b16 %v389, %v380
        %v399 = vpack.c.b16 %v390, %v381
        %v400 = vpack.c.b16 %v391, %v382
        %v401 = vpack.c.b16 %v392, %v383
        %v402 = vpack.c.b16 %v393, %v384
        %v403 = vpack.c.b16 %v394, %v385
        %v404 = vpack.c.b16 %v395, %v386
        %v405 = vpack.c.b16 %v396, %v387
        %v406 = vpack.c.b16 %v397, %v388
        %v560 = vunpack.c.l.b16 %v226
        %v561 = vunpack.c.l.b16 %v227
        %v562 = vunpack.c.l.b16 %v228
        %v563 = vunpack.c.l.b16 %v229
        %v564 = vunpack.c.l.b16 %v230
        %v565 = vunpack.c.l.b16 %v231
        %v566 = vunpack.c.l.b16 %v232
        %v567 = vunpack.c.l.b16 %v233
        %v568 = vunpack.c.l.b16 %v234
        %v569 = vunpack.c.l.b16 %v235
        %v570 = vunpack.c.l.b16 %v236
        %v571 = vunpack.c.l.b16 %v237
        %v572 = vunpack.c.l.b16 %v238
        %v573 = vunpack.c.l.b16 %v239
        %v574 = vunpack.c.l.b16 %v240
        %v575 = vunpack.c.l.b16 %v241
        %v576 = vunpack.c.l.b16 %v242
        %v577 = vunpack.c.l.b16 %v243
        %v578 = vunpack.c.l.b16 %v244
        %v579 = vunpack.c.l.b16 %v245
        %v580 = vunpack.c.l.b16 %v246
        %v581 = vunpack.c.l.b16 %v247
        %v582 = vunpack.c.l.b16 %v248
        %v583 = vunpack.c.l.b16 %v249
        %v584 = vunpack.c.l.b16 %v250
        %v585 = vunpack.c.l.b16 %v251
        %v586 = vunpack.c.l.b16 %v252
        %v587 = vunpack.c.l.b16 %v253
        %v588 = vunpack.c.l.b16 %v254
        %v589 = vunpack.c.l.b16 %v255
        %v590 = vunpack.c.l.b16 %v256
        %v591 = vunpack.c.l.b16 %v257
        %v592 = vunpack.c.l.b16 %v258
        %v593 = vunpack.c.l.b16 %v259
        %v594 = vunpack.c.l.b16 %v260
        %v595 = vunpack.c.l.b16 %v261
        %v596 = vunpack.c.l.b16 %v262
        %v597 = vunpack.c.l.b16 %v263
        %v598 = vunpack.c.l.b16 %v264
        %v599 = vunpack.c.l.b16 %v265
        %v600 = vunpack.c.l.b16 %v266
        %v601 = vunpack.c.l.b16 %v267
        %v602 = vunpack.c.l.b16 %v268
        %v603 = vunpack.c.l.b16 %v269
        %v604 = vunpack.c.l.b16 %v270
        %v605 = vunpack.c.l.b16 %v271
        %v606 = vunpack.c.l.b16 %v272
        %v607 = vunpack.c.l.b16 %v273
        %v608 = vunpack.c.l.b16 %v274
        %v609 = vunpack.c.l.b16 %v275
        %v610 = vunpack.c.l.b16 %v276
        %v611 = vunpack.c.l.b16 %v277
        %v612 = vunpack.c.l.b16 %v278
        %v613 = vunpack.c.l.b16 %v279
        %v614 = vunpack.c.l.b16 %v280
        %v615 = vunpack.c.l.b16 %v281
        %v616 = vunpack.c.l.b16 %v282
        %v617 = vunpack.c.l.b16 %v283
        %v618 = vunpack.c.l.b16 %v284
        %v619 = vunpack.c.l.b16 %v285
        %v620 = vunpack.c.l.b16 %v286
        %v621 = vunpack.c.l.b16 %v287
        %v622 = vunpack.c.l.b16 %v288
        %v623 = vunpack.c.l.b16 %v289
        %v624 = vunpack.c.l.b16 %v290
        %v625 = vunpack.c.l.b16 %v291
        %v626 = vunpack.c.l.b16 %v292
        %v627 = vunpack.c.l.b16 %v293
        %v628 = vunpack.c.l.b16 %v294
        %v629 = vunpack.c.l.b16 %v295
        %v630 = vunpack.c.l.b16 %v296
        %v631 = vunpack.c.l.b16 %v297
        %v632 = vunpack.c.l.b16 %v298
        %v633 = vunpack.c.l.b16 %v299
        %v634 = vunpack.c.l.b16 %v300
        %v635 = vunpack.c.l.b16 %v301
        %v636 = vunpack.c.l.b16 %v302
        %v637 = vunpack.c.l.b16 %v303
        %v638 = vunpack.c.l.b16 %v304
        %v639 = vunpack.c.l.b16 %v305
        %v640 = vunpack.c.l.b16 %v306
        %v641 = vunpack.c.l.b16 %v307
        %v642 = vunpack.c.l.b16 %v308
        %v643 = vunpack.c.l.b16 %v309
        %v644 = vunpack.c.l.b16 %v310
        %v645 = vunpack.c.l.b16 %v311
        %v646 = vunpack.c.l.b16 %v312
        %v647 = vunpack.c.l.b16 %v313
        %v648 = vunpack.c.l.b16 %v314
        %v649 = vunpack.c.l.b16 %v315
        %v650 = vunpack.c.l.b16 %v316
        %v651 = vunpack.c.l.b16 %v317
        %v652 = vunpack.c.l.b16 %v318
        %v653 = vunpack.c.l.b16 %v319
        %v654 = vunpack.c.l.b16 %v320
        %v655 = vunpack.c.l.b16 %v321
        %v656 = vunpack.c.l.b16 %v322
        %v657 = vunpack.c.l.b16 %v323
        %v658 = vunpack.c.l.b16 %v324
        %v659 = vunpack.c.l.b16 %v325
        %v660 = vunpack.c.l.b16 %v326
        %v661 = vunpack.c.l.b16 %v327
        %v662 = vunpack.c.l.b16 %v328
        %v663 = vunpack.c.l.b16 %v329
        %v664 = vunpack.c.l.b16 %v330
        %v665 = vunpack.c.l.b16 %v331
        %v666 = vunpack.c.l.b16 %v332
        %v667 = vunpack.c.l.b16 %v333
        %v668 = vunpack.c.l.b16 %v334
        %v669 = vunpack.c.l.b16 %v335
        %v670 = vunpack.c.l.b16 %v336
        %v671 = vunpack.c.l.b16 %v337
        %v672 = vunpack.c.l.b16 %v338
        %v673 = vunpack.c.l.b16 %v339
        %v674 = vunpack.c.l.b16 %v340
        %v675 = vunpack.c.l.b16 %v341
        %v676 = vunpack.c.l.b16 %v342
        %v677 = vunpack.c.l.b16 %v343
        %v678 = vunpack.c.l.b16 %v344
        %v679 = vunpack.c.l.b16 %v345
        %v680 = vunpack.c.l.b16 %v346
        %v681 = vunpack.c.l.b16 %v347
        %v682 = vunpack.c.l.b16 %v348
        %v683 = vunpack.c.l.b16 %v349
        %v684 = vunpack.c.l.b16 %v350
        %v685 = vunpack.c.l.b16 %v351
        %v686 = vunpack.c.l.b16 %v352
        %v687 = vunpack.c.l.b16 %v353
        %v688 = vunpack.c.l.b16 %v354
        %v689 = vunpack.c.l.b16 %v355
        %v690 = vunpack.c.l.b16 %v356
        %v691 = vunpack.c.l.b16 %v357
        %v692 = vunpack.c.l.b16 %v358
        %v693 = vunpack.c.l.b16 %v359
        %v694 = vunpack.c.l.b16 %v360
        %v695 = vunpack.c.l.b16 %v361
        %v696 = vunpack.c.l.b16 %v362
        %v697 = vunpack.c.l.b16 %v363
        %v698 = vunpack.c.l.b16 %v364
        %v699 = vunpack.c.l.b16 %v365
        %v700 = vunpack.c.l.b16 %v366
        %v701 = vunpack.c.l.b16 %v367
        %v702 = vunpack.c.l.b16 %v368
        %v703 = vunpack.c.l.b16 %v369
        %v704 = vpack.c.b16 %v561, %v560
        %v705 = vpack.c.b16 %v563, %v562
        %v706 = vpack.c.b16 %v565, %v564
        %v707 = vpack.c.b16 %v567, %v566
        %v708 = vpack.c.b16 %v569, %v568
        %v709 = vpack.c.b16 %v571, %v570
        %v710 = vpack.c.b16 %v573, %v572
        %v711 = vpack.c.b16 %v575, %v574
        %v712 = vpack.c.b16 %v577, %v576
        %v713 = vpack.c.b16 %v579, %v578
        %v714 = vpack.c.b16 %v581, %v580
        %v715 = vpack.c.b16 %v583, %v582
        %v716 = vpack.c.b16 %v585, %v584
        %v717 = vpack.c.b16 %v587, %v586
        %v718 = vpack.c.b16 %v589, %v588
        %v719 = vpack.c.b16 %v591, %v590
        %v720 = vpack.c.b16 %v593, %v592
        %v721 = vpack.c.b16 %v595, %v594
        %v722 = vpack.c.b16 %v597, %v596
        %v723 = vpack.c.b16 %v599, %v598
        %v724 = vpack.c.b16 %v601, %v600
        %v725 = vpack.c.b16 %v603, %v602
        %v726 = vpack.c.b16 %v605, %v604
        %v727 = vpack.c.b16 %v607, %v606
        %v728 = vpack.c.b16 %v609, %v608
        %v729 = vpack.c.b16 %v611, %v610
        %v730 = vpack.c.b16 %v613, %v612
        %v731 = vpack.c.b16 %v615, %v614
        %v732 = vpack.c.b16 %v617, %v616
        %v733 = vpack.c.b16 %v619, %v618
        %v734 = vpack.c.b16 %v621, %v620
        %v735 = vpack.c.b16 %v623, %v622
        %v736 = vpack.c.b16 %v625, %v624
        %v737 = vpack.c.b16 %v627, %v626
        %v738 = vpack.c.b16 %v629, %v628
        %v739 = vpack.c.b16 %v631, %v630
        %v740 = vpack.c.b16 %v633, %v632
        %v741 = vpack.c.b16 %v635, %v634
        %v742 = vpack.c.b16 %v637, %v636
        %v743 = vpack.c.b16 %v639, %v638
        %v744 = vpack.c.b16 %v641, %v640
        %v745 = vpack.c.b16 %v643, %v642
        %v746 = vpack.c.b16 %v645, %v644
        %v747 = vpack.c.b16 %v647, %v646
        %v748 = vpack.c.b16 %v649, %v648
        %v749 = vpack.c.b16 %v651, %v650
        %v750 = vpack.c.b16 %v653, %v652
        %v751 = vpack.c.b16 %v655, %v654
        %v752 = vpack.c.b16 %v657, %v656
        %v753 = vpack.c.b16 %v659, %v658
        %v754 = vpack.c.b16 %v661, %v660
        %v755 = vpack.c.b16 %v663, %v662
        %v756 = vpack.c.b16 %v665, %v664
        %v757 = vpack.c.b16 %v667, %v666
        %v758 = vpack.c.b16 %v669, %v668
        %v759 = vpack.c.b16 %v671, %v670
        %v760 = vpack.c.b16 %v673, %v672
        %v761 = vpack.c.b16 %v675, %v674
        %v762 = vpack.c.b16 %v677, %v676
        %v763 = vpack.c.b16 %v679, %v678
        %v764 = vpack.c.b16 %v681, %v680
        %v765 = vpack.c.b16 %v683, %v682
        %v766 = vpack.c.b16 %v685, %v684
        %v767 = vpack.c.b16 %v687, %v686
        %v768 = vpack.c.b16 %v689, %v688
        %v769 = vpack.c.b16 %v691, %v690
        %v770 = vpack.c.b16 %v693, %v692
        %v771 = vpack.c.b16 %v695, %v694
        %v772 = vpack.c.b16 %v697, %v696
        %v773 = vpack.c.b16 %v699, %v698
        %v774 = vpack.c.b16 %v701, %v700
        %v775 = vpack.c.b16 %v703, %v702
        %848 = vmatprep.subr.bf16.mxu0 0
        %849 = vmatpush1.bf16.msra.mxu0 %v704
        %850 = vmatprep.subr.bf16.mxu0 0
        %851 = vmatpush1.bf16.msra.mxu0 %v705
        %852 = vmatprep.subr.bf16.mxu0 0
        %853 = vmatpush1.bf16.msra.mxu0 %v706
        %854 = vmatprep.subr.bf16.mxu0 0
        %855 = vmatpush1.bf16.msra.mxu0 %v707
        %856 = vmatprep.subr.bf16.mxu0 0
        %857 = vmatpush1.bf16.msra.mxu0 %v708
        %858 = vmatprep.subr.bf16.mxu0 0
        %859 = vmatpush1.bf16.msra.mxu0 %v709
        %860 = vmatprep.subr.bf16.mxu0 0
        %861 = vmatpush1.bf16.msra.mxu0 %v710
        %862 = vmatprep.subr.bf16.mxu0 0
        %863 = vmatpush1.bf16.msra.mxu0 %v711
        %864 = vmatprep.subr.bf16.mxu0 0
        %865 = vmatpush1.bf16.msra.mxu0 %v712
        %866 = vmatprep.subr.bf16.mxu0 0
        %867 = vmatpush1.bf16.msra.mxu0 %v713
        %868 = vmatprep.subr.bf16.mxu0 0
        %869 = vmatpush1.bf16.msra.mxu0 %v714
        %870 = vmatprep.subr.bf16.mxu0 0
        %871 = vmatpush1.bf16.msra.mxu0 %v715
        %872 = vmatprep.subr.bf16.mxu0 0
        %873 = vmatpush1.bf16.msra.mxu0 %v716
        %874 = vmatprep.subr.bf16.mxu0 0
        %875 = vmatpush1.bf16.msra.mxu0 %v717
        %876 = vmatprep.subr.bf16.mxu0 0
        %877 = vmatpush1.bf16.msra.mxu0 %v718
        %878 = vmatprep.subr.bf16.mxu0 0
        %879 = vmatpush1.bf16.msra.mxu0 %v719
        %880 = vmatprep.mubr.bf16.mxu0 %v399
        %881 = vmatmul.mubr.bf16.gmra.mrb[0].mxu0 %v398
        %v882 = vpop.f32.mrb[0].mxu0
        %v883 = vadd.f32 0.0, %v882
        %v884 = vpop.f32.mrb[0].mxu0
        %v885 = vpop.f32.mrb[0].mxu0
        %v886 = vadd.f32 0.0, %v885
        %v887 = vpop.f32.mrb[0].mxu0
        %888 = vdwg.mxu0
        %889 = vmatprep.subr.bf16.mxu0 0
        %890 = vmatpush1.bf16.msra.mxu0 %v720
        %891 = vmatprep.subr.bf16.mxu0 0
        %892 = vmatpush1.bf16.msra.mxu0 %v721
        %893 = vmatprep.subr.bf16.mxu0 0
        %894 = vmatpush1.bf16.msra.mxu0 %v722
        %895 = vmatprep.subr.bf16.mxu0 0
        %896 = vmatpush1.bf16.msra.mxu0 %v723
        %897 = vmatprep.subr.bf16.mxu0 0
        %898 = vmatpush1.bf16.msra.mxu0 %v724
        %899 = vmatprep.subr.bf16.mxu0 0
        %900 = vmatpush1.bf16.msra.mxu0 %v725
        %901 = vmatprep.subr.bf16.mxu0 0
        %902 = vmatpush1.bf16.msra.mxu0 %v726
        %903 = vmatprep.subr.bf16.mxu0 0
        %904 = vmatpush1.bf16.msra.mxu0 %v727
        %905 = vmatprep.subr.bf16.mxu0 0
        %906 = vmatpush1.bf16.msra.mxu0 %v728
        %907 = vmatprep.subr.bf16.mxu0 0
        %908 = vmatpush1.bf16.msra.mxu0 %v729
        %909 = vmatprep.subr.bf16.mxu0 0
        %910 = vmatpush1.bf16.msra.mxu0 %v730
        %911 = vmatprep.subr.bf16.mxu0 0
        %912 = vmatpush1.bf16.msra.mxu0 %v731
        %913 = vmatprep.subr.bf16.mxu0 0
        %914 = vmatpush1.bf16.msra.mxu0 %v732
        %915 = vmatprep.subr.bf16.mxu0 0
        %916 = vmatpush1.bf16.msra.mxu0 %v733
        %917 = vmatprep.subr.bf16.mxu0 0
        %918 = vmatpush1.bf16.msra.mxu0 %v734
        %919 = vmatprep.subr.bf16.mxu0 0
        %920 = vmatpush1.bf16.msra.mxu0 %v735
        %921 = vmatprep.mubr.bf16.mxu0 %v401
        %922 = vmatmul.mubr.bf16.gmra.mrb[0].mxu0 %v400
        %v923 = vpop.f32.mrb[0].mxu0
        %v924 = vadd.f32 %v883, %v923
        %v925 = vpop.f32.mrb[0].mxu0
        %v926 = vpop.f32.mrb[0].mxu0
        %v927 = vadd.f32 %v886, %v926
        %v928 = vpop.f32.mrb[0].mxu0
        %929 = vdwg.mxu0
        %930 = vmatprep.subr.bf16.mxu0 0
        %931 = vmatpush1.bf16.msra.mxu0 %v736
        %932 = vmatprep.subr.bf16.mxu0 0
        %933 = vmatpush1.bf16.msra.mxu0 %v737
        %934 = vmatprep.subr.bf16.mxu0 0
        %935 = vmatpush1.bf16.msra.mxu0 %v738
        %936 = vmatprep.subr.bf16.mxu0 0
        %937 = vmatpush1.bf16.msra.mxu0 %v739
        %938 = vmatprep.subr.bf16.mxu0 0
        %939 = vmatpush1.bf16.msra.mxu0 %v740
        %940 = vmatprep.subr.bf16.mxu0 0
        %941 = vmatpush1.bf16.msra.mxu0 %v741
        %942 = vmatprep.subr.bf16.mxu0 0
        %943 = vmatpush1.bf16.msra.mxu0 %v742
        %944 = vmatprep.subr.bf16.mxu0 0
        %945 = vmatpush1.bf16.msra.mxu0 %v743
        %946 = vmatprep.subr.bf16.mxu0 0
        %947 = vmatpush1.bf16.msra.mxu0 %v744
        %948 = vmatprep.subr.bf16.mxu0 0
        %949 = vmatpush1.bf16.msra.mxu0 %v745
        %950 = vmatprep.subr.bf16.mxu0 0
        %951 = vmatpush1.bf16.msra.mxu0 %v746
        %952 = vmatprep.subr.bf16.mxu0 0
        %953 = vmatpush1.bf16.msra.mxu0 %v747
        %954 = vmatprep.subr.bf16.mxu0 0
        %955 = vmatpush1.bf16.msra.mxu0 %v748
        %956 = vmatprep.subr.bf16.mxu0 0
        %957 = vmatpush1.bf16.msra.mxu0 %v749
        %958 = vmatprep.subr.bf16.mxu0 0
        %959 = vmatpush1.bf16.msra.mxu0 %v750
        %960 = vmatprep.subr.bf16.mxu0 0
        %961 = vmatpush1.bf16.msra.mxu0 %v751
        %962 = vmatprep.mubr.bf16.mxu0 %v403
        %963 = vmatmul.mubr.bf16.gmra.mrb[0].mxu0 %v402
        %v964 = vpop.f32.mrb[0].mxu0
        %v965 = vadd.f32 %v924, %v964
        %v966 = vpop.f32.mrb[0].mxu0
        %v967 = vpop.f32.mrb[0].mxu0
        %v968 = vadd.f32 %v927, %v967
        %v969 = vpop.f32.mrb[0].mxu0
        %970 = vdwg.mxu0
        %971 = vmatprep.subr.bf16.mxu0 0
        %972 = vmatpush1.bf16.msra.mxu0 %v752
        %973 = vmatprep.subr.bf16.mxu0 0
        %974 = vmatpush1.bf16.msra.mxu0 %v753
        %975 = vmatprep.subr.bf16.mxu0 0
        %976 = vmatpush1.bf16.msra.mxu0 %v754
        %977 = vmatprep.subr.bf16.mxu0 0
        %978 = vmatpush1.bf16.msra.mxu0 %v755
        %979 = vmatprep.subr.bf16.mxu0 0
        %980 = vmatpush1.bf16.msra.mxu0 %v756
        %981 = vmatprep.subr.bf16.mxu0 0
        %982 = vmatpush1.bf16.msra.mxu0 %v757
        %983 = vmatprep.subr.bf16.mxu0 0
        %984 = vmatpush1.bf16.msra.mxu0 %v758
        %985 = vmatprep.subr.bf16.mxu0 0
        %986 = vmatpush1.bf16.msra.mxu0 %v759
        %987 = vmatprep.subr.bf16.mxu0 0
        %988 = vmatpush1.bf16.msra.mxu0 %v760
        %989 = vmatprep.subr.bf16.mxu0 0
        %990 = vmatpush1.bf16.msra.mxu0 %v761
        %991 = vmatprep.subr.bf16.mxu0 0
        %992 = vmatpush1.bf16.msra.mxu0 %v762
        %993 = vmatprep.subr.bf16.mxu0 0
        %994 = vmatpush1.bf16.msra.mxu0 %v763
        %995 = vmatprep.subr.bf16.mxu0 0
        %996 = vmatpush1.bf16.msra.mxu0 %v764
        %997 = vmatprep.subr.bf16.mxu0 0
        %998 = vmatpush1.bf16.msra.mxu0 %v765
        %999 = vmatprep.subr.bf16.mxu0 0
        %1000 = vmatpush1.bf16.msra.mxu0 %v766
        %1001 = vmatprep.subr.bf16.mxu0 0
        %1002 = vmatpush1.bf16.msra.mxu0 %v767
        %1003 = vmatprep.mubr.bf16.mxu0 %v405
        %1004 = vmatmul.mubr.bf16.gmra.mrb[0].mxu0 %v404
        %v1005 = vpop.f32.mrb[0].mxu0
        %v1006 = vadd.f32 %v965, %v1005
        %v1007 = vpop.f32.mrb[0].mxu0
        %v1008 = vpop.f32.mrb[0].mxu0
        %v1009 = vadd.f32 %v968, %v1008
        %v1010 = vpop.f32.mrb[0].mxu0
        %1011 = vdwg.mxu0
        %1012 = vmatprep.subr.bf16.mxu0 0
        %1013 = vmatpush1.bf16.msra.mxu0 %v768
        %1014 = vmatprep.subr.bf16.mxu0 0
        %1015 = vmatpush1.bf16.msra.mxu0 %v769
        %1016 = vmatprep.subr.bf16.mxu0 0
        %1017 = vmatpush1.bf16.msra.mxu0 %v770
        %1018 = vmatprep.subr.bf16.mxu0 0
        %1019 = vmatpush1.bf16.msra.mxu0 %v771
        %1020 = vmatprep.subr.bf16.mxu0 0
        %1021 = vmatpush1.bf16.msra.mxu0 %v772
        %1022 = vmatprep.subr.bf16.mxu0 0
        %1023 = vmatpush1.bf16.msra.mxu0 %v773
        %1024 = vmatprep.subr.bf16.mxu0 0
        %1025 = vmatpush1.bf16.msra.mxu0 %v774
        %1026 = vmatprep.subr.bf16.mxu0 0
        %1027 = vmatpush1.bf16.msra.mxu0 %v775
        %1028 = vmatprep.subr.bf16.mxu0 0
        %1029 = vmatpush1.bf16.msra.mxu0 0
        %1030 = vmatprep.subr.bf16.mxu0 0
        %1031 = vmatpush1.bf16.msra.mxu0 0
        %1032 = vmatprep.subr.bf16.mxu0 0
        %1033 = vmatpush1.bf16.msra.mxu0 0
        %1034 = vmatprep.subr.bf16.mxu0 0
        %1035 = vmatpush1.bf16.msra.mxu0 0
        %1036 = vmatprep.subr.bf16.mxu0 0
        %1037 = vmatpush1.bf16.msra.mxu0 0
        %1038 = vmatprep.subr.bf16.mxu0 0
        %1039 = vmatpush1.bf16.msra.mxu0 0
        %1040 = vmatprep.subr.bf16.mxu0 0
        %1041 = vmatpush1.bf16.msra.mxu0 0
        %1042 = vmatprep.subr.bf16.mxu0 0
        %1043 = vmatpush1.bf16.msra.mxu0 0
        %1044 = vmatprep.mubr.bf16.mxu0 0
        %1045 = vmatmul.mubr.bf16.gmra.mrb[0].mxu0 %v406
        %v1046 = vpop.f32.mrb[0].mxu0
        %v1047 = vadd.f32 %v1006, %v1046
        %v1048 = vpop.f32.mrb[0].mxu0
        %v1049 = vpop.f32.mrb[0].mxu0
        %v1050 = vadd.f32 %v1009, %v1049
        %v1051 = vpop.f32.mrb[0].mxu0
        %1052 = vdwg.mxu0
        %s1053 = smul.u32 %s20, 16
        %s1054 = scalar_lea.vmem [#allocation2], %s1053
        %1055 = vst [vmem:[%s1054] sm:$0xff] %v1047
        %1056 = vst [vmem:[%s1054 + $0x8] sm:$0xff] %v1050
        %v1057 = vld [vmem:[#allocation3] sm:$0x1]
        %v1058 = vadd.f32 %v1047, %v1050
        %v1059 = vrot.slane %v1058, 4
        %v1060 = vadd.f32 %v1058, %v1059
        %v1061 = vrot.slane %v1060, 2
        %v1062 = vadd.f32 %v1060, %v1061
        %v1063 = vrot.slane %v1062, 1
        %v1064 = vadd.f32 %v1062, %v1063
        %v1065 = vadd.f32 %v1057, %v1064
        %1066 = vst [vmem:[#allocation3] sm:$0x1] %v1065
        %v1067 = vld [vmem:[#allocation3 + $0x1] sm:$0x1]
        %v1068 = vmul.f32 %v1047, %v1047
        %v1069 = vmul.f32 %v1050, %v1050
        %v1070 = vadd.f32 %v1068, %v1069
        %v1071 = vrot.slane %v1070, 4
        %v1072 = vadd.f32 %v1070, %v1071
        %v1073 = vrot.slane %v1072, 2
        %v1074 = vadd.f32 %v1072, %v1073
        %v1075 = vrot.slane %v1074, 1
        %v1076 = vadd.f32 %v1074, %v1075
        %v1077 = vadd.f32 %v1067, %v1076
        %1078 = vst [vmem:[#allocation3 + $0x1] sm:$0x1] %v1077
      $region32: #{cnn_forward.11} parent=27 // pred_fallthru
        _
      %p1079 = scmp.eq.s32.totalorder %s19, 1
      // Predicated region
      $region37: #{cnn_forward.11} parent=27 // pred_check
        %p1080 = pneg %p1079
      $region38: #{cnn_forward.11} parent=27 // pred_check_branch
        %1082 = sbr.rel (%p1080) target = $region40
      $region39: #{cnn_forward.11} parent=27 // pred_region
        %p1083 = scmp.eq.s32.totalorder %s20, 0
        // Predicated region
        $region41: #{cnn_forward.11} parent=39 // pred_check
          %p1084 = pneg %p1083
        $region42: #{cnn_forward.11} parent=39 // pred_check_branch
          %1086 = sbr.rel (%p1084) target = $region44
        $region43: #{cnn_forward.11} parent=39 // pred_region
          %v1087 = vld [vmem:[#allocation3] sm:$0x1]
          %v1088 = vmul.f32 %v1087, 0.125
          %v1089 = vld [vmem:[#allocation3 + $0x1] sm:$0x1]
          %v1090 = vmul.f32 %v1089, 0.125
          %v1091 = vmul.f32 %v1088, %v1088
          %v1092 = vsub.f32 %v1090, %v1091
          %v1093 = vmax.f32 %v1092, 0.0
          %v1094 = vadd.f32 %v1093, 1e-05
          %v1095 = vrsqrt.pop %v1094
          %1096 = vst [vmem:[#allocation4] sm:$0x1] %v1095
          %v1097 = vsub.f32 0.0, %v1088
          %v1098 = vmul.f32 %v1097, %v1095
          %1099 = vst [vmem:[#allocation4 + $0x1] sm:$0x1] %v1098
          %1100 = vst [vmem:[#allocation3] sm:$0x3] 0.0
        $region44: #{cnn_forward.11} parent=39 // pred_fallthru
          _
        %s1101 = smul.u32 %s20, 16
        %s1102 = scalar_lea.vmem [#allocation2], %s1101
        %v1103 = vld [vmem:[%s1102] sm:$0xff]
        %v1104 = vld [vmem:[%s1102 + $0x8] sm:$0xff]
        %v1105 = vld [vmem:[#allocation4] sm:$0x1]
        %v1106 = vlaneseq
        %v1107 = vshrl.u32 %v1106, 7
        %v1108 = vsub.s32 0, %v1107
        %v1109 = vrot.slane %v1105, %v1108
        %v1110 = vmul.f32 %v1103, %v1109
        %v1111 = vmul.f32 %v1104, %v1109
        %v1112 = vld [vmem:[#allocation4 + $0x1] sm:$0x1]
        %v1113 = vlaneseq
        %v1114 = vshrl.u32 %v1113, 7
        %v1115 = vsub.s32 0, %v1114
        %v1116 = vrot.slane %v1112, %v1115
        %v1117 = vadd.f32 %v1110, %v1116
        %v1118 = vadd.f32 %v1111, %v1116
        %v1119 = vmax.f32 %v1117, 0.0
        %v1120 = vmax.f32 %v1118, 0.0
        %v1121 = vpack.c.bf16 %v1120, %v1119
        %v1123 = vunpack.c.l.b16 %v1121
        %v1124 = vunpack.c.h.b16 %v1121
        %v1125 = vpack.c.b16 %v1123, %v1123
        %v1126 = vpack.c.b16 %v1124, %v1124
        %1129 = vst [vmem:[%s203] sm:$0xf] %v1125
        %1130 = vst [vmem:[%s203 + $0x4] sm:$0xf] %v1126
        %v1131 = vlaneseq
        %v1132 = vshrl.u32 %v1131, 7
        %v1133 = vadd.s32 %v1132, 8
        %v1134 = vstv %s1101
        %v1135 = vadd.s32 %v1134, %v1132
        %v1136 = vadd.s32 %v1134, %v1133
        %vm1137 = vcmp.lt.s32.totalorder %v1135, 8
        %vm1138 = vcmp.lt.s32.totalorder %v1136, 8
        %v1139 = vsel %vm1137, 1, 0
        %v1140 = vsel %vm1138, 1, 0
        %vm1141 = vcmp.eq.s32.totalorder %v1139, 1
        %vm1142 = vcmp.eq.s32.totalorder %v1140, 1
        %v1143 = vsel %vm1141, %v1119, 0.0
        %v1144 = vsel %vm1142, %v1120, 0.0
        %v1145 = vld [vmem:[#allocation3] sm:$0x1]
        %v1146 = vadd.f32 %v1143, %v1144
        %v1147 = vrot.slane %v1146, 4
        %v1148 = vadd.f32 %v1146, %v1147
        %v1149 = vrot.slane %v1148, 2
        %v1150 = vadd.f32 %v1148, %v1149
        %v1151 = vrot.slane %v1150, 1
        %v1152 = vadd.f32 %v1150, %v1151
        %v1153 = vadd.f32 %v1145, %v1152
        %1154 = vst [vmem:[#allocation3] sm:$0x1] %v1153
        %v1155 = vld [vmem:[#allocation3 + $0x1] sm:$0x1]
        %v1156 = vmul.f32 %v1143, %v1143
        %v1157 = vmul.f32 %v1144, %v1144
        %v1158 = vadd.f32 %v1156, %v1157
        %v1159 = vrot.slane %v1158, 4
        %v1160 = vadd.f32 %v1158, %v1159
        %v1161 = vrot.slane %v1160, 2
        %v1162 = vadd.f32 %v1160, %v1161
        %v1163 = vrot.slane %v1162, 1
        %v1164 = vadd.f32 %v1162, %v1163
        %v1165 = vadd.f32 %v1155, %v1164
        %1166 = vst [vmem:[#allocation3 + $0x1] sm:$0x1] %v1165
        // Predicated region
        $region45: #{cnn_forward.11} parent=39 // pred_check
          %p1167 = pneg %p1083
        $region46: #{cnn_forward.11} parent=39 // pred_check_branch
          %1169 = sbr.rel (%p1167) target = $region48
        $region47: #{cnn_forward.11} parent=39 // pred_region
          %v1170 = vld [vmem:[#allocation3] sm:$0x1]
          %v1171 = vmul.f32 %v1170, 0.125
          %v1172 = vld [vmem:[#allocation3 + $0x1] sm:$0x1]
          %v1173 = vmul.f32 %v1172, 0.125
          %v1174 = vmul.f32 %v1171, %v1171
          %v1175 = vsub.f32 %v1173, %v1174
          %v1176 = vmax.f32 %v1175, 0.0
          %v1177 = vadd.f32 %v1176, 1e-05
          %v1178 = vrsqrt.pop %v1177
          %1179 = vst [vmem:[%s3] sm:$0x1] %v1178
          %v1180 = vsub.f32 0.0, %v1171
          %v1181 = vmul.f32 %v1180, %v1178
          %1182 = vst [vmem:[%s3 + $0x1] sm:$0x1] %v1181
        $region48: #{cnn_forward.11} parent=39 // pred_fallthru
          _
      $region40: #{cnn_forward.11} parent=27 // pred_fallthru
        _
      %s1183 = smul.u32 %s20, %s19
      %s1184 = smul.u32 2, %s1183
      %p1185 = scmp.lt.s32.totalorder %s1184, 1
      %s1186 = scalar_select %p1185, %s1184, 1
      %s1187 = smul.addr %s1186, 4
      %s1188 = scalar_lea.vmem %s2, %s1187
      // Predicated region
      $region49: #{cnn_forward.11} parent=27 // pred_check
        %p1189 = pneg %p98
      $region50: #{cnn_forward.11} parent=27 // pred_check_branch
        %1191 = sbr.rel (%p1189) target = $region52
      $region51: #{cnn_forward.11} parent=27 // pred_region
        %s1192 = smul.u32 %s20, %s19
        %s1193 = smul.u32 2, %s1192
      $region52: #{cnn_forward.11} parent=27 // pred_fallthru
        _
      // Predicated region
      $region53: #{cnn_forward.11} parent=27 // pred_check
        %p1194 = pneg %p119
      $region54: #{cnn_forward.11} parent=27 // pred_check_branch
        %1196 = sbr.rel (%p1194) target = $region56
      $region55: #{cnn_forward.11} parent=27 // pred_region
        _
      $region56: #{cnn_forward.11} parent=27 // pred_fallthru
        _
      // Predicated region
      $region57: #{cnn_forward.11} parent=27 // pred_check
        %p1197 = pneg %p119
      $region58: #{cnn_forward.11} parent=27 // pred_check_branch
        %1199 = sbr.rel (%p1197) target = $region60
      $region59: #{cnn_forward.11} parent=27 // pred_region
        _
      $region60: #{cnn_forward.11} parent=27 // pred_fallthru
        _
    $region28: #{cnn_forward.11} parent=5 // pred_fallthru
      _
    %p1200 = scmp.le.s32.totalorder 2, %s10
    // Predicated region
    $region61: #{cnn_forward.11} parent=5 // pred_check
      %p1201 = pneg %p1200
    $region62: #{cnn_forward.11} parent=5 // pred_check_branch
      %1203 = sbr.rel (%p1201) target = $region64
    $region63: #{cnn_forward.11} parent=5 // pred_region
      %s1204 = ssub.s32 %s10, 2
      // Predicated region
      $region65: #{cnn_forward.11} parent=63 // pred_check
        %p1205 = pneg %p104
      $region66: #{cnn_forward.11} parent=63 // pred_check_branch
        %1207 = sbr.rel (%p1205) target = $region68
      $region67: #{cnn_forward.11} parent=63 // pred_region
        %s1208 = smul.u32 %s22, %s21
        %s1209 = smul.u32 2, %s1208
        %p1210 = scmp.lt.s32.totalorder %s1209, 1
        %s1211 = scalar_select %p1210, %s1209, 1
        %s1212 = smul.addr %s1211, 4
        %s1213 = scalar_lea.vmem %s2, %s1212
      $region68: #{cnn_forward.11} parent=63 // pred_fallthru
        _
    $region64: #{cnn_forward.11} parent=5 // pred_fallthru
      _
  $region6: #{cnn_forward.11} parent=0 // loop_footer
    %s14 = sadd.s32 1, %s10
  $region7: #{cnn_forward.11} parent=0 // loop_footer_branch
    %9 = sbr.rel target = $region3
  $region8: #{cnn_forward.11} parent=0 // loop_exit
    _

// kernel: cnn_forward.12
$region0: #{cnn_forward.12}
  #allocation0 [shape = 'u32[]', space=smem, size = 0x4, offset = 0x4, fixed_abs, tag = 'smem constant byte address 0x4 - core index']
  #allocation1 [shape = 'u32[144,128]{1,0:T(1,128)}', space=vmem, size = 0x12000, scoped, tag = 'internal scratch']
  #allocation2 [shape = 'f32[2,128]{1,0:T(2,128)}', space=vmem, size = 0x400, scoped, tag = 'scratch operand']
  %s0 = inlined_call_operand.vmem [shape: bf16[4,16,512], index: 0, kind: input, shape index: {}]
  %s1 = inlined_call_operand.vmem [shape: bf16[4,512,128], index: 1, kind: input, shape index: {}]
  %s2 = inlined_call_operand.vmem [shape: f32[1,128], index: 2, kind: input, shape index: {}]
  %s3 = inlined_call_operand.vmem [shape: bf16[4,16,64], index: 3, kind: output, shape index: {0}]
  %s4 = inlined_call_operand.vmem [shape: f32[2,128], index: 4, kind: output, shape index: {1}]
  %5 = xla_tuple %s3, %s4
  %s6 = sld [smem:[#allocation0]]
  $region61: #{cnn_forward.12} parent=0
    _
  %s8 = ssub.s32 1, %s6
  %s9 = scalar_select 0, %s8, %s6
  loop: start=0, step=1, limit=6
  $region2: #{cnn_forward.12} parent=0 // loop_pre_header
    _
  $region3: #{cnn_forward.12} parent=0 // loop_header
    %s11 = sphi 0, %s15
    %p12 = scmp.ge.s32.totalorder %s11, 6
    %s18 = sphi 0, %s30
    %s19 = sphi 0, %s26
    %s20 = sphi 0, %s18
    %s21 = sphi 0, %s19
    %s22 = sphi 0, %s20
    %s23 = sphi 0, %s21
    %s35 = sphi 0, %s37
    %s38 = sphi 0, %s35
    %s39 = sphi 0, %s38
    %s55 = sphi 0, %s39
    %s61 = sphi 0, %s63
    %s64 = sphi 0, %s61
    %s65 = sphi 0, %s64
    %s81 = sphi 0, %s65
    %s85 = sphi 0, %s85
    %s87 = sphi 0, %s85
    %s88 = sphi 0, %s87
    %s102 = sphi 0, %s88
    %s110 = sphi 0, %s112
    %s113 = sphi 0, %s110
    %s114 = sphi 0, %s113
    %s130 = sphi 0, %s114
    %s134 = sphi 0, %s134
    %s136 = sphi 0, %s134
    %s137 = sphi 0, %s136
    %s151 = sphi 0, %s137
  $region4: #{cnn_forward.12} parent=0 // loop_header_branch
    %14 = sbr.rel (%p12) target = $region8
  $region5: #{cnn_forward.12} parent=0 // loop_body
    %s16 = ssub.s32 %s11, 1
    %s17 = ssub.s32 %s11, 2
    %s24 = sadd.s32 1, %s19
    %p25 = scmp.ge.s32.totalorder %s24, 1
    %s26 = scalar_select %p25, 0, %s24
    %s27 = sadd.s32 1, %s18
    %s28 = scalar_select %p25, %s27, %s18
    %p29 = scmp.ge.s32.totalorder %s28, 4
    %s30 = scalar_select %p29, 0, %s28
    %s31 = ssub.s32 %s18, %s30
    %s32 = ssub.s32 %s19, %s26
    %s33 = sor.u32 %s31, %s32
    %p34 = scmp.eq.s32.totalorder %s33, 0
    %s36 = sadd.s32 %s35, 1
    %s37 = scalar_select %p34, %s35, %s36
    %p40 = pneg %p34
    %p41 = scmp.eq.s32.totalorder %s11, 3
    %p42 = por %p40, %p41
    %p43 = scmp.ne.s32.totalorder %s35, %s38
    %p44 = scmp.eq.s32.totalorder %s11, 0
    %p45 = por %p43, %p44
    %p46 = scmp.ne.s32.totalorder %s35, %s38
    %p47 = scmp.eq.s32.totalorder %s16, 3
    %p48 = por %p46, %p47
    %p49 = scmp.ne.s32.totalorder %s38, %s39
    %p50 = scmp.eq.s32.totalorder %s16, 0
    %p51 = por %p49, %p50
    %p52 = scmp.ne.s32.totalorder %s38, %s39
    %p53 = scmp.eq.s32.totalorder %s17, 3
    %p54 = por %p52, %p53
    %p56 = scmp.ne.s32.totalorder %s39, %s55
    %p57 = scmp.eq.s32.totalorder %s17, 0
    %p58 = por %p56, %p57
    %s59 = ssub.s32 %s18, %s30
    %p60 = scmp.eq.s32.totalorder %s59, 0
    %s62 = sadd.s32 %s61, 1
    %s63 = scalar_select %p60, %s61, %s62
    %p66 = pneg %p60
    %p67 = scmp.eq.s32.totalorder %s11, 3
    %p68 = por %p66, %p67
    %p69 = scmp.ne.s32.totalorder %s61, %s64
    %p70 = scmp.eq.s32.totalorder %s11, 0
    %p71 = por %p69, %p70
    %p72 = scmp.ne.s32.totalorder %s61, %s64
    %p73 = scmp.eq.s32.totalorder %s16, 3
    %p74 = por %p72, %p73
    %p75 = scmp.ne.s32.totalorder %s64, %s65
    %p76 = scmp.eq.s32.totalorder %s16, 0
    %p77 = por %p75, %p76
    %p78 = scmp.ne.s32.totalorder %s64, %s65
    %p79 = scmp.eq.s32.totalorder %s17, 3
    %p80 = por %p78, %p79
    %p82 = scmp.ne.s32.totalorder %s65, %s81
    %p83 = scmp.eq.s32.totalorder %s17, 0
    %p84 = por %p82, %p83
    %s86 = sadd.s32 %s85, 1
    %p89 = scmp.eq.s32.totalorder %s11, 3
    %p90 = scmp.ne.s32.totalorder %s85, %s87
    %p91 = scmp.eq.s32.totalorder %s11, 0
    %p92 = por %p90, %p91
    %p93 = scmp.ne.s32.totalorder %s85, %s87
    %p94 = scmp.eq.s32.totalorder %s16, 3
    %p95 = por %p93, %p94
    %p96 = scmp.ne.s32.totalorder %s87, %s88
    %p97 = scmp.eq.s32.totalorder %s16, 0
    %p98 = por %p96, %p97
    %p99 = scmp.ne.s32.totalorder %s87, %s88
    %p100 = scmp.eq.s32.totalorder %s17, 3
    %p101 = por %p99, %p100
    %p103 = scmp.ne.s32.totalorder %s88, %s102
    %p104 = scmp.eq.s32.totalorder %s17, 0
    %p105 = por %p103, %p104
    %s106 = ssub.s32 %s18, %s30
    %s107 = ssub.s32 %s19, %s26
    %s108 = sor.u32 %s106, %s107
    %p109 = scmp.eq.s32.totalorder %s108, 0
    %s111 = sadd.s32 %s110, 1
    %s112 = scalar_select %p109, %s110, %s111
    %p115 = pneg %p109
    %p116 = scmp.eq.s32.totalorder %s11, 3
    %p117 = por %p115, %p116
    %p118 = scmp.ne.s32.totalorder %s110, %s113
    %p119 = scmp.eq.s32.totalorder %s11, 0
    %p120 = por %p118, %p119
    %p121 = scmp.ne.s32.totalorder %s110, %s113
    %p122 = scmp.eq.s32.totalorder %s16, 3
    %p123 = por %p121, %p122
    %p124 = scmp.ne.s32.totalorder %s113, %s114
    %p125 = scmp.eq.s32.totalorder %s16, 0
    %p126 = por %p124, %p125
    %p127 = scmp.ne.s32.totalorder %s113, %s114
    %p128 = scmp.eq.s32.totalorder %s17, 3
    %p129 = por %p127, %p128
    %p131 = scmp.ne.s32.totalorder %s114, %s130
    %p132 = scmp.eq.s32.totalorder %s17, 0
    %p133 = por %p131, %p132
    %s135 = sadd.s32 %s134, 1
    %p138 = scmp.eq.s32.totalorder %s11, 3
    %p139 = scmp.ne.s32.totalorder %s134, %s136
    %p140 = scmp.eq.s32.totalorder %s11, 0
    %p141 = por %p139, %p140
    %p142 = scmp.ne.s32.totalorder %s134, %s136
    %p143 = scmp.eq.s32.totalorder %s16, 3
    %p144 = por %p142, %p143
    %p145 = scmp.ne.s32.totalorder %s136, %s137
    %p146 = scmp.eq.s32.totalorder %s16, 0
    %p147 = por %p145, %p146
    %p148 = scmp.ne.s32.totalorder %s136, %s137
    %p149 = scmp.eq.s32.totalorder %s17, 3
    %p150 = por %p148, %p149
    %p152 = scmp.ne.s32.totalorder %s137, %s151
    %p153 = scmp.eq.s32.totalorder %s17, 0
    %p154 = por %p152, %p153
    %p155 = scmp.le.s32.totalorder 1, %s11
    %p156 = scmp.lt.s32.totalorder %s11, 5
    %p157 = pnand %p155, %p156
    %p158 = pneg %p157
    // Predicated region
    $region9: #{cnn_forward.12} parent=5 // pred_check
      _
    $region10: #{cnn_forward.12} parent=5 // pred_check_branch
      %160 = sbr.rel (%p157) target = $region12
    $region11: #{cnn_forward.12} parent=5 // pred_region
      %s161 = ssub.s32 %s11, 1
      // Predicated region
      $region13: #{cnn_forward.12} parent=11 // pred_check
        %p162 = pneg %p98
      $region14: #{cnn_forward.12} parent=11 // pred_check_branch
        %164 = sbr.rel (%p162) target = $region16
      $region15: #{cnn_forward.12} parent=11 // pred_region
        _
      $region16: #{cnn_forward.12} parent=11 // pred_fallthru
        _
    $region12: #{cnn_forward.12} parent=5 // pred_fallthru
      _
    %p165 = scmp.lt.s32.totalorder %s11, 4
    // Predicated region
    $region17: #{cnn_forward.12} parent=5 // pred_check
      %p166 = pneg %p165
    $region18: #{cnn_forward.12} parent=5 // pred_check_branch
      %168 = sbr.rel (%p166) target = $region20
    $region19: #{cnn_forward.12} parent=5 // pred_region
      // Predicated region
      $region21: #{cnn_forward.12} parent=19 // pred_check
        %p169 = pneg %p45
      $region22: #{cnn_forward.12} parent=19 // pred_check_branch
        %171 = sbr.rel (%p169) target = $region24
      $region23: #{cnn_forward.12} parent=19 // pred_region
        %s172 = smul.u32 2, %s19
        %p173 = scmp.lt.s32.totalorder %s18, 3
        %s174 = scalar_select %p173, %s18, 3
        %p175 = scmp.lt.s32.totalorder %s172, 1
        %s176 = scalar_select %p175, %s172, 1
        %s177 = smul.addr %s176, 4
        %s178 = smul.addr %s174, 8
        %s179 = sadd.s32 %s177, %s178
        %s180 = smul.addr %s179, 4
        %s181 = scalar_lea.vmem %s0, %s180
        %s182 = smul.u32 2, %s19
      $region24: #{cnn_forward.12} parent=19 // pred_fallthru
        _
      // Predicated region
      $region25: #{cnn_forward.12} parent=19 // pred_check
        %p183 = pneg %p71
      $region26: #{cnn_forward.12} parent=19 // pred_check_branch
        %185 = sbr.rel (%p183) target = $region28
      $region27: #{cnn_forward.12} parent=19 // pred_region
        %p186 = scmp.lt.s32.totalorder %s18, 3
        %s187 = scalar_select %p186, %s18, 3
        %s188 = smul.addr %s187, 64
        %s189 = smul.addr %s188, 4
        %s190 = scalar_lea.vmem %s1, %s189
      $region28: #{cnn_forward.12} parent=19 // pred_fallthru
        _
    $region20: #{cnn_forward.12} parent=5 // pred_fallthru
      _
    %p191 = scmp.le.s32.totalorder 1, %s11
    %p192 = scmp.lt.s32.totalorder %s11, 5
    %p193 = pnand %p191, %p192
    %p194 = pneg %p193
    // Predicated region
    $region29: #{cnn_forward.12} parent=5 // pred_check
      _
    $region30: #{cnn_forward.12} parent=5 // pred_check_branch
      %196 = sbr.rel (%p193) target = $region32
    $region31: #{cnn_forward.12} parent=5 // pred_region
      %s197 = ssub.s32 %s11, 1
      %s198 = smul.u32 2, %s21
      %p199 = scmp.lt.s32.totalorder %s20, 3
      %s200 = scalar_select %p199, %s20, 3
      %p201 = scmp.lt.s32.totalorder %s198, 1
      %s202 = scalar_select %p201, %s198, 1
      %s203 = smul.addr %s202, 4
      %s204 = smul.addr %s200, 8
      %s205 = sadd.s32 %s203, %s204
      %s206 = smul.addr %s205, 4
      %s207 = scalar_lea.vmem %s0, %s206
      %p208 = pneg %p51
      %p209 = pneg %p48
      %p210 = scmp.lt.s32.totalorder %s20, 3
      %s211 = scalar_select %p210, %s20, 3
      %s212 = smul.addr %s211, 64
      %s213 = smul.addr %s212, 4
      %s214 = scalar_lea.vmem %s1, %s213
      %p215 = pneg %p77
      %p216 = pneg %p74
      %p217 = pneg %p98
      %p218 = pneg %p95
      %p219 = pneg %p126
      %p220 = pneg %p123
      %s221 = smul.u32 2, %s21
      %p222 = scmp.lt.s32.totalorder %s20, 3
      %s223 = scalar_select %p222, %s20, 3
      %p224 = scmp.lt.s32.totalorder %s221, 1
      %s225 = scalar_select %p224, %s221, 1
      %s226 = smul.addr %s223, 2
      %s227 = sadd.s32 %s225, %s226
      %s228 = smul.addr %s227, 4
      %s229 = scalar_lea.vmem %s3, %s228
      %p230 = pneg %p147
      %p231 = pneg %p144
      %s232 = smul.u32 2, %s21
      %p233 = scmp.lt.s32.totalorder %s20, 3
      %s234 = scalar_select %p233, %s20, 3
      %p235 = scmp.lt.s32.totalorder %s232, 1
      %s236 = scalar_select %p235, %s232, 1
      %s237 = smul.addr %s236, 4
      %s238 = smul.addr %s234, 8
      %s239 = sadd.s32 %s237, %s238
      %s240 = smul.addr %s239, 4
      %s241 = scalar_lea.vmem %s0, %s240
      %s242 = smul.u32 2, %s21
      %p243 = scmp.lt.s32.totalorder %s20, 3
      %s244 = scalar_select %p243, %s20, 3
      %s245 = smul.addr %s244, 64
      %s246 = smul.addr %s245, 4
      %s247 = scalar_lea.vmem %s1, %s246
      %s248 = smul.u32 2, %s21
      %p249 = scmp.lt.s32.totalorder %s20, 3
      %s250 = scalar_select %p249, %s20, 3
      %p251 = scmp.lt.s32.totalorder %s248, 1
      %s252 = scalar_select %p251, %s248, 1
      %s253 = smul.addr %s250, 2
      %s254 = sadd.s32 %s252, %s253
      %s255 = smul.addr %s254, 4
      %s256 = scalar_lea.vmem %s3, %s255
      %s257 = smul.u32 2, %s21
      %p259 = scmp.eq.s32.totalorder %s20, 0
      %p260 = scmp.eq.s32.totalorder %s21, 0
      %p261 = pnand %p259, %p260
      %p262 = pneg %p261
      // Predicated region
      $region33: #{cnn_forward.12} parent=31 // pred_check
        _
      $region34: #{cnn_forward.12} parent=31 // pred_check_branch
        %264 = sbr.rel (%p261) target = $region36
      $region35: #{cnn_forward.12} parent=31 // pred_region
        %265 = vst [vmem:[#allocation2] sm:$0x3] 0.0
      $region36: #{cnn_forward.12} parent=31 // pred_fallthru
        _
      %v266 = vld [vmem:[%s241] sm:$0xff]
      %v267 = vld [vmem:[%s241 + $0x8] sm:$0xff]
      %v268 = vld [vmem:[%s241 + $0x10] sm:$0xff]
      %v269 = vld [vmem:[%s241 + $0x18] sm:$0xff]
      %v270 = vld [vmem:[%s247] sm:$0xf]
      %v271 = vld [vmem:[%s247 + $0x4] sm:$0xf]
      %v272 = vld [vmem:[%s247 + $0x8] sm:$0xf]
      %v273 = vld [vmem:[%s247 + $0xc] sm:$0xf]
      %v274 = vld [vmem:[%s247 + $0x10] sm:$0xf]
      %v275 = vld [vmem:[%s247 + $0x14] sm:$0xf]
      %v276 = vld [vmem:[%s247 + $0x18] sm:$0xf]
      %v277 = vld [vmem:[%s247 + $0x1c] sm:$0xf]
      %v278 = vld [vmem:[%s247 + $0x20] sm:$0xf]
      %v279 = vld [vmem:[%s247 + $0x24] sm:$0xf]
      %v280 = vld [vmem:[%s247 + $0x28] sm:$0xf]
      %v281 = vld [vmem:[%s247 + $0x2c] sm:$0xf]
      %v282 = vld [vmem:[%s247 + $0x30] sm:$0xf]
      %v283 = vld [vmem:[%s247 + $0x34] sm:$0xf]
      %v284 = vld [vmem:[%s247 + $0x38] sm:$0xf]
      %v285 = vld [vmem:[%s247 + $0x3c] sm:$0xf]
      %v286 = vld [vmem:[%s247 + $0x40] sm:$0xf]
      %v287 = vld [vmem:[%s247 + $0x44] sm:$0xf]
      %v288 = vld [vmem:[%s247 + $0x48] sm:$0xf]
      %v289 = vld [vmem:[%s247 + $0x4c] sm:$0xf]
      %v290 = vld [vmem:[%s247 + $0x50] sm:$0xf]
      %v291 = vld [vmem:[%s247 + $0x54] sm:$0xf]
      %v292 = vld [vmem:[%s247 + $0x58] sm:$0xf]
      %v293 = vld [vmem:[%s247 + $0x5c] sm:$0xf]
      %v294 = vld [vmem:[%s247 + $0x60] sm:$0xf]
      %v295 = vld [vmem:[%s247 + $0x64] sm:$0xf]
      %v296 = vld [vmem:[%s247 + $0x68] sm:$0xf]
      %v297 = vld [vmem:[%s247 + $0x6c] sm:$0xf]
      %v298 = vld [vmem:[%s247 + $0x70] sm:$0xf]
      %v299 = vld [vmem:[%s247 + $0x74] sm:$0xf]
      %v300 = vld [vmem:[%s247 + $0x78] sm:$0xf]
      %v301 = vld [vmem:[%s247 + $0x7c] sm:$0xf]
      %v302 = vld [vmem:[%s247 + $0x80] sm:$0xf]
      %v303 = vld [vmem:[%s247 + $0x84] sm:$0xf]
      %v304 = vld [vmem:[%s247 + $0x88] sm:$0xf]
      %v305 = vld [vmem:[%s247 + $0x8c] sm:$0xf]
      %v306 = vld [vmem:[%s247 + $0x90] sm:$0xf]
      %v307 = vld [vmem:[%s247 + $0x94] sm:$0xf]
      %v308 = vld [vmem:[%s247 + $0x98] sm:$0xf]
      %v309 = vld [vmem:[%s247 + $0x9c] sm:$0xf]
      %v310 = vld [vmem:[%s247 + $0xa0] sm:$0xf]
      %v311 = vld [vmem:[%s247 + $0xa4] sm:$0xf]
      %v312 = vld [vmem:[%s247 + $0xa8] sm:$0xf]
      %v313 = vld [vmem:[%s247 + $0xac] sm:$0xf]
      %v314 = vld [vmem:[%s247 + $0xb0] sm:$0xf]
      %v315 = vld [vmem:[%s247 + $0xb4] sm:$0xf]
      %v316 = vld [vmem:[%s247 + $0xb8] sm:$0xf]
      %v317 = vld [vmem:[%s247 + $0xbc] sm:$0xf]
      %v318 = vld [vmem:[%s247 + $0xc0] sm:$0xf]
      %v319 = vld [vmem:[%s247 + $0xc4] sm:$0xf]
      %v320 = vld [vmem:[%s247 + $0xc8] sm:$0xf]
      %v321 = vld [vmem:[%s247 + $0xcc] sm:$0xf]
      %v322 = vld [vmem:[%s247 + $0xd0] sm:$0xf]
      %v323 = vld [vmem:[%s247 + $0xd4] sm:$0xf]
      %v324 = vld [vmem:[%s247 + $0xd8] sm:$0xf]
      %v325 = vld [vmem:[%s247 + $0xdc] sm:$0xf]
      %v326 = vld [vmem:[%s247 + $0xe0] sm:$0xf]
      %v327 = vld [vmem:[%s247 + $0xe4] sm:$0xf]
      %v328 = vld [vmem:[%s247 + $0xe8] sm:$0xf]
      %v329 = vld [vmem:[%s247 + $0xec] sm:$0xf]
      %v330 = vld [vmem:[%s247 + $0xf0] sm:$0xf]
      %v331 = vld [vmem:[%s247 + $0xf4] sm:$0xf]
      %v332 = vld [vmem:[%s247 + $0xf8] sm:$0xf]
      %v333 = vld [vmem:[%s247 + $0xfc] sm:$0xf]
      %v334 = vld [vmem:[%s2] sm:$0x1]
      %v336 = vlaneseq
      %v337 = vshrl.u32 %v336, 7
      %v338 = vsub.s32 0, %v337
      %v339 = vrot.slane %v334, %v338
      %v345 = vunpack.c.l.b16 %v266
      %v346 = vunpack.c.h.b16 %v266
      %v347 = vunpack.c.l.b16 %v267
      %v348 = vunpack.c.h.b16 %v267
      %v349 = vunpack.c.l.b16 %v268
      %v350 = vunpack.c.h.b16 %v268
      %v351 = vunpack.c.l.b16 %v269
      %v352 = vunpack.c.h.b16 %v269
      %v353 = vpack.c.b16 %v349, %v345
      %v354 = vpack.c.b16 %v350, %v346
      %v355 = vpack.c.b16 %v351, %v347
      %v356 = vpack.c.b16 %v352, %v348
      %v425 = vunpack.c.l.b16 %v270
      %v426 = vunpack.c.l.b16 %v271
      %v427 = vunpack.c.l.b16 %v272
      %v428 = vunpack.c.l.b16 %v273
      %v429 = vunpack.c.l.b16 %v274
      %v430 = vunpack.c.l.b16 %v275
      %v431 = vunpack.c.l.b16 %v276
      %v432 = vunpack.c.l.b16 %v277
      %v433 = vunpack.c.l.b16 %v278
      %v434 = vunpack.c.l.b16 %v279
      %v435 = vunpack.c.l.b16 %v280
      %v436 = vunpack.c.l.b16 %v281
      %v437 = vunpack.c.l.b16 %v282
      %v438 = vunpack.c.l.b16 %v283
      %v439 = vunpack.c.l.b16 %v284
      %v440 = vunpack.c.l.b16 %v285
      %v441 = vunpack.c.l.b16 %v286
      %v442 = vunpack.c.l.b16 %v287
      %v443 = vunpack.c.l.b16 %v288
      %v444 = vunpack.c.l.b16 %v289
      %v445 = vunpack.c.l.b16 %v290
      %v446 = vunpack.c.l.b16 %v291
      %v447 = vunpack.c.l.b16 %v292
      %v448 = vunpack.c.l.b16 %v293
      %v449 = vunpack.c.l.b16 %v294
      %v450 = vunpack.c.l.b16 %v295
      %v451 = vunpack.c.l.b16 %v296
      %v452 = vunpack.c.l.b16 %v297
      %v453 = vunpack.c.l.b16 %v298
      %v454 = vunpack.c.l.b16 %v299
      %v455 = vunpack.c.l.b16 %v300
      %v456 = vunpack.c.l.b16 %v301
      %v457 = vunpack.c.l.b16 %v302
      %v458 = vunpack.c.l.b16 %v303
      %v459 = vunpack.c.l.b16 %v304
      %v460 = vunpack.c.l.b16 %v305
      %v461 = vunpack.c.l.b16 %v306
      %v462 = vunpack.c.l.b16 %v307
      %v463 = vunpack.c.l.b16 %v308
      %v464 = vunpack.c.l.b16 %v309
      %v465 = vunpack.c.l.b16 %v310
      %v466 = vunpack.c.l.b16 %v311
      %v467 = vunpack.c.l.b16 %v312
      %v468 = vunpack.c.l.b16 %v313
      %v469 = vunpack.c.l.b16 %v314
      %v470 = vunpack.c.l.b16 %v315
      %v471 = vunpack.c.l.b16 %v316
      %v472 = vunpack.c.l.b16 %v317
      %v473 = vunpack.c.l.b16 %v318
      %v474 = vunpack.c.l.b16 %v319
      %v475 = vunpack.c.l.b16 %v320
      %v476 = vunpack.c.l.b16 %v321
      %v477 = vunpack.c.l.b16 %v322
      %v478 = vunpack.c.l.b16 %v323
      %v479 = vunpack.c.l.b16 %v324
      %v480 = vunpack.c.l.b16 %v325
      %v481 = vunpack.c.l.b16 %v326
      %v482 = vunpack.c.l.b16 %v327
      %v483 = vunpack.c.l.b16 %v328
      %v484 = vunpack.c.l.b16 %v329
      %v485 = vunpack.c.l.b16 %v330
      %v486 = vunpack.c.l.b16 %v331
      %v487 = vunpack.c.l.b16 %v332
      %v488 = vunpack.c.l.b16 %v333
      %v489 = vpack.c.b16 %v426, %v425
      %v490 = vpack.c.b16 %v428, %v427
      %v491 = vpack.c.b16 %v430, %v429
      %v492 = vpack.c.b16 %v432, %v431
      %v493 = vpack.c.b16 %v434, %v433
      %v494 = vpack.c.b16 %v436, %v435
      %v495 = vpack.c.b16 %v438, %v437
      %v496 = vpack.c.b16 %v440, %v439
      %v497 = vpack.c.b16 %v442, %v441
      %v498 = vpack.c.b16 %v444, %v443
      %v499 = vpack.c.b16 %v446, %v445
      %v500 = vpack.c.b16 %v448, %v447
      %v501 = vpack.c.b16 %v450, %v449
      %v502 = vpack.c.b16 %v452, %v451
      %v503 = vpack.c.b16 %v454, %v453
      %v504 = vpack.c.b16 %v456, %v455
      %v505 = vpack.c.b16 %v458, %v457
      %v506 = vpack.c.b16 %v460, %v459
      %v507 = vpack.c.b16 %v462, %v461
      %v508 = vpack.c.b16 %v464, %v463
      %v509 = vpack.c.b16 %v466, %v465
      %v510 = vpack.c.b16 %v468, %v467
      %v511 = vpack.c.b16 %v470, %v469
      %v512 = vpack.c.b16 %v472, %v471
      %v513 = vpack.c.b16 %v474, %v473
      %v514 = vpack.c.b16 %v476, %v475
      %v515 = vpack.c.b16 %v478, %v477
      %v516 = vpack.c.b16 %v480, %v479
      %v517 = vpack.c.b16 %v482, %v481
      %v518 = vpack.c.b16 %v484, %v483
      %v519 = vpack.c.b16 %v486, %v485
      %v520 = vpack.c.b16 %v488, %v487
      %553 = vmatprep.subr.bf16.mxu0 0
      %554 = vmatpush1.bf16.msra.mxu0 %v489
      %555 = vmatprep.subr.bf16.mxu0 0
      %556 = vmatpush1.bf16.msra.mxu0 %v490
      %557 = vmatprep.subr.bf16.mxu0 0
      %558 = vmatpush1.bf16.msra.mxu0 %v491
      %559 = vmatprep.subr.bf16.mxu0 0
      %560 = vmatpush1.bf16.msra.mxu0 %v492
      %561 = vmatprep.subr.bf16.mxu0 0
      %562 = vmatpush1.bf16.msra.mxu0 %v493
      %563 = vmatprep.subr.bf16.mxu0 0
      %564 = vmatpush1.bf16.msra.mxu0 %v494
      %565 = vmatprep.subr.bf16.mxu0 0
      %566 = vmatpush1.bf16.msra.mxu0 %v495
      %567 = vmatprep.subr.bf16.mxu0 0
      %568 = vmatpush1.bf16.msra.mxu0 %v496
      %569 = vmatprep.subr.bf16.mxu0 0
      %570 = vmatpush1.bf16.msra.mxu0 %v497
      %571 = vmatprep.subr.bf16.mxu0 0
      %572 = vmatpush1.bf16.msra.mxu0 %v498
      %573 = vmatprep.subr.bf16.mxu0 0
      %574 = vmatpush1.bf16.msra.mxu0 %v499
      %575 = vmatprep.subr.bf16.mxu0 0
      %576 = vmatpush1.bf16.msra.mxu0 %v500
      %577 = vmatprep.subr.bf16.mxu0 0
      %578 = vmatpush1.bf16.msra.mxu0 %v501
      %579 = vmatprep.subr.bf16.mxu0 0
      %580 = vmatpush1.bf16.msra.mxu0 %v502
      %581 = vmatprep.subr.bf16.mxu0 0
      %582 = vmatpush1.bf16.msra.mxu0 %v503
      %583 = vmatprep.subr.bf16.mxu0 0
      %584 = vmatpush1.bf16.msra.mxu0 %v504
      %585 = vmatprep.mubr.bf16.mxu0 %v354
      %586 = vmatmul.mubr.bf16.gmra.mrb[0].mxu0 %v353
      %v587 = vpop.f32.mrb[0].mxu0
      %v588 = vadd.f32 %v339, %v587
      %v589 = vpop.f32.mrb[0].mxu0
      %v590 = vpop.f32.mrb[0].mxu0
      %v591 = vadd.f32 %v339, %v590
      %v592 = vpop.f32.mrb[0].mxu0
      %593 = vdwg.mxu0
      %594 = vmatprep.subr.bf16.mxu0 0
      %595 = vmatpush1.bf16.msra.mxu0 %v505
      %596 = vmatprep.subr.bf16.mxu0 0
      %597 = vmatpush1.bf16.msra.mxu0 %v506
      %598 = vmatprep.subr.bf16.mxu0 0
      %599 = vmatpush1.bf16.msra.mxu0 %v507
      %600 = vmatprep.subr.bf16.mxu0 0
      %601 = vmatpush1.bf16.msra.mxu0 %v508
      %602 = vmatprep.subr.bf16.mxu0 0
      %603 = vmatpush1.bf16.msra.mxu0 %v509
      %604 = vmatprep.subr.bf16.mxu0 0
      %605 = vmatpush1.bf16.msra.mxu0 %v510
      %606 = vmatprep.subr.bf16.mxu0 0
      %607 = vmatpush1.bf16.msra.mxu0 %v511
      %608 = vmatprep.subr.bf16.mxu0 0
      %609 = vmatpush1.bf16.msra.mxu0 %v512
      %610 = vmatprep.subr.bf16.mxu0 0
      %611 = vmatpush1.bf16.msra.mxu0 %v513
      %612 = vmatprep.subr.bf16.mxu0 0
      %613 = vmatpush1.bf16.msra.mxu0 %v514
      %614 = vmatprep.subr.bf16.mxu0 0
      %615 = vmatpush1.bf16.msra.mxu0 %v515
      %616 = vmatprep.subr.bf16.mxu0 0
      %617 = vmatpush1.bf16.msra.mxu0 %v516
      %618 = vmatprep.subr.bf16.mxu0 0
      %619 = vmatpush1.bf16.msra.mxu0 %v517
      %620 = vmatprep.subr.bf16.mxu0 0
      %621 = vmatpush1.bf16.msra.mxu0 %v518
      %622 = vmatprep.subr.bf16.mxu0 0
      %623 = vmatpush1.bf16.msra.mxu0 %v519
      %624 = vmatprep.subr.bf16.mxu0 0
      %625 = vmatpush1.bf16.msra.mxu0 %v520
      %626 = vmatprep.mubr.bf16.mxu0 %v356
      %627 = vmatmul.mubr.bf16.gmra.mrb[0].mxu0 %v355
      %v628 = vpop.f32.mrb[0].mxu0
      %v629 = vadd.f32 %v588, %v628
      %v630 = vpop.f32.mrb[0].mxu0
      %v631 = vpop.f32.mrb[0].mxu0
      %v632 = vadd.f32 %v591, %v631
      %v633 = vpop.f32.mrb[0].mxu0
      %634 = vdwg.mxu0
      %v635 = vmax.f32 %v629, 0.0
      %v636 = vmax.f32 %v632, 0.0
      %v637 = vpack.c.bf16 %v636, %v635
      %v639 = vunpack.c.l.b16 %v637
      %v640 = vunpack.c.h.b16 %v637
      %v641 = vpack.c.b16 %v639, %v639
      %v642 = vpack.c.b16 %v640, %v640
      %vm645 = vcmask 519168
      %646 = vst.msk [vmem:[%s256] sm:$0xf] %vm645, %v641
      %647 = vst.msk [vmem:[%s256 + $0x4] sm:$0xf] %vm645, %v642
      %s648 = smul.u32 %s21, 16
      %v649 = vlaneseq
      %v650 = vshrl.u32 %v649, 7
      %v651 = vadd.s32 %v650, 8
      %v652 = vstv %s648
      %v653 = vadd.s32 %v652, %v650
      %v654 = vadd.s32 %v652, %v651
      %vm655 = vcmp.lt.s32.totalorder %v653, 8
      %vm656 = vcmp.lt.s32.totalorder %v654, 8
      %v657 = vsel %vm655, 1, 0
      %v658 = vsel %vm656, 1, 0
      %vm659 = vcmp.eq.s32.totalorder %v657, 1
      %vm660 = vcmp.eq.s32.totalorder %v658, 1
      %v661 = vsel %vm659, %v635, 0.0
      %v662 = vsel %vm660, %v636, 0.0
      %v663 = vld [vmem:[#allocation2] sm:$0x1]
      %v664 = vadd.f32 %v661, %v662
      %v665 = vrot.slane %v664, 4
      %v666 = vadd.f32 %v664, %v665
      %v667 = vrot.slane %v666, 2
      %v668 = vadd.f32 %v666, %v667
      %v669 = vrot.slane %v668, 1
      %v670 = vadd.f32 %v668, %v669
      %v671 = vadd.f32 %v663, %v670
      %672 = vst [vmem:[#allocation2] sm:$0x1] %v671
      %v673 = vld [vmem:[#allocation2 + $0x1] sm:$0x1]
      %v674 = vmul.f32 %v661, %v661
      %v675 = vmul.f32 %v662, %v662
      %v676 = vadd.f32 %v674, %v675
      %v677 = vrot.slane %v676, 4
      %v678 = vadd.f32 %v676, %v677
      %v679 = vrot.slane %v678, 2
      %v680 = vadd.f32 %v678, %v679
      %v681 = vrot.slane %v680, 1
      %v682 = vadd.f32 %v680, %v681
      %v683 = vadd.f32 %v673, %v682
      %684 = vst [vmem:[#allocation2 + $0x1] sm:$0x1] %v683
      %p685 = scmp.eq.s32.totalorder %s20, 3
      %p686 = pnand %p685, %p260
      %p687 = pneg %p686
      // Predicated region
      $region37: #{cnn_forward.12} parent=31 // pred_check
        _
      $region38: #{cnn_forward.12} parent=31 // pred_check_branch
        %689 = sbr.rel (%p686) target = $region40
      $region39: #{cnn_forward.12} parent=31 // pred_region
        %v690 = vld [vmem:[#allocation2] sm:$0x1]
        %v691 = vmul.f32 %v690, 0.03125
        %v692 = vld [vmem:[#allocation2 + $0x1] sm:$0x1]
        %v693 = vmul.f32 %v692, 0.03125
        %v694 = vmul.f32 %v691, %v691
        %v695 = vsub.f32 %v693, %v694
        %v696 = vmax.f32 %v695, 0.0
        %v697 = vadd.f32 %v696, 1e-05
        %v698 = vrsqrt.pop %v697
        %699 = vst [vmem:[%s4] sm:$0x1] %v698
        %v700 = vsub.f32 0.0, %v691
        %v701 = vmul.f32 %v700, %v698
        %702 = vst [vmem:[%s4 + $0x1] sm:$0x1] %v701
      $region40: #{cnn_forward.12} parent=31 // pred_fallthru
        _
      %s703 = smul.u32 2, %s21
      %p704 = scmp.lt.s32.totalorder %s20, 3
      %s705 = scalar_select %p704, %s20, 3
      %p706 = scmp.lt.s32.totalorder %s703, 1
      %s707 = scalar_select %p706, %s703, 1
      %s708 = smul.addr %s705, 2
      %s709 = sadd.s32 %s707, %s708
      %s710 = smul.addr %s709, 4
      %s711 = scalar_lea.vmem %s3, %s710
      // Predicated region
      $region41: #{cnn_forward.12} parent=31 // pred_check
        %p712 = pneg %p123
      $region42: #{cnn_forward.12} parent=31 // pred_check_branch
        %714 = sbr.rel (%p712) target = $region44
      $region43: #{cnn_forward.12} parent=31 // pred_region
        %s715 = smul.u32 2, %s21
      $region44: #{cnn_forward.12} parent=31 // pred_fallthru
        _
      // Predicated region
      $region45: #{cnn_forward.12} parent=31 // pred_check
        %p716 = pneg %p144
      $region46: #{cnn_forward.12} parent=31 // pred_check_branch
        %718 = sbr.rel (%p716) target = $region48
      $region47: #{cnn_forward.12} parent=31 // pred_region
        _
      $region48: #{cnn_forward.12} parent=31 // pred_fallthru
        _
      // Predicated region
      $region49: #{cnn_forward.12} parent=31 // pred_check
        %p719 = pneg %p144
      $region50: #{cnn_forward.12} parent=31 // pred_check_branch
        %721 = sbr.rel (%p719) target = $region52
      $region51: #{cnn_forward.12} parent=31 // pred_region
        _
      $region52: #{cnn_forward.12} parent=31 // pred_fallthru
        _
    $region32: #{cnn_forward.12} parent=5 // pred_fallthru
      _
    %p722 = scmp.le.s32.totalorder 2, %s11
    // Predicated region
    $region53: #{cnn_forward.12} parent=5 // pred_check
      %p723 = pneg %p722
    $region54: #{cnn_forward.12} parent=5 // pred_check_branch
      %725 = sbr.rel (%p723) target = $region56
    $region55: #{cnn_forward.12} parent=5 // pred_region
      %s726 = ssub.s32 %s11, 2
      // Predicated region
      $region57: #{cnn_forward.12} parent=55 // pred_check
        %p727 = pneg %p129
      $region58: #{cnn_forward.12} parent=55 // pred_check_branch
        %729 = sbr.rel (%p727) target = $region60
      $region59: #{cnn_forward.12} parent=55 // pred_region
        %s730 = smul.u32 2, %s23
        %p731 = scmp.lt.s32.totalorder %s22, 3
        %s732 = scalar_select %p731, %s22, 3
        %p733 = scmp.lt.s32.totalorder %s730, 1
        %s734 = scalar_select %p733, %s730, 1
        %s735 = smul.addr %s732, 2
        %s736 = sadd.s32 %s734, %s735
        %s737 = smul.addr %s736, 4
        %s738 = scalar_lea.vmem %s3, %s737
      $region60: #{cnn_forward.12} parent=55 // pred_fallthru
        _
    $region56: #{cnn_forward.12} parent=5 // pred_fallthru
      _
  $region6: #{cnn_forward.12} parent=0 // loop_footer
    %s15 = sadd.s32 1, %s11
  $region7: #{cnn_forward.12} parent=0 // loop_footer_branch
    %10 = sbr.rel target = $region3
  $region8: #{cnn_forward.12} parent=0 // loop_exit
    _

// kernel: cnn_forward.13
$region0: #{cnn_forward.13}
  #allocation0 [shape = 'u32[]', space=smem, size = 0x4, offset = 0x4, fixed_abs, tag = 'smem constant byte address 0x4 - core index']
  #allocation1 [shape = 'u32[144,128]{1,0:T(1,128)}', space=vmem, size = 0x12000, scoped, tag = 'internal scratch']
  #allocation2 [shape = 'f32[2,128]{1,0:T(2,128)}', space=vmem, size = 0x400, scoped, tag = 'scratch operand']
  %s0 = inlined_call_operand.vmem [shape: bf16[4,32,256], index: 0, kind: input, shape index: {}]
  %s1 = inlined_call_operand.vmem [shape: bf16[4,256,128], index: 1, kind: input, shape index: {}]
  %s2 = inlined_call_operand.vmem [shape: f32[1,128], index: 2, kind: input, shape index: {}]
  %s3 = inlined_call_operand.vmem [shape: bf16[4,32,32], index: 3, kind: output, shape index: {0}]
  %s4 = inlined_call_operand.vmem [shape: f32[2,128], index: 4, kind: output, shape index: {1}]
  %5 = xla_tuple %s3, %s4
  %s6 = sld [smem:[#allocation0]]
  $region61: #{cnn_forward.13} parent=0
    _
  %s8 = ssub.s32 1, %s6
  %s9 = scalar_select 0, %s8, %s6
  loop: start=0, step=1, limit=6
  $region2: #{cnn_forward.13} parent=0 // loop_pre_header
    _
  $region3: #{cnn_forward.13} parent=0 // loop_header
    %s11 = sphi 0, %s15
    %p12 = scmp.ge.s32.totalorder %s11, 6
    %s18 = sphi 0, %s30
    %s19 = sphi 0, %s26
    %s20 = sphi 0, %s18
    %s21 = sphi 0, %s19
    %s22 = sphi 0, %s20
    %s23 = sphi 0, %s21
    %s35 = sphi 0, %s37
    %s38 = sphi 0, %s35
    %s39 = sphi 0, %s38
    %s55 = sphi 0, %s39
    %s61 = sphi 0, %s63
    %s64 = sphi 0, %s61
    %s65 = sphi 0, %s64
    %s81 = sphi 0, %s65
    %s85 = sphi 0, %s85
    %s87 = sphi 0, %s85
    %s88 = sphi 0, %s87
    %s102 = sphi 0, %s88
    %s110 = sphi 0, %s112
    %s113 = sphi 0, %s110
    %s114 = sphi 0, %s113
    %s130 = sphi 0, %s114
    %s134 = sphi 0, %s134
    %s136 = sphi 0, %s134
    %s137 = sphi 0, %s136
    %s151 = sphi 0, %s137
  $region4: #{cnn_forward.13} parent=0 // loop_header_branch
    %14 = sbr.rel (%p12) target = $region8
  $region5: #{cnn_forward.13} parent=0 // loop_body
    %s16 = ssub.s32 %s11, 1
    %s17 = ssub.s32 %s11, 2
    %s24 = sadd.s32 1, %s19
    %p25 = scmp.ge.s32.totalorder %s24, 1
    %s26 = scalar_select %p25, 0, %s24
    %s27 = sadd.s32 1, %s18
    %s28 = scalar_select %p25, %s27, %s18
    %p29 = scmp.ge.s32.totalorder %s28, 4
    %s30 = scalar_select %p29, 0, %s28
    %s31 = ssub.s32 %s18, %s30
    %s32 = ssub.s32 %s19, %s26
    %s33 = sor.u32 %s31, %s32
    %p34 = scmp.eq.s32.totalorder %s33, 0
    %s36 = sadd.s32 %s35, 1
    %s37 = scalar_select %p34, %s35, %s36
    %p40 = pneg %p34
    %p41 = scmp.eq.s32.totalorder %s11, 3
    %p42 = por %p40, %p41
    %p43 = scmp.ne.s32.totalorder %s35, %s38
    %p44 = scmp.eq.s32.totalorder %s11, 0
    %p45 = por %p43, %p44
    %p46 = scmp.ne.s32.totalorder %s35, %s38
    %p47 = scmp.eq.s32.totalorder %s16, 3
    %p48 = por %p46, %p47
    %p49 = scmp.ne.s32.totalorder %s38, %s39
    %p50 = scmp.eq.s32.totalorder %s16, 0
    %p51 = por %p49, %p50
    %p52 = scmp.ne.s32.totalorder %s38, %s39
    %p53 = scmp.eq.s32.totalorder %s17, 3
    %p54 = por %p52, %p53
    %p56 = scmp.ne.s32.totalorder %s39, %s55
    %p57 = scmp.eq.s32.totalorder %s17, 0
    %p58 = por %p56, %p57
    %s59 = ssub.s32 %s18, %s30
    %p60 = scmp.eq.s32.totalorder %s59, 0
    %s62 = sadd.s32 %s61, 1
    %s63 = scalar_select %p60, %s61, %s62
    %p66 = pneg %p60
    %p67 = scmp.eq.s32.totalorder %s11, 3
    %p68 = por %p66, %p67
    %p69 = scmp.ne.s32.totalorder %s61, %s64
    %p70 = scmp.eq.s32.totalorder %s11, 0
    %p71 = por %p69, %p70
    %p72 = scmp.ne.s32.totalorder %s61, %s64
    %p73 = scmp.eq.s32.totalorder %s16, 3
    %p74 = por %p72, %p73
    %p75 = scmp.ne.s32.totalorder %s64, %s65
    %p76 = scmp.eq.s32.totalorder %s16, 0
    %p77 = por %p75, %p76
    %p78 = scmp.ne.s32.totalorder %s64, %s65
    %p79 = scmp.eq.s32.totalorder %s17, 3
    %p80 = por %p78, %p79
    %p82 = scmp.ne.s32.totalorder %s65, %s81
    %p83 = scmp.eq.s32.totalorder %s17, 0
    %p84 = por %p82, %p83
    %s86 = sadd.s32 %s85, 1
    %p89 = scmp.eq.s32.totalorder %s11, 3
    %p90 = scmp.ne.s32.totalorder %s85, %s87
    %p91 = scmp.eq.s32.totalorder %s11, 0
    %p92 = por %p90, %p91
    %p93 = scmp.ne.s32.totalorder %s85, %s87
    %p94 = scmp.eq.s32.totalorder %s16, 3
    %p95 = por %p93, %p94
    %p96 = scmp.ne.s32.totalorder %s87, %s88
    %p97 = scmp.eq.s32.totalorder %s16, 0
    %p98 = por %p96, %p97
    %p99 = scmp.ne.s32.totalorder %s87, %s88
    %p100 = scmp.eq.s32.totalorder %s17, 3
    %p101 = por %p99, %p100
    %p103 = scmp.ne.s32.totalorder %s88, %s102
    %p104 = scmp.eq.s32.totalorder %s17, 0
    %p105 = por %p103, %p104
    %s106 = ssub.s32 %s18, %s30
    %s107 = ssub.s32 %s19, %s26
    %s108 = sor.u32 %s106, %s107
    %p109 = scmp.eq.s32.totalorder %s108, 0
    %s111 = sadd.s32 %s110, 1
    %s112 = scalar_select %p109, %s110, %s111
    %p115 = pneg %p109
    %p116 = scmp.eq.s32.totalorder %s11, 3
    %p117 = por %p115, %p116
    %p118 = scmp.ne.s32.totalorder %s110, %s113
    %p119 = scmp.eq.s32.totalorder %s11, 0
    %p120 = por %p118, %p119
    %p121 = scmp.ne.s32.totalorder %s110, %s113
    %p122 = scmp.eq.s32.totalorder %s16, 3
    %p123 = por %p121, %p122
    %p124 = scmp.ne.s32.totalorder %s113, %s114
    %p125 = scmp.eq.s32.totalorder %s16, 0
    %p126 = por %p124, %p125
    %p127 = scmp.ne.s32.totalorder %s113, %s114
    %p128 = scmp.eq.s32.totalorder %s17, 3
    %p129 = por %p127, %p128
    %p131 = scmp.ne.s32.totalorder %s114, %s130
    %p132 = scmp.eq.s32.totalorder %s17, 0
    %p133 = por %p131, %p132
    %s135 = sadd.s32 %s134, 1
    %p138 = scmp.eq.s32.totalorder %s11, 3
    %p139 = scmp.ne.s32.totalorder %s134, %s136
    %p140 = scmp.eq.s32.totalorder %s11, 0
    %p141 = por %p139, %p140
    %p142 = scmp.ne.s32.totalorder %s134, %s136
    %p143 = scmp.eq.s32.totalorder %s16, 3
    %p144 = por %p142, %p143
    %p145 = scmp.ne.s32.totalorder %s136, %s137
    %p146 = scmp.eq.s32.totalorder %s16, 0
    %p147 = por %p145, %p146
    %p148 = scmp.ne.s32.totalorder %s136, %s137
    %p149 = scmp.eq.s32.totalorder %s17, 3
    %p150 = por %p148, %p149
    %p152 = scmp.ne.s32.totalorder %s137, %s151
    %p153 = scmp.eq.s32.totalorder %s17, 0
    %p154 = por %p152, %p153
    %p155 = scmp.le.s32.totalorder 1, %s11
    %p156 = scmp.lt.s32.totalorder %s11, 5
    %p157 = pnand %p155, %p156
    %p158 = pneg %p157
    // Predicated region
    $region9: #{cnn_forward.13} parent=5 // pred_check
      _
    $region10: #{cnn_forward.13} parent=5 // pred_check_branch
      %160 = sbr.rel (%p157) target = $region12
    $region11: #{cnn_forward.13} parent=5 // pred_region
      %s161 = ssub.s32 %s11, 1
      // Predicated region
      $region13: #{cnn_forward.13} parent=11 // pred_check
        %p162 = pneg %p98
      $region14: #{cnn_forward.13} parent=11 // pred_check_branch
        %164 = sbr.rel (%p162) target = $region16
      $region15: #{cnn_forward.13} parent=11 // pred_region
        _
      $region16: #{cnn_forward.13} parent=11 // pred_fallthru
        _
    $region12: #{cnn_forward.13} parent=5 // pred_fallthru
      _
    %p165 = scmp.lt.s32.totalorder %s11, 4
    // Predicated region
    $region17: #{cnn_forward.13} parent=5 // pred_check
      %p166 = pneg %p165
    $region18: #{cnn_forward.13} parent=5 // pred_check_branch
      %168 = sbr.rel (%p166) target = $region20
    $region19: #{cnn_forward.13} parent=5 // pred_region
      // Predicated region
      $region21: #{cnn_forward.13} parent=19 // pred_check
        %p169 = pneg %p45
      $region22: #{cnn_forward.13} parent=19 // pred_check_branch
        %171 = sbr.rel (%p169) target = $region24
      $region23: #{cnn_forward.13} parent=19 // pred_region
        %s172 = smul.u32 4, %s19
        %p173 = scmp.lt.s32.totalorder %s18, 3
        %s174 = scalar_select %p173, %s18, 3
        %p175 = scmp.lt.s32.totalorder %s172, 3
        %s176 = scalar_select %p175, %s172, 3
        %s177 = smul.addr %s176, 2
        %s178 = smul.addr %s174, 8
        %s179 = sadd.s32 %s177, %s178
        %s180 = smul.addr %s179, 4
        %s181 = scalar_lea.vmem %s0, %s180
        %s182 = smul.u32 4, %s19
      $region24: #{cnn_forward.13} parent=19 // pred_fallthru
        _
      // Predicated region
      $region25: #{cnn_forward.13} parent=19 // pred_check
        %p183 = pneg %p71
      $region26: #{cnn_forward.13} parent=19 // pred_check_branch
        %185 = sbr.rel (%p183) target = $region28
      $region27: #{cnn_forward.13} parent=19 // pred_region
        %p186 = scmp.lt.s32.totalorder %s18, 3
        %s187 = scalar_select %p186, %s18, 3
        %s188 = smul.addr %s187, 32
        %s189 = smul.addr %s188, 4
        %s190 = scalar_lea.vmem %s1, %s189
      $region28: #{cnn_forward.13} parent=19 // pred_fallthru
        _
    $region20: #{cnn_forward.13} parent=5 // pred_fallthru
      _
    %p191 = scmp.le.s32.totalorder 1, %s11
    %p192 = scmp.lt.s32.totalorder %s11, 5
    %p193 = pnand %p191, %p192
    %p194 = pneg %p193
    // Predicated region
    $region29: #{cnn_forward.13} parent=5 // pred_check
      _
    $region30: #{cnn_forward.13} parent=5 // pred_check_branch
      %196 = sbr.rel (%p193) target = $region32
    $region31: #{cnn_forward.13} parent=5 // pred_region
      %s197 = ssub.s32 %s11, 1
      %s198 = smul.u32 4, %s21
      %p199 = scmp.lt.s32.totalorder %s20, 3
      %s200 = scalar_select %p199, %s20, 3
      %p201 = scmp.lt.s32.totalorder %s198, 3
      %s202 = scalar_select %p201, %s198, 3
      %s203 = smul.addr %s202, 2
      %s204 = smul.addr %s200, 8
      %s205 = sadd.s32 %s203, %s204
      %s206 = smul.addr %s205, 4
      %s207 = scalar_lea.vmem %s0, %s206
      %p208 = pneg %p51
      %p209 = pneg %p48
      %p210 = scmp.lt.s32.totalorder %s20, 3
      %s211 = scalar_select %p210, %s20, 3
      %s212 = smul.addr %s211, 32
      %s213 = smul.addr %s212, 4
      %s214 = scalar_lea.vmem %s1, %s213
      %p215 = pneg %p77
      %p216 = pneg %p74
      %p217 = pneg %p98
      %p218 = pneg %p95
      %p219 = pneg %p126
      %p220 = pneg %p123
      %s221 = smul.u32 4, %s21
      %p222 = scmp.lt.s32.totalorder %s20, 3
      %s223 = scalar_select %p222, %s20, 3
      %p224 = scmp.lt.s32.totalorder %s221, 3
      %s225 = scalar_select %p224, %s221, 3
      %s226 = smul.addr %s223, 4
      %s227 = sadd.s32 %s225, %s226
      %s228 = smul.addr %s227, 4
      %s229 = scalar_lea.vmem %s3, %s228
      %p230 = pneg %p147
      %p231 = pneg %p144
      %s232 = smul.u32 4, %s21
      %p233 = scmp.lt.s32.totalorder %s20, 3
      %s234 = scalar_select %p233, %s20, 3
      %p235 = scmp.lt.s32.totalorder %s232, 3
      %s236 = scalar_select %p235, %s232, 3
      %s237 = smul.addr %s236, 2
      %s238 = smul.addr %s234, 8
      %s239 = sadd.s32 %s237, %s238
      %s240 = smul.addr %s239, 4
      %s241 = scalar_lea.vmem %s0, %s240
      %s242 = smul.u32 4, %s21
      %p243 = scmp.lt.s32.totalorder %s20, 3
      %s244 = scalar_select %p243, %s20, 3
      %s245 = smul.addr %s244, 32
      %s246 = smul.addr %s245, 4
      %s247 = scalar_lea.vmem %s1, %s246
      %s248 = smul.u32 4, %s21
      %p249 = scmp.lt.s32.totalorder %s20, 3
      %s250 = scalar_select %p249, %s20, 3
      %p251 = scmp.lt.s32.totalorder %s248, 3
      %s252 = scalar_select %p251, %s248, 3
      %s253 = smul.addr %s250, 4
      %s254 = sadd.s32 %s252, %s253
      %s255 = smul.addr %s254, 4
      %s256 = scalar_lea.vmem %s3, %s255
      %s257 = smul.u32 4, %s21
      %p259 = scmp.eq.s32.totalorder %s20, 0
      %p260 = scmp.eq.s32.totalorder %s21, 0
      %p261 = pnand %p259, %p260
      %p262 = pneg %p261
      // Predicated region
      $region33: #{cnn_forward.13} parent=31 // pred_check
        _
      $region34: #{cnn_forward.13} parent=31 // pred_check_branch
        %264 = sbr.rel (%p261) target = $region36
      $region35: #{cnn_forward.13} parent=31 // pred_region
        %265 = vst [vmem:[#allocation2] sm:$0x3] 0.0
      $region36: #{cnn_forward.13} parent=31 // pred_fallthru
        _
      %v266 = vld [vmem:[%s241] sm:$0xff]
      %v267 = vld [vmem:[%s241 + $0x8] sm:$0xff]
      %v268 = vld [vmem:[%s241 + $0x10] sm:$0xff]
      %v269 = vld [vmem:[%s241 + $0x18] sm:$0xff]
      %v270 = vld [vmem:[%s247] sm:$0xf]
      %v271 = vld [vmem:[%s247 + $0x4] sm:$0xf]
      %v272 = vld [vmem:[%s247 + $0x8] sm:$0xf]
      %v273 = vld [vmem:[%s247 + $0xc] sm:$0xf]
      %v274 = vld [vmem:[%s247 + $0x10] sm:$0xf]
      %v275 = vld [vmem:[%s247 + $0x14] sm:$0xf]
      %v276 = vld [vmem:[%s247 + $0x18] sm:$0xf]
      %v277 = vld [vmem:[%s247 + $0x1c] sm:$0xf]
      %v278 = vld [vmem:[%s247 + $0x20] sm:$0xf]
      %v279 = vld [vmem:[%s247 + $0x24] sm:$0xf]
      %v280 = vld [vmem:[%s247 + $0x28] sm:$0xf]
      %v281 = vld [vmem:[%s247 + $0x2c] sm:$0xf]
      %v282 = vld [vmem:[%s247 + $0x30] sm:$0xf]
      %v283 = vld [vmem:[%s247 + $0x34] sm:$0xf]
      %v284 = vld [vmem:[%s247 + $0x38] sm:$0xf]
      %v285 = vld [vmem:[%s247 + $0x3c] sm:$0xf]
      %v286 = vld [vmem:[%s247 + $0x40] sm:$0xf]
      %v287 = vld [vmem:[%s247 + $0x44] sm:$0xf]
      %v288 = vld [vmem:[%s247 + $0x48] sm:$0xf]
      %v289 = vld [vmem:[%s247 + $0x4c] sm:$0xf]
      %v290 = vld [vmem:[%s247 + $0x50] sm:$0xf]
      %v291 = vld [vmem:[%s247 + $0x54] sm:$0xf]
      %v292 = vld [vmem:[%s247 + $0x58] sm:$0xf]
      %v293 = vld [vmem:[%s247 + $0x5c] sm:$0xf]
      %v294 = vld [vmem:[%s247 + $0x60] sm:$0xf]
      %v295 = vld [vmem:[%s247 + $0x64] sm:$0xf]
      %v296 = vld [vmem:[%s247 + $0x68] sm:$0xf]
      %v297 = vld [vmem:[%s247 + $0x6c] sm:$0xf]
      %v298 = vld [vmem:[%s247 + $0x70] sm:$0xf]
      %v299 = vld [vmem:[%s247 + $0x74] sm:$0xf]
      %v300 = vld [vmem:[%s247 + $0x78] sm:$0xf]
      %v301 = vld [vmem:[%s247 + $0x7c] sm:$0xf]
      %v302 = vld [vmem:[%s2] sm:$0x1]
      %v304 = vlaneseq
      %v305 = vshrl.u32 %v304, 7
      %v306 = vsub.s32 0, %v305
      %v307 = vrot.slane %v302, %v306
      %v313 = vunpack.c.l.b16 %v266
      %v314 = vunpack.c.h.b16 %v266
      %v315 = vunpack.c.l.b16 %v267
      %v316 = vunpack.c.h.b16 %v267
      %v317 = vunpack.c.l.b16 %v268
      %v318 = vunpack.c.h.b16 %v268
      %v319 = vunpack.c.l.b16 %v269
      %v320 = vunpack.c.h.b16 %v269
      %v321 = vpack.c.b16 %v315, %v313
      %v322 = vpack.c.b16 %v316, %v314
      %v323 = vpack.c.b16 %v319, %v317
      %v324 = vpack.c.b16 %v320, %v318
      %v361 = vunpack.c.l.b16 %v270
      %v362 = vunpack.c.l.b16 %v271
      %v363 = vunpack.c.l.b16 %v272
      %v364 = vunpack.c.l.b16 %v273
      %v365 = vunpack.c.l.b16 %v274
      %v366 = vunpack.c.l.b16 %v275
      %v367 = vunpack.c.l.b16 %v276
      %v368 = vunpack.c.l.b16 %v277
      %v369 = vunpack.c.l.b16 %v278
      %v370 = vunpack.c.l.b16 %v279
      %v371 = vunpack.c.l.b16 %v280
      %v372 = vunpack.c.l.b16 %v281
      %v373 = vunpack.c.l.b16 %v282
      %v374 = vunpack.c.l.b16 %v283
      %v375 = vunpack.c.l.b16 %v284
      %v376 = vunpack.c.l.b16 %v285
      %v377 = vunpack.c.l.b16 %v286
      %v378 = vunpack.c.l.b16 %v287
      %v379 = vunpack.c.l.b16 %v288
      %v380 = vunpack.c.l.b16 %v289
      %v381 = vunpack.c.l.b16 %v290
      %v382 = vunpack.c.l.b16 %v291
      %v383 = vunpack.c.l.b16 %v292
      %v384 = vunpack.c.l.b16 %v293
      %v385 = vunpack.c.l.b16 %v294
      %v386 = vunpack.c.l.b16 %v295
      %v387 = vunpack.c.l.b16 %v296
      %v388 = vunpack.c.l.b16 %v297
      %v389 = vunpack.c.l.b16 %v298
      %v390 = vunpack.c.l.b16 %v299
      %v391 = vunpack.c.l.b16 %v300
      %v392 = vunpack.c.l.b16 %v301
      %v393 = vpack.c.b16 %v362, %v361
      %v394 = vpack.c.b16 %v364, %v363
      %v395 = vpack.c.b16 %v366, %v365
      %v396 = vpack.c.b16 %v368, %v367
      %v397 = vpack.c.b16 %v370, %v369
      %v398 = vpack.c.b16 %v372, %v371
      %v399 = vpack.c.b16 %v374, %v373
      %v400 = vpack.c.b16 %v376, %v375
      %v401 = vpack.c.b16 %v378, %v377
      %v402 = vpack.c.b16 %v380, %v379
      %v403 = vpack.c.b16 %v382, %v381
      %v404 = vpack.c.b16 %v384, %v383
      %v405 = vpack.c.b16 %v386, %v385
      %v406 = vpack.c.b16 %v388, %v387
      %v407 = vpack.c.b16 %v390, %v389
      %v408 = vpack.c.b16 %v392, %v391
      %425 = vmatprep.subr.bf16.mxu0 0
      %426 = vmatpush1.bf16.msra.mxu0 %v393
      %427 = vmatprep.subr.bf16.mxu0 0
      %428 = vmatpush1.bf16.msra.mxu0 %v394
      %429 = vmatprep.subr.bf16.mxu0 0
      %430 = vmatpush1.bf16.msra.mxu0 %v395
      %431 = vmatprep.subr.bf16.mxu0 0
      %432 = vmatpush1.bf16.msra.mxu0 %v396
      %433 = vmatprep.subr.bf16.mxu0 0
      %434 = vmatpush1.bf16.msra.mxu0 %v397
      %435 = vmatprep.subr.bf16.mxu0 0
      %436 = vmatpush1.bf16.msra.mxu0 %v398
      %437 = vmatprep.subr.bf16.mxu0 0
      %438 = vmatpush1.bf16.msra.mxu0 %v399
      %439 = vmatprep.subr.bf16.mxu0 0
      %440 = vmatpush1.bf16.msra.mxu0 %v400
      %441 = vmatprep.subr.bf16.mxu0 0
      %442 = vmatpush1.bf16.msra.mxu0 %v401
      %443 = vmatprep.subr.bf16.mxu0 0
      %444 = vmatpush1.bf16.msra.mxu0 %v402
      %445 = vmatprep.subr.bf16.mxu0 0
      %446 = vmatpush1.bf16.msra.mxu0 %v403
      %447 = vmatprep.subr.bf16.mxu0 0
      %448 = vmatpush1.bf16.msra.mxu0 %v404
      %449 = vmatprep.subr.bf16.mxu0 0
      %450 = vmatpush1.bf16.msra.mxu0 %v405
      %451 = vmatprep.subr.bf16.mxu0 0
      %452 = vmatpush1.bf16.msra.mxu0 %v406
      %453 = vmatprep.subr.bf16.mxu0 0
      %454 = vmatpush1.bf16.msra.mxu0 %v407
      %455 = vmatprep.subr.bf16.mxu0 0
      %456 = vmatpush1.bf16.msra.mxu0 %v408
      %457 = vmatprep.mubr.bf16.mxu0 %v322
      %458 = vmatmul.mubr.bf16.gmra.mrb[0].mxu0 %v321
      %v459 = vpop.f32.mrb[0].mxu0
      %v460 = vadd.f32 %v307, %v459
      %v461 = vpop.f32.mrb[0].mxu0
      %v462 = vpop.f32.mrb[0].mxu0
      %v463 = vadd.f32 %v307, %v462
      %v464 = vpop.f32.mrb[0].mxu0
      %465 = vmatprep.mubr.bf16.mxu0 %v324
      %466 = vmatmul.mubr.bf16.gmra.mrb[0].mxu0 %v323
      %v467 = vpop.f32.mrb[0].mxu0
      %v468 = vadd.f32 %v307, %v467
      %v469 = vpop.f32.mrb[0].mxu0
      %v470 = vpop.f32.mrb[0].mxu0
      %v471 = vadd.f32 %v307, %v470
      %v472 = vpop.f32.mrb[0].mxu0
      %473 = vdwg.mxu0
      %v474 = vmax.f32 %v460, 0.0
      %v475 = vmax.f32 %v463, 0.0
      %v476 = vmax.f32 %v468, 0.0
      %v477 = vmax.f32 %v471, 0.0
      %v478 = vpack.c.bf16 %v475, %v474
      %v479 = vpack.c.bf16 %v477, %v476
      %v482 = vunpack.c.l.b16 %v478
      %v483 = vunpack.c.h.b16 %v478
      %v484 = vunpack.c.l.b16 %v479
      %v485 = vunpack.c.h.b16 %v479
      %v486 = vpack.c.b16 %v482, %v482
      %v487 = vpack.c.b16 %v483, %v483
      %v488 = vpack.c.b16 %v484, %v484
      %v489 = vpack.c.b16 %v485, %v485
      %vm494 = vcmask 257024
      %495 = vst.msk [vmem:[%s256] sm:$0xf] %vm494, %v486
      %496 = vst.msk [vmem:[%s256 + $0x4] sm:$0xf] %vm494, %v487
      %497 = vst.msk [vmem:[%s256 + $0x8] sm:$0xf] %vm494, %v488
      %498 = vst.msk [vmem:[%s256 + $0xc] sm:$0xf] %vm494, %v489
      %v499 = vld [vmem:[#allocation2] sm:$0x1]
      %v500 = vadd.f32 %v474, %v475
      %v501 = vadd.f32 %v500, %v476
      %v502 = vadd.f32 %v501, %v477
      %v503 = vrot.slane %v502, 4
      %v504 = vadd.f32 %v502, %v503
      %v505 = vrot.slane %v504, 2
      %v506 = vadd.f32 %v504, %v505
      %v507 = vrot.slane %v506, 1
      %v508 = vadd.f32 %v506, %v507
      %v509 = vadd.f32 %v499, %v508
      %510 = vst [vmem:[#allocation2] sm:$0x1] %v509
      %v511 = vld [vmem:[#allocation2 + $0x1] sm:$0x1]
      %v512 = vmul.f32 %v474, %v474
      %v513 = vmul.f32 %v475, %v475
      %v514 = vmul.f32 %v476, %v476
      %v515 = vmul.f32 %v477, %v477
      %v516 = vadd.f32 %v512, %v513
      %v517 = vadd.f32 %v516, %v514
      %v518 = vadd.f32 %v517, %v515
      %v519 = vrot.slane %v518, 4
      %v520 = vadd.f32 %v518, %v519
      %v521 = vrot.slane %v520, 2
      %v522 = vadd.f32 %v520, %v521
      %v523 = vrot.slane %v522, 1
      %v524 = vadd.f32 %v522, %v523
      %v525 = vadd.f32 %v511, %v524
      %526 = vst [vmem:[#allocation2 + $0x1] sm:$0x1] %v525
      %p527 = scmp.eq.s32.totalorder %s20, 3
      %p528 = pnand %p527, %p260
      %p529 = pneg %p528
      // Predicated region
      $region37: #{cnn_forward.13} parent=31 // pred_check
        _
      $region38: #{cnn_forward.13} parent=31 // pred_check_branch
        %531 = sbr.rel (%p528) target = $region40
      $region39: #{cnn_forward.13} parent=31 // pred_region
        %v532 = vld [vmem:[#allocation2] sm:$0x1]
        %v533 = vmul.f32 %v532, 0.0078125
        %v534 = vld [vmem:[#allocation2 + $0x1] sm:$0x1]
        %v535 = vmul.f32 %v534, 0.0078125
        %v536 = vmul.f32 %v533, %v533
        %v537 = vsub.f32 %v535, %v536
        %v538 = vmax.f32 %v537, 0.0
        %v539 = vadd.f32 %v538, 1e-05
        %v540 = vrsqrt.pop %v539
        %541 = vst [vmem:[%s4] sm:$0x1] %v540
        %v542 = vsub.f32 0.0, %v533
        %v543 = vmul.f32 %v542, %v540
        %544 = vst [vmem:[%s4 + $0x1] sm:$0x1] %v543
      $region40: #{cnn_forward.13} parent=31 // pred_fallthru
        _
      %s545 = smul.u32 4, %s21
      %p546 = scmp.lt.s32.totalorder %s20, 3
      %s547 = scalar_select %p546, %s20, 3
      %p548 = scmp.lt.s32.totalorder %s545, 3
      %s549 = scalar_select %p548, %s545, 3
      %s550 = smul.addr %s547, 4
      %s551 = sadd.s32 %s549, %s550
      %s552 = smul.addr %s551, 4
      %s553 = scalar_lea.vmem %s3, %s552
      // Predicated region
      $region41: #{cnn_forward.13} parent=31 // pred_check
        %p554 = pneg %p123
      $region42: #{cnn_forward.13} parent=31 // pred_check_branch
        %556 = sbr.rel (%p554) target = $region44
      $region43: #{cnn_forward.13} parent=31 // pred_region
        %s557 = smul.u32 4, %s21
      $region44: #{cnn_forward.13} parent=31 // pred_fallthru
        _
      // Predicated region
      $region45: #{cnn_forward.13} parent=31 // pred_check
        %p558 = pneg %p144
      $region46: #{cnn_forward.13} parent=31 // pred_check_branch
        %560 = sbr.rel (%p558) target = $region48
      $region47: #{cnn_forward.13} parent=31 // pred_region
        _
      $region48: #{cnn_forward.13} parent=31 // pred_fallthru
        _
      // Predicated region
      $region49: #{cnn_forward.13} parent=31 // pred_check
        %p561 = pneg %p144
      $region50: #{cnn_forward.13} parent=31 // pred_check_branch
        %563 = sbr.rel (%p561) target = $region52
      $region51: #{cnn_forward.13} parent=31 // pred_region
        _
      $region52: #{cnn_forward.13} parent=31 // pred_fallthru
        _
    $region32: #{cnn_forward.13} parent=5 // pred_fallthru
      _
    %p564 = scmp.le.s32.totalorder 2, %s11
    // Predicated region
    $region53: #{cnn_forward.13} parent=5 // pred_check
      %p565 = pneg %p564
    $region54: #{cnn_forward.13} parent=5 // pred_check_branch
      %567 = sbr.rel (%p565) target = $region56
    $region55: #{cnn_forward.13} parent=5 // pred_region
      %s568 = ssub.s32 %s11, 2
      // Predicated region
      $region57: #{cnn_forward.13} parent=55 // pred_check
        %p569 = pneg %p129
      $region58: #{cnn_forward.13} parent=55 // pred_check_branch
        %571 = sbr.rel (%p569) target = $region60
      $region59: #{cnn_forward.13} parent=55 // pred_region
        %s572 = smul.u32 4, %s23
        %p573 = scmp.lt.s32.totalorder %s22, 3
        %s574 = scalar_select %p573, %s22, 3
        %p575 = scmp.lt.s32.totalorder %s572, 3
        %s576 = scalar_select %p575, %s572, 3
        %s577 = smul.addr %s574, 4
        %s578 = sadd.s32 %s576, %s577
        %s579 = smul.addr %s578, 4
        %s580 = scalar_lea.vmem %s3, %s579
      $region60: #{cnn_forward.13} parent=55 // pred_fallthru
        _
    $region56: #{cnn_forward.13} parent=5 // pred_fallthru
      _
  $region6: #{cnn_forward.13} parent=0 // loop_footer
    %s15 = sadd.s32 1, %s11
  $region7: #{cnn_forward.13} parent=0 // loop_footer_branch
    %10 = sbr.rel target = $region3
  $region8: #{cnn_forward.13} parent=0 // loop_exit
    _

// kernel: cnn_forward.15
$region0: #{cnn_forward.15}
  #allocation0 [shape = 'u32[]', space=smem, size = 0x4, offset = 0x4, fixed_abs, tag = 'smem constant byte address 0x4 - core index']
  #allocation1 [shape = 'u32[144,128]{1,0:T(1,128)}', space=vmem, size = 0x12000, scoped, tag = 'internal scratch']
  %s0 = inlined_call_operand.vmem [shape: bf16[4,128,128], index: 0, kind: input, shape index: {}]
  %s1 = inlined_call_operand.vmem [shape: bf16[4,128,128], index: 1, kind: input, shape index: {}]
  %s2 = inlined_call_operand.vmem [shape: bf16[4,128,32], index: 2, kind: input, shape index: {}]
  %s3 = inlined_call_operand.vmem [shape: bf16[32,128], index: 3, kind: input, shape index: {}]
  %s4 = inlined_call_operand.vmem [shape: f32[3,128], index: 4, kind: input, shape index: {}]
  %s5 = inlined_call_operand.vmem [shape: f32[4,128,1], index: 5, kind: output, shape index: {}]
  %s6 = sld [smem:[#allocation0]]
  $region53: #{cnn_forward.15} parent=0
    _
  %s8 = ssub.s32 1, %s6
  %s9 = scalar_select 0, %s8, %s6
  loop: start=0, step=1, limit=6
  $region2: #{cnn_forward.15} parent=0 // loop_pre_header
    _
  $region3: #{cnn_forward.15} parent=0 // loop_header
    %s11 = sphi 0, %s15
    %p12 = scmp.ge.s32.totalorder %s11, 6
    %s18 = sphi 0, %s30
    %s19 = sphi 0, %s26
    %s20 = sphi 0, %s18
    %s21 = sphi 0, %s19
    %s22 = sphi 0, %s20
    %s23 = sphi 0, %s21
    %s35 = sphi 0, %s37
    %s38 = sphi 0, %s35
    %s39 = sphi 0, %s38
    %s55 = sphi 0, %s39
    %s61 = sphi 0, %s63
    %s64 = sphi 0, %s61
    %s65 = sphi 0, %s64
    %s81 = sphi 0, %s65
    %s89 = sphi 0, %s91
    %s92 = sphi 0, %s89
    %s93 = sphi 0, %s92
    %s109 = sphi 0, %s93
    %s113 = sphi 0, %s113
    %s115 = sphi 0, %s113
    %s116 = sphi 0, %s115
    %s130 = sphi 0, %s116
    %s134 = sphi 0, %s134
    %s136 = sphi 0, %s134
    %s137 = sphi 0, %s136
    %s151 = sphi 0, %s137
    %s159 = sphi 0, %s161
    %s162 = sphi 0, %s159
    %s163 = sphi 0, %s162
    %s179 = sphi 0, %s163
  $region4: #{cnn_forward.15} parent=0 // loop_header_branch
    %14 = sbr.rel (%p12) target = $region8
  $region5: #{cnn_forward.15} parent=0 // loop_body
    %s16 = ssub.s32 %s11, 1
    %s17 = ssub.s32 %s11, 2
    %s24 = sadd.s32 1, %s19
    %p25 = scmp.ge.s32.totalorder %s24, 1
    %s26 = scalar_select %p25, 0, %s24
    %s27 = sadd.s32 1, %s18
    %s28 = scalar_select %p25, %s27, %s18
    %p29 = scmp.ge.s32.totalorder %s28, 4
    %s30 = scalar_select %p29, 0, %s28
    %s31 = ssub.s32 %s18, %s30
    %s32 = ssub.s32 %s19, %s26
    %s33 = sor.u32 %s31, %s32
    %p34 = scmp.eq.s32.totalorder %s33, 0
    %s36 = sadd.s32 %s35, 1
    %s37 = scalar_select %p34, %s35, %s36
    %p40 = pneg %p34
    %p41 = scmp.eq.s32.totalorder %s11, 3
    %p42 = por %p40, %p41
    %p43 = scmp.ne.s32.totalorder %s35, %s38
    %p44 = scmp.eq.s32.totalorder %s11, 0
    %p45 = por %p43, %p44
    %p46 = scmp.ne.s32.totalorder %s35, %s38
    %p47 = scmp.eq.s32.totalorder %s16, 3
    %p48 = por %p46, %p47
    %p49 = scmp.ne.s32.totalorder %s38, %s39
    %p50 = scmp.eq.s32.totalorder %s16, 0
    %p51 = por %p49, %p50
    %p52 = scmp.ne.s32.totalorder %s38, %s39
    %p53 = scmp.eq.s32.totalorder %s17, 3
    %p54 = por %p52, %p53
    %p56 = scmp.ne.s32.totalorder %s39, %s55
    %p57 = scmp.eq.s32.totalorder %s17, 0
    %p58 = por %p56, %p57
    %s59 = ssub.s32 %s18, %s30
    %p60 = scmp.eq.s32.totalorder %s59, 0
    %s62 = sadd.s32 %s61, 1
    %s63 = scalar_select %p60, %s61, %s62
    %p66 = pneg %p60
    %p67 = scmp.eq.s32.totalorder %s11, 3
    %p68 = por %p66, %p67
    %p69 = scmp.ne.s32.totalorder %s61, %s64
    %p70 = scmp.eq.s32.totalorder %s11, 0
    %p71 = por %p69, %p70
    %p72 = scmp.ne.s32.totalorder %s61, %s64
    %p73 = scmp.eq.s32.totalorder %s16, 3
    %p74 = por %p72, %p73
    %p75 = scmp.ne.s32.totalorder %s64, %s65
    %p76 = scmp.eq.s32.totalorder %s16, 0
    %p77 = por %p75, %p76
    %p78 = scmp.ne.s32.totalorder %s64, %s65
    %p79 = scmp.eq.s32.totalorder %s17, 3
    %p80 = por %p78, %p79
    %p82 = scmp.ne.s32.totalorder %s65, %s81
    %p83 = scmp.eq.s32.totalorder %s17, 0
    %p84 = por %p82, %p83
    %s85 = ssub.s32 %s18, %s30
    %s86 = ssub.s32 %s19, %s26
    %s87 = sor.u32 %s85, %s86
    %p88 = scmp.eq.s32.totalorder %s87, 0
    %s90 = sadd.s32 %s89, 1
    %s91 = scalar_select %p88, %s89, %s90
    %p94 = pneg %p88
    %p95 = scmp.eq.s32.totalorder %s11, 3
    %p96 = por %p94, %p95
    %p97 = scmp.ne.s32.totalorder %s89, %s92
    %p98 = scmp.eq.s32.totalorder %s11, 0
    %p99 = por %p97, %p98
    %p100 = scmp.ne.s32.totalorder %s89, %s92
    %p101 = scmp.eq.s32.totalorder %s16, 3
    %p102 = por %p100, %p101
    %p103 = scmp.ne.s32.totalorder %s92, %s93
    %p104 = scmp.eq.s32.totalorder %s16, 0
    %p105 = por %p103, %p104
    %p106 = scmp.ne.s32.totalorder %s92, %s93
    %p107 = scmp.eq.s32.totalorder %s17, 3
    %p108 = por %p106, %p107
    %p110 = scmp.ne.s32.totalorder %s93, %s109
    %p111 = scmp.eq.s32.totalorder %s17, 0
    %p112 = por %p110, %p111
    %s114 = sadd.s32 %s113, 1
    %p117 = scmp.eq.s32.totalorder %s11, 3
    %p118 = scmp.ne.s32.totalorder %s113, %s115
    %p119 = scmp.eq.s32.totalorder %s11, 0
    %p120 = por %p118, %p119
    %p121 = scmp.ne.s32.totalorder %s113, %s115
    %p122 = scmp.eq.s32.totalorder %s16, 3
    %p123 = por %p121, %p122
    %p124 = scmp.ne.s32.totalorder %s115, %s116
    %p125 = scmp.eq.s32.totalorder %s16, 0
    %p126 = por %p124, %p125
    %p127 = scmp.ne.s32.totalorder %s115, %s116
    %p128 = scmp.eq.s32.totalorder %s17, 3
    %p129 = por %p127, %p128
    %p131 = scmp.ne.s32.totalorder %s116, %s130
    %p132 = scmp.eq.s32.totalorder %s17, 0
    %p133 = por %p131, %p132
    %s135 = sadd.s32 %s134, 1
    %p138 = scmp.eq.s32.totalorder %s11, 3
    %p139 = scmp.ne.s32.totalorder %s134, %s136
    %p140 = scmp.eq.s32.totalorder %s11, 0
    %p141 = por %p139, %p140
    %p142 = scmp.ne.s32.totalorder %s134, %s136
    %p143 = scmp.eq.s32.totalorder %s16, 3
    %p144 = por %p142, %p143
    %p145 = scmp.ne.s32.totalorder %s136, %s137
    %p146 = scmp.eq.s32.totalorder %s16, 0
    %p147 = por %p145, %p146
    %p148 = scmp.ne.s32.totalorder %s136, %s137
    %p149 = scmp.eq.s32.totalorder %s17, 3
    %p150 = por %p148, %p149
    %p152 = scmp.ne.s32.totalorder %s137, %s151
    %p153 = scmp.eq.s32.totalorder %s17, 0
    %p154 = por %p152, %p153
    %s155 = ssub.s32 %s18, %s30
    %s156 = ssub.s32 %s19, %s26
    %s157 = sor.u32 %s155, %s156
    %p158 = scmp.eq.s32.totalorder %s157, 0
    %s160 = sadd.s32 %s159, 1
    %s161 = scalar_select %p158, %s159, %s160
    %p164 = pneg %p158
    %p165 = scmp.eq.s32.totalorder %s11, 3
    %p166 = por %p164, %p165
    %p167 = scmp.ne.s32.totalorder %s159, %s162
    %p168 = scmp.eq.s32.totalorder %s11, 0
    %p169 = por %p167, %p168
    %p170 = scmp.ne.s32.totalorder %s159, %s162
    %p171 = scmp.eq.s32.totalorder %s16, 3
    %p172 = por %p170, %p171
    %p173 = scmp.ne.s32.totalorder %s162, %s163
    %p174 = scmp.eq.s32.totalorder %s16, 0
    %p175 = por %p173, %p174
    %p176 = scmp.ne.s32.totalorder %s162, %s163
    %p177 = scmp.eq.s32.totalorder %s17, 3
    %p178 = por %p176, %p177
    %p180 = scmp.ne.s32.totalorder %s163, %s179
    %p181 = scmp.eq.s32.totalorder %s17, 0
    %p182 = por %p180, %p181
    %p183 = scmp.le.s32.totalorder 1, %s11
    %p184 = scmp.lt.s32.totalorder %s11, 5
    %p185 = pnand %p183, %p184
    %p186 = pneg %p185
    // Predicated region
    $region9: #{cnn_forward.15} parent=5 // pred_check
      _
    $region10: #{cnn_forward.15} parent=5 // pred_check_branch
      %188 = sbr.rel (%p185) target = $region12
    $region11: #{cnn_forward.15} parent=5 // pred_region
      %s189 = ssub.s32 %s11, 1
      // Predicated region
      $region13: #{cnn_forward.15} parent=11 // pred_check
        %p190 = pneg %p126
      $region14: #{cnn_forward.15} parent=11 // pred_check_branch
        %192 = sbr.rel (%p190) target = $region16
      $region15: #{cnn_forward.15} parent=11 // pred_region
        _
      $region16: #{cnn_forward.15} parent=11 // pred_fallthru
        _
      // Predicated region
      $region17: #{cnn_forward.15} parent=11 // pred_check
        %p193 = pneg %p147
      $region18: #{cnn_forward.15} parent=11 // pred_check_branch
        %195 = sbr.rel (%p193) target = $region20
      $region19: #{cnn_forward.15} parent=11 // pred_region
        _
      $region20: #{cnn_forward.15} parent=11 // pred_fallthru
        _
    $region12: #{cnn_forward.15} parent=5 // pred_fallthru
      _
    %p196 = scmp.lt.s32.totalorder %s11, 4
    // Predicated region
    $region21: #{cnn_forward.15} parent=5 // pred_check
      %p197 = pneg %p196
    $region22: #{cnn_forward.15} parent=5 // pred_check_branch
      %199 = sbr.rel (%p197) target = $region24
    $region23: #{cnn_forward.15} parent=5 // pred_region
      // Predicated region
      $region25: #{cnn_forward.15} parent=23 // pred_check
        %p200 = pneg %p45
      $region26: #{cnn_forward.15} parent=23 // pred_check_branch
        %202 = sbr.rel (%p200) target = $region28
      $region27: #{cnn_forward.15} parent=23 // pred_region
        %s203 = smul.u32 16, %s19
        %p204 = scmp.lt.s32.totalorder %s18, 3
        %s205 = scalar_select %p204, %s18, 3
        %p206 = scmp.lt.s32.totalorder %s203, 15
        %s207 = scalar_select %p206, %s203, 15
        %s208 = smul.addr %s205, 16
        %s209 = sadd.s32 %s207, %s208
        %s210 = smul.addr %s209, 4
        %s211 = scalar_lea.vmem %s0, %s210
        %s212 = smul.u32 16, %s19
      $region28: #{cnn_forward.15} parent=23 // pred_fallthru
        _
      // Predicated region
      $region29: #{cnn_forward.15} parent=23 // pred_check
        %p213 = pneg %p71
      $region30: #{cnn_forward.15} parent=23 // pred_check_branch
        %215 = sbr.rel (%p213) target = $region32
      $region31: #{cnn_forward.15} parent=23 // pred_region
        %p216 = scmp.lt.s32.totalorder %s18, 3
        %s217 = scalar_select %p216, %s18, 3
        %s218 = smul.addr %s217, 16
        %s219 = smul.addr %s218, 4
        %s220 = scalar_lea.vmem %s1, %s219
      $region32: #{cnn_forward.15} parent=23 // pred_fallthru
        _
      // Predicated region
      $region33: #{cnn_forward.15} parent=23 // pred_check
        %p221 = pneg %p99
      $region34: #{cnn_forward.15} parent=23 // pred_check_branch
        %223 = sbr.rel (%p221) target = $region36
      $region35: #{cnn_forward.15} parent=23 // pred_region
        %s224 = smul.u32 16, %s19
        %p225 = scmp.lt.s32.totalorder %s18, 3
        %s226 = scalar_select %p225, %s18, 3
        %p227 = scmp.lt.s32.totalorder %s224, 15
        %s228 = scalar_select %p227, %s224, 15
        %s229 = smul.addr %s226, 16
        %s230 = sadd.s32 %s228, %s229
        %s231 = smul.addr %s230, 4
        %s232 = scalar_lea.vmem %s2, %s231
        %s233 = smul.u32 16, %s19
      $region36: #{cnn_forward.15} parent=23 // pred_fallthru
        _
    $region24: #{cnn_forward.15} parent=5 // pred_fallthru
      _
    %p234 = scmp.le.s32.totalorder 1, %s11
    %p235 = scmp.lt.s32.totalorder %s11, 5
    %p236 = pnand %p234, %p235
    %p237 = pneg %p236
    // Predicated region
    $region37: #{cnn_forward.15} parent=5 // pred_check
      _
    $region38: #{cnn_forward.15} parent=5 // pred_check_branch
      %239 = sbr.rel (%p236) target = $region40
    $region39: #{cnn_forward.15} parent=5 // pred_region
      %s240 = ssub.s32 %s11, 1
      %s241 = smul.u32 16, %s21
      %p242 = scmp.lt.s32.totalorder %s20, 3
      %s243 = scalar_select %p242, %s20, 3
      %p244 = scmp.lt.s32.totalorder %s241, 15
      %s245 = scalar_select %p244, %s241, 15
      %s246 = smul.addr %s243, 16
      %s247 = sadd.s32 %s245, %s246
      %s248 = smul.addr %s247, 4
      %s249 = scalar_lea.vmem %s0, %s248
      %p250 = pneg %p51
      %p251 = pneg %p48
      %p252 = scmp.lt.s32.totalorder %s20, 3
      %s253 = scalar_select %p252, %s20, 3
      %s254 = smul.addr %s253, 16
      %s255 = smul.addr %s254, 4
      %s256 = scalar_lea.vmem %s1, %s255
      %p257 = pneg %p77
      %p258 = pneg %p74
      %s259 = smul.u32 16, %s21
      %p260 = scmp.lt.s32.totalorder %s20, 3
      %s261 = scalar_select %p260, %s20, 3
      %p262 = scmp.lt.s32.totalorder %s259, 15
      %s263 = scalar_select %p262, %s259, 15
      %s264 = smul.addr %s261, 16
      %s265 = sadd.s32 %s263, %s264
      %s266 = smul.addr %s265, 4
      %s267 = scalar_lea.vmem %s2, %s266
      %p268 = pneg %p105
      %p269 = pneg %p102
      %p270 = pneg %p126
      %p271 = pneg %p123
      %p272 = pneg %p147
      %p273 = pneg %p144
      %p274 = pneg %p175
      %p275 = pneg %p172
      %s276 = smul.u32 16, %s21
      %p277 = scmp.lt.s32.totalorder %s20, 3
      %s278 = scalar_select %p277, %s20, 3
      %p279 = scmp.lt.s32.totalorder %s276, 15
      %s280 = scalar_select %p279, %s276, 15
      %s281 = smul.addr %s278, 16
      %s282 = sadd.s32 %s280, %s281
      %s283 = smul.addr %s282, 8
      %s284 = scalar_lea.vmem %s5, %s283
      %s285 = smul.u32 16, %s21
      %p286 = scmp.lt.s32.totalorder %s20, 3
      %s287 = scalar_select %p286, %s20, 3
      %p288 = scmp.lt.s32.totalorder %s285, 15
      %s289 = scalar_select %p288, %s285, 15
      %s290 = smul.addr %s287, 16
      %s291 = sadd.s32 %s289, %s290
      %s292 = smul.addr %s291, 4
      %s293 = scalar_lea.vmem %s0, %s292
      %s294 = smul.u32 16, %s21
      %p295 = scmp.lt.s32.totalorder %s20, 3
      %s296 = scalar_select %p295, %s20, 3
      %s297 = smul.addr %s296, 16
      %s298 = smul.addr %s297, 4
      %s299 = scalar_lea.vmem %s1, %s298
      %s300 = smul.u32 16, %s21
      %p301 = scmp.lt.s32.totalorder %s20, 3
      %s302 = scalar_select %p301, %s20, 3
      %p303 = scmp.lt.s32.totalorder %s300, 15
      %s304 = scalar_select %p303, %s300, 15
      %s305 = smul.addr %s302, 16
      %s306 = sadd.s32 %s304, %s305
      %s307 = smul.addr %s306, 4
      %s308 = scalar_lea.vmem %s2, %s307
      %s309 = smul.u32 16, %s21
      %s310 = smul.u32 16, %s21
      %p311 = scmp.lt.s32.totalorder %s20, 3
      %s312 = scalar_select %p311, %s20, 3
      %p313 = scmp.lt.s32.totalorder %s310, 15
      %s314 = scalar_select %p313, %s310, 15
      %s315 = smul.addr %s312, 16
      %s316 = sadd.s32 %s314, %s315
      %s317 = smul.addr %s316, 8
      %s318 = scalar_lea.vmem %s5, %s317
      %s319 = smul.u32 16, %s21
      %v321 = vld [vmem:[%s293] sm:$0xf]
      %v322 = vld [vmem:[%s293 + $0x4] sm:$0xf]
      %v323 = vld [vmem:[%s293 + $0x8] sm:$0xf]
      %v324 = vld [vmem:[%s293 + $0xc] sm:$0xf]
      %v325 = vld [vmem:[%s293 + $0x10] sm:$0xf]
      %v326 = vld [vmem:[%s293 + $0x14] sm:$0xf]
      %v327 = vld [vmem:[%s293 + $0x18] sm:$0xf]
      %v328 = vld [vmem:[%s293 + $0x1c] sm:$0xf]
      %v329 = vld [vmem:[%s293 + $0x20] sm:$0xf]
      %v330 = vld [vmem:[%s293 + $0x24] sm:$0xf]
      %v331 = vld [vmem:[%s293 + $0x28] sm:$0xf]
      %v332 = vld [vmem:[%s293 + $0x2c] sm:$0xf]
      %v333 = vld [vmem:[%s293 + $0x30] sm:$0xf]
      %v334 = vld [vmem:[%s293 + $0x34] sm:$0xf]
      %v335 = vld [vmem:[%s293 + $0x38] sm:$0xf]
      %v336 = vld [vmem:[%s293 + $0x3c] sm:$0xf]
      %v337 = vld [vmem:[%s299] sm:$0xf]
      %v338 = vld [vmem:[%s299 + $0x4] sm:$0xf]
      %v339 = vld [vmem:[%s299 + $0x8] sm:$0xf]
      %v340 = vld [vmem:[%s299 + $0xc] sm:$0xf]
      %v341 = vld [vmem:[%s299 + $0x10] sm:$0xf]
      %v342 = vld [vmem:[%s299 + $0x14] sm:$0xf]
      %v343 = vld [vmem:[%s299 + $0x18] sm:$0xf]
      %v344 = vld [vmem:[%s299 + $0x1c] sm:$0xf]
      %v345 = vld [vmem:[%s299 + $0x20] sm:$0xf]
      %v346 = vld [vmem:[%s299 + $0x24] sm:$0xf]
      %v347 = vld [vmem:[%s299 + $0x28] sm:$0xf]
      %v348 = vld [vmem:[%s299 + $0x2c] sm:$0xf]
      %v349 = vld [vmem:[%s299 + $0x30] sm:$0xf]
      %v350 = vld [vmem:[%s299 + $0x34] sm:$0xf]
      %v351 = vld [vmem:[%s299 + $0x38] sm:$0xf]
      %v352 = vld [vmem:[%s299 + $0x3c] sm:$0xf]
      %v353 = vld [vmem:[%s4] sm:$0x1]
      %v354 = vlaneseq
      %v355 = vshrl.u32 %v354, 7
      %v356 = vsub.s32 0, %v355
      %v357 = vrot.slane %v353, %v356
      %v374 = vunpack.c.l.b16 %v321
      %v375 = vunpack.c.l.b16 %v322
      %v376 = vunpack.c.l.b16 %v323
      %v377 = vunpack.c.l.b16 %v324
      %v378 = vunpack.c.l.b16 %v325
      %v379 = vunpack.c.l.b16 %v326
      %v380 = vunpack.c.l.b16 %v327
      %v381 = vunpack.c.l.b16 %v328
      %v382 = vunpack.c.l.b16 %v329
      %v383 = vunpack.c.l.b16 %v330
      %v384 = vunpack.c.l.b16 %v331
      %v385 = vunpack.c.l.b16 %v332
      %v386 = vunpack.c.l.b16 %v333
      %v387 = vunpack.c.l.b16 %v334
      %v388 = vunpack.c.l.b16 %v335
      %v389 = vunpack.c.l.b16 %v336
      %v390 = vpack.c.b16 %v375, %v374
      %v391 = vpack.c.b16 %v377, %v376
      %v392 = vpack.c.b16 %v379, %v378
      %v393 = vpack.c.b16 %v381, %v380
      %v394 = vpack.c.b16 %v383, %v382
      %v395 = vpack.c.b16 %v385, %v384
      %v396 = vpack.c.b16 %v387, %v386
      %v397 = vpack.c.b16 %v389, %v388
      %v422 = vunpack.c.l.b16 %v337
      %v423 = vunpack.c.l.b16 %v338
      %v424 = vunpack.c.l.b16 %v339
      %v425 = vunpack.c.l.b16 %v340
      %v426 = vunpack.c.l.b16 %v341
      %v427 = vunpack.c.l.b16 %v342
      %v428 = vunpack.c.l.b16 %v343
      %v429 = vunpack.c.l.b16 %v344
      %v430 = vunpack.c.l.b16 %v345
      %v431 = vunpack.c.l.b16 %v346
      %v432 = vunpack.c.l.b16 %v347
      %v433 = vunpack.c.l.b16 %v348
      %v434 = vunpack.c.l.b16 %v349
      %v435 = vunpack.c.l.b16 %v350
      %v436 = vunpack.c.l.b16 %v351
      %v437 = vunpack.c.l.b16 %v352
      %v438 = vpack.c.b16 %v423, %v422
      %v439 = vpack.c.b16 %v425, %v424
      %v440 = vpack.c.b16 %v427, %v426
      %v441 = vpack.c.b16 %v429, %v428
      %v442 = vpack.c.b16 %v431, %v430
      %v443 = vpack.c.b16 %v433, %v432
      %v444 = vpack.c.b16 %v435, %v434
      %v445 = vpack.c.b16 %v437, %v436
      %454 = vmatprep.subr.bf16.mxu0 0
      %455 = vmatpush1.bf16.msra.mxu0 %v438
      %456 = vmatprep.subr.bf16.mxu0 0
      %457 = vmatpush1.bf16.msra.mxu0 %v439
      %458 = vmatprep.subr.bf16.mxu0 0
      %459 = vmatpush1.bf16.msra.mxu0 %v440
      %460 = vmatprep.subr.bf16.mxu0 0
      %461 = vmatpush1.bf16.msra.mxu0 %v441
      %462 = vmatprep.subr.bf16.mxu0 0
      %463 = vmatpush1.bf16.msra.mxu0 %v442
      %464 = vmatprep.subr.bf16.mxu0 0
      %465 = vmatpush1.bf16.msra.mxu0 %v443
      %466 = vmatprep.subr.bf16.mxu0 0
      %467 = vmatpush1.bf16.msra.mxu0 %v444
      %468 = vmatprep.subr.bf16.mxu0 0
      %469 = vmatpush1.bf16.msra.mxu0 %v445
      %470 = vmatprep.subr.bf16.mxu0 0
      %471 = vmatpush1.bf16.msra.mxu0 0
      %472 = vmatprep.subr.bf16.mxu0 0
      %473 = vmatpush1.bf16.msra.mxu0 0
      %474 = vmatprep.subr.bf16.mxu0 0
      %475 = vmatpush1.bf16.msra.mxu0 0
      %476 = vmatprep.subr.bf16.mxu0 0
      %477 = vmatpush1.bf16.msra.mxu0 0
      %478 = vmatprep.subr.bf16.mxu0 0
      %479 = vmatpush1.bf16.msra.mxu0 0
      %480 = vmatprep.subr.bf16.mxu0 0
      %481 = vmatpush1.bf16.msra.mxu0 0
      %482 = vmatprep.subr.bf16.mxu0 0
      %483 = vmatpush1.bf16.msra.mxu0 0
      %484 = vmatprep.subr.bf16.mxu0 0
      %485 = vmatpush1.bf16.msra.mxu0 0
      %486 = vmatprep.mubr.bf16.mxu0 0
      %487 = vmatmul.mubr.bf16.gmra.mrb[0].mxu0 %v390
      %v488 = vpop.f32.mrb[0].mxu0
      %v489 = vadd.f32 %v357, %v488
      %v490 = vpop.f32.mrb[0].mxu0
      %v491 = vpop.f32.mrb[0].mxu0
      %v492 = vadd.f32 %v357, %v491
      %v493 = vpop.f32.mrb[0].mxu0
      %494 = vmatprep.mubr.bf16.mxu0 0
      %495 = vmatmul.mubr.bf16.gmra.mrb[0].mxu0 %v391
      %v496 = vpop.f32.mrb[0].mxu0
      %v497 = vadd.f32 %v357, %v496
      %v498 = vpop.f32.mrb[0].mxu0
      %v499 = vpop.f32.mrb[0].mxu0
      %v500 = vadd.f32 %v357, %v499
      %v501 = vpop.f32.mrb[0].mxu0
      %502 = vmatprep.mubr.bf16.mxu0 0
      %503 = vmatmul.mubr.bf16.gmra.mrb[0].mxu0 %v392
      %v504 = vpop.f32.mrb[0].mxu0
      %v505 = vadd.f32 %v357, %v504
      %v506 = vpop.f32.mrb[0].mxu0
      %v507 = vpop.f32.mrb[0].mxu0
      %v508 = vadd.f32 %v357, %v507
      %v509 = vpop.f32.mrb[0].mxu0
      %510 = vmatprep.mubr.bf16.mxu0 0
      %511 = vmatmul.mubr.bf16.gmra.mrb[0].mxu0 %v393
      %v512 = vpop.f32.mrb[0].mxu0
      %v513 = vadd.f32 %v357, %v512
      %v514 = vpop.f32.mrb[0].mxu0
      %v515 = vpop.f32.mrb[0].mxu0
      %v516 = vadd.f32 %v357, %v515
      %v517 = vpop.f32.mrb[0].mxu0
      %518 = vmatprep.mubr.bf16.mxu0 0
      %519 = vmatmul.mubr.bf16.gmra.mrb[0].mxu0 %v394
      %v520 = vpop.f32.mrb[0].mxu0
      %v521 = vadd.f32 %v357, %v520
      %v522 = vpop.f32.mrb[0].mxu0
      %v523 = vpop.f32.mrb[0].mxu0
      %v524 = vadd.f32 %v357, %v523
      %v525 = vpop.f32.mrb[0].mxu0
      %526 = vmatprep.mubr.bf16.mxu0 0
      %527 = vmatmul.mubr.bf16.gmra.mrb[0].mxu0 %v395
      %v528 = vpop.f32.mrb[0].mxu0
      %v529 = vadd.f32 %v357, %v528
      %v530 = vpop.f32.mrb[0].mxu0
      %v531 = vpop.f32.mrb[0].mxu0
      %v532 = vadd.f32 %v357, %v531
      %v533 = vpop.f32.mrb[0].mxu0
      %534 = vmatprep.mubr.bf16.mxu0 0
      %535 = vmatmul.mubr.bf16.gmra.mrb[0].mxu0 %v396
      %v536 = vpop.f32.mrb[0].mxu0
      %v537 = vadd.f32 %v357, %v536
      %v538 = vpop.f32.mrb[0].mxu0
      %v539 = vpop.f32.mrb[0].mxu0
      %v540 = vadd.f32 %v357, %v539
      %v541 = vpop.f32.mrb[0].mxu0
      %542 = vmatprep.mubr.bf16.mxu0 0
      %543 = vmatmul.mubr.bf16.gmra.mrb[0].mxu0 %v397
      %v544 = vpop.f32.mrb[0].mxu0
      %v545 = vadd.f32 %v357, %v544
      %v546 = vpop.f32.mrb[0].mxu0
      %v547 = vpop.f32.mrb[0].mxu0
      %v548 = vadd.f32 %v357, %v547
      %v549 = vpop.f32.mrb[0].mxu0
      %550 = vdwg.mxu0
      %v551 = vmax.f32 %v489, 0.0
      %v552 = vmax.f32 %v492, 0.0
      %v553 = vmax.f32 %v497, 0.0
      %v554 = vmax.f32 %v500, 0.0
      %v555 = vmax.f32 %v505, 0.0
      %v556 = vmax.f32 %v508, 0.0
      %v557 = vmax.f32 %v513, 0.0
      %v558 = vmax.f32 %v516, 0.0
      %v559 = vmax.f32 %v521, 0.0
      %v560 = vmax.f32 %v524, 0.0
      %v561 = vmax.f32 %v529, 0.0
      %v562 = vmax.f32 %v532, 0.0
      %v563 = vmax.f32 %v537, 0.0
      %v564 = vmax.f32 %v540, 0.0
      %v565 = vmax.f32 %v545, 0.0
      %v566 = vmax.f32 %v548, 0.0
      %v567 = vld [vmem:[%s308] sm:$0xf]
      %v568 = vld [vmem:[%s308 + $0x4] sm:$0xf]
      %v569 = vld [vmem:[%s308 + $0x8] sm:$0xf]
      %v570 = vld [vmem:[%s308 + $0xc] sm:$0xf]
      %v571 = vld [vmem:[%s308 + $0x10] sm:$0xf]
      %v572 = vld [vmem:[%s308 + $0x14] sm:$0xf]
      %v573 = vld [vmem:[%s308 + $0x18] sm:$0xf]
      %v574 = vld [vmem:[%s308 + $0x1c] sm:$0xf]
      %v575 = vld [vmem:[%s308 + $0x20] sm:$0xf]
      %v576 = vld [vmem:[%s308 + $0x24] sm:$0xf]
      %v577 = vld [vmem:[%s308 + $0x28] sm:$0xf]
      %v578 = vld [vmem:[%s308 + $0x2c] sm:$0xf]
      %v579 = vld [vmem:[%s308 + $0x30] sm:$0xf]
      %v580 = vld [vmem:[%s308 + $0x34] sm:$0xf]
      %v581 = vld [vmem:[%s308 + $0x38] sm:$0xf]
      %v582 = vld [vmem:[%s308 + $0x3c] sm:$0xf]
      %v583 = vld [vmem:[%s3] sm:$0xf]
      %v584 = vld [vmem:[%s3 + $0x4] sm:$0xf]
      %v585 = vld [vmem:[%s3 + $0x8] sm:$0xf]
      %v586 = vld [vmem:[%s3 + $0xc] sm:$0xf]
      %v603 = vunpack.c.l.b16 %v567
      %v604 = vunpack.c.l.b16 %v568
      %v605 = vunpack.c.l.b16 %v569
      %v606 = vunpack.c.l.b16 %v570
      %v607 = vunpack.c.l.b16 %v571
      %v608 = vunpack.c.l.b16 %v572
      %v609 = vunpack.c.l.b16 %v573
      %v610 = vunpack.c.l.b16 %v574
      %v611 = vunpack.c.l.b16 %v575
      %v612 = vunpack.c.l.b16 %v576
      %v613 = vunpack.c.l.b16 %v577
      %v614 = vunpack.c.l.b16 %v578
      %v615 = vunpack.c.l.b16 %v579
      %v616 = vunpack.c.l.b16 %v580
      %v617 = vunpack.c.l.b16 %v581
      %v618 = vunpack.c.l.b16 %v582
      %v619 = vpack.c.b16 %v604, %v603
      %v620 = vpack.c.b16 %v606, %v605
      %v621 = vpack.c.b16 %v608, %v607
      %v622 = vpack.c.b16 %v610, %v609
      %v623 = vpack.c.b16 %v612, %v611
      %v624 = vpack.c.b16 %v614, %v613
      %v625 = vpack.c.b16 %v616, %v615
      %v626 = vpack.c.b16 %v618, %v617
      %v631 = vunpack.c.l.b16 %v583
      %v632 = vunpack.c.l.b16 %v584
      %v633 = vunpack.c.l.b16 %v585
      %v634 = vunpack.c.l.b16 %v586
      %v635 = vpack.c.b16 %v632, %v631
      %v636 = vpack.c.b16 %v634, %v633
      %vm639 = vcmask 261120
      %v641 = vsel %vm639, %v619, 0
      %v644 = vsel %vm639, %v620, 0
      %v647 = vsel %vm639, %v621, 0
      %v650 = vsel %vm639, %v622, 0
      %v653 = vsel %vm639, %v623, 0
      %v656 = vsel %vm639, %v624, 0
      %v659 = vsel %vm639, %v625, 0
      %v662 = vsel %vm639, %v626, 0
      %664 = vmatprep.subr.bf16.mxu0 0
      %665 = vmatpush1.bf16.msra.mxu0 %v635
      %666 = vmatprep.subr.bf16.mxu0 0
      %667 = vmatpush1.bf16.msra.mxu0 %v636
      %668 = vmatprep.subr.bf16.mxu0 0
      %669 = vmatpush1.bf16.msra.mxu0 0
      %670 = vmatprep.subr.bf16.mxu0 0
      %671 = vmatpush1.bf16.msra.mxu0 0
      %672 = vmatprep.subr.bf16.mxu0 0
      %673 = vmatpush1.bf16.msra.mxu0 0
      %674 = vmatprep.subr.bf16.mxu0 0
      %675 = vmatpush1.bf16.msra.mxu0 0
      %676 = vmatprep.subr.bf16.mxu0 0
      %677 = vmatpush1.bf16.msra.mxu0 0
      %678 = vmatprep.subr.bf16.mxu0 0
      %679 = vmatpush1.bf16.msra.mxu0 0
      %680 = vmatprep.subr.bf16.mxu0 0
      %681 = vmatpush1.bf16.msra.mxu0 0
      %682 = vmatprep.subr.bf16.mxu0 0
      %683 = vmatpush1.bf16.msra.mxu0 0
      %684 = vmatprep.subr.bf16.mxu0 0
      %685 = vmatpush1.bf16.msra.mxu0 0
      %686 = vmatprep.subr.bf16.mxu0 0
      %687 = vmatpush1.bf16.msra.mxu0 0
      %688 = vmatprep.subr.bf16.mxu0 0
      %689 = vmatpush1.bf16.msra.mxu0 0
      %690 = vmatprep.subr.bf16.mxu0 0
      %691 = vmatpush1.bf16.msra.mxu0 0
      %692 = vmatprep.subr.bf16.mxu0 0
      %693 = vmatpush1.bf16.msra.mxu0 0
      %694 = vmatprep.subr.bf16.mxu0 0
      %695 = vmatpush1.bf16.msra.mxu0 0
      %696 = vmatprep.mubr.bf16.mxu0 0
      %697 = vmatmul.mubr.bf16.gmra.mrb[0].mxu0 %v641
      %v698 = vpop.f32.mrb[0].mxu0
      %v699 = vadd.f32 0.0, %v698
      %v700 = vpop.f32.mrb[0].mxu0
      %v701 = vpop.f32.mrb[0].mxu0
      %v702 = vadd.f32 0.0, %v701
      %v703 = vpop.f32.mrb[0].mxu0
      %704 = vmatprep.mubr.bf16.mxu0 0
      %705 = vmatmul.mubr.bf16.gmra.mrb[0].mxu0 %v644
      %v706 = vpop.f32.mrb[0].mxu0
      %v707 = vadd.f32 0.0, %v706
      %v708 = vpop.f32.mrb[0].mxu0
      %v709 = vpop.f32.mrb[0].mxu0
      %v710 = vadd.f32 0.0, %v709
      %v711 = vpop.f32.mrb[0].mxu0
      %712 = vmatprep.mubr.bf16.mxu0 0
      %713 = vmatmul.mubr.bf16.gmra.mrb[0].mxu0 %v647
      %v714 = vpop.f32.mrb[0].mxu0
      %v715 = vadd.f32 0.0, %v714
      %v716 = vpop.f32.mrb[0].mxu0
      %v717 = vpop.f32.mrb[0].mxu0
      %v718 = vadd.f32 0.0, %v717
      %v719 = vpop.f32.mrb[0].mxu0
      %720 = vmatprep.mubr.bf16.mxu0 0
      %721 = vmatmul.mubr.bf16.gmra.mrb[0].mxu0 %v650
      %v722 = vpop.f32.mrb[0].mxu0
      %v723 = vadd.f32 0.0, %v722
      %v724 = vpop.f32.mrb[0].mxu0
      %v725 = vpop.f32.mrb[0].mxu0
      %v726 = vadd.f32 0.0, %v725
      %v727 = vpop.f32.mrb[0].mxu0
      %728 = vmatprep.mubr.bf16.mxu0 0
      %729 = vmatmul.mubr.bf16.gmra.mrb[0].mxu0 %v653
      %v730 = vpop.f32.mrb[0].mxu0
      %v731 = vadd.f32 0.0, %v730
      %v732 = vpop.f32.mrb[0].mxu0
      %v733 = vpop.f32.mrb[0].mxu0
      %v734 = vadd.f32 0.0, %v733
      %v735 = vpop.f32.mrb[0].mxu0
      %736 = vmatprep.mubr.bf16.mxu0 0
      %737 = vmatmul.mubr.bf16.gmra.mrb[0].mxu0 %v656
      %v738 = vpop.f32.mrb[0].mxu0
      %v739 = vadd.f32 0.0, %v738
      %v740 = vpop.f32.mrb[0].mxu0
      %v741 = vpop.f32.mrb[0].mxu0
      %v742 = vadd.f32 0.0, %v741
      %v743 = vpop.f32.mrb[0].mxu0
      %744 = vmatprep.mubr.bf16.mxu0 0
      %745 = vmatmul.mubr.bf16.gmra.mrb[0].mxu0 %v659
      %v746 = vpop.f32.mrb[0].mxu0
      %v747 = vadd.f32 0.0, %v746
      %v748 = vpop.f32.mrb[0].mxu0
      %v749 = vpop.f32.mrb[0].mxu0
      %v750 = vadd.f32 0.0, %v749
      %v751 = vpop.f32.mrb[0].mxu0
      %752 = vmatprep.mubr.bf16.mxu0 0
      %753 = vmatmul.mubr.bf16.gmra.mrb[0].mxu0 %v662
      %v754 = vpop.f32.mrb[0].mxu0
      %v755 = vadd.f32 0.0, %v754
      %v756 = vpop.f32.mrb[0].mxu0
      %v757 = vpop.f32.mrb[0].mxu0
      %v758 = vadd.f32 0.0, %v757
      %v759 = vpop.f32.mrb[0].mxu0
      %760 = vdwg.mxu0
      %v761 = vld [vmem:[%s4 + $0x1] sm:$0x1]
      %v762 = vlaneseq
      %v763 = vshrl.u32 %v762, 7
      %v764 = vsub.s32 0, %v763
      %v765 = vrot.slane %v761, %v764
      %v766 = vmul.f32 %v551, %v765
      %v767 = vmul.f32 %v552, %v765
      %v768 = vmul.f32 %v553, %v765
      %v769 = vmul.f32 %v554, %v765
      %v770 = vmul.f32 %v555, %v765
      %v771 = vmul.f32 %v556, %v765
      %v772 = vmul.f32 %v557, %v765
      %v773 = vmul.f32 %v558, %v765
      %v774 = vmul.f32 %v559, %v765
      %v775 = vmul.f32 %v560, %v765
      %v776 = vmul.f32 %v561, %v765
      %v777 = vmul.f32 %v562, %v765
      %v778 = vmul.f32 %v563, %v765
      %v779 = vmul.f32 %v564, %v765
      %v780 = vmul.f32 %v565, %v765
      %v781 = vmul.f32 %v566, %v765
      %v782 = vadd.f32 %v766, %v699
      %v783 = vadd.f32 %v767, %v702
      %v784 = vadd.f32 %v768, %v707
      %v785 = vadd.f32 %v769, %v710
      %v786 = vadd.f32 %v770, %v715
      %v787 = vadd.f32 %v771, %v718
      %v788 = vadd.f32 %v772, %v723
      %v789 = vadd.f32 %v773, %v726
      %v790 = vadd.f32 %v774, %v731
      %v791 = vadd.f32 %v775, %v734
      %v792 = vadd.f32 %v776, %v739
      %v793 = vadd.f32 %v777, %v742
      %v794 = vadd.f32 %v778, %v747
      %v795 = vadd.f32 %v779, %v750
      %v796 = vadd.f32 %v780, %v755
      %v797 = vadd.f32 %v781, %v758
      %v798 = vld [vmem:[%s4 + $0x2] sm:$0x1]
      %v799 = vlaneseq
      %v800 = vshrl.u32 %v799, 7
      %v801 = vsub.s32 0, %v800
      %v802 = vrot.slane %v798, %v801
      %v803 = vadd.f32 %v782, %v802
      %v804 = vadd.f32 %v783, %v802
      %v805 = vadd.f32 %v784, %v802
      %v806 = vadd.f32 %v785, %v802
      %v807 = vadd.f32 %v786, %v802
      %v808 = vadd.f32 %v787, %v802
      %v809 = vadd.f32 %v788, %v802
      %v810 = vadd.f32 %v789, %v802
      %v811 = vadd.f32 %v790, %v802
      %v812 = vadd.f32 %v791, %v802
      %v813 = vadd.f32 %v792, %v802
      %v814 = vadd.f32 %v793, %v802
      %v815 = vadd.f32 %v794, %v802
      %v816 = vadd.f32 %v795, %v802
      %v817 = vadd.f32 %v796, %v802
      %v818 = vadd.f32 %v797, %v802
      %vm819 = vcmask 7168
      %820 = vst.msk [vmem:[%s318] sm:$0xff] %vm819, %v803
      %821 = vst.msk [vmem:[%s318 + $0x8] sm:$0xff] %vm819, %v804
      %822 = vst.msk [vmem:[%s318 + $0x10] sm:$0xff] %vm819, %v805
      %823 = vst.msk [vmem:[%s318 + $0x18] sm:$0xff] %vm819, %v806
      %824 = vst.msk [vmem:[%s318 + $0x20] sm:$0xff] %vm819, %v807
      %825 = vst.msk [vmem:[%s318 + $0x28] sm:$0xff] %vm819, %v808
      %826 = vst.msk [vmem:[%s318 + $0x30] sm:$0xff] %vm819, %v809
      %827 = vst.msk [vmem:[%s318 + $0x38] sm:$0xff] %vm819, %v810
      %828 = vst.msk [vmem:[%s318 + $0x40] sm:$0xff] %vm819, %v811
      %829 = vst.msk [vmem:[%s318 + $0x48] sm:$0xff] %vm819, %v812
      %830 = vst.msk [vmem:[%s318 + $0x50] sm:$0xff] %vm819, %v813
      %831 = vst.msk [vmem:[%s318 + $0x58] sm:$0xff] %vm819, %v814
      %832 = vst.msk [vmem:[%s318 + $0x60] sm:$0xff] %vm819, %v815
      %833 = vst.msk [vmem:[%s318 + $0x68] sm:$0xff] %vm819, %v816
      %834 = vst.msk [vmem:[%s318 + $0x70] sm:$0xff] %vm819, %v817
      %835 = vst.msk [vmem:[%s318 + $0x78] sm:$0xff] %vm819, %v818
      %s836 = smul.u32 16, %s21
      %p837 = scmp.lt.s32.totalorder %s20, 3
      %s838 = scalar_select %p837, %s20, 3
      %p839 = scmp.lt.s32.totalorder %s836, 15
      %s840 = scalar_select %p839, %s836, 15
      %s841 = smul.addr %s838, 16
      %s842 = sadd.s32 %s840, %s841
      %s843 = smul.addr %s842, 8
      %s844 = scalar_lea.vmem %s5, %s843
      // Predicated region
      $region41: #{cnn_forward.15} parent=39 // pred_check
        %p845 = pneg %p172
      $region42: #{cnn_forward.15} parent=39 // pred_check_branch
        %847 = sbr.rel (%p845) target = $region44
      $region43: #{cnn_forward.15} parent=39 // pred_region
        %s848 = smul.u32 16, %s21
      $region44: #{cnn_forward.15} parent=39 // pred_fallthru
        _
    $region40: #{cnn_forward.15} parent=5 // pred_fallthru
      _
    %p849 = scmp.le.s32.totalorder 2, %s11
    // Predicated region
    $region45: #{cnn_forward.15} parent=5 // pred_check
      %p850 = pneg %p849
    $region46: #{cnn_forward.15} parent=5 // pred_check_branch
      %852 = sbr.rel (%p850) target = $region48
    $region47: #{cnn_forward.15} parent=5 // pred_region
      %s853 = ssub.s32 %s11, 2
      // Predicated region
      $region49: #{cnn_forward.15} parent=47 // pred_check
        %p854 = pneg %p178
      $region50: #{cnn_forward.15} parent=47 // pred_check_branch
        %856 = sbr.rel (%p854) target = $region52
      $region51: #{cnn_forward.15} parent=47 // pred_region
        %s857 = smul.u32 16, %s23
        %p858 = scmp.lt.s32.totalorder %s22, 3
        %s859 = scalar_select %p858, %s22, 3
        %p860 = scmp.lt.s32.totalorder %s857, 15
        %s861 = scalar_select %p860, %s857, 15
        %s862 = smul.addr %s859, 16
        %s863 = sadd.s32 %s861, %s862
        %s864 = smul.addr %s863, 8
        %s865 = scalar_lea.vmem %s5, %s864
      $region52: #{cnn_forward.15} parent=47 // pred_fallthru
        _
    $region48: #{cnn_forward.15} parent=5 // pred_fallthru
      _
  $region6: #{cnn_forward.15} parent=0 // loop_footer
    %s15 = sadd.s32 1, %s11
  $region7: #{cnn_forward.15} parent=0 // loop_footer_branch
    %10 = sbr.rel target = $region3
  $region8: #{cnn_forward.15} parent=0 // loop_exit
    _

// kernel: squeeze.21
$region0: #{squeeze.21}
  %s0 = inlined_call_operand.vmem [shape: f32[4,128], index: 0, kind: input, shape index: {}]
  %s1 = inlined_call_operand.vmem [shape: f32[2,2,2,8,8], index: 1, kind: output, shape index: {}]
  $region1: #{squeeze.21} parent=0
    #allocation0 [shape = 'u8[4096]{0}', space=vmem, size = 0x1000, scoped, tag = 'scoped mem for input reshape']
    %s3 = sshllo.u32 0, 4
    %v4 = vld [vmem:[%s0] sm:%s3]
    %5 = vst [vmem:[#allocation0] sm:%s3] %v4
    %v6 = vld [vmem:[#allocation0] sm:$0xf]
    %vm7 = vcmask 64512
    %8 = vst.msk [vmem:[%s1] ss:$16 sm:$0x3] %vm7, %v6
    %9 = vst.msk [vmem:[%s1] ss:$16 sm:$0xc] %vm7, %v6
    %v10 = vld [vmem:[#allocation0] sm:$0xf]
    %11 = vrot.lane.b32.xlu0 %v10, 120
    %v12 = vpop.permute.xlu0 %11
    %vm13 = vcmask 64512
    %s14 = scalar_lea.vmem %s1, 1
    %15 = vst.msk [vmem:[%s14] ss:$16 sm:$0x3] %vm13, %v12
    %s16 = scalar_lea.vmem %s1, 1
    %17 = vst.msk [vmem:[%s16] ss:$16 sm:$0xc] %vm13, %v12
    %v18 = vld [vmem:[#allocation0] sm:$0xf]
    %19 = vrot.lane.b32.xlu0 %v18, 112
    %v20 = vpop.permute.xlu0 %19
    %vm21 = vcmask 64512
    %s22 = scalar_lea.vmem %s1, 2
    %23 = vst.msk [vmem:[%s22] ss:$16 sm:$0x3] %vm21, %v20
    %s24 = scalar_lea.vmem %s1, 2
    %25 = vst.msk [vmem:[%s24] ss:$16 sm:$0xc] %vm21, %v20
    %v26 = vld [vmem:[#allocation0] sm:$0xf]
    %27 = vrot.lane.b32.xlu0 %v26, 104
    %v28 = vpop.permute.xlu0 %27
    %vm29 = vcmask 64512
    %s30 = scalar_lea.vmem %s1, 3
    %31 = vst.msk [vmem:[%s30] ss:$16 sm:$0x3] %vm29, %v28
    %s32 = scalar_lea.vmem %s1, 3
    %33 = vst.msk [vmem:[%s32] ss:$16 sm:$0xc] %vm29, %v28
    %v34 = vld [vmem:[#allocation0] sm:$0xf]
    %35 = vrot.lane.b32.xlu0 %v34, 96
    %v36 = vpop.permute.xlu0 %35
    %vm37 = vcmask 64512
    %s38 = scalar_lea.vmem %s1, 4
    %39 = vst.msk [vmem:[%s38] ss:$16 sm:$0x3] %vm37, %v36
    %s40 = scalar_lea.vmem %s1, 4
    %41 = vst.msk [vmem:[%s40] ss:$16 sm:$0xc] %vm37, %v36
    %v42 = vld [vmem:[#allocation0] sm:$0xf]
    %43 = vrot.lane.b32.xlu0 %v42, 88
    %v44 = vpop.permute.xlu0 %43
    %vm45 = vcmask 64512
    %s46 = scalar_lea.vmem %s1, 5
    %47 = vst.msk [vmem:[%s46] ss:$16 sm:$0x3] %vm45, %v44
    %s48 = scalar_lea.vmem %s1, 5
    %49 = vst.msk [vmem:[%s48] ss:$16 sm:$0xc] %vm45, %v44
    %v50 = vld [vmem:[#allocation0] sm:$0xf]
    %51 = vrot.lane.b32.xlu0 %v50, 80
    %v52 = vpop.permute.xlu0 %51
    %vm53 = vcmask 64512
    %s54 = scalar_lea.vmem %s1, 6
    %55 = vst.msk [vmem:[%s54] ss:$16 sm:$0x3] %vm53, %v52
    %s56 = scalar_lea.vmem %s1, 6
    %57 = vst.msk [vmem:[%s56] ss:$16 sm:$0xc] %vm53, %v52
    %v58 = vld [vmem:[#allocation0] sm:$0xf]
    %59 = vrot.lane.b32.xlu0 %v58, 72
    %v60 = vpop.permute.xlu0 %59
    %vm61 = vcmask 64512
    %s62 = scalar_lea.vmem %s1, 7
    %63 = vst.msk [vmem:[%s62] ss:$16 sm:$0x3] %vm61, %v60
    %s64 = scalar_lea.vmem %s1, 7
    %65 = vst.msk [vmem:[%s64] ss:$16 sm:$0xc] %vm61, %v60
    %v66 = vld [vmem:[#allocation0] sm:$0xf]
    %67 = vrot.lane.b32.xlu0 %v66, 64
    %v68 = vpop.permute.xlu0 %67
    %vm69 = vcmask 64512
    %s70 = scalar_lea.vmem %s1, 8
    %71 = vst.msk [vmem:[%s70] ss:$16 sm:$0x3] %vm69, %v68
    %s72 = scalar_lea.vmem %s1, 8
    %73 = vst.msk [vmem:[%s72] ss:$16 sm:$0xc] %vm69, %v68
    %v74 = vld [vmem:[#allocation0] sm:$0xf]
    %75 = vrot.lane.b32.xlu0 %v74, 56
    %v76 = vpop.permute.xlu0 %75
    %vm77 = vcmask 64512
    %s78 = scalar_lea.vmem %s1, 9
    %79 = vst.msk [vmem:[%s78] ss:$16 sm:$0x3] %vm77, %v76
    %s80 = scalar_lea.vmem %s1, 9
    %81 = vst.msk [vmem:[%s80] ss:$16 sm:$0xc] %vm77, %v76
    %v82 = vld [vmem:[#allocation0] sm:$0xf]
    %83 = vrot.lane.b32.xlu0 %v82, 48
    %v84 = vpop.permute.xlu0 %83
    %vm85 = vcmask 64512
    %s86 = scalar_lea.vmem %s1, 10
    %87 = vst.msk [vmem:[%s86] ss:$16 sm:$0x3] %vm85, %v84
    %s88 = scalar_lea.vmem %s1, 10
    %89 = vst.msk [vmem:[%s88] ss:$16 sm:$0xc] %vm85, %v84
    %v90 = vld [vmem:[#allocation0] sm:$0xf]
    %91 = vrot.lane.b32.xlu0 %v90, 40
    %v92 = vpop.permute.xlu0 %91
    %vm93 = vcmask 64512
    %s94 = scalar_lea.vmem %s1, 11
    %95 = vst.msk [vmem:[%s94] ss:$16 sm:$0x3] %vm93, %v92
    %s96 = scalar_lea.vmem %s1, 11
    %97 = vst.msk [vmem:[%s96] ss:$16 sm:$0xc] %vm93, %v92
    %v98 = vld [vmem:[#allocation0] sm:$0xf]
    %99 = vrot.lane.b32.xlu0 %v98, 32
    %v100 = vpop.permute.xlu0 %99
    %vm101 = vcmask 64512
    %s102 = scalar_lea.vmem %s1, 12
    %103 = vst.msk [vmem:[%s102] ss:$16 sm:$0x3] %vm101, %v100
    %s104 = scalar_lea.vmem %s1, 12
    %105 = vst.msk [vmem:[%s104] ss:$16 sm:$0xc] %vm101, %v100
    %v106 = vld [vmem:[#allocation0] sm:$0xf]
    %107 = vrot.lane.b32.xlu0 %v106, 24
    %v108 = vpop.permute.xlu0 %107
    %vm109 = vcmask 64512
    %s110 = scalar_lea.vmem %s1, 13
    %111 = vst.msk [vmem:[%s110] ss:$16 sm:$0x3] %vm109, %v108
    %s112 = scalar_lea.vmem %s1, 13
    %113 = vst.msk [vmem:[%s112] ss:$16 sm:$0xc] %vm109, %v108
    %v114 = vld [vmem:[#allocation0] sm:$0xf]
    %115 = vrot.lane.b32.xlu0 %v114, 16
    %v116 = vpop.permute.xlu0 %115
    %vm117 = vcmask 64512
    %s118 = scalar_lea.vmem %s1, 14
    %119 = vst.msk [vmem:[%s118] ss:$16 sm:$0x3] %vm117, %v116
    %s120 = scalar_lea.vmem %s1, 14
    %121 = vst.msk [vmem:[%s120] ss:$16 sm:$0xc] %vm117, %v116
    %v122 = vld [vmem:[#allocation0] sm:$0xf]
    %123 = vrot.lane.b32.xlu0 %v122, 8
    %v124 = vpop.permute.xlu0 %123
    %vm125 = vcmask 64512
    %s126 = scalar_lea.vmem %s1, 15
    %127 = vst.msk [vmem:[%s126] ss:$16 sm:$0x3] %vm125, %v124
    %s128 = scalar_lea.vmem %s1, 15
    %129 = vst.msk [vmem:[%s128] ss:$16 sm:$0xc] %vm125, %v124

</llo_original>
